<compile_context>
chip_gen: v5e
topology: v5e:2x2
jax: 0.10.0
libtpu: 0.0.40
codegen_flags: <defaults>
</compile_context>

<pallas_src>
import jax
import jax.numpy as jnp
from jax.experimental import pallas as pl
from jax.experimental.pallas import tpu as pltpu

BN_EPS = 1e-5
ACT_DTYPE = jnp.bfloat16     # inter-kernel activations / conv-weight storage
MXU_DTYPE = jnp.bfloat16     # dtype fed to the MXU (accumulation stays f32)


# --------------------------- fused Pallas kernels -----------------------------

def _make_stem_kernel(H, W, Cin, P):
    """3x3 stride-1 conv + bias for one whole image (9 tall MXU dots)."""
    HW = H * W

    def kernel(x_ref, w_ref, b_ref, o_ref, pad):
        pad[...] = jnp.zeros(pad.shape, pad.dtype)
        pad[1:H + 1, 8:8 + W, :] = x_ref[0].astype(pad.dtype)
        acc = jnp.broadcast_to(b_ref[...], (HW, P)).astype(jnp.float32)
        for dh in range(3):
            for dw in range(3):
                patch = pad[dh:dh + H, 7 + dw:7 + dw + W, :].reshape(HW, Cin)
                acc = acc + jnp.dot(patch.astype(MXU_DTYPE), w_ref[dh, dw],
                                    preferred_element_type=jnp.float32)
        o_ref[0] = acc.reshape(H, W, P).astype(o_ref.dtype)

    return kernel


def _make_block_kernel(H, W, Cin, P, stride, has_sc):
    """Fused wide_basic block for one image:
       BN1+ReLU, conv1 3x3, (dropout=id), BN2+ReLU, conv2 3x3 (stride folded),
       1x1 shortcut (or identity), residual add."""
    HW = H * W
    Ho, Wo = H // stride, W // stride

    def kernel(*refs):
        it = iter(refs)
        x_ref = next(it)
        s1_ref, t1_ref = next(it), next(it)
        w1_ref, b1_ref = next(it), next(it)
        s2_ref, t2_ref = next(it), next(it)
        w2_ref, b2_ref = next(it), next(it)
        wsc_ref = bsc_ref = sel_ref = None
        if has_sc:
            wsc_ref, bsc_ref = next(it), next(it)
        if stride != 1:
            sel_ref = next(it)
        o_ref = next(it)
        pad1 = next(it)
        pad2 = next(it)

        # ---- BN1 + ReLU, written into a zero halo buffer in VMEM ----
        x = x_ref[0].astype(jnp.float32)                       # (H, W, Cin)
        a1 = jnp.maximum(x * s1_ref[...] + t1_ref[...], 0.0)
        pad1[...] = jnp.zeros(pad1.shape, pad1.dtype)
        pad1[1:H + 1, 8:8 + W, :] = a1

        # ---- conv1: 3x3 stride 1; f32 accumulator seeded with the bias ----
        acc1 = jnp.broadcast_to(b1_ref[...], (HW, P)).astype(jnp.float32)
        for dh in range(3):
            for dw in range(3):
                patch = pad1[dh:dh + H, 7 + dw:7 + dw + W, :].reshape(HW, Cin)
                acc1 = acc1 + jnp.dot(patch.astype(MXU_DTYPE), w1_ref[dh, dw],
                                      preferred_element_type=jnp.float32)
        # (dropout: inference-mode identity)

        # ---- BN2 + ReLU into the second halo buffer ----
        a2 = jnp.maximum(acc1 * s2_ref[...] + t2_ref[...], 0.0)
        pad2[...] = jnp.zeros(pad2.shape, pad2.dtype)
        pad2[1:H + 1, 8:8 + W, :] = a2.reshape(H, W, P)

        # ---- conv2: 3x3 accumulated at stride-1 resolution ----
        acc2 = jnp.zeros((HW, P), jnp.float32)
        for dh in range(3):
            for dw in range(3):
                patch = pad2[dh:dh + H, 7 + dw:7 + dw + W, :].reshape(HW, P)
                acc2 = acc2 + jnp.dot(patch.astype(MXU_DTYPE), w2_ref[dh, dw],
                                      preferred_element_type=jnp.float32)

        # ---- shortcut + residual add, fused epilogue ----
        if has_sc:
            x_flat = x_ref[0].reshape(HW, Cin)                 # bf16 MXU operand
            sc = jnp.dot(x_flat, wsc_ref[...],
                         preferred_element_type=jnp.float32)
            full = acc2 + sc + b2_ref[...] + bsc_ref[...]
        else:
            full = acc2 + x.reshape(HW, Cin) + b2_ref[...]

        if stride != 1:
            # Exact stride-s subsample as a 0/1 selection matmul (stays in VMEM,
            # no full-resolution HBM writeback, no host-side strided slice).
            out = jnp.dot(sel_ref[...], full,
                          preferred_element_type=jnp.float32)
        else:
            out = full
        o_ref[0] = out.reshape(Ho, Wo, P).astype(o_ref.dtype)

    return kernel


def _head_kernel(x_ref, s_ref, t_ref, w_ref, b_ref, o_ref):
    # relu(bn(x)) -> global 8x8 average pool -> linear, fused in one kernel.
    x = x_ref[...].astype(jnp.float32)                         # (N, 8, 8, C)
    y = jnp.maximum(x * s_ref[...] + t_ref[...], 0.0)
    pooled = jnp.mean(y, axis=(1, 2))                          # (N, C)
    o_ref[...] = (jnp.dot(pooled, w_ref[...],
                          preferred_element_type=jnp.float32)
                  + b_ref[...]).astype(o_ref.dtype)


# --------------------------- kernel wrappers ----------------------------------

def _fold_bn(bn):
    scale = bn['gamma'] * jax.lax.rsqrt(bn['var'] + BN_EPS)
    shift = bn['beta'] - bn['mean'] * scale
    return scale, shift


def _subsample_matrix(H, W, stride):
    """(Ho*Wo, H*W) 0/1 matrix selecting every `stride`-th pixel (exact)."""
    Ho, Wo = H // stride, W // stride
    r = jnp.arange(Ho * Wo, dtype=jnp.int32)
    src = (r // Wo) * (stride * W) + (r % Wo) * stride
    cols = jnp.arange(H * W, dtype=jnp.int32)
    return (src[:, None] == cols[None, :]).astype(jnp.float32)


def stem_conv3x3(x, w, b):
    """x: (N, H, W, Cin) NHWC, w: (3,3,Cin,P) HWIO, b: (P,)."""
    N, H, W, Cin = x.shape
    P = w.shape[-1]
    return pl.pallas_call(
        _make_stem_kernel(H, W, Cin, P),
        out_shape=jax.ShapeDtypeStruct((N, H, W, P), ACT_DTYPE),
        grid=(N,),
        in_specs=[pl.BlockSpec((1, H, W, Cin), lambda n: (n, 0, 0, 0)),
                  pl.BlockSpec((3, 3, Cin, P), lambda n: (0, 0, 0, 0)),
                  pl.BlockSpec((1, P), lambda n: (0, 0))],
        out_specs=pl.BlockSpec((1, H, W, P), lambda n: (n, 0, 0, 0)),
        scratch_shapes=[pltpu.VMEM((H + 2, W + 16, Cin), jnp.float32)],
        compiler_params=pltpu.CompilerParams(
            dimension_semantics=("parallel",)),
    )(x, w.astype(MXU_DTYPE), b.reshape(1, P))


def wide_basic_block(x, p):
    """One fused wide_basic block.  x: (N, H, W, Cin) NHWC bf16 activations."""
    N, H, W, Cin = x.shape
    P = p['conv1_w'].shape[-1]
    stride = p['stride']
    has_sc = 'sc_w' in p
    Ho, Wo = H // stride, W // stride

    s1, t1 = _fold_bn(p['bn1'])
    s2, t2 = _fold_bn(p['bn2'])

    inputs = [x,
              s1.reshape(1, Cin), t1.reshape(1, Cin),
              p['conv1_w'].astype(MXU_DTYPE), p['conv1_b'].reshape(1, P),
              s2.reshape(1, P), t2.reshape(1, P),
              p['conv2_w'].astype(MXU_DTYPE), p['conv2_b'].reshape(1, P)]
    in_specs = [
        pl.BlockSpec((1, H, W, Cin), lambda n: (n, 0, 0, 0)),
        pl.BlockSpec((1, Cin), lambda n: (0, 0)),
        pl.BlockSpec((1, Cin), lambda n: (0, 0)),
        pl.BlockSpec((3, 3, Cin, P), lambda n: (0, 0, 0, 0)),
        pl.BlockSpec((1, P), lambda n: (0, 0)),
        pl.BlockSpec((1, P), lambda n: (0, 0)),
        pl.BlockSpec((1, P), lambda n: (0, 0)),
        pl.BlockSpec((3, 3, P, P), lambda n: (0, 0, 0, 0)),
        pl.BlockSpec((1, P), lambda n: (0, 0)),
    ]
    if has_sc:
        inputs += [p['sc_w'].astype(MXU_DTYPE), p['sc_b'].reshape(1, P)]
        in_specs += [pl.BlockSpec((Cin, P), lambda n: (0, 0)),
                     pl.BlockSpec((1, P), lambda n: (0, 0))]
    if stride != 1:
        sel = _subsample_matrix(H, W, stride)
        inputs += [sel]
        in_specs += [pl.BlockSpec(sel.shape, lambda n: (0, 0))]

    return pl.pallas_call(
        _make_block_kernel(H, W, Cin, P, stride, has_sc),
        out_shape=jax.ShapeDtypeStruct((N, Ho, Wo, P), ACT_DTYPE),
        grid=(N,),
        in_specs=in_specs,
        out_specs=pl.BlockSpec((1, Ho, Wo, P), lambda n: (n, 0, 0, 0)),
        scratch_shapes=[pltpu.VMEM((H + 2, W + 16, Cin), jnp.float32),
                        pltpu.VMEM((H + 2, W + 16, P), jnp.float32)],
        compiler_params=pltpu.CompilerParams(
            dimension_semantics=("parallel",)),
    )(*inputs)


def head(x, bn, lin_w, lin_b):
    """Fused final BN+ReLU + global 8x8 avg-pool + linear."""
    N, H, W, C = x.shape
    assert H == 8 and W == 8  # F.avg_pool2d(out, 8) on 8x8 == global mean
    nc = lin_w.shape[1]
    scale, shift = _fold_bn(bn)
    return pl.pallas_call(
        _head_kernel,
        out_shape=jax.ShapeDtypeStruct((N, nc), jnp.float32),
        grid=(1,),
        in_specs=[pl.BlockSpec((N, H, W, C), lambda i: (0, 0, 0, 0)),
                  pl.BlockSpec((1, C), lambda i: (0, 0)),
                  pl.BlockSpec((1, C), lambda i: (0, 0)),
                  pl.BlockSpec((C, nc), lambda i: (0, 0)),
                  pl.BlockSpec((1, nc), lambda i: (0, 0))],
        out_specs=pl.BlockSpec((N, nc), lambda i: (0, 0)),
    )(x, scale.reshape(1, C), shift.reshape(1, C), lin_w, lin_b.reshape(1, nc))


# --------------------------- parameter init -----------------------------------

def _conv_init(key, kh, kw, cin, cout):
    kw_, kb = jax.random.split(key)
    fan_in = kh * kw * cin
    w = jax.random.normal(kw_, (kh, kw, cin, cout), jnp.float32) * jnp.sqrt(2.0 / fan_in)
    b = jax.random.normal(kb, (cout,), jnp.float32) * 0.01
    return w, b


def _bn_init(key, c):
    k1, k2, k3, k4 = jax.random.split(key, 4)
    return dict(
        gamma=1.0 + 0.1 * jax.random.normal(k1, (c,), jnp.float32),
        beta=0.1 * jax.random.normal(k2, (c,), jnp.float32),
        mean=0.1 * jax.random.normal(k3, (c,), jnp.float32),
        var=0.5 + jax.random.uniform(k4, (c,), jnp.float32),
    )


def _basic_block_init(key, in_planes, planes, stride):
    keys = jax.random.split(key, 5)
    p = {'bn1': _bn_init(keys[0], in_planes),
         'bn2': _bn_init(keys[1], planes),
         'stride': stride}
    p['conv1_w'], p['conv1_b'] = _conv_init(keys[2], 3, 3, in_planes, planes)
    p['conv2_w'], p['conv2_b'] = _conv_init(keys[3], 3, 3, planes, planes)
    if stride != 1 or in_planes != planes:
        w, b = _conv_init(keys[4], 1, 1, in_planes, planes)
        p['sc_w'], p['sc_b'] = w.reshape(in_planes, planes), b
    return p


def init_wide_resnet(key, depth, widen_factor, num_classes):
    assert (depth - 4) % 6 == 0, 'Wide-resnet depth should be 6n+4'
    n = (depth - 4) // 6
    k = widen_factor
    stages = [16, 16 * k, 32 * k, 64 * k]
    keys = jax.random.split(key, 8)
    params = {}
    params['conv1_w'], params['conv1_b'] = _conv_init(keys[0], 3, 3, 3, stages[0])
    in_planes = stages[0]
    for li, (planes, stride) in enumerate(zip(stages[1:], (1, 2, 2)), start=1):
        blocks = []
        strides = [stride] + [1] * (n - 1)
        for bi, s in enumerate(strides):
            blocks.append(_basic_block_init(jax.random.fold_in(keys[li], bi),
                                            in_planes, planes, s))
            in_planes = planes
        params[f'layer{li}'] = blocks
    params['bn_final'] = _bn_init(keys[4], stages[3])
    kw_, kb = jax.random.split(keys[5])
    params['lin_w'] = jax.random.normal(kw_, (stages[3], num_classes),
                                        jnp.float32) / jnp.sqrt(stages[3])
    params['lin_b'] = jax.random.normal(kb, (num_classes,), jnp.float32) * 0.01
    return params


# --------------------------- forward pass -------------------------------------

def wide_resnet_forward(params, x_nchw, dataset='cifar10'):
    """x_nchw: (N, 3, H, W) float32, PyTorch layout."""
    x = jnp.transpose(x_nchw, (0, 2, 3, 1)).astype(ACT_DTYPE)   # NCHW -> NHWC
    h = stem_conv3x3(x, params['conv1_w'], params['conv1_b'])
    for li in (1, 2, 3):
        for bp in params[f'layer{li}']:
            h = wide_basic_block(h, bp)
    if dataset in ('cifar10', 'cifar100'):
        return head(h, params['bn_final'], params['lin_w'], params['lin_b'])
    # TODO(synk): linear2 path (nStages[3]*4 features) for non-CIFAR datasets.
    raise NotImplementedError


if __name__ == "__main__":
    key = jax.random.PRNGKey(0)
    pkey, xkey = jax.random.split(key)
    # Wide-ResNet 10x1 (smallest legal depth: 6*1+4), cifar10 head.
    params = init_wide_resnet(pkey, depth=10, widen_factor=1, num_classes=10)
    x = jax.random.normal(xkey, (2, 3, 32, 32), jnp.float32)     # NCHW, like PyTorch
    logits = wide_resnet_forward(params, x, dataset='cifar10')
    logits = jax.block_until_ready(logits)
    assert logits.shape == (2, 10) and logits.dtype == jnp.float32
    print("KERNEL_OK")
</pallas_src>

<mosaic_0001>
module attributes {stable_mosaic.version = 11 : i64} {
  func.func @kernel(%arg0: i32, %arg1: memref<1x32x32x3xbf16, #tpu.memory_space<vmem>>, %arg2: memref<3x3x3x16xbf16, #tpu.memory_space<vmem>>, %arg3: memref<1x16xf32, #tpu.memory_space<vmem>>, %arg4: memref<1x32x32x16xbf16, #tpu.memory_space<vmem>>, %arg5: memref<34x48x3xf32, #tpu.memory_space<vmem>>) attributes {dimension_semantics = [#tpu.dimension_semantics<parallel>], iteration_bounds = array<i64: 2>, scalar_prefetch = 0 : i64, scratch_operands = 1 : i64, tpu.core_type = #tpu.core_type<tc>, window_params = [{transform_indices = @transform_0, window_bounds = array<i64: 1, 32, 32, 3>}, {pipeline_mode = #tpu.pipeline_mode<synchronous>, transform_indices = @transform_1, window_bounds = array<i64: 3, 3, 3, 16>}, {pipeline_mode = #tpu.pipeline_mode<synchronous>, transform_indices = @transform_2, window_bounds = array<i64: 1, 16>}, {transform_indices = @transform_3, window_bounds = array<i64: 1, 32, 32, 16>}]} {
    %cst = arith.constant 0.000000e+00 : f32
    %0 = vector.broadcast %cst : f32 to vector<34x48x3xf32>
    %c0 = arith.constant 0 : index
    %c0_0 = arith.constant 0 : index
    %c0_1 = arith.constant 0 : index
    %1 = vector.load %arg5[%c0, %c0_0, %c0_1] : memref<34x48x3xf32, #tpu.memory_space<vmem>>, vector<34x48x3xf32>
    tpu.vector_store %arg5[%c0, %c0_0, %c0_1], %0 {strides = array<i32>} : memref<34x48x3xf32, #tpu.memory_space<vmem>>, vector<34x48x3xf32>,
    %c0_2 = arith.constant 0 : index
    %c0_3 = arith.constant 0 : index
    %c0_4 = arith.constant 0 : index
    %c0_5 = arith.constant 0 : index
    %2 = vector.load %arg1[%c0_2, %c0_3, %c0_4, %c0_5] : memref<1x32x32x3xbf16, #tpu.memory_space<vmem>>, vector<1x32x32x3xbf16>
    %3 = vector.shape_cast %2 : vector<1x32x32x3xbf16> to vector<32x32x3xbf16>
    %4 = arith.extf %3 : vector<32x32x3xbf16> to vector<32x32x3xf32>
    %c1 = arith.constant 1 : index
    %c8 = arith.constant 8 : index
    %c0_6 = arith.constant 0 : index
    %5 = vector.load %arg5[%c1, %c8, %c0_6] : memref<34x48x3xf32, #tpu.memory_space<vmem>>, vector<32x32x3xf32>
    tpu.vector_store %arg5[%c1, %c8, %c0_6], %4 {strides = array<i32>} : memref<34x48x3xf32, #tpu.memory_space<vmem>>, vector<32x32x3xf32>,
    %c0_7 = arith.constant 0 : index
    %c0_8 = arith.constant 0 : index
    %6 = vector.load %arg3[%c0_7, %c0_8] : memref<1x16xf32, #tpu.memory_space<vmem>>, vector<1x16xf32>
    %7 = vector.shape_cast %6 : vector<1x16xf32> to vector<1x16xf32>
    %8 = vector.broadcast %7 : vector<1x16xf32> to vector<1024x16xf32>
    %c0_9 = arith.constant 0 : index
    %c7 = arith.constant 7 : index
    %c0_10 = arith.constant 0 : index
    %9 = vector.load %arg5[%c0_9, %c7, %c0_10] : memref<34x48x3xf32, #tpu.memory_space<vmem>>, vector<32x32x3xf32>
    %10 = vector.shape_cast %9 : vector<32x32x3xf32> to vector<1024x3xf32>
    %11 = arith.truncf %10 : vector<1024x3xf32> to vector<1024x3xbf16>
    %c0_11 = arith.constant 0 : index
    %c0_12 = arith.constant 0 : index
    %c0_13 = arith.constant 0 : index
    %c0_14 = arith.constant 0 : index
    %12 = vector.load %arg2[%c0_11, %c0_12, %c0_13, %c0_14] : memref<3x3x3x16xbf16, #tpu.memory_space<vmem>>, vector<1x1x3x16xbf16>
    %13 = vector.shape_cast %12 : vector<1x1x3x16xbf16> to vector<3x16xbf16>
    %cst_15 = arith.constant dense<0.000000e+00> : vector<1024x16xf32>
    %14 = tpu.matmul %11, %13, %cst_15 {dimension_numbers = #tpu.dot_dimension_numbers<[1], [0], [0], [1], [0, 0, 1, 1], [], []>} : vector<1024x3xbf16>, vector<3x16xbf16>, vector<1024x16xf32> -> vector<1024x16xf32>
    %15 = arith.addf %8, %14 : vector<1024x16xf32>
    %c0_16 = arith.constant 0 : index
    %c8_17 = arith.constant 8 : index
    %c0_18 = arith.constant 0 : index
    %16 = vector.load %arg5[%c0_16, %c8_17, %c0_18] : memref<34x48x3xf32, #tpu.memory_space<vmem>>, vector<32x32x3xf32>
    %17 = vector.shape_cast %16 : vector<32x32x3xf32> to vector<1024x3xf32>
    %18 = arith.truncf %17 : vector<1024x3xf32> to vector<1024x3xbf16>
    %c0_19 = arith.constant 0 : index
    %c1_20 = arith.constant 1 : index
    %c0_21 = arith.constant 0 : index
    %c0_22 = arith.constant 0 : index
    %19 = vector.load %arg2[%c0_19, %c1_20, %c0_21, %c0_22] : memref<3x3x3x16xbf16, #tpu.memory_space<vmem>>, vector<1x1x3x16xbf16>
    %20 = vector.shape_cast %19 : vector<1x1x3x16xbf16> to vector<3x16xbf16>
    %cst_23 = arith.constant dense<0.000000e+00> : vector<1024x16xf32>
    %21 = tpu.matmul %18, %20, %cst_23 {dimension_numbers = #tpu.dot_dimension_numbers<[1], [0], [0], [1], [0, 0, 1, 1], [], []>} : vector<1024x3xbf16>, vector<3x16xbf16>, vector<1024x16xf32> -> vector<1024x16xf32>
    %22 = arith.addf %15, %21 : vector<1024x16xf32>
    %c0_24 = arith.constant 0 : index
    %c9 = arith.constant 9 : index
    %c0_25 = arith.constant 0 : index
    %23 = vector.load %arg5[%c0_24, %c9, %c0_25] : memref<34x48x3xf32, #tpu.memory_space<vmem>>, vector<32x32x3xf32>
    %24 = vector.shape_cast %23 : vector<32x32x3xf32> to vector<1024x3xf32>
    %25 = arith.truncf %24 : vector<1024x3xf32> to vector<1024x3xbf16>
    %c0_26 = arith.constant 0 : index
    %c2 = arith.constant 2 : index
    %c0_27 = arith.constant 0 : index
    %c0_28 = arith.constant 0 : index
    %26 = vector.load %arg2[%c0_26, %c2, %c0_27, %c0_28] : memref<3x3x3x16xbf16, #tpu.memory_space<vmem>>, vector<1x1x3x16xbf16>
    %27 = vector.shape_cast %26 : vector<1x1x3x16xbf16> to vector<3x16xbf16>
    %cst_29 = arith.constant dense<0.000000e+00> : vector<1024x16xf32>
    %28 = tpu.matmul %25, %27, %cst_29 {dimension_numbers = #tpu.dot_dimension_numbers<[1], [0], [0], [1], [0, 0, 1, 1], [], []>} : vector<1024x3xbf16>, vector<3x16xbf16>, vector<1024x16xf32> -> vector<1024x16xf32>
    %29 = arith.addf %22, %28 : vector<1024x16xf32>
    %c1_30 = arith.constant 1 : index
    %c7_31 = arith.constant 7 : index
    %c0_32 = arith.constant 0 : index
    %30 = vector.load %arg5[%c1_30, %c7_31, %c0_32] : memref<34x48x3xf32, #tpu.memory_space<vmem>>, vector<32x32x3xf32>
    %31 = vector.shape_cast %30 : vector<32x32x3xf32> to vector<1024x3xf32>
    %32 = arith.truncf %31 : vector<1024x3xf32> to vector<1024x3xbf16>
    %c1_33 = arith.constant 1 : index
    %c0_34 = arith.constant 0 : index
    %c0_35 = arith.constant 0 : index
    %c0_36 = arith.constant 0 : index
    %33 = vector.load %arg2[%c1_33, %c0_34, %c0_35, %c0_36] : memref<3x3x3x16xbf16, #tpu.memory_space<vmem>>, vector<1x1x3x16xbf16>
    %34 = vector.shape_cast %33 : vector<1x1x3x16xbf16> to vector<3x16xbf16>
    %cst_37 = arith.constant dense<0.000000e+00> : vector<1024x16xf32>
    %35 = tpu.matmul %32, %34, %cst_37 {dimension_numbers = #tpu.dot_dimension_numbers<[1], [0], [0], [1], [0, 0, 1, 1], [], []>} : vector<1024x3xbf16>, vector<3x16xbf16>, vector<1024x16xf32> -> vector<1024x16xf32>
    %36 = arith.addf %29, %35 : vector<1024x16xf32>
    %c1_38 = arith.constant 1 : index
    %c8_39 = arith.constant 8 : index
    %c0_40 = arith.constant 0 : index
    %37 = vector.load %arg5[%c1_38, %c8_39, %c0_40] : memref<34x48x3xf32, #tpu.memory_space<vmem>>, vector<32x32x3xf32>
    %38 = vector.shape_cast %37 : vector<32x32x3xf32> to vector<1024x3xf32>
    %39 = arith.truncf %38 : vector<1024x3xf32> to vector<1024x3xbf16>
    %c1_41 = arith.constant 1 : index
    %c1_42 = arith.constant 1 : index
    %c0_43 = arith.constant 0 : index
    %c0_44 = arith.constant 0 : index
    %40 = vector.load %arg2[%c1_41, %c1_42, %c0_43, %c0_44] : memref<3x3x3x16xbf16, #tpu.memory_space<vmem>>, vector<1x1x3x16xbf16>
    %41 = vector.shape_cast %40 : vector<1x1x3x16xbf16> to vector<3x16xbf16>
    %cst_45 = arith.constant dense<0.000000e+00> : vector<1024x16xf32>
    %42 = tpu.matmul %39, %41, %cst_45 {dimension_numbers = #tpu.dot_dimension_numbers<[1], [0], [0], [1], [0, 0, 1, 1], [], []>} : vector<1024x3xbf16>, vector<3x16xbf16>, vector<1024x16xf32> -> vector<1024x16xf32>
    %43 = arith.addf %36, %42 : vector<1024x16xf32>
    %c1_46 = arith.constant 1 : index
    %c9_47 = arith.constant 9 : index
    %c0_48 = arith.constant 0 : index
    %44 = vector.load %arg5[%c1_46, %c9_47, %c0_48] : memref<34x48x3xf32, #tpu.memory_space<vmem>>, vector<32x32x3xf32>
    %45 = vector.shape_cast %44 : vector<32x32x3xf32> to vector<1024x3xf32>
    %46 = arith.truncf %45 : vector<1024x3xf32> to vector<1024x3xbf16>
    %c1_49 = arith.constant 1 : index
    %c2_50 = arith.constant 2 : index
    %c0_51 = arith.constant 0 : index
    %c0_52 = arith.constant 0 : index
    %47 = vector.load %arg2[%c1_49, %c2_50, %c0_51, %c0_52] : memref<3x3x3x16xbf16, #tpu.memory_space<vmem>>, vector<1x1x3x16xbf16>
    %48 = vector.shape_cast %47 : vector<1x1x3x16xbf16> to vector<3x16xbf16>
    %cst_53 = arith.constant dense<0.000000e+00> : vector<1024x16xf32>
    %49 = tpu.matmul %46, %48, %cst_53 {dimension_numbers = #tpu.dot_dimension_numbers<[1], [0], [0], [1], [0, 0, 1, 1], [], []>} : vector<1024x3xbf16>, vector<3x16xbf16>, vector<1024x16xf32> -> vector<1024x16xf32>
    %50 = arith.addf %43, %49 : vector<1024x16xf32>
    %c2_54 = arith.constant 2 : index
    %c7_55 = arith.constant 7 : index
    %c0_56 = arith.constant 0 : index
    %51 = vector.load %arg5[%c2_54, %c7_55, %c0_56] : memref<34x48x3xf32, #tpu.memory_space<vmem>>, vector<32x32x3xf32>
    %52 = vector.shape_cast %51 : vector<32x32x3xf32> to vector<1024x3xf32>
    %53 = arith.truncf %52 : vector<1024x3xf32> to vector<1024x3xbf16>
    %c2_57 = arith.constant 2 : index
    %c0_58 = arith.constant 0 : index
    %c0_59 = arith.constant 0 : index
    %c0_60 = arith.constant 0 : index
    %54 = vector.load %arg2[%c2_57, %c0_58, %c0_59, %c0_60] : memref<3x3x3x16xbf16, #tpu.memory_space<vmem>>, vector<1x1x3x16xbf16>
    %55 = vector.shape_cast %54 : vector<1x1x3x16xbf16> to vector<3x16xbf16>
    %cst_61 = arith.constant dense<0.000000e+00> : vector<1024x16xf32>
    %56 = tpu.matmul %53, %55, %cst_61 {dimension_numbers = #tpu.dot_dimension_numbers<[1], [0], [0], [1], [0, 0, 1, 1], [], []>} : vector<1024x3xbf16>, vector<3x16xbf16>, vector<1024x16xf32> -> vector<1024x16xf32>
    %57 = arith.addf %50, %56 : vector<1024x16xf32>
    %c2_62 = arith.constant 2 : index
    %c8_63 = arith.constant 8 : index
    %c0_64 = arith.constant 0 : index
    %58 = vector.load %arg5[%c2_62, %c8_63, %c0_64] : memref<34x48x3xf32, #tpu.memory_space<vmem>>, vector<32x32x3xf32>
    %59 = vector.shape_cast %58 : vector<32x32x3xf32> to vector<1024x3xf32>
    %60 = arith.truncf %59 : vector<1024x3xf32> to vector<1024x3xbf16>
    %c2_65 = arith.constant 2 : index
    %c1_66 = arith.constant 1 : index
    %c0_67 = arith.constant 0 : index
    %c0_68 = arith.constant 0 : index
    %61 = vector.load %arg2[%c2_65, %c1_66, %c0_67, %c0_68] : memref<3x3x3x16xbf16, #tpu.memory_space<vmem>>, vector<1x1x3x16xbf16>
    %62 = vector.shape_cast %61 : vector<1x1x3x16xbf16> to vector<3x16xbf16>
    %cst_69 = arith.constant dense<0.000000e+00> : vector<1024x16xf32>
    %63 = tpu.matmul %60, %62, %cst_69 {dimension_numbers = #tpu.dot_dimension_numbers<[1], [0], [0], [1], [0, 0, 1, 1], [], []>} : vector<1024x3xbf16>, vector<3x16xbf16>, vector<1024x16xf32> -> vector<1024x16xf32>
    %64 = arith.addf %57, %63 : vector<1024x16xf32>
    %c2_70 = arith.constant 2 : index
    %c9_71 = arith.constant 9 : index
    %c0_72 = arith.constant 0 : index
    %65 = vector.load %arg5[%c2_70, %c9_71, %c0_72] : memref<34x48x3xf32, #tpu.memory_space<vmem>>, vector<32x32x3xf32>
    %66 = vector.shape_cast %65 : vector<32x32x3xf32> to vector<1024x3xf32>
    %67 = arith.truncf %66 : vector<1024x3xf32> to vector<1024x3xbf16>
    %c2_73 = arith.constant 2 : index
    %c2_74 = arith.constant 2 : index
    %c0_75 = arith.constant 0 : index
    %c0_76 = arith.constant 0 : index
    %68 = vector.load %arg2[%c2_73, %c2_74, %c0_75, %c0_76] : memref<3x3x3x16xbf16, #tpu.memory_space<vmem>>, vector<1x1x3x16xbf16>
    %69 = vector.shape_cast %68 : vector<1x1x3x16xbf16> to vector<3x16xbf16>
    %cst_77 = arith.constant dense<0.000000e+00> : vector<1024x16xf32>
    %70 = tpu.matmul %67, %69, %cst_77 {dimension_numbers = #tpu.dot_dimension_numbers<[1], [0], [0], [1], [0, 0, 1, 1], [], []>} : vector<1024x3xbf16>, vector<3x16xbf16>, vector<1024x16xf32> -> vector<1024x16xf32>
    %71 = arith.addf %64, %70 : vector<1024x16xf32>
    %72 = vector.shape_cast %71 : vector<1024x16xf32> to vector<32x32x16xf32>
    %73 = arith.truncf %72 : vector<32x32x16xf32> to vector<32x32x16xbf16>
    %c0_78 = arith.constant 0 : index
    %c0_79 = arith.constant 0 : index
    %c0_80 = arith.constant 0 : index
    %c0_81 = arith.constant 0 : index
    %74 = vector.load %arg4[%c0_78, %c0_79, %c0_80, %c0_81] : memref<1x32x32x16xbf16, #tpu.memory_space<vmem>>, vector<1x32x32x16xbf16>
    %75 = vector.shape_cast %74 : vector<1x32x32x16xbf16> to vector<32x32x16xbf16>
    %76 = vector.shape_cast %73 : vector<32x32x16xbf16> to vector<1x32x32x16xbf16>
    tpu.vector_store %arg4[%c0_78, %c0_79, %c0_80, %c0_81], %76 {strides = array<i32>} : memref<1x32x32x16xbf16, #tpu.memory_space<vmem>>, vector<1x32x32x16xbf16>,
    return
  }
  func.func @transform_0(%arg0: i32) -> (i32, i32, i32, i32) {
    %c0_i32 = arith.constant 0 : i32
    %c0_i32_0 = arith.constant 0 : i32
    %c0_i32_1 = arith.constant 0 : i32
    %c0_i32_2 = arith.constant 0 : i32
    return %arg0, %c0_i32, %c0_i32_0, %c0_i32_1 : i32, i32, i32, i32
  }
  func.func @transform_1(%arg0: i32) -> (i32, i32, i32, i32) {
    %c0_i32 = arith.constant 0 : i32
    %c0_i32_0 = arith.constant 0 : i32
    %c0_i32_1 = arith.constant 0 : i32
    %c0_i32_2 = arith.constant 0 : i32
    %c0_i32_3 = arith.constant 0 : i32
    return %c0_i32, %c0_i32_0, %c0_i32_1, %c0_i32_2 : i32, i32, i32, i32
  }
  func.func @transform_2(%arg0: i32) -> (i32, i32) {
    %c0_i32 = arith.constant 0 : i32
    %c0_i32_0 = arith.constant 0 : i32
    %c0_i32_1 = arith.constant 0 : i32
    return %c0_i32, %c0_i32_0 : i32, i32
  }
  func.func @transform_3(%arg0: i32) -> (i32, i32, i32, i32) {
    %c0_i32 = arith.constant 0 : i32
    %c0_i32_0 = arith.constant 0 : i32
    %c0_i32_1 = arith.constant 0 : i32
    %c0_i32_2 = arith.constant 0 : i32
    return %arg0, %c0_i32, %c0_i32_0, %c0_i32_1 : i32, i32, i32, i32
  }
}

</mosaic_0001>

<llo_original>
// kernel: tpu_custom_call.1
$region0: #{tpu_custom_call.1}
  #allocation0 [shape = 'u32[]', space=smem, size = 0x4, offset = 0x4, fixed_abs, tag = 'smem constant byte address 0x4 - core index']
  #allocation1 [shape = 'u32[72,128]{1,0:T(1,128)}', space=vmem, size = 0x9000, scoped, tag = 'internal scratch']
  #allocation2 [shape = 'f32[34,48,3]{2,1,0:T(8,128)}', space=vmem, size = 0xcc000, scoped, tag = 'scratch operand']
  %s0 = inlined_call_operand.vmem [shape: bf16[2,32,32,3], index: 0, kind: input, shape index: {}]
  %s1 = inlined_call_operand.vmem [shape: bf16[3,3,3,16], index: 1, kind: input, shape index: {}]
  %s2 = inlined_call_operand.vmem [shape: f32[1,16], index: 2, kind: input, shape index: {}]
  %s3 = inlined_call_operand.vmem [shape: bf16[2,32,32,16], index: 3, kind: output, shape index: {}]
  %s4 = sld [smem:[#allocation0]]
  $region45: #{tpu_custom_call.1} parent=0
    _
  %s6 = ssub.s32 1, %s4
  %s7 = scalar_select 0, %s6, %s4
  loop: start=0, step=1, limit=4
  $region2: #{tpu_custom_call.1} parent=0 // loop_pre_header
    _
  $region3: #{tpu_custom_call.1} parent=0 // loop_header
    %s9 = sphi 0, %s13
    %p10 = scmp.ge.s32.totalorder %s9, 4
    %s19 = sphi 0, %s21
    %s22 = sphi 0, %s19
    %s23 = sphi 0, %s22
    %s39 = sphi 0, %s23
    %s43 = sphi 0, %s43
    %s45 = sphi 0, %s43
    %s46 = sphi 0, %s45
    %s60 = sphi 0, %s46
    %s64 = sphi 0, %s64
    %s66 = sphi 0, %s64
    %s67 = sphi 0, %s66
    %s81 = sphi 0, %s67
    %s87 = sphi 0, %s89
    %s90 = sphi 0, %s87
    %s91 = sphi 0, %s90
    %s107 = sphi 0, %s91
  $region4: #{tpu_custom_call.1} parent=0 // loop_header_branch
    %12 = sbr.rel (%p10) target = $region8
  $region5: #{tpu_custom_call.1} parent=0 // loop_body
    %s14 = ssub.s32 %s9, 1
    %s15 = ssub.s32 %s9, 2
    %s16 = sadd.s32 %s9, 1
    %s17 = ssub.s32 %s9, %s16
    %p18 = scmp.eq.s32.totalorder %s17, 0
    %s20 = sadd.s32 %s19, 1
    %s21 = scalar_select %p18, %s19, %s20
    %p24 = pneg %p18
    %p25 = scmp.eq.s32.totalorder %s9, 1
    %p26 = por %p24, %p25
    %p27 = scmp.ne.s32.totalorder %s19, %s22
    %p28 = scmp.eq.s32.totalorder %s9, 0
    %p29 = por %p27, %p28
    %p30 = scmp.ne.s32.totalorder %s19, %s22
    %p31 = scmp.eq.s32.totalorder %s14, 1
    %p32 = por %p30, %p31
    %p33 = scmp.ne.s32.totalorder %s22, %s23
    %p34 = scmp.eq.s32.totalorder %s14, 0
    %p35 = por %p33, %p34
    %p36 = scmp.ne.s32.totalorder %s22, %s23
    %p37 = scmp.eq.s32.totalorder %s15, 1
    %p38 = por %p36, %p37
    %p40 = scmp.ne.s32.totalorder %s23, %s39
    %p41 = scmp.eq.s32.totalorder %s15, 0
    %p42 = por %p40, %p41
    %s44 = sadd.s32 %s43, 1
    %p47 = scmp.eq.s32.totalorder %s9, 1
    %p48 = scmp.ne.s32.totalorder %s43, %s45
    %p49 = scmp.eq.s32.totalorder %s9, 0
    %p50 = por %p48, %p49
    %p51 = scmp.ne.s32.totalorder %s43, %s45
    %p52 = scmp.eq.s32.totalorder %s14, 1
    %p53 = por %p51, %p52
    %p54 = scmp.ne.s32.totalorder %s45, %s46
    %p55 = scmp.eq.s32.totalorder %s14, 0
    %p56 = por %p54, %p55
    %p57 = scmp.ne.s32.totalorder %s45, %s46
    %p58 = scmp.eq.s32.totalorder %s15, 1
    %p59 = por %p57, %p58
    %p61 = scmp.ne.s32.totalorder %s46, %s60
    %p62 = scmp.eq.s32.totalorder %s15, 0
    %p63 = por %p61, %p62
    %s65 = sadd.s32 %s64, 1
    %p68 = scmp.eq.s32.totalorder %s9, 1
    %p69 = scmp.ne.s32.totalorder %s64, %s66
    %p70 = scmp.eq.s32.totalorder %s9, 0
    %p71 = por %p69, %p70
    %p72 = scmp.ne.s32.totalorder %s64, %s66
    %p73 = scmp.eq.s32.totalorder %s14, 1
    %p74 = por %p72, %p73
    %p75 = scmp.ne.s32.totalorder %s66, %s67
    %p76 = scmp.eq.s32.totalorder %s14, 0
    %p77 = por %p75, %p76
    %p78 = scmp.ne.s32.totalorder %s66, %s67
    %p79 = scmp.eq.s32.totalorder %s15, 1
    %p80 = por %p78, %p79
    %p82 = scmp.ne.s32.totalorder %s67, %s81
    %p83 = scmp.eq.s32.totalorder %s15, 0
    %p84 = por %p82, %p83
    %s85 = ssub.s32 %s9, %s16
    %p86 = scmp.eq.s32.totalorder %s85, 0
    %s88 = sadd.s32 %s87, 1
    %s89 = scalar_select %p86, %s87, %s88
    %p92 = pneg %p86
    %p93 = scmp.eq.s32.totalorder %s9, 1
    %p94 = por %p92, %p93
    %p95 = scmp.ne.s32.totalorder %s87, %s90
    %p96 = scmp.eq.s32.totalorder %s9, 0
    %p97 = por %p95, %p96
    %p98 = scmp.ne.s32.totalorder %s87, %s90
    %p99 = scmp.eq.s32.totalorder %s14, 1
    %p100 = por %p98, %p99
    %p101 = scmp.ne.s32.totalorder %s90, %s91
    %p102 = scmp.eq.s32.totalorder %s14, 0
    %p103 = por %p101, %p102
    %p104 = scmp.ne.s32.totalorder %s90, %s91
    %p105 = scmp.eq.s32.totalorder %s15, 1
    %p106 = por %p104, %p105
    %p108 = scmp.ne.s32.totalorder %s91, %s107
    %p109 = scmp.eq.s32.totalorder %s15, 0
    %p110 = por %p108, %p109
    %p111 = scmp.le.s32.totalorder 1, %s9
    %p112 = scmp.lt.s32.totalorder %s9, 3
    %p113 = pnand %p111, %p112
    %p114 = pneg %p113
    // Predicated region
    $region9: #{tpu_custom_call.1} parent=5 // pred_check
      _
    $region10: #{tpu_custom_call.1} parent=5 // pred_check_branch
      %116 = sbr.rel (%p113) target = $region12
    $region11: #{tpu_custom_call.1} parent=5 // pred_region
      %s117 = ssub.s32 %s9, 1
      // Predicated region
      $region13: #{tpu_custom_call.1} parent=11 // pred_check
        %p118 = pneg %p56
      $region14: #{tpu_custom_call.1} parent=11 // pred_check_branch
        %120 = sbr.rel (%p118) target = $region16
      $region15: #{tpu_custom_call.1} parent=11 // pred_region
        _
      $region16: #{tpu_custom_call.1} parent=11 // pred_fallthru
        _
      // Predicated region
      $region17: #{tpu_custom_call.1} parent=11 // pred_check
        %p121 = pneg %p77
      $region18: #{tpu_custom_call.1} parent=11 // pred_check_branch
        %123 = sbr.rel (%p121) target = $region20
      $region19: #{tpu_custom_call.1} parent=11 // pred_region
        _
      $region20: #{tpu_custom_call.1} parent=11 // pred_fallthru
        _
    $region12: #{tpu_custom_call.1} parent=5 // pred_fallthru
      _
    %p124 = scmp.lt.s32.totalorder %s9, 2
    // Predicated region
    $region21: #{tpu_custom_call.1} parent=5 // pred_check
      %p125 = pneg %p124
    $region22: #{tpu_custom_call.1} parent=5 // pred_check_branch
      %127 = sbr.rel (%p125) target = $region24
    $region23: #{tpu_custom_call.1} parent=5 // pred_region
      // Predicated region
      $region25: #{tpu_custom_call.1} parent=23 // pred_check
        %p128 = pneg %p29
      $region26: #{tpu_custom_call.1} parent=23 // pred_check_branch
        %130 = sbr.rel (%p128) target = $region28
      $region27: #{tpu_custom_call.1} parent=23 // pred_region
        %p131 = scmp.lt.s32.totalorder %s9, 1
        %s132 = scalar_select %p131, %s9, 1
        %s133 = smul.addr %s132, 128
        %s134 = smul.addr %s133, 4
        %s135 = scalar_lea.vmem %s0, %s134
      $region28: #{tpu_custom_call.1} parent=23 // pred_fallthru
        _
    $region24: #{tpu_custom_call.1} parent=5 // pred_fallthru
      _
    %p136 = scmp.le.s32.totalorder 1, %s9
    %p137 = scmp.lt.s32.totalorder %s9, 3
    %p138 = pnand %p136, %p137
    %p139 = pneg %p138
    // Predicated region
    $region29: #{tpu_custom_call.1} parent=5 // pred_check
      _
    $region30: #{tpu_custom_call.1} parent=5 // pred_check_branch
      %141 = sbr.rel (%p138) target = $region32
    $region31: #{tpu_custom_call.1} parent=5 // pred_region
      %s142 = ssub.s32 %s9, 1
      %p143 = scmp.lt.s32.totalorder %s14, 1
      %s144 = scalar_select %p143, %s14, 1
      %s145 = smul.addr %s144, 128
      %s146 = smul.addr %s145, 4
      %s147 = scalar_lea.vmem %s0, %s146
      %p148 = pneg %p35
      %p149 = pneg %p32
      %p150 = pneg %p56
      %p151 = pneg %p53
      %p152 = pneg %p77
      %p153 = pneg %p74
      %p154 = pneg %p103
      %p155 = pneg %p100
      %p156 = scmp.lt.s32.totalorder %s14, 1
      %s157 = scalar_select %p156, %s14, 1
      %s158 = smul.addr %s157, 128
      %s159 = smul.addr %s158, 4
      %s160 = scalar_lea.vmem %s3, %s159
      %p161 = scmp.lt.s32.totalorder %s14, 1
      %s162 = scalar_select %p161, %s14, 1
      %s163 = smul.addr %s162, 128
      %s164 = smul.addr %s163, 4
      %s165 = scalar_lea.vmem %s0, %s164
      %p166 = scmp.lt.s32.totalorder %s14, 1
      %s167 = scalar_select %p166, %s14, 1
      %s168 = smul.addr %s167, 128
      %s169 = smul.addr %s168, 4
      %s170 = scalar_lea.vmem %s3, %s169
      %vm172 = vcmask 23552
      %173 = vst.msk [vmem:[#allocation2] sm:$0xff] %vm172, 0.0
      %174 = vst.msk [vmem:[#allocation2 + $0x8] sm:$0xff] %vm172, 0.0
      %175 = vst.msk [vmem:[#allocation2 + $0x10] sm:$0xff] %vm172, 0.0
      %176 = vst.msk [vmem:[#allocation2 + $0x18] sm:$0xff] %vm172, 0.0
      %177 = vst.msk [vmem:[#allocation2 + $0x20] sm:$0xff] %vm172, 0.0
      %178 = vst.msk [vmem:[#allocation2 + $0x28] sm:$0xff] %vm172, 0.0
      %179 = vst.msk [vmem:[#allocation2 + $0x30] sm:$0xff] %vm172, 0.0
      %180 = vst.msk [vmem:[#allocation2 + $0x38] sm:$0xff] %vm172, 0.0
      %181 = vst.msk [vmem:[#allocation2 + $0x40] sm:$0xff] %vm172, 0.0
      %182 = vst.msk [vmem:[#allocation2 + $0x48] sm:$0xff] %vm172, 0.0
      %183 = vst.msk [vmem:[#allocation2 + $0x50] sm:$0xff] %vm172, 0.0
      %184 = vst.msk [vmem:[#allocation2 + $0x58] sm:$0xff] %vm172, 0.0
      %185 = vst.msk [vmem:[#allocation2 + $0x60] sm:$0xff] %vm172, 0.0
      %186 = vst.msk [vmem:[#allocation2 + $0x68] sm:$0xff] %vm172, 0.0
      %187 = vst.msk [vmem:[#allocation2 + $0x70] sm:$0xff] %vm172, 0.0
      %188 = vst.msk [vmem:[#allocation2 + $0x78] sm:$0xff] %vm172, 0.0
      %189 = vst.msk [vmem:[#allocation2 + $0x80] sm:$0xff] %vm172, 0.0
      %190 = vst.msk [vmem:[#allocation2 + $0x88] sm:$0xff] %vm172, 0.0
      %191 = vst.msk [vmem:[#allocation2 + $0x90] sm:$0xff] %vm172, 0.0
      %192 = vst.msk [vmem:[#allocation2 + $0x98] sm:$0xff] %vm172, 0.0
      %193 = vst.msk [vmem:[#allocation2 + $0xa0] sm:$0xff] %vm172, 0.0
      %194 = vst.msk [vmem:[#allocation2 + $0xa8] sm:$0xff] %vm172, 0.0
      %195 = vst.msk [vmem:[#allocation2 + $0xb0] sm:$0xff] %vm172, 0.0
      %196 = vst.msk [vmem:[#allocation2 + $0xb8] sm:$0xff] %vm172, 0.0
      %197 = vst.msk [vmem:[#allocation2 + $0xc0] sm:$0xff] %vm172, 0.0
      %198 = vst.msk [vmem:[#allocation2 + $0xc8] sm:$0xff] %vm172, 0.0
      %199 = vst.msk [vmem:[#allocation2 + $0xd0] sm:$0xff] %vm172, 0.0
      %200 = vst.msk [vmem:[#allocation2 + $0xd8] sm:$0xff] %vm172, 0.0
      %201 = vst.msk [vmem:[#allocation2 + $0xe0] sm:$0xff] %vm172, 0.0
      %202 = vst.msk [vmem:[#allocation2 + $0xe8] sm:$0xff] %vm172, 0.0
      %203 = vst.msk [vmem:[#allocation2 + $0xf0] sm:$0xff] %vm172, 0.0
      %204 = vst.msk [vmem:[#allocation2 + $0xf8] sm:$0xff] %vm172, 0.0
      %205 = vst.msk [vmem:[#allocation2 + $0x100] sm:$0xff] %vm172, 0.0
      %206 = vst.msk [vmem:[#allocation2 + $0x108] sm:$0xff] %vm172, 0.0
      %207 = vst.msk [vmem:[#allocation2 + $0x110] sm:$0xff] %vm172, 0.0
      %208 = vst.msk [vmem:[#allocation2 + $0x118] sm:$0xff] %vm172, 0.0
      %209 = vst.msk [vmem:[#allocation2 + $0x120] sm:$0xff] %vm172, 0.0
      %210 = vst.msk [vmem:[#allocation2 + $0x128] sm:$0xff] %vm172, 0.0
      %211 = vst.msk [vmem:[#allocation2 + $0x130] sm:$0xff] %vm172, 0.0
      %212 = vst.msk [vmem:[#allocation2 + $0x138] sm:$0xff] %vm172, 0.0
      %213 = vst.msk [vmem:[#allocation2 + $0x140] sm:$0xff] %vm172, 0.0
      %214 = vst.msk [vmem:[#allocation2 + $0x148] sm:$0xff] %vm172, 0.0
      %215 = vst.msk [vmem:[#allocation2 + $0x150] sm:$0xff] %vm172, 0.0
      %216 = vst.msk [vmem:[#allocation2 + $0x158] sm:$0xff] %vm172, 0.0
      %217 = vst.msk [vmem:[#allocation2 + $0x160] sm:$0xff] %vm172, 0.0
      %218 = vst.msk [vmem:[#allocation2 + $0x168] sm:$0xff] %vm172, 0.0
      %219 = vst.msk [vmem:[#allocation2 + $0x170] sm:$0xff] %vm172, 0.0
      %220 = vst.msk [vmem:[#allocation2 + $0x178] sm:$0xff] %vm172, 0.0
      %221 = vst.msk [vmem:[#allocation2 + $0x180] sm:$0xff] %vm172, 0.0
      %222 = vst.msk [vmem:[#allocation2 + $0x188] sm:$0xff] %vm172, 0.0
      %223 = vst.msk [vmem:[#allocation2 + $0x190] sm:$0xff] %vm172, 0.0
      %224 = vst.msk [vmem:[#allocation2 + $0x198] sm:$0xff] %vm172, 0.0
      %225 = vst.msk [vmem:[#allocation2 + $0x1a0] sm:$0xff] %vm172, 0.0
      %226 = vst.msk [vmem:[#allocation2 + $0x1a8] sm:$0xff] %vm172, 0.0
      %227 = vst.msk [vmem:[#allocation2 + $0x1b0] sm:$0xff] %vm172, 0.0
      %228 = vst.msk [vmem:[#allocation2 + $0x1b8] sm:$0xff] %vm172, 0.0
      %229 = vst.msk [vmem:[#allocation2 + $0x1c0] sm:$0xff] %vm172, 0.0
      %230 = vst.msk [vmem:[#allocation2 + $0x1c8] sm:$0xff] %vm172, 0.0
      %231 = vst.msk [vmem:[#allocation2 + $0x1d0] sm:$0xff] %vm172, 0.0
      %232 = vst.msk [vmem:[#allocation2 + $0x1d8] sm:$0xff] %vm172, 0.0
      %233 = vst.msk [vmem:[#allocation2 + $0x1e0] sm:$0xff] %vm172, 0.0
      %234 = vst.msk [vmem:[#allocation2 + $0x1e8] sm:$0xff] %vm172, 0.0
      %235 = vst.msk [vmem:[#allocation2 + $0x1f0] sm:$0xff] %vm172, 0.0
      %236 = vst.msk [vmem:[#allocation2 + $0x1f8] sm:$0xff] %vm172, 0.0
      %237 = vst.msk [vmem:[#allocation2 + $0x200] sm:$0xff] %vm172, 0.0
      %238 = vst.msk [vmem:[#allocation2 + $0x208] sm:$0xff] %vm172, 0.0
      %239 = vst.msk [vmem:[#allocation2 + $0x210] sm:$0xff] %vm172, 0.0
      %240 = vst.msk [vmem:[#allocation2 + $0x218] sm:$0xff] %vm172, 0.0
      %241 = vst.msk [vmem:[#allocation2 + $0x220] sm:$0xff] %vm172, 0.0
      %242 = vst.msk [vmem:[#allocation2 + $0x228] sm:$0xff] %vm172, 0.0
      %243 = vst.msk [vmem:[#allocation2 + $0x230] sm:$0xff] %vm172, 0.0
      %244 = vst.msk [vmem:[#allocation2 + $0x238] sm:$0xff] %vm172, 0.0
      %245 = vst.msk [vmem:[#allocation2 + $0x240] sm:$0xff] %vm172, 0.0
      %246 = vst.msk [vmem:[#allocation2 + $0x248] sm:$0xff] %vm172, 0.0
      %247 = vst.msk [vmem:[#allocation2 + $0x250] sm:$0xff] %vm172, 0.0
      %248 = vst.msk [vmem:[#allocation2 + $0x258] sm:$0xff] %vm172, 0.0
      %249 = vst.msk [vmem:[#allocation2 + $0x260] sm:$0xff] %vm172, 0.0
      %250 = vst.msk [vmem:[#allocation2 + $0x268] sm:$0xff] %vm172, 0.0
      %251 = vst.msk [vmem:[#allocation2 + $0x270] sm:$0xff] %vm172, 0.0
      %252 = vst.msk [vmem:[#allocation2 + $0x278] sm:$0xff] %vm172, 0.0
      %253 = vst.msk [vmem:[#allocation2 + $0x280] sm:$0xff] %vm172, 0.0
      %254 = vst.msk [vmem:[#allocation2 + $0x288] sm:$0xff] %vm172, 0.0
      %255 = vst.msk [vmem:[#allocation2 + $0x290] sm:$0xff] %vm172, 0.0
      %256 = vst.msk [vmem:[#allocation2 + $0x298] sm:$0xff] %vm172, 0.0
      %257 = vst.msk [vmem:[#allocation2 + $0x2a0] sm:$0xff] %vm172, 0.0
      %258 = vst.msk [vmem:[#allocation2 + $0x2a8] sm:$0xff] %vm172, 0.0
      %259 = vst.msk [vmem:[#allocation2 + $0x2b0] sm:$0xff] %vm172, 0.0
      %260 = vst.msk [vmem:[#allocation2 + $0x2b8] sm:$0xff] %vm172, 0.0
      %261 = vst.msk [vmem:[#allocation2 + $0x2c0] sm:$0xff] %vm172, 0.0
      %262 = vst.msk [vmem:[#allocation2 + $0x2c8] sm:$0xff] %vm172, 0.0
      %263 = vst.msk [vmem:[#allocation2 + $0x2d0] sm:$0xff] %vm172, 0.0
      %264 = vst.msk [vmem:[#allocation2 + $0x2d8] sm:$0xff] %vm172, 0.0
      %265 = vst.msk [vmem:[#allocation2 + $0x2e0] sm:$0xff] %vm172, 0.0
      %266 = vst.msk [vmem:[#allocation2 + $0x2e8] sm:$0xff] %vm172, 0.0
      %267 = vst.msk [vmem:[#allocation2 + $0x2f0] sm:$0xff] %vm172, 0.0
      %268 = vst.msk [vmem:[#allocation2 + $0x2f8] sm:$0xff] %vm172, 0.0
      %269 = vst.msk [vmem:[#allocation2 + $0x300] sm:$0xff] %vm172, 0.0
      %270 = vst.msk [vmem:[#allocation2 + $0x308] sm:$0xff] %vm172, 0.0
      %271 = vst.msk [vmem:[#allocation2 + $0x310] sm:$0xff] %vm172, 0.0
      %272 = vst.msk [vmem:[#allocation2 + $0x318] sm:$0xff] %vm172, 0.0
      %273 = vst.msk [vmem:[#allocation2 + $0x320] sm:$0xff] %vm172, 0.0
      %274 = vst.msk [vmem:[#allocation2 + $0x328] sm:$0xff] %vm172, 0.0
      %275 = vst.msk [vmem:[#allocation2 + $0x330] sm:$0xff] %vm172, 0.0
      %276 = vst.msk [vmem:[#allocation2 + $0x338] sm:$0xff] %vm172, 0.0
      %277 = vst.msk [vmem:[#allocation2 + $0x340] sm:$0xff] %vm172, 0.0
      %278 = vst.msk [vmem:[#allocation2 + $0x348] sm:$0xff] %vm172, 0.0
      %279 = vst.msk [vmem:[#allocation2 + $0x350] sm:$0xff] %vm172, 0.0
      %280 = vst.msk [vmem:[#allocation2 + $0x358] sm:$0xff] %vm172, 0.0
      %281 = vst.msk [vmem:[#allocation2 + $0x360] sm:$0xff] %vm172, 0.0
      %282 = vst.msk [vmem:[#allocation2 + $0x368] sm:$0xff] %vm172, 0.0
      %283 = vst.msk [vmem:[#allocation2 + $0x370] sm:$0xff] %vm172, 0.0
      %284 = vst.msk [vmem:[#allocation2 + $0x378] sm:$0xff] %vm172, 0.0
      %285 = vst.msk [vmem:[#allocation2 + $0x380] sm:$0xff] %vm172, 0.0
      %286 = vst.msk [vmem:[#allocation2 + $0x388] sm:$0xff] %vm172, 0.0
      %287 = vst.msk [vmem:[#allocation2 + $0x390] sm:$0xff] %vm172, 0.0
      %288 = vst.msk [vmem:[#allocation2 + $0x398] sm:$0xff] %vm172, 0.0
      %289 = vst.msk [vmem:[#allocation2 + $0x3a0] sm:$0xff] %vm172, 0.0
      %290 = vst.msk [vmem:[#allocation2 + $0x3a8] sm:$0xff] %vm172, 0.0
      %291 = vst.msk [vmem:[#allocation2 + $0x3b0] sm:$0xff] %vm172, 0.0
      %292 = vst.msk [vmem:[#allocation2 + $0x3b8] sm:$0xff] %vm172, 0.0
      %293 = vst.msk [vmem:[#allocation2 + $0x3c0] sm:$0xff] %vm172, 0.0
      %294 = vst.msk [vmem:[#allocation2 + $0x3c8] sm:$0xff] %vm172, 0.0
      %295 = vst.msk [vmem:[#allocation2 + $0x3d0] sm:$0xff] %vm172, 0.0
      %296 = vst.msk [vmem:[#allocation2 + $0x3d8] sm:$0xff] %vm172, 0.0
      %297 = vst.msk [vmem:[#allocation2 + $0x3e0] sm:$0xff] %vm172, 0.0
      %298 = vst.msk [vmem:[#allocation2 + $0x3e8] sm:$0xff] %vm172, 0.0
      %299 = vst.msk [vmem:[#allocation2 + $0x3f0] sm:$0xff] %vm172, 0.0
      %300 = vst.msk [vmem:[#allocation2 + $0x3f8] sm:$0xff] %vm172, 0.0
      %301 = vst.msk [vmem:[#allocation2 + $0x400] sm:$0xff] %vm172, 0.0
      %302 = vst.msk [vmem:[#allocation2 + $0x408] sm:$0xff] %vm172, 0.0
      %303 = vst.msk [vmem:[#allocation2 + $0x410] sm:$0xff] %vm172, 0.0
      %304 = vst.msk [vmem:[#allocation2 + $0x418] sm:$0xff] %vm172, 0.0
      %305 = vst.msk [vmem:[#allocation2 + $0x420] sm:$0xff] %vm172, 0.0
      %306 = vst.msk [vmem:[#allocation2 + $0x428] sm:$0xff] %vm172, 0.0
      %307 = vst.msk [vmem:[#allocation2 + $0x430] sm:$0xff] %vm172, 0.0
      %308 = vst.msk [vmem:[#allocation2 + $0x438] sm:$0xff] %vm172, 0.0
      %309 = vst.msk [vmem:[#allocation2 + $0x440] sm:$0xff] %vm172, 0.0
      %310 = vst.msk [vmem:[#allocation2 + $0x448] sm:$0xff] %vm172, 0.0
      %311 = vst.msk [vmem:[#allocation2 + $0x450] sm:$0xff] %vm172, 0.0
      %312 = vst.msk [vmem:[#allocation2 + $0x458] sm:$0xff] %vm172, 0.0
      %313 = vst.msk [vmem:[#allocation2 + $0x460] sm:$0xff] %vm172, 0.0
      %314 = vst.msk [vmem:[#allocation2 + $0x468] sm:$0xff] %vm172, 0.0
      %315 = vst.msk [vmem:[#allocation2 + $0x470] sm:$0xff] %vm172, 0.0
      %316 = vst.msk [vmem:[#allocation2 + $0x478] sm:$0xff] %vm172, 0.0
      %317 = vst.msk [vmem:[#allocation2 + $0x480] sm:$0xff] %vm172, 0.0
      %318 = vst.msk [vmem:[#allocation2 + $0x488] sm:$0xff] %vm172, 0.0
      %319 = vst.msk [vmem:[#allocation2 + $0x490] sm:$0xff] %vm172, 0.0
      %320 = vst.msk [vmem:[#allocation2 + $0x498] sm:$0xff] %vm172, 0.0
      %321 = vst.msk [vmem:[#allocation2 + $0x4a0] sm:$0xff] %vm172, 0.0
      %322 = vst.msk [vmem:[#allocation2 + $0x4a8] sm:$0xff] %vm172, 0.0
      %323 = vst.msk [vmem:[#allocation2 + $0x4b0] sm:$0xff] %vm172, 0.0
      %324 = vst.msk [vmem:[#allocation2 + $0x4b8] sm:$0xff] %vm172, 0.0
      %325 = vst.msk [vmem:[#allocation2 + $0x4c0] sm:$0xff] %vm172, 0.0
      %326 = vst.msk [vmem:[#allocation2 + $0x4c8] sm:$0xff] %vm172, 0.0
      %327 = vst.msk [vmem:[#allocation2 + $0x4d0] sm:$0xff] %vm172, 0.0
      %328 = vst.msk [vmem:[#allocation2 + $0x4d8] sm:$0xff] %vm172, 0.0
      %329 = vst.msk [vmem:[#allocation2 + $0x4e0] sm:$0xff] %vm172, 0.0
      %330 = vst.msk [vmem:[#allocation2 + $0x4e8] sm:$0xff] %vm172, 0.0
      %331 = vst.msk [vmem:[#allocation2 + $0x4f0] sm:$0xff] %vm172, 0.0
      %332 = vst.msk [vmem:[#allocation2 + $0x4f8] sm:$0xff] %vm172, 0.0
      %333 = vst.msk [vmem:[#allocation2 + $0x500] sm:$0xff] %vm172, 0.0
      %334 = vst.msk [vmem:[#allocation2 + $0x508] sm:$0xff] %vm172, 0.0
      %335 = vst.msk [vmem:[#allocation2 + $0x510] sm:$0xff] %vm172, 0.0
      %336 = vst.msk [vmem:[#allocation2 + $0x518] sm:$0xff] %vm172, 0.0
      %337 = vst.msk [vmem:[#allocation2 + $0x520] sm:$0xff] %vm172, 0.0
      %338 = vst.msk [vmem:[#allocation2 + $0x528] sm:$0xff] %vm172, 0.0
      %339 = vst.msk [vmem:[#allocation2 + $0x530] sm:$0xff] %vm172, 0.0
      %340 = vst.msk [vmem:[#allocation2 + $0x538] sm:$0xff] %vm172, 0.0
      %341 = vst.msk [vmem:[#allocation2 + $0x540] sm:$0xff] %vm172, 0.0
      %342 = vst.msk [vmem:[#allocation2 + $0x548] sm:$0xff] %vm172, 0.0
      %343 = vst.msk [vmem:[#allocation2 + $0x550] sm:$0xff] %vm172, 0.0
      %344 = vst.msk [vmem:[#allocation2 + $0x558] sm:$0xff] %vm172, 0.0
      %345 = vst.msk [vmem:[#allocation2 + $0x560] sm:$0xff] %vm172, 0.0
      %346 = vst.msk [vmem:[#allocation2 + $0x568] sm:$0xff] %vm172, 0.0
      %347 = vst.msk [vmem:[#allocation2 + $0x570] sm:$0xff] %vm172, 0.0
      %348 = vst.msk [vmem:[#allocation2 + $0x578] sm:$0xff] %vm172, 0.0
      %349 = vst.msk [vmem:[#allocation2 + $0x580] sm:$0xff] %vm172, 0.0
      %350 = vst.msk [vmem:[#allocation2 + $0x588] sm:$0xff] %vm172, 0.0
      %351 = vst.msk [vmem:[#allocation2 + $0x590] sm:$0xff] %vm172, 0.0
      %352 = vst.msk [vmem:[#allocation2 + $0x598] sm:$0xff] %vm172, 0.0
      %353 = vst.msk [vmem:[#allocation2 + $0x5a0] sm:$0xff] %vm172, 0.0
      %354 = vst.msk [vmem:[#allocation2 + $0x5a8] sm:$0xff] %vm172, 0.0
      %355 = vst.msk [vmem:[#allocation2 + $0x5b0] sm:$0xff] %vm172, 0.0
      %356 = vst.msk [vmem:[#allocation2 + $0x5b8] sm:$0xff] %vm172, 0.0
      %357 = vst.msk [vmem:[#allocation2 + $0x5c0] sm:$0xff] %vm172, 0.0
      %358 = vst.msk [vmem:[#allocation2 + $0x5c8] sm:$0xff] %vm172, 0.0
      %359 = vst.msk [vmem:[#allocation2 + $0x5d0] sm:$0xff] %vm172, 0.0
      %360 = vst.msk [vmem:[#allocation2 + $0x5d8] sm:$0xff] %vm172, 0.0
      %361 = vst.msk [vmem:[#allocation2 + $0x5e0] sm:$0xff] %vm172, 0.0
      %362 = vst.msk [vmem:[#allocation2 + $0x5e8] sm:$0xff] %vm172, 0.0
      %363 = vst.msk [vmem:[#allocation2 + $0x5f0] sm:$0xff] %vm172, 0.0
      %364 = vst.msk [vmem:[#allocation2 + $0x5f8] sm:$0xff] %vm172, 0.0
      %365 = vst.msk [vmem:[#allocation2 + $0x600] sm:$0xff] %vm172, 0.0
      %366 = vst.msk [vmem:[#allocation2 + $0x608] sm:$0xff] %vm172, 0.0
      %367 = vst.msk [vmem:[#allocation2 + $0x610] sm:$0xff] %vm172, 0.0
      %368 = vst.msk [vmem:[#allocation2 + $0x618] sm:$0xff] %vm172, 0.0
      %369 = vst.msk [vmem:[#allocation2 + $0x620] sm:$0xff] %vm172, 0.0
      %370 = vst.msk [vmem:[#allocation2 + $0x628] sm:$0xff] %vm172, 0.0
      %371 = vst.msk [vmem:[#allocation2 + $0x630] sm:$0xff] %vm172, 0.0
      %372 = vst.msk [vmem:[#allocation2 + $0x638] sm:$0xff] %vm172, 0.0
      %373 = vst.msk [vmem:[#allocation2 + $0x640] sm:$0xff] %vm172, 0.0
      %374 = vst.msk [vmem:[#allocation2 + $0x648] sm:$0xff] %vm172, 0.0
      %375 = vst.msk [vmem:[#allocation2 + $0x650] sm:$0xff] %vm172, 0.0
      %376 = vst.msk [vmem:[#allocation2 + $0x658] sm:$0xff] %vm172, 0.0
      %v377 = vld [vmem:[%s165] sm:$0xf]
      %v378 = vld [vmem:[%s165 + $0x4] sm:$0xf]
      %v379 = vld [vmem:[%s165 + $0x8] sm:$0xf]
      %v380 = vld [vmem:[%s165 + $0xc] sm:$0xf]
      %v381 = vld [vmem:[%s165 + $0x10] sm:$0xf]
      %v382 = vld [vmem:[%s165 + $0x14] sm:$0xf]
      %v383 = vld [vmem:[%s165 + $0x18] sm:$0xf]
      %v384 = vld [vmem:[%s165 + $0x1c] sm:$0xf]
      %v385 = vld [vmem:[%s165 + $0x20] sm:$0xf]
      %v386 = vld [vmem:[%s165 + $0x24] sm:$0xf]
      %v387 = vld [vmem:[%s165 + $0x28] sm:$0xf]
      %v388 = vld [vmem:[%s165 + $0x2c] sm:$0xf]
      %v389 = vld [vmem:[%s165 + $0x30] sm:$0xf]
      %v390 = vld [vmem:[%s165 + $0x34] sm:$0xf]
      %v391 = vld [vmem:[%s165 + $0x38] sm:$0xf]
      %v392 = vld [vmem:[%s165 + $0x3c] sm:$0xf]
      %v393 = vld [vmem:[%s165 + $0x40] sm:$0xf]
      %v394 = vld [vmem:[%s165 + $0x44] sm:$0xf]
      %v395 = vld [vmem:[%s165 + $0x48] sm:$0xf]
      %v396 = vld [vmem:[%s165 + $0x4c] sm:$0xf]
      %v397 = vld [vmem:[%s165 + $0x50] sm:$0xf]
      %v398 = vld [vmem:[%s165 + $0x54] sm:$0xf]
      %v399 = vld [vmem:[%s165 + $0x58] sm:$0xf]
      %v400 = vld [vmem:[%s165 + $0x5c] sm:$0xf]
      %v401 = vld [vmem:[%s165 + $0x60] sm:$0xf]
      %v402 = vld [vmem:[%s165 + $0x64] sm:$0xf]
      %v403 = vld [vmem:[%s165 + $0x68] sm:$0xf]
      %v404 = vld [vmem:[%s165 + $0x6c] sm:$0xf]
      %v405 = vld [vmem:[%s165 + $0x70] sm:$0xf]
      %v406 = vld [vmem:[%s165 + $0x74] sm:$0xf]
      %v407 = vld [vmem:[%s165 + $0x78] sm:$0xf]
      %v408 = vld [vmem:[%s165 + $0x7c] sm:$0xf]
      %v409 = vld [vmem:[%s165 + $0x80] sm:$0xf]
      %v410 = vld [vmem:[%s165 + $0x84] sm:$0xf]
      %v411 = vld [vmem:[%s165 + $0x88] sm:$0xf]
      %v412 = vld [vmem:[%s165 + $0x8c] sm:$0xf]
      %v413 = vld [vmem:[%s165 + $0x90] sm:$0xf]
      %v414 = vld [vmem:[%s165 + $0x94] sm:$0xf]
      %v415 = vld [vmem:[%s165 + $0x98] sm:$0xf]
      %v416 = vld [vmem:[%s165 + $0x9c] sm:$0xf]
      %v417 = vld [vmem:[%s165 + $0xa0] sm:$0xf]
      %v418 = vld [vmem:[%s165 + $0xa4] sm:$0xf]
      %v419 = vld [vmem:[%s165 + $0xa8] sm:$0xf]
      %v420 = vld [vmem:[%s165 + $0xac] sm:$0xf]
      %v421 = vld [vmem:[%s165 + $0xb0] sm:$0xf]
      %v422 = vld [vmem:[%s165 + $0xb4] sm:$0xf]
      %v423 = vld [vmem:[%s165 + $0xb8] sm:$0xf]
      %v424 = vld [vmem:[%s165 + $0xbc] sm:$0xf]
      %v425 = vld [vmem:[%s165 + $0xc0] sm:$0xf]
      %v426 = vld [vmem:[%s165 + $0xc4] sm:$0xf]
      %v427 = vld [vmem:[%s165 + $0xc8] sm:$0xf]
      %v428 = vld [vmem:[%s165 + $0xcc] sm:$0xf]
      %v429 = vld [vmem:[%s165 + $0xd0] sm:$0xf]
      %v430 = vld [vmem:[%s165 + $0xd4] sm:$0xf]
      %v431 = vld [vmem:[%s165 + $0xd8] sm:$0xf]
      %v432 = vld [vmem:[%s165 + $0xdc] sm:$0xf]
      %v433 = vld [vmem:[%s165 + $0xe0] sm:$0xf]
      %v434 = vld [vmem:[%s165 + $0xe4] sm:$0xf]
      %v435 = vld [vmem:[%s165 + $0xe8] sm:$0xf]
      %v436 = vld [vmem:[%s165 + $0xec] sm:$0xf]
      %v437 = vld [vmem:[%s165 + $0xf0] sm:$0xf]
      %v438 = vld [vmem:[%s165 + $0xf4] sm:$0xf]
      %v439 = vld [vmem:[%s165 + $0xf8] sm:$0xf]
      %v440 = vld [vmem:[%s165 + $0xfc] sm:$0xf]
      %v441 = vld [vmem:[%s165 + $0x100] sm:$0xf]
      %v442 = vld [vmem:[%s165 + $0x104] sm:$0xf]
      %v443 = vld [vmem:[%s165 + $0x108] sm:$0xf]
      %v444 = vld [vmem:[%s165 + $0x10c] sm:$0xf]
      %v445 = vld [vmem:[%s165 + $0x110] sm:$0xf]
      %v446 = vld [vmem:[%s165 + $0x114] sm:$0xf]
      %v447 = vld [vmem:[%s165 + $0x118] sm:$0xf]
      %v448 = vld [vmem:[%s165 + $0x11c] sm:$0xf]
      %v449 = vld [vmem:[%s165 + $0x120] sm:$0xf]
      %v450 = vld [vmem:[%s165 + $0x124] sm:$0xf]
      %v451 = vld [vmem:[%s165 + $0x128] sm:$0xf]
      %v452 = vld [vmem:[%s165 + $0x12c] sm:$0xf]
      %v453 = vld [vmem:[%s165 + $0x130] sm:$0xf]
      %v454 = vld [vmem:[%s165 + $0x134] sm:$0xf]
      %v455 = vld [vmem:[%s165 + $0x138] sm:$0xf]
      %v456 = vld [vmem:[%s165 + $0x13c] sm:$0xf]
      %v457 = vld [vmem:[%s165 + $0x140] sm:$0xf]
      %v458 = vld [vmem:[%s165 + $0x144] sm:$0xf]
      %v459 = vld [vmem:[%s165 + $0x148] sm:$0xf]
      %v460 = vld [vmem:[%s165 + $0x14c] sm:$0xf]
      %v461 = vld [vmem:[%s165 + $0x150] sm:$0xf]
      %v462 = vld [vmem:[%s165 + $0x154] sm:$0xf]
      %v463 = vld [vmem:[%s165 + $0x158] sm:$0xf]
      %v464 = vld [vmem:[%s165 + $0x15c] sm:$0xf]
      %v465 = vld [vmem:[%s165 + $0x160] sm:$0xf]
      %v466 = vld [vmem:[%s165 + $0x164] sm:$0xf]
      %v467 = vld [vmem:[%s165 + $0x168] sm:$0xf]
      %v468 = vld [vmem:[%s165 + $0x16c] sm:$0xf]
      %v469 = vld [vmem:[%s165 + $0x170] sm:$0xf]
      %v470 = vld [vmem:[%s165 + $0x174] sm:$0xf]
      %v471 = vld [vmem:[%s165 + $0x178] sm:$0xf]
      %v472 = vld [vmem:[%s165 + $0x17c] sm:$0xf]
      %v473 = vld [vmem:[%s165 + $0x180] sm:$0xf]
      %v474 = vld [vmem:[%s165 + $0x184] sm:$0xf]
      %v475 = vld [vmem:[%s165 + $0x188] sm:$0xf]
      %v476 = vld [vmem:[%s165 + $0x18c] sm:$0xf]
      %v477 = vld [vmem:[%s165 + $0x190] sm:$0xf]
      %v478 = vld [vmem:[%s165 + $0x194] sm:$0xf]
      %v479 = vld [vmem:[%s165 + $0x198] sm:$0xf]
      %v480 = vld [vmem:[%s165 + $0x19c] sm:$0xf]
      %v481 = vld [vmem:[%s165 + $0x1a0] sm:$0xf]
      %v482 = vld [vmem:[%s165 + $0x1a4] sm:$0xf]
      %v483 = vld [vmem:[%s165 + $0x1a8] sm:$0xf]
      %v484 = vld [vmem:[%s165 + $0x1ac] sm:$0xf]
      %v485 = vld [vmem:[%s165 + $0x1b0] sm:$0xf]
      %v486 = vld [vmem:[%s165 + $0x1b4] sm:$0xf]
      %v487 = vld [vmem:[%s165 + $0x1b8] sm:$0xf]
      %v488 = vld [vmem:[%s165 + $0x1bc] sm:$0xf]
      %v489 = vld [vmem:[%s165 + $0x1c0] sm:$0xf]
      %v490 = vld [vmem:[%s165 + $0x1c4] sm:$0xf]
      %v491 = vld [vmem:[%s165 + $0x1c8] sm:$0xf]
      %v492 = vld [vmem:[%s165 + $0x1cc] sm:$0xf]
      %v493 = vld [vmem:[%s165 + $0x1d0] sm:$0xf]
      %v494 = vld [vmem:[%s165 + $0x1d4] sm:$0xf]
      %v495 = vld [vmem:[%s165 + $0x1d8] sm:$0xf]
      %v496 = vld [vmem:[%s165 + $0x1dc] sm:$0xf]
      %v497 = vld [vmem:[%s165 + $0x1e0] sm:$0xf]
      %v498 = vld [vmem:[%s165 + $0x1e4] sm:$0xf]
      %v499 = vld [vmem:[%s165 + $0x1e8] sm:$0xf]
      %v500 = vld [vmem:[%s165 + $0x1ec] sm:$0xf]
      %v501 = vld [vmem:[%s165 + $0x1f0] sm:$0xf]
      %v502 = vld [vmem:[%s165 + $0x1f4] sm:$0xf]
      %v503 = vld [vmem:[%s165 + $0x1f8] sm:$0xf]
      %v504 = vld [vmem:[%s165 + $0x1fc] sm:$0xf]
      %v505 = vunpack.c.l.bf16 %v377
      %v506 = vunpack.c.l.bf16 %v378
      %v507 = vunpack.c.l.bf16 %v379
      %v508 = vunpack.c.l.bf16 %v380
      %v509 = vunpack.c.l.bf16 %v381
      %v510 = vunpack.c.l.bf16 %v382
      %v511 = vunpack.c.l.bf16 %v383
      %v512 = vunpack.c.l.bf16 %v384
      %v513 = vunpack.c.l.bf16 %v385
      %v514 = vunpack.c.l.bf16 %v386
      %v515 = vunpack.c.l.bf16 %v387
      %v516 = vunpack.c.l.bf16 %v388
      %v517 = vunpack.c.l.bf16 %v389
      %v518 = vunpack.c.l.bf16 %v390
      %v519 = vunpack.c.l.bf16 %v391
      %v520 = vunpack.c.l.bf16 %v392
      %v521 = vunpack.c.l.bf16 %v393
      %v522 = vunpack.c.l.bf16 %v394
      %v523 = vunpack.c.l.bf16 %v395
      %v524 = vunpack.c.l.bf16 %v396
      %v525 = vunpack.c.l.bf16 %v397
      %v526 = vunpack.c.l.bf16 %v398
      %v527 = vunpack.c.l.bf16 %v399
      %v528 = vunpack.c.l.bf16 %v400
      %v529 = vunpack.c.l.bf16 %v401
      %v530 = vunpack.c.l.bf16 %v402
      %v531 = vunpack.c.l.bf16 %v403
      %v532 = vunpack.c.l.bf16 %v404
      %v533 = vunpack.c.l.bf16 %v405
      %v534 = vunpack.c.l.bf16 %v406
      %v535 = vunpack.c.l.bf16 %v407
      %v536 = vunpack.c.l.bf16 %v408
      %v537 = vunpack.c.l.bf16 %v409
      %v538 = vunpack.c.l.bf16 %v410
      %v539 = vunpack.c.l.bf16 %v411
      %v540 = vunpack.c.l.bf16 %v412
      %v541 = vunpack.c.l.bf16 %v413
      %v542 = vunpack.c.l.bf16 %v414
      %v543 = vunpack.c.l.bf16 %v415
      %v544 = vunpack.c.l.bf16 %v416
      %v545 = vunpack.c.l.bf16 %v417
      %v546 = vunpack.c.l.bf16 %v418
      %v547 = vunpack.c.l.bf16 %v419
      %v548 = vunpack.c.l.bf16 %v420
      %v549 = vunpack.c.l.bf16 %v421
      %v550 = vunpack.c.l.bf16 %v422
      %v551 = vunpack.c.l.bf16 %v423
      %v552 = vunpack.c.l.bf16 %v424
      %v553 = vunpack.c.l.bf16 %v425
      %v554 = vunpack.c.l.bf16 %v426
      %v555 = vunpack.c.l.bf16 %v427
      %v556 = vunpack.c.l.bf16 %v428
      %v557 = vunpack.c.l.bf16 %v429
      %v558 = vunpack.c.l.bf16 %v430
      %v559 = vunpack.c.l.bf16 %v431
      %v560 = vunpack.c.l.bf16 %v432
      %v561 = vunpack.c.l.bf16 %v433
      %v562 = vunpack.c.l.bf16 %v434
      %v563 = vunpack.c.l.bf16 %v435
      %v564 = vunpack.c.l.bf16 %v436
      %v565 = vunpack.c.l.bf16 %v437
      %v566 = vunpack.c.l.bf16 %v438
      %v567 = vunpack.c.l.bf16 %v439
      %v568 = vunpack.c.l.bf16 %v440
      %v569 = vunpack.c.l.bf16 %v441
      %v570 = vunpack.c.l.bf16 %v442
      %v571 = vunpack.c.l.bf16 %v443
      %v572 = vunpack.c.l.bf16 %v444
      %v573 = vunpack.c.l.bf16 %v445
      %v574 = vunpack.c.l.bf16 %v446
      %v575 = vunpack.c.l.bf16 %v447
      %v576 = vunpack.c.l.bf16 %v448
      %v577 = vunpack.c.l.bf16 %v449
      %v578 = vunpack.c.l.bf16 %v450
      %v579 = vunpack.c.l.bf16 %v451
      %v580 = vunpack.c.l.bf16 %v452
      %v581 = vunpack.c.l.bf16 %v453
      %v582 = vunpack.c.l.bf16 %v454
      %v583 = vunpack.c.l.bf16 %v455
      %v584 = vunpack.c.l.bf16 %v456
      %v585 = vunpack.c.l.bf16 %v457
      %v586 = vunpack.c.l.bf16 %v458
      %v587 = vunpack.c.l.bf16 %v459
      %v588 = vunpack.c.l.bf16 %v460
      %v589 = vunpack.c.l.bf16 %v461
      %v590 = vunpack.c.l.bf16 %v462
      %v591 = vunpack.c.l.bf16 %v463
      %v592 = vunpack.c.l.bf16 %v464
      %v593 = vunpack.c.l.bf16 %v465
      %v594 = vunpack.c.l.bf16 %v466
      %v595 = vunpack.c.l.bf16 %v467
      %v596 = vunpack.c.l.bf16 %v468
      %v597 = vunpack.c.l.bf16 %v469
      %v598 = vunpack.c.l.bf16 %v470
      %v599 = vunpack.c.l.bf16 %v471
      %v600 = vunpack.c.l.bf16 %v472
      %v601 = vunpack.c.l.bf16 %v473
      %v602 = vunpack.c.l.bf16 %v474
      %v603 = vunpack.c.l.bf16 %v475
      %v604 = vunpack.c.l.bf16 %v476
      %v605 = vunpack.c.l.bf16 %v477
      %v606 = vunpack.c.l.bf16 %v478
      %v607 = vunpack.c.l.bf16 %v479
      %v608 = vunpack.c.l.bf16 %v480
      %v609 = vunpack.c.l.bf16 %v481
      %v610 = vunpack.c.l.bf16 %v482
      %v611 = vunpack.c.l.bf16 %v483
      %v612 = vunpack.c.l.bf16 %v484
      %v613 = vunpack.c.l.bf16 %v485
      %v614 = vunpack.c.l.bf16 %v486
      %v615 = vunpack.c.l.bf16 %v487
      %v616 = vunpack.c.l.bf16 %v488
      %v617 = vunpack.c.l.bf16 %v489
      %v618 = vunpack.c.l.bf16 %v490
      %v619 = vunpack.c.l.bf16 %v491
      %v620 = vunpack.c.l.bf16 %v492
      %v621 = vunpack.c.l.bf16 %v493
      %v622 = vunpack.c.l.bf16 %v494
      %v623 = vunpack.c.l.bf16 %v495
      %v624 = vunpack.c.l.bf16 %v496
      %v625 = vunpack.c.l.bf16 %v497
      %v626 = vunpack.c.l.bf16 %v498
      %v627 = vunpack.c.l.bf16 %v499
      %v628 = vunpack.c.l.bf16 %v500
      %v629 = vunpack.c.l.bf16 %v501
      %v630 = vunpack.c.l.bf16 %v502
      %v631 = vunpack.c.l.bf16 %v503
      %v632 = vunpack.c.l.bf16 %v504
      %s633 = scalar_lea.vmem [#allocation2], 48
      %634 = vst.msk [vmem:[%s633 + $0x8] sm:$0xff] %vm172, %v505
      %635 = vst.msk [vmem:[%s633 + $0x10] sm:$0xff] %vm172, %v506
      %636 = vst.msk [vmem:[%s633 + $0x18] sm:$0xff] %vm172, %v507
      %637 = vst.msk [vmem:[%s633 + $0x20] sm:$0xff] %vm172, %v508
      %638 = vst.msk [vmem:[%s633 + $0x38] sm:$0xff] %vm172, %v509
      %639 = vst.msk [vmem:[%s633 + $0x40] sm:$0xff] %vm172, %v510
      %640 = vst.msk [vmem:[%s633 + $0x48] sm:$0xff] %vm172, %v511
      %641 = vst.msk [vmem:[%s633 + $0x50] sm:$0xff] %vm172, %v512
      %642 = vst.msk [vmem:[%s633 + $0x68] sm:$0xff] %vm172, %v513
      %643 = vst.msk [vmem:[%s633 + $0x70] sm:$0xff] %vm172, %v514
      %644 = vst.msk [vmem:[%s633 + $0x78] sm:$0xff] %vm172, %v515
      %645 = vst.msk [vmem:[%s633 + $0x80] sm:$0xff] %vm172, %v516
      %646 = vst.msk [vmem:[%s633 + $0x98] sm:$0xff] %vm172, %v517
      %647 = vst.msk [vmem:[%s633 + $0xa0] sm:$0xff] %vm172, %v518
      %648 = vst.msk [vmem:[%s633 + $0xa8] sm:$0xff] %vm172, %v519
      %649 = vst.msk [vmem:[%s633 + $0xb0] sm:$0xff] %vm172, %v520
      %650 = vst.msk [vmem:[%s633 + $0xc8] sm:$0xff] %vm172, %v521
      %651 = vst.msk [vmem:[%s633 + $0xd0] sm:$0xff] %vm172, %v522
      %652 = vst.msk [vmem:[%s633 + $0xd8] sm:$0xff] %vm172, %v523
      %653 = vst.msk [vmem:[%s633 + $0xe0] sm:$0xff] %vm172, %v524
      %654 = vst.msk [vmem:[%s633 + $0xf8] sm:$0xff] %vm172, %v525
      %655 = vst.msk [vmem:[%s633 + $0x100] sm:$0xff] %vm172, %v526
      %656 = vst.msk [vmem:[%s633 + $0x108] sm:$0xff] %vm172, %v527
      %657 = vst.msk [vmem:[%s633 + $0x110] sm:$0xff] %vm172, %v528
      %658 = vst.msk [vmem:[%s633 + $0x128] sm:$0xff] %vm172, %v529
      %659 = vst.msk [vmem:[%s633 + $0x130] sm:$0xff] %vm172, %v530
      %660 = vst.msk [vmem:[%s633 + $0x138] sm:$0xff] %vm172, %v531
      %661 = vst.msk [vmem:[%s633 + $0x140] sm:$0xff] %vm172, %v532
      %662 = vst.msk [vmem:[%s633 + $0x158] sm:$0xff] %vm172, %v533
      %663 = vst.msk [vmem:[%s633 + $0x160] sm:$0xff] %vm172, %v534
      %664 = vst.msk [vmem:[%s633 + $0x168] sm:$0xff] %vm172, %v535
      %665 = vst.msk [vmem:[%s633 + $0x170] sm:$0xff] %vm172, %v536
      %666 = vst.msk [vmem:[%s633 + $0x188] sm:$0xff] %vm172, %v537
      %667 = vst.msk [vmem:[%s633 + $0x190] sm:$0xff] %vm172, %v538
      %668 = vst.msk [vmem:[%s633 + $0x198] sm:$0xff] %vm172, %v539
      %669 = vst.msk [vmem:[%s633 + $0x1a0] sm:$0xff] %vm172, %v540
      %670 = vst.msk [vmem:[%s633 + $0x1b8] sm:$0xff] %vm172, %v541
      %671 = vst.msk [vmem:[%s633 + $0x1c0] sm:$0xff] %vm172, %v542
      %672 = vst.msk [vmem:[%s633 + $0x1c8] sm:$0xff] %vm172, %v543
      %673 = vst.msk [vmem:[%s633 + $0x1d0] sm:$0xff] %vm172, %v544
      %674 = vst.msk [vmem:[%s633 + $0x1e8] sm:$0xff] %vm172, %v545
      %675 = vst.msk [vmem:[%s633 + $0x1f0] sm:$0xff] %vm172, %v546
      %676 = vst.msk [vmem:[%s633 + $0x1f8] sm:$0xff] %vm172, %v547
      %677 = vst.msk [vmem:[%s633 + $0x200] sm:$0xff] %vm172, %v548
      %678 = vst.msk [vmem:[%s633 + $0x218] sm:$0xff] %vm172, %v549
      %679 = vst.msk [vmem:[%s633 + $0x220] sm:$0xff] %vm172, %v550
      %680 = vst.msk [vmem:[%s633 + $0x228] sm:$0xff] %vm172, %v551
      %681 = vst.msk [vmem:[%s633 + $0x230] sm:$0xff] %vm172, %v552
      %682 = vst.msk [vmem:[%s633 + $0x248] sm:$0xff] %vm172, %v553
      %683 = vst.msk [vmem:[%s633 + $0x250] sm:$0xff] %vm172, %v554
      %684 = vst.msk [vmem:[%s633 + $0x258] sm:$0xff] %vm172, %v555
      %685 = vst.msk [vmem:[%s633 + $0x260] sm:$0xff] %vm172, %v556
      %686 = vst.msk [vmem:[%s633 + $0x278] sm:$0xff] %vm172, %v557
      %687 = vst.msk [vmem:[%s633 + $0x280] sm:$0xff] %vm172, %v558
      %688 = vst.msk [vmem:[%s633 + $0x288] sm:$0xff] %vm172, %v559
      %689 = vst.msk [vmem:[%s633 + $0x290] sm:$0xff] %vm172, %v560
      %690 = vst.msk [vmem:[%s633 + $0x2a8] sm:$0xff] %vm172, %v561
      %691 = vst.msk [vmem:[%s633 + $0x2b0] sm:$0xff] %vm172, %v562
      %692 = vst.msk [vmem:[%s633 + $0x2b8] sm:$0xff] %vm172, %v563
      %693 = vst.msk [vmem:[%s633 + $0x2c0] sm:$0xff] %vm172, %v564
      %694 = vst.msk [vmem:[%s633 + $0x2d8] sm:$0xff] %vm172, %v565
      %695 = vst.msk [vmem:[%s633 + $0x2e0] sm:$0xff] %vm172, %v566
      %696 = vst.msk [vmem:[%s633 + $0x2e8] sm:$0xff] %vm172, %v567
      %697 = vst.msk [vmem:[%s633 + $0x2f0] sm:$0xff] %vm172, %v568
      %698 = vst.msk [vmem:[%s633 + $0x308] sm:$0xff] %vm172, %v569
      %699 = vst.msk [vmem:[%s633 + $0x310] sm:$0xff] %vm172, %v570
      %700 = vst.msk [vmem:[%s633 + $0x318] sm:$0xff] %vm172, %v571
      %701 = vst.msk [vmem:[%s633 + $0x320] sm:$0xff] %vm172, %v572
      %702 = vst.msk [vmem:[%s633 + $0x338] sm:$0xff] %vm172, %v573
      %703 = vst.msk [vmem:[%s633 + $0x340] sm:$0xff] %vm172, %v574
      %704 = vst.msk [vmem:[%s633 + $0x348] sm:$0xff] %vm172, %v575
      %705 = vst.msk [vmem:[%s633 + $0x350] sm:$0xff] %vm172, %v576
      %706 = vst.msk [vmem:[%s633 + $0x368] sm:$0xff] %vm172, %v577
      %707 = vst.msk [vmem:[%s633 + $0x370] sm:$0xff] %vm172, %v578
      %708 = vst.msk [vmem:[%s633 + $0x378] sm:$0xff] %vm172, %v579
      %709 = vst.msk [vmem:[%s633 + $0x380] sm:$0xff] %vm172, %v580
      %710 = vst.msk [vmem:[%s633 + $0x398] sm:$0xff] %vm172, %v581
      %711 = vst.msk [vmem:[%s633 + $0x3a0] sm:$0xff] %vm172, %v582
      %712 = vst.msk [vmem:[%s633 + $0x3a8] sm:$0xff] %vm172, %v583
      %713 = vst.msk [vmem:[%s633 + $0x3b0] sm:$0xff] %vm172, %v584
      %714 = vst.msk [vmem:[%s633 + $0x3c8] sm:$0xff] %vm172, %v585
      %715 = vst.msk [vmem:[%s633 + $0x3d0] sm:$0xff] %vm172, %v586
      %716 = vst.msk [vmem:[%s633 + $0x3d8] sm:$0xff] %vm172, %v587
      %717 = vst.msk [vmem:[%s633 + $0x3e0] sm:$0xff] %vm172, %v588
      %718 = vst.msk [vmem:[%s633 + $0x3f8] sm:$0xff] %vm172, %v589
      %719 = vst.msk [vmem:[%s633 + $0x400] sm:$0xff] %vm172, %v590
      %720 = vst.msk [vmem:[%s633 + $0x408] sm:$0xff] %vm172, %v591
      %721 = vst.msk [vmem:[%s633 + $0x410] sm:$0xff] %vm172, %v592
      %722 = vst.msk [vmem:[%s633 + $0x428] sm:$0xff] %vm172, %v593
      %723 = vst.msk [vmem:[%s633 + $0x430] sm:$0xff] %vm172, %v594
      %724 = vst.msk [vmem:[%s633 + $0x438] sm:$0xff] %vm172, %v595
      %725 = vst.msk [vmem:[%s633 + $0x440] sm:$0xff] %vm172, %v596
      %726 = vst.msk [vmem:[%s633 + $0x458] sm:$0xff] %vm172, %v597
      %727 = vst.msk [vmem:[%s633 + $0x460] sm:$0xff] %vm172, %v598
      %728 = vst.msk [vmem:[%s633 + $0x468] sm:$0xff] %vm172, %v599
      %729 = vst.msk [vmem:[%s633 + $0x470] sm:$0xff] %vm172, %v600
      %730 = vst.msk [vmem:[%s633 + $0x488] sm:$0xff] %vm172, %v601
      %731 = vst.msk [vmem:[%s633 + $0x490] sm:$0xff] %vm172, %v602
      %732 = vst.msk [vmem:[%s633 + $0x498] sm:$0xff] %vm172, %v603
      %733 = vst.msk [vmem:[%s633 + $0x4a0] sm:$0xff] %vm172, %v604
      %734 = vst.msk [vmem:[%s633 + $0x4b8] sm:$0xff] %vm172, %v605
      %735 = vst.msk [vmem:[%s633 + $0x4c0] sm:$0xff] %vm172, %v606
      %736 = vst.msk [vmem:[%s633 + $0x4c8] sm:$0xff] %vm172, %v607
      %737 = vst.msk [vmem:[%s633 + $0x4d0] sm:$0xff] %vm172, %v608
      %738 = vst.msk [vmem:[%s633 + $0x4e8] sm:$0xff] %vm172, %v609
      %739 = vst.msk [vmem:[%s633 + $0x4f0] sm:$0xff] %vm172, %v610
      %740 = vst.msk [vmem:[%s633 + $0x4f8] sm:$0xff] %vm172, %v611
      %741 = vst.msk [vmem:[%s633 + $0x500] sm:$0xff] %vm172, %v612
      %742 = vst.msk [vmem:[%s633 + $0x518] sm:$0xff] %vm172, %v613
      %743 = vst.msk [vmem:[%s633 + $0x520] sm:$0xff] %vm172, %v614
      %744 = vst.msk [vmem:[%s633 + $0x528] sm:$0xff] %vm172, %v615
      %745 = vst.msk [vmem:[%s633 + $0x530] sm:$0xff] %vm172, %v616
      %746 = vst.msk [vmem:[%s633 + $0x548] sm:$0xff] %vm172, %v617
      %747 = vst.msk [vmem:[%s633 + $0x550] sm:$0xff] %vm172, %v618
      %748 = vst.msk [vmem:[%s633 + $0x558] sm:$0xff] %vm172, %v619
      %749 = vst.msk [vmem:[%s633 + $0x560] sm:$0xff] %vm172, %v620
      %750 = vst.msk [vmem:[%s633 + $0x578] sm:$0xff] %vm172, %v621
      %751 = vst.msk [vmem:[%s633 + $0x580] sm:$0xff] %vm172, %v622
      %752 = vst.msk [vmem:[%s633 + $0x588] sm:$0xff] %vm172, %v623
      %753 = vst.msk [vmem:[%s633 + $0x590] sm:$0xff] %vm172, %v624
      %754 = vst.msk [vmem:[%s633 + $0x5a8] sm:$0xff] %vm172, %v625
      %755 = vst.msk [vmem:[%s633 + $0x5b0] sm:$0xff] %vm172, %v626
      %756 = vst.msk [vmem:[%s633 + $0x5b8] sm:$0xff] %vm172, %v627
      %757 = vst.msk [vmem:[%s633 + $0x5c0] sm:$0xff] %vm172, %v628
      %758 = vst.msk [vmem:[%s633 + $0x5d8] sm:$0xff] %vm172, %v629
      %759 = vst.msk [vmem:[%s633 + $0x5e0] sm:$0xff] %vm172, %v630
      %760 = vst.msk [vmem:[%s633 + $0x5e8] sm:$0xff] %vm172, %v631
      %761 = vst.msk [vmem:[%s633 + $0x5f0] sm:$0xff] %vm172, %v632
      %v762 = vld [vmem:[%s2] sm:$0x1]
      %v764 = vperm.slane %v762, 0
      %v766 = vld [vmem:[#allocation2 + $0x7] sm:$0xff]
      %v767 = vld [vmem:[#allocation2 + $0xf] sm:$0xff]
      %v768 = vld [vmem:[#allocation2 + $0x17] sm:$0xff]
      %v769 = vld [vmem:[#allocation2 + $0x1f] sm:$0xff]
      %v770 = vld [vmem:[#allocation2 + $0x37] sm:$0xff]
      %v771 = vld [vmem:[#allocation2 + $0x3f] sm:$0xff]
      %v772 = vld [vmem:[#allocation2 + $0x47] sm:$0xff]
      %v773 = vld [vmem:[#allocation2 + $0x4f] sm:$0xff]
      %v774 = vld [vmem:[#allocation2 + $0x67] sm:$0xff]
      %v775 = vld [vmem:[#allocation2 + $0x6f] sm:$0xff]
      %v776 = vld [vmem:[#allocation2 + $0x77] sm:$0xff]
      %v777 = vld [vmem:[#allocation2 + $0x7f] sm:$0xff]
      %v778 = vld [vmem:[#allocation2 + $0x97] sm:$0xff]
      %v779 = vld [vmem:[#allocation2 + $0x9f] sm:$0xff]
      %v780 = vld [vmem:[#allocation2 + $0xa7] sm:$0xff]
      %v781 = vld [vmem:[#allocation2 + $0xaf] sm:$0xff]
      %v782 = vld [vmem:[#allocation2 + $0xc7] sm:$0xff]
      %v783 = vld [vmem:[#allocation2 + $0xcf] sm:$0xff]
      %v784 = vld [vmem:[#allocation2 + $0xd7] sm:$0xff]
      %v785 = vld [vmem:[#allocation2 + $0xdf] sm:$0xff]
      %v786 = vld [vmem:[#allocation2 + $0xf7] sm:$0xff]
      %v787 = vld [vmem:[#allocation2 + $0xff] sm:$0xff]
      %v788 = vld [vmem:[#allocation2 + $0x107] sm:$0xff]
      %v789 = vld [vmem:[#allocation2 + $0x10f] sm:$0xff]
      %v790 = vld [vmem:[#allocation2 + $0x127] sm:$0xff]
      %v791 = vld [vmem:[#allocation2 + $0x12f] sm:$0xff]
      %v792 = vld [vmem:[#allocation2 + $0x137] sm:$0xff]
      %v793 = vld [vmem:[#allocation2 + $0x13f] sm:$0xff]
      %v794 = vld [vmem:[#allocation2 + $0x157] sm:$0xff]
      %v795 = vld [vmem:[#allocation2 + $0x15f] sm:$0xff]
      %v796 = vld [vmem:[#allocation2 + $0x167] sm:$0xff]
      %v797 = vld [vmem:[#allocation2 + $0x16f] sm:$0xff]
      %v798 = vld [vmem:[#allocation2 + $0x187] sm:$0xff]
      %v799 = vld [vmem:[#allocation2 + $0x18f] sm:$0xff]
      %v800 = vld [vmem:[#allocation2 + $0x197] sm:$0xff]
      %v801 = vld [vmem:[#allocation2 + $0x19f] sm:$0xff]
      %v802 = vld [vmem:[#allocation2 + $0x1b7] sm:$0xff]
      %v803 = vld [vmem:[#allocation2 + $0x1bf] sm:$0xff]
      %v804 = vld [vmem:[#allocation2 + $0x1c7] sm:$0xff]
      %v805 = vld [vmem:[#allocation2 + $0x1cf] sm:$0xff]
      %v806 = vld [vmem:[#allocation2 + $0x1e7] sm:$0xff]
      %v807 = vld [vmem:[#allocation2 + $0x1ef] sm:$0xff]
      %v808 = vld [vmem:[#allocation2 + $0x1f7] sm:$0xff]
      %v809 = vld [vmem:[#allocation2 + $0x1ff] sm:$0xff]
      %v810 = vld [vmem:[#allocation2 + $0x217] sm:$0xff]
      %v811 = vld [vmem:[#allocation2 + $0x21f] sm:$0xff]
      %v812 = vld [vmem:[#allocation2 + $0x227] sm:$0xff]
      %v813 = vld [vmem:[#allocation2 + $0x22f] sm:$0xff]
      %v814 = vld [vmem:[#allocation2 + $0x247] sm:$0xff]
      %v815 = vld [vmem:[#allocation2 + $0x24f] sm:$0xff]
      %v816 = vld [vmem:[#allocation2 + $0x257] sm:$0xff]
      %v817 = vld [vmem:[#allocation2 + $0x25f] sm:$0xff]
      %v818 = vld [vmem:[#allocation2 + $0x277] sm:$0xff]
      %v819 = vld [vmem:[#allocation2 + $0x27f] sm:$0xff]
      %v820 = vld [vmem:[#allocation2 + $0x287] sm:$0xff]
      %v821 = vld [vmem:[#allocation2 + $0x28f] sm:$0xff]
      %v822 = vld [vmem:[#allocation2 + $0x2a7] sm:$0xff]
      %v823 = vld [vmem:[#allocation2 + $0x2af] sm:$0xff]
      %v824 = vld [vmem:[#allocation2 + $0x2b7] sm:$0xff]
      %v825 = vld [vmem:[#allocation2 + $0x2bf] sm:$0xff]
      %v826 = vld [vmem:[#allocation2 + $0x2d7] sm:$0xff]
      %v827 = vld [vmem:[#allocation2 + $0x2df] sm:$0xff]
      %v828 = vld [vmem:[#allocation2 + $0x2e7] sm:$0xff]
      %v829 = vld [vmem:[#allocation2 + $0x2ef] sm:$0xff]
      %v830 = vld [vmem:[#allocation2 + $0x307] sm:$0xff]
      %v831 = vld [vmem:[#allocation2 + $0x30f] sm:$0xff]
      %v832 = vld [vmem:[#allocation2 + $0x317] sm:$0xff]
      %v833 = vld [vmem:[#allocation2 + $0x31f] sm:$0xff]
      %v834 = vld [vmem:[#allocation2 + $0x337] sm:$0xff]
      %v835 = vld [vmem:[#allocation2 + $0x33f] sm:$0xff]
      %v836 = vld [vmem:[#allocation2 + $0x347] sm:$0xff]
      %v837 = vld [vmem:[#allocation2 + $0x34f] sm:$0xff]
      %v838 = vld [vmem:[#allocation2 + $0x367] sm:$0xff]
      %v839 = vld [vmem:[#allocation2 + $0x36f] sm:$0xff]
      %v840 = vld [vmem:[#allocation2 + $0x377] sm:$0xff]
      %v841 = vld [vmem:[#allocation2 + $0x37f] sm:$0xff]
      %v842 = vld [vmem:[#allocation2 + $0x397] sm:$0xff]
      %v843 = vld [vmem:[#allocation2 + $0x39f] sm:$0xff]
      %v844 = vld [vmem:[#allocation2 + $0x3a7] sm:$0xff]
      %v845 = vld [vmem:[#allocation2 + $0x3af] sm:$0xff]
      %v846 = vld [vmem:[#allocation2 + $0x3c7] sm:$0xff]
      %v847 = vld [vmem:[#allocation2 + $0x3cf] sm:$0xff]
      %v848 = vld [vmem:[#allocation2 + $0x3d7] sm:$0xff]
      %v849 = vld [vmem:[#allocation2 + $0x3df] sm:$0xff]
      %v850 = vld [vmem:[#allocation2 + $0x3f7] sm:$0xff]
      %v851 = vld [vmem:[#allocation2 + $0x3ff] sm:$0xff]
      %v852 = vld [vmem:[#allocation2 + $0x407] sm:$0xff]
      %v853 = vld [vmem:[#allocation2 + $0x40f] sm:$0xff]
      %v854 = vld [vmem:[#allocation2 + $0x427] sm:$0xff]
      %v855 = vld [vmem:[#allocation2 + $0x42f] sm:$0xff]
      %v856 = vld [vmem:[#allocation2 + $0x437] sm:$0xff]
      %v857 = vld [vmem:[#allocation2 + $0x43f] sm:$0xff]
      %v858 = vld [vmem:[#allocation2 + $0x457] sm:$0xff]
      %v859 = vld [vmem:[#allocation2 + $0x45f] sm:$0xff]
      %v860 = vld [vmem:[#allocation2 + $0x467] sm:$0xff]
      %v861 = vld [vmem:[#allocation2 + $0x46f] sm:$0xff]
      %v862 = vld [vmem:[#allocation2 + $0x487] sm:$0xff]
      %v863 = vld [vmem:[#allocation2 + $0x48f] sm:$0xff]
      %v864 = vld [vmem:[#allocation2 + $0x497] sm:$0xff]
      %v865 = vld [vmem:[#allocation2 + $0x49f] sm:$0xff]
      %v866 = vld [vmem:[#allocation2 + $0x4b7] sm:$0xff]
      %v867 = vld [vmem:[#allocation2 + $0x4bf] sm:$0xff]
      %v868 = vld [vmem:[#allocation2 + $0x4c7] sm:$0xff]
      %v869 = vld [vmem:[#allocation2 + $0x4cf] sm:$0xff]
      %v870 = vld [vmem:[#allocation2 + $0x4e7] sm:$0xff]
      %v871 = vld [vmem:[#allocation2 + $0x4ef] sm:$0xff]
      %v872 = vld [vmem:[#allocation2 + $0x4f7] sm:$0xff]
      %v873 = vld [vmem:[#allocation2 + $0x4ff] sm:$0xff]
      %v874 = vld [vmem:[#allocation2 + $0x517] sm:$0xff]
      %v875 = vld [vmem:[#allocation2 + $0x51f] sm:$0xff]
      %v876 = vld [vmem:[#allocation2 + $0x527] sm:$0xff]
      %v877 = vld [vmem:[#allocation2 + $0x52f] sm:$0xff]
      %v878 = vld [vmem:[#allocation2 + $0x547] sm:$0xff]
      %v879 = vld [vmem:[#allocation2 + $0x54f] sm:$0xff]
      %v880 = vld [vmem:[#allocation2 + $0x557] sm:$0xff]
      %v881 = vld [vmem:[#allocation2 + $0x55f] sm:$0xff]
      %v882 = vld [vmem:[#allocation2 + $0x577] sm:$0xff]
      %v883 = vld [vmem:[#allocation2 + $0x57f] sm:$0xff]
      %v884 = vld [vmem:[#allocation2 + $0x587] sm:$0xff]
      %v885 = vld [vmem:[#allocation2 + $0x58f] sm:$0xff]
      %v886 = vld [vmem:[#allocation2 + $0x5a7] sm:$0xff]
      %v887 = vld [vmem:[#allocation2 + $0x5af] sm:$0xff]
      %v888 = vld [vmem:[#allocation2 + $0x5b7] sm:$0xff]
      %v889 = vld [vmem:[#allocation2 + $0x5bf] sm:$0xff]
      %v890 = vld [vmem:[#allocation2 + $0x5d7] sm:$0xff]
      %v891 = vld [vmem:[#allocation2 + $0x5df] sm:$0xff]
      %v892 = vld [vmem:[#allocation2 + $0x5e7] sm:$0xff]
      %v893 = vld [vmem:[#allocation2 + $0x5ef] sm:$0xff]
      %v894 = vpack.c.bf16 %v767, %v766
      %v895 = vpack.c.bf16 %v769, %v768
      %v896 = vpack.c.bf16 %v771, %v770
      %v897 = vpack.c.bf16 %v773, %v772
      %v898 = vpack.c.bf16 %v775, %v774
      %v899 = vpack.c.bf16 %v777, %v776
      %v900 = vpack.c.bf16 %v779, %v778
      %v901 = vpack.c.bf16 %v781, %v780
      %v902 = vpack.c.bf16 %v783, %v782
      %v903 = vpack.c.bf16 %v785, %v784
      %v904 = vpack.c.bf16 %v787, %v786
      %v905 = vpack.c.bf16 %v789, %v788
      %v906 = vpack.c.bf16 %v791, %v790
      %v907 = vpack.c.bf16 %v793, %v792
      %v908 = vpack.c.bf16 %v795, %v794
      %v909 = vpack.c.bf16 %v797, %v796
      %v910 = vpack.c.bf16 %v799, %v798
      %v911 = vpack.c.bf16 %v801, %v800
      %v912 = vpack.c.bf16 %v803, %v802
      %v913 = vpack.c.bf16 %v805, %v804
      %v914 = vpack.c.bf16 %v807, %v806
      %v915 = vpack.c.bf16 %v809, %v808
      %v916 = vpack.c.bf16 %v811, %v810
      %v917 = vpack.c.bf16 %v813, %v812
      %v918 = vpack.c.bf16 %v815, %v814
      %v919 = vpack.c.bf16 %v817, %v816
      %v920 = vpack.c.bf16 %v819, %v818
      %v921 = vpack.c.bf16 %v821, %v820
      %v922 = vpack.c.bf16 %v823, %v822
      %v923 = vpack.c.bf16 %v825, %v824
      %v924 = vpack.c.bf16 %v827, %v826
      %v925 = vpack.c.bf16 %v829, %v828
      %v926 = vpack.c.bf16 %v831, %v830
      %v927 = vpack.c.bf16 %v833, %v832
      %v928 = vpack.c.bf16 %v835, %v834
      %v929 = vpack.c.bf16 %v837, %v836
      %v930 = vpack.c.bf16 %v839, %v838
      %v931 = vpack.c.bf16 %v841, %v840
      %v932 = vpack.c.bf16 %v843, %v842
      %v933 = vpack.c.bf16 %v845, %v844
      %v934 = vpack.c.bf16 %v847, %v846
      %v935 = vpack.c.bf16 %v849, %v848
      %v936 = vpack.c.bf16 %v851, %v850
      %v937 = vpack.c.bf16 %v853, %v852
      %v938 = vpack.c.bf16 %v855, %v854
      %v939 = vpack.c.bf16 %v857, %v856
      %v940 = vpack.c.bf16 %v859, %v858
      %v941 = vpack.c.bf16 %v861, %v860
      %v942 = vpack.c.bf16 %v863, %v862
      %v943 = vpack.c.bf16 %v865, %v864
      %v944 = vpack.c.bf16 %v867, %v866
      %v945 = vpack.c.bf16 %v869, %v868
      %v946 = vpack.c.bf16 %v871, %v870
      %v947 = vpack.c.bf16 %v873, %v872
      %v948 = vpack.c.bf16 %v875, %v874
      %v949 = vpack.c.bf16 %v877, %v876
      %v950 = vpack.c.bf16 %v879, %v878
      %v951 = vpack.c.bf16 %v881, %v880
      %v952 = vpack.c.bf16 %v883, %v882
      %v953 = vpack.c.bf16 %v885, %v884
      %v954 = vpack.c.bf16 %v887, %v886
      %v955 = vpack.c.bf16 %v889, %v888
      %v956 = vpack.c.bf16 %v891, %v890
      %v957 = vpack.c.bf16 %v893, %v892
      %v958 = vld [vmem:[%s1] sm:$0x3]
      %v960 = vsel %vm172, %v894, 0
      %v963 = vsel %vm172, %v895, 0
      %v966 = vsel %vm172, %v896, 0
      %v969 = vsel %vm172, %v897, 0
      %v972 = vsel %vm172, %v898, 0
      %v975 = vsel %vm172, %v899, 0
      %v978 = vsel %vm172, %v900, 0
      %v981 = vsel %vm172, %v901, 0
      %v984 = vsel %vm172, %v902, 0
      %v987 = vsel %vm172, %v903, 0
      %v990 = vsel %vm172, %v904, 0
      %v993 = vsel %vm172, %v905, 0
      %v996 = vsel %vm172, %v906, 0
      %v999 = vsel %vm172, %v907, 0
      %v1002 = vsel %vm172, %v908, 0
      %v1005 = vsel %vm172, %v909, 0
      %v1008 = vsel %vm172, %v910, 0
      %v1011 = vsel %vm172, %v911, 0
      %v1014 = vsel %vm172, %v912, 0
      %v1017 = vsel %vm172, %v913, 0
      %v1020 = vsel %vm172, %v914, 0
      %v1023 = vsel %vm172, %v915, 0
      %v1026 = vsel %vm172, %v916, 0
      %v1029 = vsel %vm172, %v917, 0
      %v1032 = vsel %vm172, %v918, 0
      %v1035 = vsel %vm172, %v919, 0
      %v1038 = vsel %vm172, %v920, 0
      %v1041 = vsel %vm172, %v921, 0
      %v1044 = vsel %vm172, %v922, 0
      %v1047 = vsel %vm172, %v923, 0
      %v1050 = vsel %vm172, %v924, 0
      %v1053 = vsel %vm172, %v925, 0
      %v1056 = vsel %vm172, %v926, 0
      %v1059 = vsel %vm172, %v927, 0
      %v1062 = vsel %vm172, %v928, 0
      %v1065 = vsel %vm172, %v929, 0
      %v1068 = vsel %vm172, %v930, 0
      %v1071 = vsel %vm172, %v931, 0
      %v1074 = vsel %vm172, %v932, 0
      %v1077 = vsel %vm172, %v933, 0
      %v1080 = vsel %vm172, %v934, 0
      %v1083 = vsel %vm172, %v935, 0
      %v1086 = vsel %vm172, %v936, 0
      %v1089 = vsel %vm172, %v937, 0
      %v1092 = vsel %vm172, %v938, 0
      %v1095 = vsel %vm172, %v939, 0
      %v1098 = vsel %vm172, %v940, 0
      %v1101 = vsel %vm172, %v941, 0
      %v1104 = vsel %vm172, %v942, 0
      %v1107 = vsel %vm172, %v943, 0
      %v1110 = vsel %vm172, %v944, 0
      %v1113 = vsel %vm172, %v945, 0
      %v1116 = vsel %vm172, %v946, 0
      %v1119 = vsel %vm172, %v947, 0
      %v1122 = vsel %vm172, %v948, 0
      %v1125 = vsel %vm172, %v949, 0
      %v1128 = vsel %vm172, %v950, 0
      %v1131 = vsel %vm172, %v951, 0
      %v1134 = vsel %vm172, %v952, 0
      %v1137 = vsel %vm172, %v953, 0
      %v1140 = vsel %vm172, %v954, 0
      %v1143 = vsel %vm172, %v955, 0
      %v1146 = vsel %vm172, %v956, 0
      %v1149 = vsel %vm172, %v957, 0
      %vm1151 = vcmask 1040384
      %vm1152 = vcmask 1041408
      %v1153 = vsel %vm1151, 4294967295, 65535
      %v1154 = vsel %vm1152, %v1153, 0
      %v1156 = vand.u32 %v958, %v1154
      %1158 = vmatpush.bf16.msra.mxu0 0
      %1159 = vmatpush.bf16.msra.mxu0 0
      %1160 = vmatpush.bf16.msra.mxu0 0
      %1161 = vmatpush.bf16.msra.mxu0 0
      %1162 = vmatpush.bf16.msra.mxu0 0
      %1163 = vmatpush.bf16.msra.mxu0 0
      %1164 = vmatpush.bf16.msra.mxu0 0
      %1165 = vmatpush.bf16.msra.mxu0 %v1156
      %1166 = vmatmul.bf16.gmra.mxu0 %v960
      %v1167 = vpop.f32.mrf.mxu0
      %v1168 = vadd.f32 0.0, %v1167
      %v1169 = vpop.f32.mrf.mxu0
      %v1170 = vadd.f32 0.0, %v1169
      %1171 = vmatmul.bf16.gmra.mxu0 %v963
      %v1172 = vpop.f32.mrf.mxu0
      %v1173 = vadd.f32 0.0, %v1172
      %v1174 = vpop.f32.mrf.mxu0
      %v1175 = vadd.f32 0.0, %v1174
      %1176 = vmatmul.bf16.gmra.mxu0 %v966
      %v1177 = vpop.f32.mrf.mxu0
      %v1178 = vadd.f32 0.0, %v1177
      %v1179 = vpop.f32.mrf.mxu0
      %v1180 = vadd.f32 0.0, %v1179
      %1181 = vmatmul.bf16.gmra.mxu0 %v969
      %v1182 = vpop.f32.mrf.mxu0
      %v1183 = vadd.f32 0.0, %v1182
      %v1184 = vpop.f32.mrf.mxu0
      %v1185 = vadd.f32 0.0, %v1184
      %1186 = vmatmul.bf16.gmra.mxu0 %v972
      %v1187 = vpop.f32.mrf.mxu0
      %v1188 = vadd.f32 0.0, %v1187
      %v1189 = vpop.f32.mrf.mxu0
      %v1190 = vadd.f32 0.0, %v1189
      %1191 = vmatmul.bf16.gmra.mxu0 %v975
      %v1192 = vpop.f32.mrf.mxu0
      %v1193 = vadd.f32 0.0, %v1192
      %v1194 = vpop.f32.mrf.mxu0
      %v1195 = vadd.f32 0.0, %v1194
      %1196 = vmatmul.bf16.gmra.mxu0 %v978
      %v1197 = vpop.f32.mrf.mxu0
      %v1198 = vadd.f32 0.0, %v1197
      %v1199 = vpop.f32.mrf.mxu0
      %v1200 = vadd.f32 0.0, %v1199
      %1201 = vmatmul.bf16.gmra.mxu0 %v981
      %v1202 = vpop.f32.mrf.mxu0
      %v1203 = vadd.f32 0.0, %v1202
      %v1204 = vpop.f32.mrf.mxu0
      %v1205 = vadd.f32 0.0, %v1204
      %1206 = vmatmul.bf16.gmra.mxu0 %v984
      %v1207 = vpop.f32.mrf.mxu0
      %v1208 = vadd.f32 0.0, %v1207
      %v1209 = vpop.f32.mrf.mxu0
      %v1210 = vadd.f32 0.0, %v1209
      %1211 = vmatmul.bf16.gmra.mxu0 %v987
      %v1212 = vpop.f32.mrf.mxu0
      %v1213 = vadd.f32 0.0, %v1212
      %v1214 = vpop.f32.mrf.mxu0
      %v1215 = vadd.f32 0.0, %v1214
      %1216 = vmatmul.bf16.gmra.mxu0 %v990
      %v1217 = vpop.f32.mrf.mxu0
      %v1218 = vadd.f32 0.0, %v1217
      %v1219 = vpop.f32.mrf.mxu0
      %v1220 = vadd.f32 0.0, %v1219
      %1221 = vmatmul.bf16.gmra.mxu0 %v993
      %v1222 = vpop.f32.mrf.mxu0
      %v1223 = vadd.f32 0.0, %v1222
      %v1224 = vpop.f32.mrf.mxu0
      %v1225 = vadd.f32 0.0, %v1224
      %1226 = vmatmul.bf16.gmra.mxu0 %v996
      %v1227 = vpop.f32.mrf.mxu0
      %v1228 = vadd.f32 0.0, %v1227
      %v1229 = vpop.f32.mrf.mxu0
      %v1230 = vadd.f32 0.0, %v1229
      %1231 = vmatmul.bf16.gmra.mxu0 %v999
      %v1232 = vpop.f32.mrf.mxu0
      %v1233 = vadd.f32 0.0, %v1232
      %v1234 = vpop.f32.mrf.mxu0
      %v1235 = vadd.f32 0.0, %v1234
      %1236 = vmatmul.bf16.gmra.mxu0 %v1002
      %v1237 = vpop.f32.mrf.mxu0
      %v1238 = vadd.f32 0.0, %v1237
      %v1239 = vpop.f32.mrf.mxu0
      %v1240 = vadd.f32 0.0, %v1239
      %1241 = vmatmul.bf16.gmra.mxu0 %v1005
      %v1242 = vpop.f32.mrf.mxu0
      %v1243 = vadd.f32 0.0, %v1242
      %v1244 = vpop.f32.mrf.mxu0
      %v1245 = vadd.f32 0.0, %v1244
      %1246 = vmatmul.bf16.gmra.mxu0 %v1008
      %v1247 = vpop.f32.mrf.mxu0
      %v1248 = vadd.f32 0.0, %v1247
      %v1249 = vpop.f32.mrf.mxu0
      %v1250 = vadd.f32 0.0, %v1249
      %1251 = vmatmul.bf16.gmra.mxu0 %v1011
      %v1252 = vpop.f32.mrf.mxu0
      %v1253 = vadd.f32 0.0, %v1252
      %v1254 = vpop.f32.mrf.mxu0
      %v1255 = vadd.f32 0.0, %v1254
      %1256 = vmatmul.bf16.gmra.mxu0 %v1014
      %v1257 = vpop.f32.mrf.mxu0
      %v1258 = vadd.f32 0.0, %v1257
      %v1259 = vpop.f32.mrf.mxu0
      %v1260 = vadd.f32 0.0, %v1259
      %1261 = vmatmul.bf16.gmra.mxu0 %v1017
      %v1262 = vpop.f32.mrf.mxu0
      %v1263 = vadd.f32 0.0, %v1262
      %v1264 = vpop.f32.mrf.mxu0
      %v1265 = vadd.f32 0.0, %v1264
      %1266 = vmatmul.bf16.gmra.mxu0 %v1020
      %v1267 = vpop.f32.mrf.mxu0
      %v1268 = vadd.f32 0.0, %v1267
      %v1269 = vpop.f32.mrf.mxu0
      %v1270 = vadd.f32 0.0, %v1269
      %1271 = vmatmul.bf16.gmra.mxu0 %v1023
      %v1272 = vpop.f32.mrf.mxu0
      %v1273 = vadd.f32 0.0, %v1272
      %v1274 = vpop.f32.mrf.mxu0
      %v1275 = vadd.f32 0.0, %v1274
      %1276 = vmatmul.bf16.gmra.mxu0 %v1026
      %v1277 = vpop.f32.mrf.mxu0
      %v1278 = vadd.f32 0.0, %v1277
      %v1279 = vpop.f32.mrf.mxu0
      %v1280 = vadd.f32 0.0, %v1279
      %1281 = vmatmul.bf16.gmra.mxu0 %v1029
      %v1282 = vpop.f32.mrf.mxu0
      %v1283 = vadd.f32 0.0, %v1282
      %v1284 = vpop.f32.mrf.mxu0
      %v1285 = vadd.f32 0.0, %v1284
      %1286 = vmatmul.bf16.gmra.mxu0 %v1032
      %v1287 = vpop.f32.mrf.mxu0
      %v1288 = vadd.f32 0.0, %v1287
      %v1289 = vpop.f32.mrf.mxu0
      %v1290 = vadd.f32 0.0, %v1289
      %1291 = vmatmul.bf16.gmra.mxu0 %v1035
      %v1292 = vpop.f32.mrf.mxu0
      %v1293 = vadd.f32 0.0, %v1292
      %v1294 = vpop.f32.mrf.mxu0
      %v1295 = vadd.f32 0.0, %v1294
      %1296 = vmatmul.bf16.gmra.mxu0 %v1038
      %v1297 = vpop.f32.mrf.mxu0
      %v1298 = vadd.f32 0.0, %v1297
      %v1299 = vpop.f32.mrf.mxu0
      %v1300 = vadd.f32 0.0, %v1299
      %1301 = vmatmul.bf16.gmra.mxu0 %v1041
      %v1302 = vpop.f32.mrf.mxu0
      %v1303 = vadd.f32 0.0, %v1302
      %v1304 = vpop.f32.mrf.mxu0
      %v1305 = vadd.f32 0.0, %v1304
      %1306 = vmatmul.bf16.gmra.mxu0 %v1044
      %v1307 = vpop.f32.mrf.mxu0
      %v1308 = vadd.f32 0.0, %v1307
      %v1309 = vpop.f32.mrf.mxu0
      %v1310 = vadd.f32 0.0, %v1309
      %1311 = vmatmul.bf16.gmra.mxu0 %v1047
      %v1312 = vpop.f32.mrf.mxu0
      %v1313 = vadd.f32 0.0, %v1312
      %v1314 = vpop.f32.mrf.mxu0
      %v1315 = vadd.f32 0.0, %v1314
      %1316 = vmatmul.bf16.gmra.mxu0 %v1050
      %v1317 = vpop.f32.mrf.mxu0
      %v1318 = vadd.f32 0.0, %v1317
      %v1319 = vpop.f32.mrf.mxu0
      %v1320 = vadd.f32 0.0, %v1319
      %1321 = vmatmul.bf16.gmra.mxu0 %v1053
      %v1322 = vpop.f32.mrf.mxu0
      %v1323 = vadd.f32 0.0, %v1322
      %v1324 = vpop.f32.mrf.mxu0
      %v1325 = vadd.f32 0.0, %v1324
      %1326 = vmatmul.bf16.gmra.mxu0 %v1056
      %v1327 = vpop.f32.mrf.mxu0
      %v1328 = vadd.f32 0.0, %v1327
      %v1329 = vpop.f32.mrf.mxu0
      %v1330 = vadd.f32 0.0, %v1329
      %1331 = vmatmul.bf16.gmra.mxu0 %v1059
      %v1332 = vpop.f32.mrf.mxu0
      %v1333 = vadd.f32 0.0, %v1332
      %v1334 = vpop.f32.mrf.mxu0
      %v1335 = vadd.f32 0.0, %v1334
      %1336 = vmatmul.bf16.gmra.mxu0 %v1062
      %v1337 = vpop.f32.mrf.mxu0
      %v1338 = vadd.f32 0.0, %v1337
      %v1339 = vpop.f32.mrf.mxu0
      %v1340 = vadd.f32 0.0, %v1339
      %1341 = vmatmul.bf16.gmra.mxu0 %v1065
      %v1342 = vpop.f32.mrf.mxu0
      %v1343 = vadd.f32 0.0, %v1342
      %v1344 = vpop.f32.mrf.mxu0
      %v1345 = vadd.f32 0.0, %v1344
      %1346 = vmatmul.bf16.gmra.mxu0 %v1068
      %v1347 = vpop.f32.mrf.mxu0
      %v1348 = vadd.f32 0.0, %v1347
      %v1349 = vpop.f32.mrf.mxu0
      %v1350 = vadd.f32 0.0, %v1349
      %1351 = vmatmul.bf16.gmra.mxu0 %v1071
      %v1352 = vpop.f32.mrf.mxu0
      %v1353 = vadd.f32 0.0, %v1352
      %v1354 = vpop.f32.mrf.mxu0
      %v1355 = vadd.f32 0.0, %v1354
      %1356 = vmatmul.bf16.gmra.mxu0 %v1074
      %v1357 = vpop.f32.mrf.mxu0
      %v1358 = vadd.f32 0.0, %v1357
      %v1359 = vpop.f32.mrf.mxu0
      %v1360 = vadd.f32 0.0, %v1359
      %1361 = vmatmul.bf16.gmra.mxu0 %v1077
      %v1362 = vpop.f32.mrf.mxu0
      %v1363 = vadd.f32 0.0, %v1362
      %v1364 = vpop.f32.mrf.mxu0
      %v1365 = vadd.f32 0.0, %v1364
      %1366 = vmatmul.bf16.gmra.mxu0 %v1080
      %v1367 = vpop.f32.mrf.mxu0
      %v1368 = vadd.f32 0.0, %v1367
      %v1369 = vpop.f32.mrf.mxu0
      %v1370 = vadd.f32 0.0, %v1369
      %1371 = vmatmul.bf16.gmra.mxu0 %v1083
      %v1372 = vpop.f32.mrf.mxu0
      %v1373 = vadd.f32 0.0, %v1372
      %v1374 = vpop.f32.mrf.mxu0
      %v1375 = vadd.f32 0.0, %v1374
      %1376 = vmatmul.bf16.gmra.mxu0 %v1086
      %v1377 = vpop.f32.mrf.mxu0
      %v1378 = vadd.f32 0.0, %v1377
      %v1379 = vpop.f32.mrf.mxu0
      %v1380 = vadd.f32 0.0, %v1379
      %1381 = vmatmul.bf16.gmra.mxu0 %v1089
      %v1382 = vpop.f32.mrf.mxu0
      %v1383 = vadd.f32 0.0, %v1382
      %v1384 = vpop.f32.mrf.mxu0
      %v1385 = vadd.f32 0.0, %v1384
      %1386 = vmatmul.bf16.gmra.mxu0 %v1092
      %v1387 = vpop.f32.mrf.mxu0
      %v1388 = vadd.f32 0.0, %v1387
      %v1389 = vpop.f32.mrf.mxu0
      %v1390 = vadd.f32 0.0, %v1389
      %1391 = vmatmul.bf16.gmra.mxu0 %v1095
      %v1392 = vpop.f32.mrf.mxu0
      %v1393 = vadd.f32 0.0, %v1392
      %v1394 = vpop.f32.mrf.mxu0
      %v1395 = vadd.f32 0.0, %v1394
      %1396 = vmatmul.bf16.gmra.mxu0 %v1098
      %v1397 = vpop.f32.mrf.mxu0
      %v1398 = vadd.f32 0.0, %v1397
      %v1399 = vpop.f32.mrf.mxu0
      %v1400 = vadd.f32 0.0, %v1399
      %1401 = vmatmul.bf16.gmra.mxu0 %v1101
      %v1402 = vpop.f32.mrf.mxu0
      %v1403 = vadd.f32 0.0, %v1402
      %v1404 = vpop.f32.mrf.mxu0
      %v1405 = vadd.f32 0.0, %v1404
      %1406 = vmatmul.bf16.gmra.mxu0 %v1104
      %v1407 = vpop.f32.mrf.mxu0
      %v1408 = vadd.f32 0.0, %v1407
      %v1409 = vpop.f32.mrf.mxu0
      %v1410 = vadd.f32 0.0, %v1409
      %1411 = vmatmul.bf16.gmra.mxu0 %v1107
      %v1412 = vpop.f32.mrf.mxu0
      %v1413 = vadd.f32 0.0, %v1412
      %v1414 = vpop.f32.mrf.mxu0
      %v1415 = vadd.f32 0.0, %v1414
      %1416 = vmatmul.bf16.gmra.mxu0 %v1110
      %v1417 = vpop.f32.mrf.mxu0
      %v1418 = vadd.f32 0.0, %v1417
      %v1419 = vpop.f32.mrf.mxu0
      %v1420 = vadd.f32 0.0, %v1419
      %1421 = vmatmul.bf16.gmra.mxu0 %v1113
      %v1422 = vpop.f32.mrf.mxu0
      %v1423 = vadd.f32 0.0, %v1422
      %v1424 = vpop.f32.mrf.mxu0
      %v1425 = vadd.f32 0.0, %v1424
      %1426 = vmatmul.bf16.gmra.mxu0 %v1116
      %v1427 = vpop.f32.mrf.mxu0
      %v1428 = vadd.f32 0.0, %v1427
      %v1429 = vpop.f32.mrf.mxu0
      %v1430 = vadd.f32 0.0, %v1429
      %1431 = vmatmul.bf16.gmra.mxu0 %v1119
      %v1432 = vpop.f32.mrf.mxu0
      %v1433 = vadd.f32 0.0, %v1432
      %v1434 = vpop.f32.mrf.mxu0
      %v1435 = vadd.f32 0.0, %v1434
      %1436 = vmatmul.bf16.gmra.mxu0 %v1122
      %v1437 = vpop.f32.mrf.mxu0
      %v1438 = vadd.f32 0.0, %v1437
      %v1439 = vpop.f32.mrf.mxu0
      %v1440 = vadd.f32 0.0, %v1439
      %1441 = vmatmul.bf16.gmra.mxu0 %v1125
      %v1442 = vpop.f32.mrf.mxu0
      %v1443 = vadd.f32 0.0, %v1442
      %v1444 = vpop.f32.mrf.mxu0
      %v1445 = vadd.f32 0.0, %v1444
      %1446 = vmatmul.bf16.gmra.mxu0 %v1128
      %v1447 = vpop.f32.mrf.mxu0
      %v1448 = vadd.f32 0.0, %v1447
      %v1449 = vpop.f32.mrf.mxu0
      %v1450 = vadd.f32 0.0, %v1449
      %1451 = vmatmul.bf16.gmra.mxu0 %v1131
      %v1452 = vpop.f32.mrf.mxu0
      %v1453 = vadd.f32 0.0, %v1452
      %v1454 = vpop.f32.mrf.mxu0
      %v1455 = vadd.f32 0.0, %v1454
      %1456 = vmatmul.bf16.gmra.mxu0 %v1134
      %v1457 = vpop.f32.mrf.mxu0
      %v1458 = vadd.f32 0.0, %v1457
      %v1459 = vpop.f32.mrf.mxu0
      %v1460 = vadd.f32 0.0, %v1459
      %1461 = vmatmul.bf16.gmra.mxu0 %v1137
      %v1462 = vpop.f32.mrf.mxu0
      %v1463 = vadd.f32 0.0, %v1462
      %v1464 = vpop.f32.mrf.mxu0
      %v1465 = vadd.f32 0.0, %v1464
      %1466 = vmatmul.bf16.gmra.mxu0 %v1140
      %v1467 = vpop.f32.mrf.mxu0
      %v1468 = vadd.f32 0.0, %v1467
      %v1469 = vpop.f32.mrf.mxu0
      %v1470 = vadd.f32 0.0, %v1469
      %1471 = vmatmul.bf16.gmra.mxu0 %v1143
      %v1472 = vpop.f32.mrf.mxu0
      %v1473 = vadd.f32 0.0, %v1472
      %v1474 = vpop.f32.mrf.mxu0
      %v1475 = vadd.f32 0.0, %v1474
      %1476 = vmatmul.bf16.gmra.mxu0 %v1146
      %v1477 = vpop.f32.mrf.mxu0
      %v1478 = vadd.f32 0.0, %v1477
      %v1479 = vpop.f32.mrf.mxu0
      %v1480 = vadd.f32 0.0, %v1479
      %1481 = vmatmul.bf16.gmra.mxu0 %v1149
      %v1482 = vpop.f32.mrf.mxu0
      %v1483 = vadd.f32 0.0, %v1482
      %v1484 = vpop.f32.mrf.mxu0
      %v1485 = vadd.f32 0.0, %v1484
      %1486 = vdwg.mxu0
      %v1487 = vadd.f32 %v764, %v1168
      %v1488 = vadd.f32 %v764, %v1170
      %v1489 = vadd.f32 %v764, %v1173
      %v1490 = vadd.f32 %v764, %v1175
      %v1491 = vadd.f32 %v764, %v1178
      %v1492 = vadd.f32 %v764, %v1180
      %v1493 = vadd.f32 %v764, %v1183
      %v1494 = vadd.f32 %v764, %v1185
      %v1495 = vadd.f32 %v764, %v1188
      %v1496 = vadd.f32 %v764, %v1190
      %v1497 = vadd.f32 %v764, %v1193
      %v1498 = vadd.f32 %v764, %v1195
      %v1499 = vadd.f32 %v764, %v1198
      %v1500 = vadd.f32 %v764, %v1200
      %v1501 = vadd.f32 %v764, %v1203
      %v1502 = vadd.f32 %v764, %v1205
      %v1503 = vadd.f32 %v764, %v1208
      %v1504 = vadd.f32 %v764, %v1210
      %v1505 = vadd.f32 %v764, %v1213
      %v1506 = vadd.f32 %v764, %v1215
      %v1507 = vadd.f32 %v764, %v1218
      %v1508 = vadd.f32 %v764, %v1220
      %v1509 = vadd.f32 %v764, %v1223
      %v1510 = vadd.f32 %v764, %v1225
      %v1511 = vadd.f32 %v764, %v1228
      %v1512 = vadd.f32 %v764, %v1230
      %v1513 = vadd.f32 %v764, %v1233
      %v1514 = vadd.f32 %v764, %v1235
      %v1515 = vadd.f32 %v764, %v1238
      %v1516 = vadd.f32 %v764, %v1240
      %v1517 = vadd.f32 %v764, %v1243
      %v1518 = vadd.f32 %v764, %v1245
      %v1519 = vadd.f32 %v764, %v1248
      %v1520 = vadd.f32 %v764, %v1250
      %v1521 = vadd.f32 %v764, %v1253
      %v1522 = vadd.f32 %v764, %v1255
      %v1523 = vadd.f32 %v764, %v1258
      %v1524 = vadd.f32 %v764, %v1260
      %v1525 = vadd.f32 %v764, %v1263
      %v1526 = vadd.f32 %v764, %v1265
      %v1527 = vadd.f32 %v764, %v1268
      %v1528 = vadd.f32 %v764, %v1270
      %v1529 = vadd.f32 %v764, %v1273
      %v1530 = vadd.f32 %v764, %v1275
      %v1531 = vadd.f32 %v764, %v1278
      %v1532 = vadd.f32 %v764, %v1280
      %v1533 = vadd.f32 %v764, %v1283
      %v1534 = vadd.f32 %v764, %v1285
      %v1535 = vadd.f32 %v764, %v1288
      %v1536 = vadd.f32 %v764, %v1290
      %v1537 = vadd.f32 %v764, %v1293
      %v1538 = vadd.f32 %v764, %v1295
      %v1539 = vadd.f32 %v764, %v1298
      %v1540 = vadd.f32 %v764, %v1300
      %v1541 = vadd.f32 %v764, %v1303
      %v1542 = vadd.f32 %v764, %v1305
      %v1543 = vadd.f32 %v764, %v1308
      %v1544 = vadd.f32 %v764, %v1310
      %v1545 = vadd.f32 %v764, %v1313
      %v1546 = vadd.f32 %v764, %v1315
      %v1547 = vadd.f32 %v764, %v1318
      %v1548 = vadd.f32 %v764, %v1320
      %v1549 = vadd.f32 %v764, %v1323
      %v1550 = vadd.f32 %v764, %v1325
      %v1551 = vadd.f32 %v764, %v1328
      %v1552 = vadd.f32 %v764, %v1330
      %v1553 = vadd.f32 %v764, %v1333
      %v1554 = vadd.f32 %v764, %v1335
      %v1555 = vadd.f32 %v764, %v1338
      %v1556 = vadd.f32 %v764, %v1340
      %v1557 = vadd.f32 %v764, %v1343
      %v1558 = vadd.f32 %v764, %v1345
      %v1559 = vadd.f32 %v764, %v1348
      %v1560 = vadd.f32 %v764, %v1350
      %v1561 = vadd.f32 %v764, %v1353
      %v1562 = vadd.f32 %v764, %v1355
      %v1563 = vadd.f32 %v764, %v1358
      %v1564 = vadd.f32 %v764, %v1360
      %v1565 = vadd.f32 %v764, %v1363
      %v1566 = vadd.f32 %v764, %v1365
      %v1567 = vadd.f32 %v764, %v1368
      %v1568 = vadd.f32 %v764, %v1370
      %v1569 = vadd.f32 %v764, %v1373
      %v1570 = vadd.f32 %v764, %v1375
      %v1571 = vadd.f32 %v764, %v1378
      %v1572 = vadd.f32 %v764, %v1380
      %v1573 = vadd.f32 %v764, %v1383
      %v1574 = vadd.f32 %v764, %v1385
      %v1575 = vadd.f32 %v764, %v1388
      %v1576 = vadd.f32 %v764, %v1390
      %v1577 = vadd.f32 %v764, %v1393
      %v1578 = vadd.f32 %v764, %v1395
      %v1579 = vadd.f32 %v764, %v1398
      %v1580 = vadd.f32 %v764, %v1400
      %v1581 = vadd.f32 %v764, %v1403
      %v1582 = vadd.f32 %v764, %v1405
      %v1583 = vadd.f32 %v764, %v1408
      %v1584 = vadd.f32 %v764, %v1410
      %v1585 = vadd.f32 %v764, %v1413
      %v1586 = vadd.f32 %v764, %v1415
      %v1587 = vadd.f32 %v764, %v1418
      %v1588 = vadd.f32 %v764, %v1420
      %v1589 = vadd.f32 %v764, %v1423
      %v1590 = vadd.f32 %v764, %v1425
      %v1591 = vadd.f32 %v764, %v1428
      %v1592 = vadd.f32 %v764, %v1430
      %v1593 = vadd.f32 %v764, %v1433
      %v1594 = vadd.f32 %v764, %v1435
      %v1595 = vadd.f32 %v764, %v1438
      %v1596 = vadd.f32 %v764, %v1440
      %v1597 = vadd.f32 %v764, %v1443
      %v1598 = vadd.f32 %v764, %v1445
      %v1599 = vadd.f32 %v764, %v1448
      %v1600 = vadd.f32 %v764, %v1450
      %v1601 = vadd.f32 %v764, %v1453
      %v1602 = vadd.f32 %v764, %v1455
      %v1603 = vadd.f32 %v764, %v1458
      %v1604 = vadd.f32 %v764, %v1460
      %v1605 = vadd.f32 %v764, %v1463
      %v1606 = vadd.f32 %v764, %v1465
      %v1607 = vadd.f32 %v764, %v1468
      %v1608 = vadd.f32 %v764, %v1470
      %v1609 = vadd.f32 %v764, %v1473
      %v1610 = vadd.f32 %v764, %v1475
      %v1611 = vadd.f32 %v764, %v1478
      %v1612 = vadd.f32 %v764, %v1480
      %v1613 = vadd.f32 %v764, %v1483
      %v1614 = vadd.f32 %v764, %v1485
      %v1615 = vld [vmem:[#allocation2 + $0x8] sm:$0xff]
      %v1616 = vld [vmem:[#allocation2 + $0x10] sm:$0xff]
      %v1617 = vld [vmem:[#allocation2 + $0x18] sm:$0xff]
      %v1618 = vld [vmem:[#allocation2 + $0x20] sm:$0xff]
      %v1619 = vld [vmem:[#allocation2 + $0x38] sm:$0xff]
      %v1620 = vld [vmem:[#allocation2 + $0x40] sm:$0xff]
      %v1621 = vld [vmem:[#allocation2 + $0x48] sm:$0xff]
      %v1622 = vld [vmem:[#allocation2 + $0x50] sm:$0xff]
      %v1623 = vld [vmem:[#allocation2 + $0x68] sm:$0xff]
      %v1624 = vld [vmem:[#allocation2 + $0x70] sm:$0xff]
      %v1625 = vld [vmem:[#allocation2 + $0x78] sm:$0xff]
      %v1626 = vld [vmem:[#allocation2 + $0x80] sm:$0xff]
      %v1627 = vld [vmem:[#allocation2 + $0x98] sm:$0xff]
      %v1628 = vld [vmem:[#allocation2 + $0xa0] sm:$0xff]
      %v1629 = vld [vmem:[#allocation2 + $0xa8] sm:$0xff]
      %v1630 = vld [vmem:[#allocation2 + $0xb0] sm:$0xff]
      %v1631 = vld [vmem:[#allocation2 + $0xc8] sm:$0xff]
      %v1632 = vld [vmem:[#allocation2 + $0xd0] sm:$0xff]
      %v1633 = vld [vmem:[#allocation2 + $0xd8] sm:$0xff]
      %v1634 = vld [vmem:[#allocation2 + $0xe0] sm:$0xff]
      %v1635 = vld [vmem:[#allocation2 + $0xf8] sm:$0xff]
      %v1636 = vld [vmem:[#allocation2 + $0x100] sm:$0xff]
      %v1637 = vld [vmem:[#allocation2 + $0x108] sm:$0xff]
      %v1638 = vld [vmem:[#allocation2 + $0x110] sm:$0xff]
      %v1639 = vld [vmem:[#allocation2 + $0x128] sm:$0xff]
      %v1640 = vld [vmem:[#allocation2 + $0x130] sm:$0xff]
      %v1641 = vld [vmem:[#allocation2 + $0x138] sm:$0xff]
      %v1642 = vld [vmem:[#allocation2 + $0x140] sm:$0xff]
      %v1643 = vld [vmem:[#allocation2 + $0x158] sm:$0xff]
      %v1644 = vld [vmem:[#allocation2 + $0x160] sm:$0xff]
      %v1645 = vld [vmem:[#allocation2 + $0x168] sm:$0xff]
      %v1646 = vld [vmem:[#allocation2 + $0x170] sm:$0xff]
      %v1647 = vld [vmem:[#allocation2 + $0x188] sm:$0xff]
      %v1648 = vld [vmem:[#allocation2 + $0x190] sm:$0xff]
      %v1649 = vld [vmem:[#allocation2 + $0x198] sm:$0xff]
      %v1650 = vld [vmem:[#allocation2 + $0x1a0] sm:$0xff]
      %v1651 = vld [vmem:[#allocation2 + $0x1b8] sm:$0xff]
      %v1652 = vld [vmem:[#allocation2 + $0x1c0] sm:$0xff]
      %v1653 = vld [vmem:[#allocation2 + $0x1c8] sm:$0xff]
      %v1654 = vld [vmem:[#allocation2 + $0x1d0] sm:$0xff]
      %v1655 = vld [vmem:[#allocation2 + $0x1e8] sm:$0xff]
      %v1656 = vld [vmem:[#allocation2 + $0x1f0] sm:$0xff]
      %v1657 = vld [vmem:[#allocation2 + $0x1f8] sm:$0xff]
      %v1658 = vld [vmem:[#allocation2 + $0x200] sm:$0xff]
      %v1659 = vld [vmem:[#allocation2 + $0x218] sm:$0xff]
      %v1660 = vld [vmem:[#allocation2 + $0x220] sm:$0xff]
      %v1661 = vld [vmem:[#allocation2 + $0x228] sm:$0xff]
      %v1662 = vld [vmem:[#allocation2 + $0x230] sm:$0xff]
      %v1663 = vld [vmem:[#allocation2 + $0x248] sm:$0xff]
      %v1664 = vld [vmem:[#allocation2 + $0x250] sm:$0xff]
      %v1665 = vld [vmem:[#allocation2 + $0x258] sm:$0xff]
      %v1666 = vld [vmem:[#allocation2 + $0x260] sm:$0xff]
      %v1667 = vld [vmem:[#allocation2 + $0x278] sm:$0xff]
      %v1668 = vld [vmem:[#allocation2 + $0x280] sm:$0xff]
      %v1669 = vld [vmem:[#allocation2 + $0x288] sm:$0xff]
      %v1670 = vld [vmem:[#allocation2 + $0x290] sm:$0xff]
      %v1671 = vld [vmem:[#allocation2 + $0x2a8] sm:$0xff]
      %v1672 = vld [vmem:[#allocation2 + $0x2b0] sm:$0xff]
      %v1673 = vld [vmem:[#allocation2 + $0x2b8] sm:$0xff]
      %v1674 = vld [vmem:[#allocation2 + $0x2c0] sm:$0xff]
      %v1675 = vld [vmem:[#allocation2 + $0x2d8] sm:$0xff]
      %v1676 = vld [vmem:[#allocation2 + $0x2e0] sm:$0xff]
      %v1677 = vld [vmem:[#allocation2 + $0x2e8] sm:$0xff]
      %v1678 = vld [vmem:[#allocation2 + $0x2f0] sm:$0xff]
      %v1679 = vld [vmem:[#allocation2 + $0x308] sm:$0xff]
      %v1680 = vld [vmem:[#allocation2 + $0x310] sm:$0xff]
      %v1681 = vld [vmem:[#allocation2 + $0x318] sm:$0xff]
      %v1682 = vld [vmem:[#allocation2 + $0x320] sm:$0xff]
      %v1683 = vld [vmem:[#allocation2 + $0x338] sm:$0xff]
      %v1684 = vld [vmem:[#allocation2 + $0x340] sm:$0xff]
      %v1685 = vld [vmem:[#allocation2 + $0x348] sm:$0xff]
      %v1686 = vld [vmem:[#allocation2 + $0x350] sm:$0xff]
      %v1687 = vld [vmem:[#allocation2 + $0x368] sm:$0xff]
      %v1688 = vld [vmem:[#allocation2 + $0x370] sm:$0xff]
      %v1689 = vld [vmem:[#allocation2 + $0x378] sm:$0xff]
      %v1690 = vld [vmem:[#allocation2 + $0x380] sm:$0xff]
      %v1691 = vld [vmem:[#allocation2 + $0x398] sm:$0xff]
      %v1692 = vld [vmem:[#allocation2 + $0x3a0] sm:$0xff]
      %v1693 = vld [vmem:[#allocation2 + $0x3a8] sm:$0xff]
      %v1694 = vld [vmem:[#allocation2 + $0x3b0] sm:$0xff]
      %v1695 = vld [vmem:[#allocation2 + $0x3c8] sm:$0xff]
      %v1696 = vld [vmem:[#allocation2 + $0x3d0] sm:$0xff]
      %v1697 = vld [vmem:[#allocation2 + $0x3d8] sm:$0xff]
      %v1698 = vld [vmem:[#allocation2 + $0x3e0] sm:$0xff]
      %v1699 = vld [vmem:[#allocation2 + $0x3f8] sm:$0xff]
      %v1700 = vld [vmem:[#allocation2 + $0x400] sm:$0xff]
      %v1701 = vld [vmem:[#allocation2 + $0x408] sm:$0xff]
      %v1702 = vld [vmem:[#allocation2 + $0x410] sm:$0xff]
      %v1703 = vld [vmem:[#allocation2 + $0x428] sm:$0xff]
      %v1704 = vld [vmem:[#allocation2 + $0x430] sm:$0xff]
      %v1705 = vld [vmem:[#allocation2 + $0x438] sm:$0xff]
      %v1706 = vld [vmem:[#allocation2 + $0x440] sm:$0xff]
      %v1707 = vld [vmem:[#allocation2 + $0x458] sm:$0xff]
      %v1708 = vld [vmem:[#allocation2 + $0x460] sm:$0xff]
      %v1709 = vld [vmem:[#allocation2 + $0x468] sm:$0xff]
      %v1710 = vld [vmem:[#allocation2 + $0x470] sm:$0xff]
      %v1711 = vld [vmem:[#allocation2 + $0x488] sm:$0xff]
      %v1712 = vld [vmem:[#allocation2 + $0x490] sm:$0xff]
      %v1713 = vld [vmem:[#allocation2 + $0x498] sm:$0xff]
      %v1714 = vld [vmem:[#allocation2 + $0x4a0] sm:$0xff]
      %v1715 = vld [vmem:[#allocation2 + $0x4b8] sm:$0xff]
      %v1716 = vld [vmem:[#allocation2 + $0x4c0] sm:$0xff]
      %v1717 = vld [vmem:[#allocation2 + $0x4c8] sm:$0xff]
      %v1718 = vld [vmem:[#allocation2 + $0x4d0] sm:$0xff]
      %v1719 = vld [vmem:[#allocation2 + $0x4e8] sm:$0xff]
      %v1720 = vld [vmem:[#allocation2 + $0x4f0] sm:$0xff]
      %v1721 = vld [vmem:[#allocation2 + $0x4f8] sm:$0xff]
      %v1722 = vld [vmem:[#allocation2 + $0x500] sm:$0xff]
      %v1723 = vld [vmem:[#allocation2 + $0x518] sm:$0xff]
      %v1724 = vld [vmem:[#allocation2 + $0x520] sm:$0xff]
      %v1725 = vld [vmem:[#allocation2 + $0x528] sm:$0xff]
      %v1726 = vld [vmem:[#allocation2 + $0x530] sm:$0xff]
      %v1727 = vld [vmem:[#allocation2 + $0x548] sm:$0xff]
      %v1728 = vld [vmem:[#allocation2 + $0x550] sm:$0xff]
      %v1729 = vld [vmem:[#allocation2 + $0x558] sm:$0xff]
      %v1730 = vld [vmem:[#allocation2 + $0x560] sm:$0xff]
      %v1731 = vld [vmem:[#allocation2 + $0x578] sm:$0xff]
      %v1732 = vld [vmem:[#allocation2 + $0x580] sm:$0xff]
      %v1733 = vld [vmem:[#allocation2 + $0x588] sm:$0xff]
      %v1734 = vld [vmem:[#allocation2 + $0x590] sm:$0xff]
      %v1735 = vld [vmem:[#allocation2 + $0x5a8] sm:$0xff]
      %v1736 = vld [vmem:[#allocation2 + $0x5b0] sm:$0xff]
      %v1737 = vld [vmem:[#allocation2 + $0x5b8] sm:$0xff]
      %v1738 = vld [vmem:[#allocation2 + $0x5c0] sm:$0xff]
      %v1739 = vld [vmem:[#allocation2 + $0x5d8] sm:$0xff]
      %v1740 = vld [vmem:[#allocation2 + $0x5e0] sm:$0xff]
      %v1741 = vld [vmem:[#allocation2 + $0x5e8] sm:$0xff]
      %v1742 = vld [vmem:[#allocation2 + $0x5f0] sm:$0xff]
      %v1743 = vpack.c.bf16 %v1616, %v1615
      %v1744 = vpack.c.bf16 %v1618, %v1617
      %v1745 = vpack.c.bf16 %v1620, %v1619
      %v1746 = vpack.c.bf16 %v1622, %v1621
      %v1747 = vpack.c.bf16 %v1624, %v1623
      %v1748 = vpack.c.bf16 %v1626, %v1625
      %v1749 = vpack.c.bf16 %v1628, %v1627
      %v1750 = vpack.c.bf16 %v1630, %v1629
      %v1751 = vpack.c.bf16 %v1632, %v1631
      %v1752 = vpack.c.bf16 %v1634, %v1633
      %v1753 = vpack.c.bf16 %v1636, %v1635
      %v1754 = vpack.c.bf16 %v1638, %v1637
      %v1755 = vpack.c.bf16 %v1640, %v1639
      %v1756 = vpack.c.bf16 %v1642, %v1641
      %v1757 = vpack.c.bf16 %v1644, %v1643
      %v1758 = vpack.c.bf16 %v1646, %v1645
      %v1759 = vpack.c.bf16 %v1648, %v1647
      %v1760 = vpack.c.bf16 %v1650, %v1649
      %v1761 = vpack.c.bf16 %v1652, %v1651
      %v1762 = vpack.c.bf16 %v1654, %v1653
      %v1763 = vpack.c.bf16 %v1656, %v1655
      %v1764 = vpack.c.bf16 %v1658, %v1657
      %v1765 = vpack.c.bf16 %v1660, %v1659
      %v1766 = vpack.c.bf16 %v1662, %v1661
      %v1767 = vpack.c.bf16 %v1664, %v1663
      %v1768 = vpack.c.bf16 %v1666, %v1665
      %v1769 = vpack.c.bf16 %v1668, %v1667
      %v1770 = vpack.c.bf16 %v1670, %v1669
      %v1771 = vpack.c.bf16 %v1672, %v1671
      %v1772 = vpack.c.bf16 %v1674, %v1673
      %v1773 = vpack.c.bf16 %v1676, %v1675
      %v1774 = vpack.c.bf16 %v1678, %v1677
      %v1775 = vpack.c.bf16 %v1680, %v1679
      %v1776 = vpack.c.bf16 %v1682, %v1681
      %v1777 = vpack.c.bf16 %v1684, %v1683
      %v1778 = vpack.c.bf16 %v1686, %v1685
      %v1779 = vpack.c.bf16 %v1688, %v1687
      %v1780 = vpack.c.bf16 %v1690, %v1689
      %v1781 = vpack.c.bf16 %v1692, %v1691
      %v1782 = vpack.c.bf16 %v1694, %v1693
      %v1783 = vpack.c.bf16 %v1696, %v1695
      %v1784 = vpack.c.bf16 %v1698, %v1697
      %v1785 = vpack.c.bf16 %v1700, %v1699
      %v1786 = vpack.c.bf16 %v1702, %v1701
      %v1787 = vpack.c.bf16 %v1704, %v1703
      %v1788 = vpack.c.bf16 %v1706, %v1705
      %v1789 = vpack.c.bf16 %v1708, %v1707
      %v1790 = vpack.c.bf16 %v1710, %v1709
      %v1791 = vpack.c.bf16 %v1712, %v1711
      %v1792 = vpack.c.bf16 %v1714, %v1713
      %v1793 = vpack.c.bf16 %v1716, %v1715
      %v1794 = vpack.c.bf16 %v1718, %v1717
      %v1795 = vpack.c.bf16 %v1720, %v1719
      %v1796 = vpack.c.bf16 %v1722, %v1721
      %v1797 = vpack.c.bf16 %v1724, %v1723
      %v1798 = vpack.c.bf16 %v1726, %v1725
      %v1799 = vpack.c.bf16 %v1728, %v1727
      %v1800 = vpack.c.bf16 %v1730, %v1729
      %v1801 = vpack.c.bf16 %v1732, %v1731
      %v1802 = vpack.c.bf16 %v1734, %v1733
      %v1803 = vpack.c.bf16 %v1736, %v1735
      %v1804 = vpack.c.bf16 %v1738, %v1737
      %v1805 = vpack.c.bf16 %v1740, %v1739
      %v1806 = vpack.c.bf16 %v1742, %v1741
      %s1807 = scalar_lea.vmem %s1, 2
      %v1808 = vld [vmem:[%s1807] sm:$0x3]
      %v1810 = vsel %vm172, %v1743, 0
      %v1813 = vsel %vm172, %v1744, 0
      %v1816 = vsel %vm172, %v1745, 0
      %v1819 = vsel %vm172, %v1746, 0
      %v1822 = vsel %vm172, %v1747, 0
      %v1825 = vsel %vm172, %v1748, 0
      %v1828 = vsel %vm172, %v1749, 0
      %v1831 = vsel %vm172, %v1750, 0
      %v1834 = vsel %vm172, %v1751, 0
      %v1837 = vsel %vm172, %v1752, 0
      %v1840 = vsel %vm172, %v1753, 0
      %v1843 = vsel %vm172, %v1754, 0
      %v1846 = vsel %vm172, %v1755, 0
      %v1849 = vsel %vm172, %v1756, 0
      %v1852 = vsel %vm172, %v1757, 0
      %v1855 = vsel %vm172, %v1758, 0
      %v1858 = vsel %vm172, %v1759, 0
      %v1861 = vsel %vm172, %v1760, 0
      %v1864 = vsel %vm172, %v1761, 0
      %v1867 = vsel %vm172, %v1762, 0
      %v1870 = vsel %vm172, %v1763, 0
      %v1873 = vsel %vm172, %v1764, 0
      %v1876 = vsel %vm172, %v1765, 0
      %v1879 = vsel %vm172, %v1766, 0
      %v1882 = vsel %vm172, %v1767, 0
      %v1885 = vsel %vm172, %v1768, 0
      %v1888 = vsel %vm172, %v1769, 0
      %v1891 = vsel %vm172, %v1770, 0
      %v1894 = vsel %vm172, %v1771, 0
      %v1897 = vsel %vm172, %v1772, 0
      %v1900 = vsel %vm172, %v1773, 0
      %v1903 = vsel %vm172, %v1774, 0
      %v1906 = vsel %vm172, %v1775, 0
      %v1909 = vsel %vm172, %v1776, 0
      %v1912 = vsel %vm172, %v1777, 0
      %v1915 = vsel %vm172, %v1778, 0
      %v1918 = vsel %vm172, %v1779, 0
      %v1921 = vsel %vm172, %v1780, 0
      %v1924 = vsel %vm172, %v1781, 0
      %v1927 = vsel %vm172, %v1782, 0
      %v1930 = vsel %vm172, %v1783, 0
      %v1933 = vsel %vm172, %v1784, 0
      %v1936 = vsel %vm172, %v1785, 0
      %v1939 = vsel %vm172, %v1786, 0
      %v1942 = vsel %vm172, %v1787, 0
      %v1945 = vsel %vm172, %v1788, 0
      %v1948 = vsel %vm172, %v1789, 0
      %v1951 = vsel %vm172, %v1790, 0
      %v1954 = vsel %vm172, %v1791, 0
      %v1957 = vsel %vm172, %v1792, 0
      %v1960 = vsel %vm172, %v1793, 0
      %v1963 = vsel %vm172, %v1794, 0
      %v1966 = vsel %vm172, %v1795, 0
      %v1969 = vsel %vm172, %v1796, 0
      %v1972 = vsel %vm172, %v1797, 0
      %v1975 = vsel %vm172, %v1798, 0
      %v1978 = vsel %vm172, %v1799, 0
      %v1981 = vsel %vm172, %v1800, 0
      %v1984 = vsel %vm172, %v1801, 0
      %v1987 = vsel %vm172, %v1802, 0
      %v1990 = vsel %vm172, %v1803, 0
      %v1993 = vsel %vm172, %v1804, 0
      %v1996 = vsel %vm172, %v1805, 0
      %v1999 = vsel %vm172, %v1806, 0
      %v2002 = vand.u32 %v1808, %v1154
      %2004 = vmatpush.bf16.msra.mxu0 0
      %2005 = vmatpush.bf16.msra.mxu0 0
      %2006 = vmatpush.bf16.msra.mxu0 0
      %2007 = vmatpush.bf16.msra.mxu0 0
      %2008 = vmatpush.bf16.msra.mxu0 0
      %2009 = vmatpush.bf16.msra.mxu0 0
      %2010 = vmatpush.bf16.msra.mxu0 0
      %2011 = vmatpush.bf16.msra.mxu0 %v2002
      %2012 = vmatmul.bf16.gmra.mxu0 %v1810
      %v2013 = vpop.f32.mrf.mxu0
      %v2014 = vadd.f32 0.0, %v2013
      %v2015 = vpop.f32.mrf.mxu0
      %v2016 = vadd.f32 0.0, %v2015
      %2017 = vmatmul.bf16.gmra.mxu0 %v1813
      %v2018 = vpop.f32.mrf.mxu0
      %v2019 = vadd.f32 0.0, %v2018
      %v2020 = vpop.f32.mrf.mxu0
      %v2021 = vadd.f32 0.0, %v2020
      %2022 = vmatmul.bf16.gmra.mxu0 %v1816
      %v2023 = vpop.f32.mrf.mxu0
      %v2024 = vadd.f32 0.0, %v2023
      %v2025 = vpop.f32.mrf.mxu0
      %v2026 = vadd.f32 0.0, %v2025
      %2027 = vmatmul.bf16.gmra.mxu0 %v1819
      %v2028 = vpop.f32.mrf.mxu0
      %v2029 = vadd.f32 0.0, %v2028
      %v2030 = vpop.f32.mrf.mxu0
      %v2031 = vadd.f32 0.0, %v2030
      %2032 = vmatmul.bf16.gmra.mxu0 %v1822
      %v2033 = vpop.f32.mrf.mxu0
      %v2034 = vadd.f32 0.0, %v2033
      %v2035 = vpop.f32.mrf.mxu0
      %v2036 = vadd.f32 0.0, %v2035
      %2037 = vmatmul.bf16.gmra.mxu0 %v1825
      %v2038 = vpop.f32.mrf.mxu0
      %v2039 = vadd.f32 0.0, %v2038
      %v2040 = vpop.f32.mrf.mxu0
      %v2041 = vadd.f32 0.0, %v2040
      %2042 = vmatmul.bf16.gmra.mxu0 %v1828
      %v2043 = vpop.f32.mrf.mxu0
      %v2044 = vadd.f32 0.0, %v2043
      %v2045 = vpop.f32.mrf.mxu0
      %v2046 = vadd.f32 0.0, %v2045
      %2047 = vmatmul.bf16.gmra.mxu0 %v1831
      %v2048 = vpop.f32.mrf.mxu0
      %v2049 = vadd.f32 0.0, %v2048
      %v2050 = vpop.f32.mrf.mxu0
      %v2051 = vadd.f32 0.0, %v2050
      %2052 = vmatmul.bf16.gmra.mxu0 %v1834
      %v2053 = vpop.f32.mrf.mxu0
      %v2054 = vadd.f32 0.0, %v2053
      %v2055 = vpop.f32.mrf.mxu0
      %v2056 = vadd.f32 0.0, %v2055
      %2057 = vmatmul.bf16.gmra.mxu0 %v1837
      %v2058 = vpop.f32.mrf.mxu0
      %v2059 = vadd.f32 0.0, %v2058
      %v2060 = vpop.f32.mrf.mxu0
      %v2061 = vadd.f32 0.0, %v2060
      %2062 = vmatmul.bf16.gmra.mxu0 %v1840
      %v2063 = vpop.f32.mrf.mxu0
      %v2064 = vadd.f32 0.0, %v2063
      %v2065 = vpop.f32.mrf.mxu0
      %v2066 = vadd.f32 0.0, %v2065
      %2067 = vmatmul.bf16.gmra.mxu0 %v1843
      %v2068 = vpop.f32.mrf.mxu0
      %v2069 = vadd.f32 0.0, %v2068
      %v2070 = vpop.f32.mrf.mxu0
      %v2071 = vadd.f32 0.0, %v2070
      %2072 = vmatmul.bf16.gmra.mxu0 %v1846
      %v2073 = vpop.f32.mrf.mxu0
      %v2074 = vadd.f32 0.0, %v2073
      %v2075 = vpop.f32.mrf.mxu0
      %v2076 = vadd.f32 0.0, %v2075
      %2077 = vmatmul.bf16.gmra.mxu0 %v1849
      %v2078 = vpop.f32.mrf.mxu0
      %v2079 = vadd.f32 0.0, %v2078
      %v2080 = vpop.f32.mrf.mxu0
      %v2081 = vadd.f32 0.0, %v2080
      %2082 = vmatmul.bf16.gmra.mxu0 %v1852
      %v2083 = vpop.f32.mrf.mxu0
      %v2084 = vadd.f32 0.0, %v2083
      %v2085 = vpop.f32.mrf.mxu0
      %v2086 = vadd.f32 0.0, %v2085
      %2087 = vmatmul.bf16.gmra.mxu0 %v1855
      %v2088 = vpop.f32.mrf.mxu0
      %v2089 = vadd.f32 0.0, %v2088
      %v2090 = vpop.f32.mrf.mxu0
      %v2091 = vadd.f32 0.0, %v2090
      %2092 = vmatmul.bf16.gmra.mxu0 %v1858
      %v2093 = vpop.f32.mrf.mxu0
      %v2094 = vadd.f32 0.0, %v2093
      %v2095 = vpop.f32.mrf.mxu0
      %v2096 = vadd.f32 0.0, %v2095
      %2097 = vmatmul.bf16.gmra.mxu0 %v1861
      %v2098 = vpop.f32.mrf.mxu0
      %v2099 = vadd.f32 0.0, %v2098
      %v2100 = vpop.f32.mrf.mxu0
      %v2101 = vadd.f32 0.0, %v2100
      %2102 = vmatmul.bf16.gmra.mxu0 %v1864
      %v2103 = vpop.f32.mrf.mxu0
      %v2104 = vadd.f32 0.0, %v2103
      %v2105 = vpop.f32.mrf.mxu0
      %v2106 = vadd.f32 0.0, %v2105
      %2107 = vmatmul.bf16.gmra.mxu0 %v1867
      %v2108 = vpop.f32.mrf.mxu0
      %v2109 = vadd.f32 0.0, %v2108
      %v2110 = vpop.f32.mrf.mxu0
      %v2111 = vadd.f32 0.0, %v2110
      %2112 = vmatmul.bf16.gmra.mxu0 %v1870
      %v2113 = vpop.f32.mrf.mxu0
      %v2114 = vadd.f32 0.0, %v2113
      %v2115 = vpop.f32.mrf.mxu0
      %v2116 = vadd.f32 0.0, %v2115
      %2117 = vmatmul.bf16.gmra.mxu0 %v1873
      %v2118 = vpop.f32.mrf.mxu0
      %v2119 = vadd.f32 0.0, %v2118
      %v2120 = vpop.f32.mrf.mxu0
      %v2121 = vadd.f32 0.0, %v2120
      %2122 = vmatmul.bf16.gmra.mxu0 %v1876
      %v2123 = vpop.f32.mrf.mxu0
      %v2124 = vadd.f32 0.0, %v2123
      %v2125 = vpop.f32.mrf.mxu0
      %v2126 = vadd.f32 0.0, %v2125
      %2127 = vmatmul.bf16.gmra.mxu0 %v1879
      %v2128 = vpop.f32.mrf.mxu0
      %v2129 = vadd.f32 0.0, %v2128
      %v2130 = vpop.f32.mrf.mxu0
      %v2131 = vadd.f32 0.0, %v2130
      %2132 = vmatmul.bf16.gmra.mxu0 %v1882
      %v2133 = vpop.f32.mrf.mxu0
      %v2134 = vadd.f32 0.0, %v2133
      %v2135 = vpop.f32.mrf.mxu0
      %v2136 = vadd.f32 0.0, %v2135
      %2137 = vmatmul.bf16.gmra.mxu0 %v1885
      %v2138 = vpop.f32.mrf.mxu0
      %v2139 = vadd.f32 0.0, %v2138
      %v2140 = vpop.f32.mrf.mxu0
      %v2141 = vadd.f32 0.0, %v2140
      %2142 = vmatmul.bf16.gmra.mxu0 %v1888
      %v2143 = vpop.f32.mrf.mxu0
      %v2144 = vadd.f32 0.0, %v2143
      %v2145 = vpop.f32.mrf.mxu0
      %v2146 = vadd.f32 0.0, %v2145
      %2147 = vmatmul.bf16.gmra.mxu0 %v1891
      %v2148 = vpop.f32.mrf.mxu0
      %v2149 = vadd.f32 0.0, %v2148
      %v2150 = vpop.f32.mrf.mxu0
      %v2151 = vadd.f32 0.0, %v2150
      %2152 = vmatmul.bf16.gmra.mxu0 %v1894
      %v2153 = vpop.f32.mrf.mxu0
      %v2154 = vadd.f32 0.0, %v2153
      %v2155 = vpop.f32.mrf.mxu0
      %v2156 = vadd.f32 0.0, %v2155
      %2157 = vmatmul.bf16.gmra.mxu0 %v1897
      %v2158 = vpop.f32.mrf.mxu0
      %v2159 = vadd.f32 0.0, %v2158
      %v2160 = vpop.f32.mrf.mxu0
      %v2161 = vadd.f32 0.0, %v2160
      %2162 = vmatmul.bf16.gmra.mxu0 %v1900
      %v2163 = vpop.f32.mrf.mxu0
      %v2164 = vadd.f32 0.0, %v2163
      %v2165 = vpop.f32.mrf.mxu0
      %v2166 = vadd.f32 0.0, %v2165
      %2167 = vmatmul.bf16.gmra.mxu0 %v1903
      %v2168 = vpop.f32.mrf.mxu0
      %v2169 = vadd.f32 0.0, %v2168
      %v2170 = vpop.f32.mrf.mxu0
      %v2171 = vadd.f32 0.0, %v2170
      %2172 = vmatmul.bf16.gmra.mxu0 %v1906
      %v2173 = vpop.f32.mrf.mxu0
      %v2174 = vadd.f32 0.0, %v2173
      %v2175 = vpop.f32.mrf.mxu0
      %v2176 = vadd.f32 0.0, %v2175
      %2177 = vmatmul.bf16.gmra.mxu0 %v1909
      %v2178 = vpop.f32.mrf.mxu0
      %v2179 = vadd.f32 0.0, %v2178
      %v2180 = vpop.f32.mrf.mxu0
      %v2181 = vadd.f32 0.0, %v2180
      %2182 = vmatmul.bf16.gmra.mxu0 %v1912
      %v2183 = vpop.f32.mrf.mxu0
      %v2184 = vadd.f32 0.0, %v2183
      %v2185 = vpop.f32.mrf.mxu0
      %v2186 = vadd.f32 0.0, %v2185
      %2187 = vmatmul.bf16.gmra.mxu0 %v1915
      %v2188 = vpop.f32.mrf.mxu0
      %v2189 = vadd.f32 0.0, %v2188
      %v2190 = vpop.f32.mrf.mxu0
      %v2191 = vadd.f32 0.0, %v2190
      %2192 = vmatmul.bf16.gmra.mxu0 %v1918
      %v2193 = vpop.f32.mrf.mxu0
      %v2194 = vadd.f32 0.0, %v2193
      %v2195 = vpop.f32.mrf.mxu0
      %v2196 = vadd.f32 0.0, %v2195
      %2197 = vmatmul.bf16.gmra.mxu0 %v1921
      %v2198 = vpop.f32.mrf.mxu0
      %v2199 = vadd.f32 0.0, %v2198
      %v2200 = vpop.f32.mrf.mxu0
      %v2201 = vadd.f32 0.0, %v2200
      %2202 = vmatmul.bf16.gmra.mxu0 %v1924
      %v2203 = vpop.f32.mrf.mxu0
      %v2204 = vadd.f32 0.0, %v2203
      %v2205 = vpop.f32.mrf.mxu0
      %v2206 = vadd.f32 0.0, %v2205
      %2207 = vmatmul.bf16.gmra.mxu0 %v1927
      %v2208 = vpop.f32.mrf.mxu0
      %v2209 = vadd.f32 0.0, %v2208
      %v2210 = vpop.f32.mrf.mxu0
      %v2211 = vadd.f32 0.0, %v2210
      %2212 = vmatmul.bf16.gmra.mxu0 %v1930
      %v2213 = vpop.f32.mrf.mxu0
      %v2214 = vadd.f32 0.0, %v2213
      %v2215 = vpop.f32.mrf.mxu0
      %v2216 = vadd.f32 0.0, %v2215
      %2217 = vmatmul.bf16.gmra.mxu0 %v1933
      %v2218 = vpop.f32.mrf.mxu0
      %v2219 = vadd.f32 0.0, %v2218
      %v2220 = vpop.f32.mrf.mxu0
      %v2221 = vadd.f32 0.0, %v2220
      %2222 = vmatmul.bf16.gmra.mxu0 %v1936
      %v2223 = vpop.f32.mrf.mxu0
      %v2224 = vadd.f32 0.0, %v2223
      %v2225 = vpop.f32.mrf.mxu0
      %v2226 = vadd.f32 0.0, %v2225
      %2227 = vmatmul.bf16.gmra.mxu0 %v1939
      %v2228 = vpop.f32.mrf.mxu0
      %v2229 = vadd.f32 0.0, %v2228
      %v2230 = vpop.f32.mrf.mxu0
      %v2231 = vadd.f32 0.0, %v2230
      %2232 = vmatmul.bf16.gmra.mxu0 %v1942
      %v2233 = vpop.f32.mrf.mxu0
      %v2234 = vadd.f32 0.0, %v2233
      %v2235 = vpop.f32.mrf.mxu0
      %v2236 = vadd.f32 0.0, %v2235
      %2237 = vmatmul.bf16.gmra.mxu0 %v1945
      %v2238 = vpop.f32.mrf.mxu0
      %v2239 = vadd.f32 0.0, %v2238
      %v2240 = vpop.f32.mrf.mxu0
      %v2241 = vadd.f32 0.0, %v2240
      %2242 = vmatmul.bf16.gmra.mxu0 %v1948
      %v2243 = vpop.f32.mrf.mxu0
      %v2244 = vadd.f32 0.0, %v2243
      %v2245 = vpop.f32.mrf.mxu0
      %v2246 = vadd.f32 0.0, %v2245
      %2247 = vmatmul.bf16.gmra.mxu0 %v1951
      %v2248 = vpop.f32.mrf.mxu0
      %v2249 = vadd.f32 0.0, %v2248
      %v2250 = vpop.f32.mrf.mxu0
      %v2251 = vadd.f32 0.0, %v2250
      %2252 = vmatmul.bf16.gmra.mxu0 %v1954
      %v2253 = vpop.f32.mrf.mxu0
      %v2254 = vadd.f32 0.0, %v2253
      %v2255 = vpop.f32.mrf.mxu0
      %v2256 = vadd.f32 0.0, %v2255
      %2257 = vmatmul.bf16.gmra.mxu0 %v1957
      %v2258 = vpop.f32.mrf.mxu0
      %v2259 = vadd.f32 0.0, %v2258
      %v2260 = vpop.f32.mrf.mxu0
      %v2261 = vadd.f32 0.0, %v2260
      %2262 = vmatmul.bf16.gmra.mxu0 %v1960
      %v2263 = vpop.f32.mrf.mxu0
      %v2264 = vadd.f32 0.0, %v2263
      %v2265 = vpop.f32.mrf.mxu0
      %v2266 = vadd.f32 0.0, %v2265
      %2267 = vmatmul.bf16.gmra.mxu0 %v1963
      %v2268 = vpop.f32.mrf.mxu0
      %v2269 = vadd.f32 0.0, %v2268
      %v2270 = vpop.f32.mrf.mxu0
      %v2271 = vadd.f32 0.0, %v2270
      %2272 = vmatmul.bf16.gmra.mxu0 %v1966
      %v2273 = vpop.f32.mrf.mxu0
      %v2274 = vadd.f32 0.0, %v2273
      %v2275 = vpop.f32.mrf.mxu0
      %v2276 = vadd.f32 0.0, %v2275
      %2277 = vmatmul.bf16.gmra.mxu0 %v1969
      %v2278 = vpop.f32.mrf.mxu0
      %v2279 = vadd.f32 0.0, %v2278
      %v2280 = vpop.f32.mrf.mxu0
      %v2281 = vadd.f32 0.0, %v2280
      %2282 = vmatmul.bf16.gmra.mxu0 %v1972
      %v2283 = vpop.f32.mrf.mxu0
      %v2284 = vadd.f32 0.0, %v2283
      %v2285 = vpop.f32.mrf.mxu0
      %v2286 = vadd.f32 0.0, %v2285
      %2287 = vmatmul.bf16.gmra.mxu0 %v1975
      %v2288 = vpop.f32.mrf.mxu0
      %v2289 = vadd.f32 0.0, %v2288
      %v2290 = vpop.f32.mrf.mxu0
      %v2291 = vadd.f32 0.0, %v2290
      %2292 = vmatmul.bf16.gmra.mxu0 %v1978
      %v2293 = vpop.f32.mrf.mxu0
      %v2294 = vadd.f32 0.0, %v2293
      %v2295 = vpop.f32.mrf.mxu0
      %v2296 = vadd.f32 0.0, %v2295
      %2297 = vmatmul.bf16.gmra.mxu0 %v1981
      %v2298 = vpop.f32.mrf.mxu0
      %v2299 = vadd.f32 0.0, %v2298
      %v2300 = vpop.f32.mrf.mxu0
      %v2301 = vadd.f32 0.0, %v2300
      %2302 = vmatmul.bf16.gmra.mxu0 %v1984
      %v2303 = vpop.f32.mrf.mxu0
      %v2304 = vadd.f32 0.0, %v2303
      %v2305 = vpop.f32.mrf.mxu0
      %v2306 = vadd.f32 0.0, %v2305
      %2307 = vmatmul.bf16.gmra.mxu0 %v1987
      %v2308 = vpop.f32.mrf.mxu0
      %v2309 = vadd.f32 0.0, %v2308
      %v2310 = vpop.f32.mrf.mxu0
      %v2311 = vadd.f32 0.0, %v2310
      %2312 = vmatmul.bf16.gmra.mxu0 %v1990
      %v2313 = vpop.f32.mrf.mxu0
      %v2314 = vadd.f32 0.0, %v2313
      %v2315 = vpop.f32.mrf.mxu0
      %v2316 = vadd.f32 0.0, %v2315
      %2317 = vmatmul.bf16.gmra.mxu0 %v1993
      %v2318 = vpop.f32.mrf.mxu0
      %v2319 = vadd.f32 0.0, %v2318
      %v2320 = vpop.f32.mrf.mxu0
      %v2321 = vadd.f32 0.0, %v2320
      %2322 = vmatmul.bf16.gmra.mxu0 %v1996
      %v2323 = vpop.f32.mrf.mxu0
      %v2324 = vadd.f32 0.0, %v2323
      %v2325 = vpop.f32.mrf.mxu0
      %v2326 = vadd.f32 0.0, %v2325
      %2327 = vmatmul.bf16.gmra.mxu0 %v1999
      %v2328 = vpop.f32.mrf.mxu0
      %v2329 = vadd.f32 0.0, %v2328
      %v2330 = vpop.f32.mrf.mxu0
      %v2331 = vadd.f32 0.0, %v2330
      %2332 = vdwg.mxu0
      %v2333 = vadd.f32 %v1487, %v2014
      %v2334 = vadd.f32 %v1488, %v2016
      %v2335 = vadd.f32 %v1489, %v2019
      %v2336 = vadd.f32 %v1490, %v2021
      %v2337 = vadd.f32 %v1491, %v2024
      %v2338 = vadd.f32 %v1492, %v2026
      %v2339 = vadd.f32 %v1493, %v2029
      %v2340 = vadd.f32 %v1494, %v2031
      %v2341 = vadd.f32 %v1495, %v2034
      %v2342 = vadd.f32 %v1496, %v2036
      %v2343 = vadd.f32 %v1497, %v2039
      %v2344 = vadd.f32 %v1498, %v2041
      %v2345 = vadd.f32 %v1499, %v2044
      %v2346 = vadd.f32 %v1500, %v2046
      %v2347 = vadd.f32 %v1501, %v2049
      %v2348 = vadd.f32 %v1502, %v2051
      %v2349 = vadd.f32 %v1503, %v2054
      %v2350 = vadd.f32 %v1504, %v2056
      %v2351 = vadd.f32 %v1505, %v2059
      %v2352 = vadd.f32 %v1506, %v2061
      %v2353 = vadd.f32 %v1507, %v2064
      %v2354 = vadd.f32 %v1508, %v2066
      %v2355 = vadd.f32 %v1509, %v2069
      %v2356 = vadd.f32 %v1510, %v2071
      %v2357 = vadd.f32 %v1511, %v2074
      %v2358 = vadd.f32 %v1512, %v2076
      %v2359 = vadd.f32 %v1513, %v2079
      %v2360 = vadd.f32 %v1514, %v2081
      %v2361 = vadd.f32 %v1515, %v2084
      %v2362 = vadd.f32 %v1516, %v2086
      %v2363 = vadd.f32 %v1517, %v2089
      %v2364 = vadd.f32 %v1518, %v2091
      %v2365 = vadd.f32 %v1519, %v2094
      %v2366 = vadd.f32 %v1520, %v2096
      %v2367 = vadd.f32 %v1521, %v2099
      %v2368 = vadd.f32 %v1522, %v2101
      %v2369 = vadd.f32 %v1523, %v2104
      %v2370 = vadd.f32 %v1524, %v2106
      %v2371 = vadd.f32 %v1525, %v2109
      %v2372 = vadd.f32 %v1526, %v2111
      %v2373 = vadd.f32 %v1527, %v2114
      %v2374 = vadd.f32 %v1528, %v2116
      %v2375 = vadd.f32 %v1529, %v2119
      %v2376 = vadd.f32 %v1530, %v2121
      %v2377 = vadd.f32 %v1531, %v2124
      %v2378 = vadd.f32 %v1532, %v2126
      %v2379 = vadd.f32 %v1533, %v2129
      %v2380 = vadd.f32 %v1534, %v2131
      %v2381 = vadd.f32 %v1535, %v2134
      %v2382 = vadd.f32 %v1536, %v2136
      %v2383 = vadd.f32 %v1537, %v2139
      %v2384 = vadd.f32 %v1538, %v2141
      %v2385 = vadd.f32 %v1539, %v2144
      %v2386 = vadd.f32 %v1540, %v2146
      %v2387 = vadd.f32 %v1541, %v2149
      %v2388 = vadd.f32 %v1542, %v2151
      %v2389 = vadd.f32 %v1543, %v2154
      %v2390 = vadd.f32 %v1544, %v2156
      %v2391 = vadd.f32 %v1545, %v2159
      %v2392 = vadd.f32 %v1546, %v2161
      %v2393 = vadd.f32 %v1547, %v2164
      %v2394 = vadd.f32 %v1548, %v2166
      %v2395 = vadd.f32 %v1549, %v2169
      %v2396 = vadd.f32 %v1550, %v2171
      %v2397 = vadd.f32 %v1551, %v2174
      %v2398 = vadd.f32 %v1552, %v2176
      %v2399 = vadd.f32 %v1553, %v2179
      %v2400 = vadd.f32 %v1554, %v2181
      %v2401 = vadd.f32 %v1555, %v2184
      %v2402 = vadd.f32 %v1556, %v2186
      %v2403 = vadd.f32 %v1557, %v2189
      %v2404 = vadd.f32 %v1558, %v2191
      %v2405 = vadd.f32 %v1559, %v2194
      %v2406 = vadd.f32 %v1560, %v2196
      %v2407 = vadd.f32 %v1561, %v2199
      %v2408 = vadd.f32 %v1562, %v2201
      %v2409 = vadd.f32 %v1563, %v2204
      %v2410 = vadd.f32 %v1564, %v2206
      %v2411 = vadd.f32 %v1565, %v2209
      %v2412 = vadd.f32 %v1566, %v2211
      %v2413 = vadd.f32 %v1567, %v2214
      %v2414 = vadd.f32 %v1568, %v2216
      %v2415 = vadd.f32 %v1569, %v2219
      %v2416 = vadd.f32 %v1570, %v2221
      %v2417 = vadd.f32 %v1571, %v2224
      %v2418 = vadd.f32 %v1572, %v2226
      %v2419 = vadd.f32 %v1573, %v2229
      %v2420 = vadd.f32 %v1574, %v2231
      %v2421 = vadd.f32 %v1575, %v2234
      %v2422 = vadd.f32 %v1576, %v2236
      %v2423 = vadd.f32 %v1577, %v2239
      %v2424 = vadd.f32 %v1578, %v2241
      %v2425 = vadd.f32 %v1579, %v2244
      %v2426 = vadd.f32 %v1580, %v2246
      %v2427 = vadd.f32 %v1581, %v2249
      %v2428 = vadd.f32 %v1582, %v2251
      %v2429 = vadd.f32 %v1583, %v2254
      %v2430 = vadd.f32 %v1584, %v2256
      %v2431 = vadd.f32 %v1585, %v2259
      %v2432 = vadd.f32 %v1586, %v2261
      %v2433 = vadd.f32 %v1587, %v2264
      %v2434 = vadd.f32 %v1588, %v2266
      %v2435 = vadd.f32 %v1589, %v2269
      %v2436 = vadd.f32 %v1590, %v2271
      %v2437 = vadd.f32 %v1591, %v2274
      %v2438 = vadd.f32 %v1592, %v2276
      %v2439 = vadd.f32 %v1593, %v2279
      %v2440 = vadd.f32 %v1594, %v2281
      %v2441 = vadd.f32 %v1595, %v2284
      %v2442 = vadd.f32 %v1596, %v2286
      %v2443 = vadd.f32 %v1597, %v2289
      %v2444 = vadd.f32 %v1598, %v2291
      %v2445 = vadd.f32 %v1599, %v2294
      %v2446 = vadd.f32 %v1600, %v2296
      %v2447 = vadd.f32 %v1601, %v2299
      %v2448 = vadd.f32 %v1602, %v2301
      %v2449 = vadd.f32 %v1603, %v2304
      %v2450 = vadd.f32 %v1604, %v2306
      %v2451 = vadd.f32 %v1605, %v2309
      %v2452 = vadd.f32 %v1606, %v2311
      %v2453 = vadd.f32 %v1607, %v2314
      %v2454 = vadd.f32 %v1608, %v2316
      %v2455 = vadd.f32 %v1609, %v2319
      %v2456 = vadd.f32 %v1610, %v2321
      %v2457 = vadd.f32 %v1611, %v2324
      %v2458 = vadd.f32 %v1612, %v2326
      %v2459 = vadd.f32 %v1613, %v2329
      %v2460 = vadd.f32 %v1614, %v2331
      %v2461 = vld [vmem:[#allocation2 + $0x9] sm:$0xff]
      %v2462 = vld [vmem:[#allocation2 + $0x11] sm:$0xff]
      %v2463 = vld [vmem:[#allocation2 + $0x19] sm:$0xff]
      %v2464 = vld [vmem:[#allocation2 + $0x21] sm:$0xff]
      %v2465 = vld [vmem:[#allocation2 + $0x39] sm:$0xff]
      %v2466 = vld [vmem:[#allocation2 + $0x41] sm:$0xff]
      %v2467 = vld [vmem:[#allocation2 + $0x49] sm:$0xff]
      %v2468 = vld [vmem:[#allocation2 + $0x51] sm:$0xff]
      %v2469 = vld [vmem:[#allocation2 + $0x69] sm:$0xff]
      %v2470 = vld [vmem:[#allocation2 + $0x71] sm:$0xff]
      %v2471 = vld [vmem:[#allocation2 + $0x79] sm:$0xff]
      %v2472 = vld [vmem:[#allocation2 + $0x81] sm:$0xff]
      %v2473 = vld [vmem:[#allocation2 + $0x99] sm:$0xff]
      %v2474 = vld [vmem:[#allocation2 + $0xa1] sm:$0xff]
      %v2475 = vld [vmem:[#allocation2 + $0xa9] sm:$0xff]
      %v2476 = vld [vmem:[#allocation2 + $0xb1] sm:$0xff]
      %v2477 = vld [vmem:[#allocation2 + $0xc9] sm:$0xff]
      %v2478 = vld [vmem:[#allocation2 + $0xd1] sm:$0xff]
      %v2479 = vld [vmem:[#allocation2 + $0xd9] sm:$0xff]
      %v2480 = vld [vmem:[#allocation2 + $0xe1] sm:$0xff]
      %v2481 = vld [vmem:[#allocation2 + $0xf9] sm:$0xff]
      %v2482 = vld [vmem:[#allocation2 + $0x101] sm:$0xff]
      %v2483 = vld [vmem:[#allocation2 + $0x109] sm:$0xff]
      %v2484 = vld [vmem:[#allocation2 + $0x111] sm:$0xff]
      %v2485 = vld [vmem:[#allocation2 + $0x129] sm:$0xff]
      %v2486 = vld [vmem:[#allocation2 + $0x131] sm:$0xff]
      %v2487 = vld [vmem:[#allocation2 + $0x139] sm:$0xff]
      %v2488 = vld [vmem:[#allocation2 + $0x141] sm:$0xff]
      %v2489 = vld [vmem:[#allocation2 + $0x159] sm:$0xff]
      %v2490 = vld [vmem:[#allocation2 + $0x161] sm:$0xff]
      %v2491 = vld [vmem:[#allocation2 + $0x169] sm:$0xff]
      %v2492 = vld [vmem:[#allocation2 + $0x171] sm:$0xff]
      %v2493 = vld [vmem:[#allocation2 + $0x189] sm:$0xff]
      %v2494 = vld [vmem:[#allocation2 + $0x191] sm:$0xff]
      %v2495 = vld [vmem:[#allocation2 + $0x199] sm:$0xff]
      %v2496 = vld [vmem:[#allocation2 + $0x1a1] sm:$0xff]
      %v2497 = vld [vmem:[#allocation2 + $0x1b9] sm:$0xff]
      %v2498 = vld [vmem:[#allocation2 + $0x1c1] sm:$0xff]
      %v2499 = vld [vmem:[#allocation2 + $0x1c9] sm:$0xff]
      %v2500 = vld [vmem:[#allocation2 + $0x1d1] sm:$0xff]
      %v2501 = vld [vmem:[#allocation2 + $0x1e9] sm:$0xff]
      %v2502 = vld [vmem:[#allocation2 + $0x1f1] sm:$0xff]
      %v2503 = vld [vmem:[#allocation2 + $0x1f9] sm:$0xff]
      %v2504 = vld [vmem:[#allocation2 + $0x201] sm:$0xff]
      %v2505 = vld [vmem:[#allocation2 + $0x219] sm:$0xff]
      %v2506 = vld [vmem:[#allocation2 + $0x221] sm:$0xff]
      %v2507 = vld [vmem:[#allocation2 + $0x229] sm:$0xff]
      %v2508 = vld [vmem:[#allocation2 + $0x231] sm:$0xff]
      %v2509 = vld [vmem:[#allocation2 + $0x249] sm:$0xff]
      %v2510 = vld [vmem:[#allocation2 + $0x251] sm:$0xff]
      %v2511 = vld [vmem:[#allocation2 + $0x259] sm:$0xff]
      %v2512 = vld [vmem:[#allocation2 + $0x261] sm:$0xff]
      %v2513 = vld [vmem:[#allocation2 + $0x279] sm:$0xff]
      %v2514 = vld [vmem:[#allocation2 + $0x281] sm:$0xff]
      %v2515 = vld [vmem:[#allocation2 + $0x289] sm:$0xff]
      %v2516 = vld [vmem:[#allocation2 + $0x291] sm:$0xff]
      %v2517 = vld [vmem:[#allocation2 + $0x2a9] sm:$0xff]
      %v2518 = vld [vmem:[#allocation2 + $0x2b1] sm:$0xff]
      %v2519 = vld [vmem:[#allocation2 + $0x2b9] sm:$0xff]
      %v2520 = vld [vmem:[#allocation2 + $0x2c1] sm:$0xff]
      %v2521 = vld [vmem:[#allocation2 + $0x2d9] sm:$0xff]
      %v2522 = vld [vmem:[#allocation2 + $0x2e1] sm:$0xff]
      %v2523 = vld [vmem:[#allocation2 + $0x2e9] sm:$0xff]
      %v2524 = vld [vmem:[#allocation2 + $0x2f1] sm:$0xff]
      %v2525 = vld [vmem:[#allocation2 + $0x309] sm:$0xff]
      %v2526 = vld [vmem:[#allocation2 + $0x311] sm:$0xff]
      %v2527 = vld [vmem:[#allocation2 + $0x319] sm:$0xff]
      %v2528 = vld [vmem:[#allocation2 + $0x321] sm:$0xff]
      %v2529 = vld [vmem:[#allocation2 + $0x339] sm:$0xff]
      %v2530 = vld [vmem:[#allocation2 + $0x341] sm:$0xff]
      %v2531 = vld [vmem:[#allocation2 + $0x349] sm:$0xff]
      %v2532 = vld [vmem:[#allocation2 + $0x351] sm:$0xff]
      %v2533 = vld [vmem:[#allocation2 + $0x369] sm:$0xff]
      %v2534 = vld [vmem:[#allocation2 + $0x371] sm:$0xff]
      %v2535 = vld [vmem:[#allocation2 + $0x379] sm:$0xff]
      %v2536 = vld [vmem:[#allocation2 + $0x381] sm:$0xff]
      %v2537 = vld [vmem:[#allocation2 + $0x399] sm:$0xff]
      %v2538 = vld [vmem:[#allocation2 + $0x3a1] sm:$0xff]
      %v2539 = vld [vmem:[#allocation2 + $0x3a9] sm:$0xff]
      %v2540 = vld [vmem:[#allocation2 + $0x3b1] sm:$0xff]
      %v2541 = vld [vmem:[#allocation2 + $0x3c9] sm:$0xff]
      %v2542 = vld [vmem:[#allocation2 + $0x3d1] sm:$0xff]
      %v2543 = vld [vmem:[#allocation2 + $0x3d9] sm:$0xff]
      %v2544 = vld [vmem:[#allocation2 + $0x3e1] sm:$0xff]
      %v2545 = vld [vmem:[#allocation2 + $0x3f9] sm:$0xff]
      %v2546 = vld [vmem:[#allocation2 + $0x401] sm:$0xff]
      %v2547 = vld [vmem:[#allocation2 + $0x409] sm:$0xff]
      %v2548 = vld [vmem:[#allocation2 + $0x411] sm:$0xff]
      %v2549 = vld [vmem:[#allocation2 + $0x429] sm:$0xff]
      %v2550 = vld [vmem:[#allocation2 + $0x431] sm:$0xff]
      %v2551 = vld [vmem:[#allocation2 + $0x439] sm:$0xff]
      %v2552 = vld [vmem:[#allocation2 + $0x441] sm:$0xff]
      %v2553 = vld [vmem:[#allocation2 + $0x459] sm:$0xff]
      %v2554 = vld [vmem:[#allocation2 + $0x461] sm:$0xff]
      %v2555 = vld [vmem:[#allocation2 + $0x469] sm:$0xff]
      %v2556 = vld [vmem:[#allocation2 + $0x471] sm:$0xff]
      %v2557 = vld [vmem:[#allocation2 + $0x489] sm:$0xff]
      %v2558 = vld [vmem:[#allocation2 + $0x491] sm:$0xff]
      %v2559 = vld [vmem:[#allocation2 + $0x499] sm:$0xff]
      %v2560 = vld [vmem:[#allocation2 + $0x4a1] sm:$0xff]
      %v2561 = vld [vmem:[#allocation2 + $0x4b9] sm:$0xff]
      %v2562 = vld [vmem:[#allocation2 + $0x4c1] sm:$0xff]
      %v2563 = vld [vmem:[#allocation2 + $0x4c9] sm:$0xff]
      %v2564 = vld [vmem:[#allocation2 + $0x4d1] sm:$0xff]
      %v2565 = vld [vmem:[#allocation2 + $0x4e9] sm:$0xff]
      %v2566 = vld [vmem:[#allocation2 + $0x4f1] sm:$0xff]
      %v2567 = vld [vmem:[#allocation2 + $0x4f9] sm:$0xff]
      %v2568 = vld [vmem:[#allocation2 + $0x501] sm:$0xff]
      %v2569 = vld [vmem:[#allocation2 + $0x519] sm:$0xff]
      %v2570 = vld [vmem:[#allocation2 + $0x521] sm:$0xff]
      %v2571 = vld [vmem:[#allocation2 + $0x529] sm:$0xff]
      %v2572 = vld [vmem:[#allocation2 + $0x531] sm:$0xff]
      %v2573 = vld [vmem:[#allocation2 + $0x549] sm:$0xff]
      %v2574 = vld [vmem:[#allocation2 + $0x551] sm:$0xff]
      %v2575 = vld [vmem:[#allocation2 + $0x559] sm:$0xff]
      %v2576 = vld [vmem:[#allocation2 + $0x561] sm:$0xff]
      %v2577 = vld [vmem:[#allocation2 + $0x579] sm:$0xff]
      %v2578 = vld [vmem:[#allocation2 + $0x581] sm:$0xff]
      %v2579 = vld [vmem:[#allocation2 + $0x589] sm:$0xff]
      %v2580 = vld [vmem:[#allocation2 + $0x591] sm:$0xff]
      %v2581 = vld [vmem:[#allocation2 + $0x5a9] sm:$0xff]
      %v2582 = vld [vmem:[#allocation2 + $0x5b1] sm:$0xff]
      %v2583 = vld [vmem:[#allocation2 + $0x5b9] sm:$0xff]
      %v2584 = vld [vmem:[#allocation2 + $0x5c1] sm:$0xff]
      %v2585 = vld [vmem:[#allocation2 + $0x5d9] sm:$0xff]
      %v2586 = vld [vmem:[#allocation2 + $0x5e1] sm:$0xff]
      %v2587 = vld [vmem:[#allocation2 + $0x5e9] sm:$0xff]
      %v2588 = vld [vmem:[#allocation2 + $0x5f1] sm:$0xff]
      %v2589 = vpack.c.bf16 %v2462, %v2461
      %v2590 = vpack.c.bf16 %v2464, %v2463
      %v2591 = vpack.c.bf16 %v2466, %v2465
      %v2592 = vpack.c.bf16 %v2468, %v2467
      %v2593 = vpack.c.bf16 %v2470, %v2469
      %v2594 = vpack.c.bf16 %v2472, %v2471
      %v2595 = vpack.c.bf16 %v2474, %v2473
      %v2596 = vpack.c.bf16 %v2476, %v2475
      %v2597 = vpack.c.bf16 %v2478, %v2477
      %v2598 = vpack.c.bf16 %v2480, %v2479
      %v2599 = vpack.c.bf16 %v2482, %v2481
      %v2600 = vpack.c.bf16 %v2484, %v2483
      %v2601 = vpack.c.bf16 %v2486, %v2485
      %v2602 = vpack.c.bf16 %v2488, %v2487
      %v2603 = vpack.c.bf16 %v2490, %v2489
      %v2604 = vpack.c.bf16 %v2492, %v2491
      %v2605 = vpack.c.bf16 %v2494, %v2493
      %v2606 = vpack.c.bf16 %v2496, %v2495
      %v2607 = vpack.c.bf16 %v2498, %v2497
      %v2608 = vpack.c.bf16 %v2500, %v2499
      %v2609 = vpack.c.bf16 %v2502, %v2501
      %v2610 = vpack.c.bf16 %v2504, %v2503
      %v2611 = vpack.c.bf16 %v2506, %v2505
      %v2612 = vpack.c.bf16 %v2508, %v2507
      %v2613 = vpack.c.bf16 %v2510, %v2509
      %v2614 = vpack.c.bf16 %v2512, %v2511
      %v2615 = vpack.c.bf16 %v2514, %v2513
      %v2616 = vpack.c.bf16 %v2516, %v2515
      %v2617 = vpack.c.bf16 %v2518, %v2517
      %v2618 = vpack.c.bf16 %v2520, %v2519
      %v2619 = vpack.c.bf16 %v2522, %v2521
      %v2620 = vpack.c.bf16 %v2524, %v2523
      %v2621 = vpack.c.bf16 %v2526, %v2525
      %v2622 = vpack.c.bf16 %v2528, %v2527
      %v2623 = vpack.c.bf16 %v2530, %v2529
      %v2624 = vpack.c.bf16 %v2532, %v2531
      %v2625 = vpack.c.bf16 %v2534, %v2533
      %v2626 = vpack.c.bf16 %v2536, %v2535
      %v2627 = vpack.c.bf16 %v2538, %v2537
      %v2628 = vpack.c.bf16 %v2540, %v2539
      %v2629 = vpack.c.bf16 %v2542, %v2541
      %v2630 = vpack.c.bf16 %v2544, %v2543
      %v2631 = vpack.c.bf16 %v2546, %v2545
      %v2632 = vpack.c.bf16 %v2548, %v2547
      %v2633 = vpack.c.bf16 %v2550, %v2549
      %v2634 = vpack.c.bf16 %v2552, %v2551
      %v2635 = vpack.c.bf16 %v2554, %v2553
      %v2636 = vpack.c.bf16 %v2556, %v2555
      %v2637 = vpack.c.bf16 %v2558, %v2557
      %v2638 = vpack.c.bf16 %v2560, %v2559
      %v2639 = vpack.c.bf16 %v2562, %v2561
      %v2640 = vpack.c.bf16 %v2564, %v2563
      %v2641 = vpack.c.bf16 %v2566, %v2565
      %v2642 = vpack.c.bf16 %v2568, %v2567
      %v2643 = vpack.c.bf16 %v2570, %v2569
      %v2644 = vpack.c.bf16 %v2572, %v2571
      %v2645 = vpack.c.bf16 %v2574, %v2573
      %v2646 = vpack.c.bf16 %v2576, %v2575
      %v2647 = vpack.c.bf16 %v2578, %v2577
      %v2648 = vpack.c.bf16 %v2580, %v2579
      %v2649 = vpack.c.bf16 %v2582, %v2581
      %v2650 = vpack.c.bf16 %v2584, %v2583
      %v2651 = vpack.c.bf16 %v2586, %v2585
      %v2652 = vpack.c.bf16 %v2588, %v2587
      %s2653 = scalar_lea.vmem %s1, 4
      %v2654 = vld [vmem:[%s2653] sm:$0x3]
      %v2656 = vsel %vm172, %v2589, 0
      %v2659 = vsel %vm172, %v2590, 0
      %v2662 = vsel %vm172, %v2591, 0
      %v2665 = vsel %vm172, %v2592, 0
      %v2668 = vsel %vm172, %v2593, 0
      %v2671 = vsel %vm172, %v2594, 0
      %v2674 = vsel %vm172, %v2595, 0
      %v2677 = vsel %vm172, %v2596, 0
      %v2680 = vsel %vm172, %v2597, 0
      %v2683 = vsel %vm172, %v2598, 0
      %v2686 = vsel %vm172, %v2599, 0
      %v2689 = vsel %vm172, %v2600, 0
      %v2692 = vsel %vm172, %v2601, 0
      %v2695 = vsel %vm172, %v2602, 0
      %v2698 = vsel %vm172, %v2603, 0
      %v2701 = vsel %vm172, %v2604, 0
      %v2704 = vsel %vm172, %v2605, 0
      %v2707 = vsel %vm172, %v2606, 0
      %v2710 = vsel %vm172, %v2607, 0
      %v2713 = vsel %vm172, %v2608, 0
      %v2716 = vsel %vm172, %v2609, 0
      %v2719 = vsel %vm172, %v2610, 0
      %v2722 = vsel %vm172, %v2611, 0
      %v2725 = vsel %vm172, %v2612, 0
      %v2728 = vsel %vm172, %v2613, 0
      %v2731 = vsel %vm172, %v2614, 0
      %v2734 = vsel %vm172, %v2615, 0
      %v2737 = vsel %vm172, %v2616, 0
      %v2740 = vsel %vm172, %v2617, 0
      %v2743 = vsel %vm172, %v2618, 0
      %v2746 = vsel %vm172, %v2619, 0
      %v2749 = vsel %vm172, %v2620, 0
      %v2752 = vsel %vm172, %v2621, 0
      %v2755 = vsel %vm172, %v2622, 0
      %v2758 = vsel %vm172, %v2623, 0
      %v2761 = vsel %vm172, %v2624, 0
      %v2764 = vsel %vm172, %v2625, 0
      %v2767 = vsel %vm172, %v2626, 0
      %v2770 = vsel %vm172, %v2627, 0
      %v2773 = vsel %vm172, %v2628, 0
      %v2776 = vsel %vm172, %v2629, 0
      %v2779 = vsel %vm172, %v2630, 0
      %v2782 = vsel %vm172, %v2631, 0
      %v2785 = vsel %vm172, %v2632, 0
      %v2788 = vsel %vm172, %v2633, 0
      %v2791 = vsel %vm172, %v2634, 0
      %v2794 = vsel %vm172, %v2635, 0
      %v2797 = vsel %vm172, %v2636, 0
      %v2800 = vsel %vm172, %v2637, 0
      %v2803 = vsel %vm172, %v2638, 0
      %v2806 = vsel %vm172, %v2639, 0
      %v2809 = vsel %vm172, %v2640, 0
      %v2812 = vsel %vm172, %v2641, 0
      %v2815 = vsel %vm172, %v2642, 0
      %v2818 = vsel %vm172, %v2643, 0
      %v2821 = vsel %vm172, %v2644, 0
      %v2824 = vsel %vm172, %v2645, 0
      %v2827 = vsel %vm172, %v2646, 0
      %v2830 = vsel %vm172, %v2647, 0
      %v2833 = vsel %vm172, %v2648, 0
      %v2836 = vsel %vm172, %v2649, 0
      %v2839 = vsel %vm172, %v2650, 0
      %v2842 = vsel %vm172, %v2651, 0
      %v2845 = vsel %vm172, %v2652, 0
      %v2848 = vand.u32 %v2654, %v1154
      %2850 = vmatpush.bf16.msra.mxu0 0
      %2851 = vmatpush.bf16.msra.mxu0 0
      %2852 = vmatpush.bf16.msra.mxu0 0
      %2853 = vmatpush.bf16.msra.mxu0 0
      %2854 = vmatpush.bf16.msra.mxu0 0
      %2855 = vmatpush.bf16.msra.mxu0 0
      %2856 = vmatpush.bf16.msra.mxu0 0
      %2857 = vmatpush.bf16.msra.mxu0 %v2848
      %2858 = vmatmul.bf16.gmra.mxu0 %v2656
      %v2859 = vpop.f32.mrf.mxu0
      %v2860 = vadd.f32 0.0, %v2859
      %v2861 = vpop.f32.mrf.mxu0
      %v2862 = vadd.f32 0.0, %v2861
      %2863 = vmatmul.bf16.gmra.mxu0 %v2659
      %v2864 = vpop.f32.mrf.mxu0
      %v2865 = vadd.f32 0.0, %v2864
      %v2866 = vpop.f32.mrf.mxu0
      %v2867 = vadd.f32 0.0, %v2866
      %2868 = vmatmul.bf16.gmra.mxu0 %v2662
      %v2869 = vpop.f32.mrf.mxu0
      %v2870 = vadd.f32 0.0, %v2869
      %v2871 = vpop.f32.mrf.mxu0
      %v2872 = vadd.f32 0.0, %v2871
      %2873 = vmatmul.bf16.gmra.mxu0 %v2665
      %v2874 = vpop.f32.mrf.mxu0
      %v2875 = vadd.f32 0.0, %v2874
      %v2876 = vpop.f32.mrf.mxu0
      %v2877 = vadd.f32 0.0, %v2876
      %2878 = vmatmul.bf16.gmra.mxu0 %v2668
      %v2879 = vpop.f32.mrf.mxu0
      %v2880 = vadd.f32 0.0, %v2879
      %v2881 = vpop.f32.mrf.mxu0
      %v2882 = vadd.f32 0.0, %v2881
      %2883 = vmatmul.bf16.gmra.mxu0 %v2671
      %v2884 = vpop.f32.mrf.mxu0
      %v2885 = vadd.f32 0.0, %v2884
      %v2886 = vpop.f32.mrf.mxu0
      %v2887 = vadd.f32 0.0, %v2886
      %2888 = vmatmul.bf16.gmra.mxu0 %v2674
      %v2889 = vpop.f32.mrf.mxu0
      %v2890 = vadd.f32 0.0, %v2889
      %v2891 = vpop.f32.mrf.mxu0
      %v2892 = vadd.f32 0.0, %v2891
      %2893 = vmatmul.bf16.gmra.mxu0 %v2677
      %v2894 = vpop.f32.mrf.mxu0
      %v2895 = vadd.f32 0.0, %v2894
      %v2896 = vpop.f32.mrf.mxu0
      %v2897 = vadd.f32 0.0, %v2896
      %2898 = vmatmul.bf16.gmra.mxu0 %v2680
      %v2899 = vpop.f32.mrf.mxu0
      %v2900 = vadd.f32 0.0, %v2899
      %v2901 = vpop.f32.mrf.mxu0
      %v2902 = vadd.f32 0.0, %v2901
      %2903 = vmatmul.bf16.gmra.mxu0 %v2683
      %v2904 = vpop.f32.mrf.mxu0
      %v2905 = vadd.f32 0.0, %v2904
      %v2906 = vpop.f32.mrf.mxu0
      %v2907 = vadd.f32 0.0, %v2906
      %2908 = vmatmul.bf16.gmra.mxu0 %v2686
      %v2909 = vpop.f32.mrf.mxu0
      %v2910 = vadd.f32 0.0, %v2909
      %v2911 = vpop.f32.mrf.mxu0
      %v2912 = vadd.f32 0.0, %v2911
      %2913 = vmatmul.bf16.gmra.mxu0 %v2689
      %v2914 = vpop.f32.mrf.mxu0
      %v2915 = vadd.f32 0.0, %v2914
      %v2916 = vpop.f32.mrf.mxu0
      %v2917 = vadd.f32 0.0, %v2916
      %2918 = vmatmul.bf16.gmra.mxu0 %v2692
      %v2919 = vpop.f32.mrf.mxu0
      %v2920 = vadd.f32 0.0, %v2919
      %v2921 = vpop.f32.mrf.mxu0
      %v2922 = vadd.f32 0.0, %v2921
      %2923 = vmatmul.bf16.gmra.mxu0 %v2695
      %v2924 = vpop.f32.mrf.mxu0
      %v2925 = vadd.f32 0.0, %v2924
      %v2926 = vpop.f32.mrf.mxu0
      %v2927 = vadd.f32 0.0, %v2926
      %2928 = vmatmul.bf16.gmra.mxu0 %v2698
      %v2929 = vpop.f32.mrf.mxu0
      %v2930 = vadd.f32 0.0, %v2929
      %v2931 = vpop.f32.mrf.mxu0
      %v2932 = vadd.f32 0.0, %v2931
      %2933 = vmatmul.bf16.gmra.mxu0 %v2701
      %v2934 = vpop.f32.mrf.mxu0
      %v2935 = vadd.f32 0.0, %v2934
      %v2936 = vpop.f32.mrf.mxu0
      %v2937 = vadd.f32 0.0, %v2936
      %2938 = vmatmul.bf16.gmra.mxu0 %v2704
      %v2939 = vpop.f32.mrf.mxu0
      %v2940 = vadd.f32 0.0, %v2939
      %v2941 = vpop.f32.mrf.mxu0
      %v2942 = vadd.f32 0.0, %v2941
      %2943 = vmatmul.bf16.gmra.mxu0 %v2707
      %v2944 = vpop.f32.mrf.mxu0
      %v2945 = vadd.f32 0.0, %v2944
      %v2946 = vpop.f32.mrf.mxu0
      %v2947 = vadd.f32 0.0, %v2946
      %2948 = vmatmul.bf16.gmra.mxu0 %v2710
      %v2949 = vpop.f32.mrf.mxu0
      %v2950 = vadd.f32 0.0, %v2949
      %v2951 = vpop.f32.mrf.mxu0
      %v2952 = vadd.f32 0.0, %v2951
      %2953 = vmatmul.bf16.gmra.mxu0 %v2713
      %v2954 = vpop.f32.mrf.mxu0
      %v2955 = vadd.f32 0.0, %v2954
      %v2956 = vpop.f32.mrf.mxu0
      %v2957 = vadd.f32 0.0, %v2956
      %2958 = vmatmul.bf16.gmra.mxu0 %v2716
      %v2959 = vpop.f32.mrf.mxu0
      %v2960 = vadd.f32 0.0, %v2959
      %v2961 = vpop.f32.mrf.mxu0
      %v2962 = vadd.f32 0.0, %v2961
      %2963 = vmatmul.bf16.gmra.mxu0 %v2719
      %v2964 = vpop.f32.mrf.mxu0
      %v2965 = vadd.f32 0.0, %v2964
      %v2966 = vpop.f32.mrf.mxu0
      %v2967 = vadd.f32 0.0, %v2966
      %2968 = vmatmul.bf16.gmra.mxu0 %v2722
      %v2969 = vpop.f32.mrf.mxu0
      %v2970 = vadd.f32 0.0, %v2969
      %v2971 = vpop.f32.mrf.mxu0
      %v2972 = vadd.f32 0.0, %v2971
      %2973 = vmatmul.bf16.gmra.mxu0 %v2725
      %v2974 = vpop.f32.mrf.mxu0
      %v2975 = vadd.f32 0.0, %v2974
      %v2976 = vpop.f32.mrf.mxu0
      %v2977 = vadd.f32 0.0, %v2976
      %2978 = vmatmul.bf16.gmra.mxu0 %v2728
      %v2979 = vpop.f32.mrf.mxu0
      %v2980 = vadd.f32 0.0, %v2979
      %v2981 = vpop.f32.mrf.mxu0
      %v2982 = vadd.f32 0.0, %v2981
      %2983 = vmatmul.bf16.gmra.mxu0 %v2731
      %v2984 = vpop.f32.mrf.mxu0
      %v2985 = vadd.f32 0.0, %v2984
      %v2986 = vpop.f32.mrf.mxu0
      %v2987 = vadd.f32 0.0, %v2986
      %2988 = vmatmul.bf16.gmra.mxu0 %v2734
      %v2989 = vpop.f32.mrf.mxu0
      %v2990 = vadd.f32 0.0, %v2989
      %v2991 = vpop.f32.mrf.mxu0
      %v2992 = vadd.f32 0.0, %v2991
      %2993 = vmatmul.bf16.gmra.mxu0 %v2737
      %v2994 = vpop.f32.mrf.mxu0
      %v2995 = vadd.f32 0.0, %v2994
      %v2996 = vpop.f32.mrf.mxu0
      %v2997 = vadd.f32 0.0, %v2996
      %2998 = vmatmul.bf16.gmra.mxu0 %v2740
      %v2999 = vpop.f32.mrf.mxu0
      %v3000 = vadd.f32 0.0, %v2999
      %v3001 = vpop.f32.mrf.mxu0
      %v3002 = vadd.f32 0.0, %v3001
      %3003 = vmatmul.bf16.gmra.mxu0 %v2743
      %v3004 = vpop.f32.mrf.mxu0
      %v3005 = vadd.f32 0.0, %v3004
      %v3006 = vpop.f32.mrf.mxu0
      %v3007 = vadd.f32 0.0, %v3006
      %3008 = vmatmul.bf16.gmra.mxu0 %v2746
      %v3009 = vpop.f32.mrf.mxu0
      %v3010 = vadd.f32 0.0, %v3009
      %v3011 = vpop.f32.mrf.mxu0
      %v3012 = vadd.f32 0.0, %v3011
      %3013 = vmatmul.bf16.gmra.mxu0 %v2749
      %v3014 = vpop.f32.mrf.mxu0
      %v3015 = vadd.f32 0.0, %v3014
      %v3016 = vpop.f32.mrf.mxu0
      %v3017 = vadd.f32 0.0, %v3016
      %3018 = vmatmul.bf16.gmra.mxu0 %v2752
      %v3019 = vpop.f32.mrf.mxu0
      %v3020 = vadd.f32 0.0, %v3019
      %v3021 = vpop.f32.mrf.mxu0
      %v3022 = vadd.f32 0.0, %v3021
      %3023 = vmatmul.bf16.gmra.mxu0 %v2755
      %v3024 = vpop.f32.mrf.mxu0
      %v3025 = vadd.f32 0.0, %v3024
      %v3026 = vpop.f32.mrf.mxu0
      %v3027 = vadd.f32 0.0, %v3026
      %3028 = vmatmul.bf16.gmra.mxu0 %v2758
      %v3029 = vpop.f32.mrf.mxu0
      %v3030 = vadd.f32 0.0, %v3029
      %v3031 = vpop.f32.mrf.mxu0
      %v3032 = vadd.f32 0.0, %v3031
      %3033 = vmatmul.bf16.gmra.mxu0 %v2761
      %v3034 = vpop.f32.mrf.mxu0
      %v3035 = vadd.f32 0.0, %v3034
      %v3036 = vpop.f32.mrf.mxu0
      %v3037 = vadd.f32 0.0, %v3036
      %3038 = vmatmul.bf16.gmra.mxu0 %v2764
      %v3039 = vpop.f32.mrf.mxu0
      %v3040 = vadd.f32 0.0, %v3039
      %v3041 = vpop.f32.mrf.mxu0
      %v3042 = vadd.f32 0.0, %v3041
      %3043 = vmatmul.bf16.gmra.mxu0 %v2767
      %v3044 = vpop.f32.mrf.mxu0
      %v3045 = vadd.f32 0.0, %v3044
      %v3046 = vpop.f32.mrf.mxu0
      %v3047 = vadd.f32 0.0, %v3046
      %3048 = vmatmul.bf16.gmra.mxu0 %v2770
      %v3049 = vpop.f32.mrf.mxu0
      %v3050 = vadd.f32 0.0, %v3049
      %v3051 = vpop.f32.mrf.mxu0
      %v3052 = vadd.f32 0.0, %v3051
      %3053 = vmatmul.bf16.gmra.mxu0 %v2773
      %v3054 = vpop.f32.mrf.mxu0
      %v3055 = vadd.f32 0.0, %v3054
      %v3056 = vpop.f32.mrf.mxu0
      %v3057 = vadd.f32 0.0, %v3056
      %3058 = vmatmul.bf16.gmra.mxu0 %v2776
      %v3059 = vpop.f32.mrf.mxu0
      %v3060 = vadd.f32 0.0, %v3059
      %v3061 = vpop.f32.mrf.mxu0
      %v3062 = vadd.f32 0.0, %v3061
      %3063 = vmatmul.bf16.gmra.mxu0 %v2779
      %v3064 = vpop.f32.mrf.mxu0
      %v3065 = vadd.f32 0.0, %v3064
      %v3066 = vpop.f32.mrf.mxu0
      %v3067 = vadd.f32 0.0, %v3066
      %3068 = vmatmul.bf16.gmra.mxu0 %v2782
      %v3069 = vpop.f32.mrf.mxu0
      %v3070 = vadd.f32 0.0, %v3069
      %v3071 = vpop.f32.mrf.mxu0
      %v3072 = vadd.f32 0.0, %v3071
      %3073 = vmatmul.bf16.gmra.mxu0 %v2785
      %v3074 = vpop.f32.mrf.mxu0
      %v3075 = vadd.f32 0.0, %v3074
      %v3076 = vpop.f32.mrf.mxu0
      %v3077 = vadd.f32 0.0, %v3076
      %3078 = vmatmul.bf16.gmra.mxu0 %v2788
      %v3079 = vpop.f32.mrf.mxu0
      %v3080 = vadd.f32 0.0, %v3079
      %v3081 = vpop.f32.mrf.mxu0
      %v3082 = vadd.f32 0.0, %v3081
      %3083 = vmatmul.bf16.gmra.mxu0 %v2791
      %v3084 = vpop.f32.mrf.mxu0
      %v3085 = vadd.f32 0.0, %v3084
      %v3086 = vpop.f32.mrf.mxu0
      %v3087 = vadd.f32 0.0, %v3086
      %3088 = vmatmul.bf16.gmra.mxu0 %v2794
      %v3089 = vpop.f32.mrf.mxu0
      %v3090 = vadd.f32 0.0, %v3089
      %v3091 = vpop.f32.mrf.mxu0
      %v3092 = vadd.f32 0.0, %v3091
      %3093 = vmatmul.bf16.gmra.mxu0 %v2797
      %v3094 = vpop.f32.mrf.mxu0
      %v3095 = vadd.f32 0.0, %v3094
      %v3096 = vpop.f32.mrf.mxu0
      %v3097 = vadd.f32 0.0, %v3096
      %3098 = vmatmul.bf16.gmra.mxu0 %v2800
      %v3099 = vpop.f32.mrf.mxu0
      %v3100 = vadd.f32 0.0, %v3099
      %v3101 = vpop.f32.mrf.mxu0
      %v3102 = vadd.f32 0.0, %v3101
      %3103 = vmatmul.bf16.gmra.mxu0 %v2803
      %v3104 = vpop.f32.mrf.mxu0
      %v3105 = vadd.f32 0.0, %v3104
      %v3106 = vpop.f32.mrf.mxu0
      %v3107 = vadd.f32 0.0, %v3106
      %3108 = vmatmul.bf16.gmra.mxu0 %v2806
      %v3109 = vpop.f32.mrf.mxu0
      %v3110 = vadd.f32 0.0, %v3109
      %v3111 = vpop.f32.mrf.mxu0
      %v3112 = vadd.f32 0.0, %v3111
      %3113 = vmatmul.bf16.gmra.mxu0 %v2809
      %v3114 = vpop.f32.mrf.mxu0
      %v3115 = vadd.f32 0.0, %v3114
      %v3116 = vpop.f32.mrf.mxu0
      %v3117 = vadd.f32 0.0, %v3116
      %3118 = vmatmul.bf16.gmra.mxu0 %v2812
      %v3119 = vpop.f32.mrf.mxu0
      %v3120 = vadd.f32 0.0, %v3119
      %v3121 = vpop.f32.mrf.mxu0
      %v3122 = vadd.f32 0.0, %v3121
      %3123 = vmatmul.bf16.gmra.mxu0 %v2815
      %v3124 = vpop.f32.mrf.mxu0
      %v3125 = vadd.f32 0.0, %v3124
      %v3126 = vpop.f32.mrf.mxu0
      %v3127 = vadd.f32 0.0, %v3126
      %3128 = vmatmul.bf16.gmra.mxu0 %v2818
      %v3129 = vpop.f32.mrf.mxu0
      %v3130 = vadd.f32 0.0, %v3129
      %v3131 = vpop.f32.mrf.mxu0
      %v3132 = vadd.f32 0.0, %v3131
      %3133 = vmatmul.bf16.gmra.mxu0 %v2821
      %v3134 = vpop.f32.mrf.mxu0
      %v3135 = vadd.f32 0.0, %v3134
      %v3136 = vpop.f32.mrf.mxu0
      %v3137 = vadd.f32 0.0, %v3136
      %3138 = vmatmul.bf16.gmra.mxu0 %v2824
      %v3139 = vpop.f32.mrf.mxu0
      %v3140 = vadd.f32 0.0, %v3139
      %v3141 = vpop.f32.mrf.mxu0
      %v3142 = vadd.f32 0.0, %v3141
      %3143 = vmatmul.bf16.gmra.mxu0 %v2827
      %v3144 = vpop.f32.mrf.mxu0
      %v3145 = vadd.f32 0.0, %v3144
      %v3146 = vpop.f32.mrf.mxu0
      %v3147 = vadd.f32 0.0, %v3146
      %3148 = vmatmul.bf16.gmra.mxu0 %v2830
      %v3149 = vpop.f32.mrf.mxu0
      %v3150 = vadd.f32 0.0, %v3149
      %v3151 = vpop.f32.mrf.mxu0
      %v3152 = vadd.f32 0.0, %v3151
      %3153 = vmatmul.bf16.gmra.mxu0 %v2833
      %v3154 = vpop.f32.mrf.mxu0
      %v3155 = vadd.f32 0.0, %v3154
      %v3156 = vpop.f32.mrf.mxu0
      %v3157 = vadd.f32 0.0, %v3156
      %3158 = vmatmul.bf16.gmra.mxu0 %v2836
      %v3159 = vpop.f32.mrf.mxu0
      %v3160 = vadd.f32 0.0, %v3159
      %v3161 = vpop.f32.mrf.mxu0
      %v3162 = vadd.f32 0.0, %v3161
      %3163 = vmatmul.bf16.gmra.mxu0 %v2839
      %v3164 = vpop.f32.mrf.mxu0
      %v3165 = vadd.f32 0.0, %v3164
      %v3166 = vpop.f32.mrf.mxu0
      %v3167 = vadd.f32 0.0, %v3166
      %3168 = vmatmul.bf16.gmra.mxu0 %v2842
      %v3169 = vpop.f32.mrf.mxu0
      %v3170 = vadd.f32 0.0, %v3169
      %v3171 = vpop.f32.mrf.mxu0
      %v3172 = vadd.f32 0.0, %v3171
      %3173 = vmatmul.bf16.gmra.mxu0 %v2845
      %v3174 = vpop.f32.mrf.mxu0
      %v3175 = vadd.f32 0.0, %v3174
      %v3176 = vpop.f32.mrf.mxu0
      %v3177 = vadd.f32 0.0, %v3176
      %3178 = vdwg.mxu0
      %v3179 = vadd.f32 %v2333, %v2860
      %v3180 = vadd.f32 %v2334, %v2862
      %v3181 = vadd.f32 %v2335, %v2865
      %v3182 = vadd.f32 %v2336, %v2867
      %v3183 = vadd.f32 %v2337, %v2870
      %v3184 = vadd.f32 %v2338, %v2872
      %v3185 = vadd.f32 %v2339, %v2875
      %v3186 = vadd.f32 %v2340, %v2877
      %v3187 = vadd.f32 %v2341, %v2880
      %v3188 = vadd.f32 %v2342, %v2882
      %v3189 = vadd.f32 %v2343, %v2885
      %v3190 = vadd.f32 %v2344, %v2887
      %v3191 = vadd.f32 %v2345, %v2890
      %v3192 = vadd.f32 %v2346, %v2892
      %v3193 = vadd.f32 %v2347, %v2895
      %v3194 = vadd.f32 %v2348, %v2897
      %v3195 = vadd.f32 %v2349, %v2900
      %v3196 = vadd.f32 %v2350, %v2902
      %v3197 = vadd.f32 %v2351, %v2905
      %v3198 = vadd.f32 %v2352, %v2907
      %v3199 = vadd.f32 %v2353, %v2910
      %v3200 = vadd.f32 %v2354, %v2912
      %v3201 = vadd.f32 %v2355, %v2915
      %v3202 = vadd.f32 %v2356, %v2917
      %v3203 = vadd.f32 %v2357, %v2920
      %v3204 = vadd.f32 %v2358, %v2922
      %v3205 = vadd.f32 %v2359, %v2925
      %v3206 = vadd.f32 %v2360, %v2927
      %v3207 = vadd.f32 %v2361, %v2930
      %v3208 = vadd.f32 %v2362, %v2932
      %v3209 = vadd.f32 %v2363, %v2935
      %v3210 = vadd.f32 %v2364, %v2937
      %v3211 = vadd.f32 %v2365, %v2940
      %v3212 = vadd.f32 %v2366, %v2942
      %v3213 = vadd.f32 %v2367, %v2945
      %v3214 = vadd.f32 %v2368, %v2947
      %v3215 = vadd.f32 %v2369, %v2950
      %v3216 = vadd.f32 %v2370, %v2952
      %v3217 = vadd.f32 %v2371, %v2955
      %v3218 = vadd.f32 %v2372, %v2957
      %v3219 = vadd.f32 %v2373, %v2960
      %v3220 = vadd.f32 %v2374, %v2962
      %v3221 = vadd.f32 %v2375, %v2965
      %v3222 = vadd.f32 %v2376, %v2967
      %v3223 = vadd.f32 %v2377, %v2970
      %v3224 = vadd.f32 %v2378, %v2972
      %v3225 = vadd.f32 %v2379, %v2975
      %v3226 = vadd.f32 %v2380, %v2977
      %v3227 = vadd.f32 %v2381, %v2980
      %v3228 = vadd.f32 %v2382, %v2982
      %v3229 = vadd.f32 %v2383, %v2985
      %v3230 = vadd.f32 %v2384, %v2987
      %v3231 = vadd.f32 %v2385, %v2990
      %v3232 = vadd.f32 %v2386, %v2992
      %v3233 = vadd.f32 %v2387, %v2995
      %v3234 = vadd.f32 %v2388, %v2997
      %v3235 = vadd.f32 %v2389, %v3000
      %v3236 = vadd.f32 %v2390, %v3002
      %v3237 = vadd.f32 %v2391, %v3005
      %v3238 = vadd.f32 %v2392, %v3007
      %v3239 = vadd.f32 %v2393, %v3010
      %v3240 = vadd.f32 %v2394, %v3012
      %v3241 = vadd.f32 %v2395, %v3015
      %v3242 = vadd.f32 %v2396, %v3017
      %v3243 = vadd.f32 %v2397, %v3020
      %v3244 = vadd.f32 %v2398, %v3022
      %v3245 = vadd.f32 %v2399, %v3025
      %v3246 = vadd.f32 %v2400, %v3027
      %v3247 = vadd.f32 %v2401, %v3030
      %v3248 = vadd.f32 %v2402, %v3032
      %v3249 = vadd.f32 %v2403, %v3035
      %v3250 = vadd.f32 %v2404, %v3037
      %v3251 = vadd.f32 %v2405, %v3040
      %v3252 = vadd.f32 %v2406, %v3042
      %v3253 = vadd.f32 %v2407, %v3045
      %v3254 = vadd.f32 %v2408, %v3047
      %v3255 = vadd.f32 %v2409, %v3050
      %v3256 = vadd.f32 %v2410, %v3052
      %v3257 = vadd.f32 %v2411, %v3055
      %v3258 = vadd.f32 %v2412, %v3057
      %v3259 = vadd.f32 %v2413, %v3060
      %v3260 = vadd.f32 %v2414, %v3062
      %v3261 = vadd.f32 %v2415, %v3065
      %v3262 = vadd.f32 %v2416, %v3067
      %v3263 = vadd.f32 %v2417, %v3070
      %v3264 = vadd.f32 %v2418, %v3072
      %v3265 = vadd.f32 %v2419, %v3075
      %v3266 = vadd.f32 %v2420, %v3077
      %v3267 = vadd.f32 %v2421, %v3080
      %v3268 = vadd.f32 %v2422, %v3082
      %v3269 = vadd.f32 %v2423, %v3085
      %v3270 = vadd.f32 %v2424, %v3087
      %v3271 = vadd.f32 %v2425, %v3090
      %v3272 = vadd.f32 %v2426, %v3092
      %v3273 = vadd.f32 %v2427, %v3095
      %v3274 = vadd.f32 %v2428, %v3097
      %v3275 = vadd.f32 %v2429, %v3100
      %v3276 = vadd.f32 %v2430, %v3102
      %v3277 = vadd.f32 %v2431, %v3105
      %v3278 = vadd.f32 %v2432, %v3107
      %v3279 = vadd.f32 %v2433, %v3110
      %v3280 = vadd.f32 %v2434, %v3112
      %v3281 = vadd.f32 %v2435, %v3115
      %v3282 = vadd.f32 %v2436, %v3117
      %v3283 = vadd.f32 %v2437, %v3120
      %v3284 = vadd.f32 %v2438, %v3122
      %v3285 = vadd.f32 %v2439, %v3125
      %v3286 = vadd.f32 %v2440, %v3127
      %v3287 = vadd.f32 %v2441, %v3130
      %v3288 = vadd.f32 %v2442, %v3132
      %v3289 = vadd.f32 %v2443, %v3135
      %v3290 = vadd.f32 %v2444, %v3137
      %v3291 = vadd.f32 %v2445, %v3140
      %v3292 = vadd.f32 %v2446, %v3142
      %v3293 = vadd.f32 %v2447, %v3145
      %v3294 = vadd.f32 %v2448, %v3147
      %v3295 = vadd.f32 %v2449, %v3150
      %v3296 = vadd.f32 %v2450, %v3152
      %v3297 = vadd.f32 %v2451, %v3155
      %v3298 = vadd.f32 %v2452, %v3157
      %v3299 = vadd.f32 %v2453, %v3160
      %v3300 = vadd.f32 %v2454, %v3162
      %v3301 = vadd.f32 %v2455, %v3165
      %v3302 = vadd.f32 %v2456, %v3167
      %v3303 = vadd.f32 %v2457, %v3170
      %v3304 = vadd.f32 %v2458, %v3172
      %v3305 = vadd.f32 %v2459, %v3175
      %v3306 = vadd.f32 %v2460, %v3177
      %v3307 = vld [vmem:[%s633 + $0x7] sm:$0xff]
      %v3308 = vld [vmem:[%s633 + $0xf] sm:$0xff]
      %v3309 = vld [vmem:[%s633 + $0x17] sm:$0xff]
      %v3310 = vld [vmem:[%s633 + $0x1f] sm:$0xff]
      %v3311 = vld [vmem:[%s633 + $0x37] sm:$0xff]
      %v3312 = vld [vmem:[%s633 + $0x3f] sm:$0xff]
      %v3313 = vld [vmem:[%s633 + $0x47] sm:$0xff]
      %v3314 = vld [vmem:[%s633 + $0x4f] sm:$0xff]
      %v3315 = vld [vmem:[%s633 + $0x67] sm:$0xff]
      %v3316 = vld [vmem:[%s633 + $0x6f] sm:$0xff]
      %v3317 = vld [vmem:[%s633 + $0x77] sm:$0xff]
      %v3318 = vld [vmem:[%s633 + $0x7f] sm:$0xff]
      %v3319 = vld [vmem:[%s633 + $0x97] sm:$0xff]
      %v3320 = vld [vmem:[%s633 + $0x9f] sm:$0xff]
      %v3321 = vld [vmem:[%s633 + $0xa7] sm:$0xff]
      %v3322 = vld [vmem:[%s633 + $0xaf] sm:$0xff]
      %v3323 = vld [vmem:[%s633 + $0xc7] sm:$0xff]
      %v3324 = vld [vmem:[%s633 + $0xcf] sm:$0xff]
      %v3325 = vld [vmem:[%s633 + $0xd7] sm:$0xff]
      %v3326 = vld [vmem:[%s633 + $0xdf] sm:$0xff]
      %v3327 = vld [vmem:[%s633 + $0xf7] sm:$0xff]
      %v3328 = vld [vmem:[%s633 + $0xff] sm:$0xff]
      %v3329 = vld [vmem:[%s633 + $0x107] sm:$0xff]
      %v3330 = vld [vmem:[%s633 + $0x10f] sm:$0xff]
      %v3331 = vld [vmem:[%s633 + $0x127] sm:$0xff]
      %v3332 = vld [vmem:[%s633 + $0x12f] sm:$0xff]
      %v3333 = vld [vmem:[%s633 + $0x137] sm:$0xff]
      %v3334 = vld [vmem:[%s633 + $0x13f] sm:$0xff]
      %v3335 = vld [vmem:[%s633 + $0x157] sm:$0xff]
      %v3336 = vld [vmem:[%s633 + $0x15f] sm:$0xff]
      %v3337 = vld [vmem:[%s633 + $0x167] sm:$0xff]
      %v3338 = vld [vmem:[%s633 + $0x16f] sm:$0xff]
      %v3339 = vld [vmem:[%s633 + $0x187] sm:$0xff]
      %v3340 = vld [vmem:[%s633 + $0x18f] sm:$0xff]
      %v3341 = vld [vmem:[%s633 + $0x197] sm:$0xff]
      %v3342 = vld [vmem:[%s633 + $0x19f] sm:$0xff]
      %v3343 = vld [vmem:[%s633 + $0x1b7] sm:$0xff]
      %v3344 = vld [vmem:[%s633 + $0x1bf] sm:$0xff]
      %v3345 = vld [vmem:[%s633 + $0x1c7] sm:$0xff]
      %v3346 = vld [vmem:[%s633 + $0x1cf] sm:$0xff]
      %v3347 = vld [vmem:[%s633 + $0x1e7] sm:$0xff]
      %v3348 = vld [vmem:[%s633 + $0x1ef] sm:$0xff]
      %v3349 = vld [vmem:[%s633 + $0x1f7] sm:$0xff]
      %v3350 = vld [vmem:[%s633 + $0x1ff] sm:$0xff]
      %v3351 = vld [vmem:[%s633 + $0x217] sm:$0xff]
      %v3352 = vld [vmem:[%s633 + $0x21f] sm:$0xff]
      %v3353 = vld [vmem:[%s633 + $0x227] sm:$0xff]
      %v3354 = vld [vmem:[%s633 + $0x22f] sm:$0xff]
      %v3355 = vld [vmem:[%s633 + $0x247] sm:$0xff]
      %v3356 = vld [vmem:[%s633 + $0x24f] sm:$0xff]
      %v3357 = vld [vmem:[%s633 + $0x257] sm:$0xff]
      %v3358 = vld [vmem:[%s633 + $0x25f] sm:$0xff]
      %v3359 = vld [vmem:[%s633 + $0x277] sm:$0xff]
      %v3360 = vld [vmem:[%s633 + $0x27f] sm:$0xff]
      %v3361 = vld [vmem:[%s633 + $0x287] sm:$0xff]
      %v3362 = vld [vmem:[%s633 + $0x28f] sm:$0xff]
      %v3363 = vld [vmem:[%s633 + $0x2a7] sm:$0xff]
      %v3364 = vld [vmem:[%s633 + $0x2af] sm:$0xff]
      %v3365 = vld [vmem:[%s633 + $0x2b7] sm:$0xff]
      %v3366 = vld [vmem:[%s633 + $0x2bf] sm:$0xff]
      %v3367 = vld [vmem:[%s633 + $0x2d7] sm:$0xff]
      %v3368 = vld [vmem:[%s633 + $0x2df] sm:$0xff]
      %v3369 = vld [vmem:[%s633 + $0x2e7] sm:$0xff]
      %v3370 = vld [vmem:[%s633 + $0x2ef] sm:$0xff]
      %v3371 = vld [vmem:[%s633 + $0x307] sm:$0xff]
      %v3372 = vld [vmem:[%s633 + $0x30f] sm:$0xff]
      %v3373 = vld [vmem:[%s633 + $0x317] sm:$0xff]
      %v3374 = vld [vmem:[%s633 + $0x31f] sm:$0xff]
      %v3375 = vld [vmem:[%s633 + $0x337] sm:$0xff]
      %v3376 = vld [vmem:[%s633 + $0x33f] sm:$0xff]
      %v3377 = vld [vmem:[%s633 + $0x347] sm:$0xff]
      %v3378 = vld [vmem:[%s633 + $0x34f] sm:$0xff]
      %v3379 = vld [vmem:[%s633 + $0x367] sm:$0xff]
      %v3380 = vld [vmem:[%s633 + $0x36f] sm:$0xff]
      %v3381 = vld [vmem:[%s633 + $0x377] sm:$0xff]
      %v3382 = vld [vmem:[%s633 + $0x37f] sm:$0xff]
      %v3383 = vld [vmem:[%s633 + $0x397] sm:$0xff]
      %v3384 = vld [vmem:[%s633 + $0x39f] sm:$0xff]
      %v3385 = vld [vmem:[%s633 + $0x3a7] sm:$0xff]
      %v3386 = vld [vmem:[%s633 + $0x3af] sm:$0xff]
      %v3387 = vld [vmem:[%s633 + $0x3c7] sm:$0xff]
      %v3388 = vld [vmem:[%s633 + $0x3cf] sm:$0xff]
      %v3389 = vld [vmem:[%s633 + $0x3d7] sm:$0xff]
      %v3390 = vld [vmem:[%s633 + $0x3df] sm:$0xff]
      %v3391 = vld [vmem:[%s633 + $0x3f7] sm:$0xff]
      %v3392 = vld [vmem:[%s633 + $0x3ff] sm:$0xff]
      %v3393 = vld [vmem:[%s633 + $0x407] sm:$0xff]
      %v3394 = vld [vmem:[%s633 + $0x40f] sm:$0xff]
      %v3395 = vld [vmem:[%s633 + $0x427] sm:$0xff]
      %v3396 = vld [vmem:[%s633 + $0x42f] sm:$0xff]
      %v3397 = vld [vmem:[%s633 + $0x437] sm:$0xff]
      %v3398 = vld [vmem:[%s633 + $0x43f] sm:$0xff]
      %v3399 = vld [vmem:[%s633 + $0x457] sm:$0xff]
      %v3400 = vld [vmem:[%s633 + $0x45f] sm:$0xff]
      %v3401 = vld [vmem:[%s633 + $0x467] sm:$0xff]
      %v3402 = vld [vmem:[%s633 + $0x46f] sm:$0xff]
      %v3403 = vld [vmem:[%s633 + $0x487] sm:$0xff]
      %v3404 = vld [vmem:[%s633 + $0x48f] sm:$0xff]
      %v3405 = vld [vmem:[%s633 + $0x497] sm:$0xff]
      %v3406 = vld [vmem:[%s633 + $0x49f] sm:$0xff]
      %v3407 = vld [vmem:[%s633 + $0x4b7] sm:$0xff]
      %v3408 = vld [vmem:[%s633 + $0x4bf] sm:$0xff]
      %v3409 = vld [vmem:[%s633 + $0x4c7] sm:$0xff]
      %v3410 = vld [vmem:[%s633 + $0x4cf] sm:$0xff]
      %v3411 = vld [vmem:[%s633 + $0x4e7] sm:$0xff]
      %v3412 = vld [vmem:[%s633 + $0x4ef] sm:$0xff]
      %v3413 = vld [vmem:[%s633 + $0x4f7] sm:$0xff]
      %v3414 = vld [vmem:[%s633 + $0x4ff] sm:$0xff]
      %v3415 = vld [vmem:[%s633 + $0x517] sm:$0xff]
      %v3416 = vld [vmem:[%s633 + $0x51f] sm:$0xff]
      %v3417 = vld [vmem:[%s633 + $0x527] sm:$0xff]
      %v3418 = vld [vmem:[%s633 + $0x52f] sm:$0xff]
      %v3419 = vld [vmem:[%s633 + $0x547] sm:$0xff]
      %v3420 = vld [vmem:[%s633 + $0x54f] sm:$0xff]
      %v3421 = vld [vmem:[%s633 + $0x557] sm:$0xff]
      %v3422 = vld [vmem:[%s633 + $0x55f] sm:$0xff]
      %v3423 = vld [vmem:[%s633 + $0x577] sm:$0xff]
      %v3424 = vld [vmem:[%s633 + $0x57f] sm:$0xff]
      %v3425 = vld [vmem:[%s633 + $0x587] sm:$0xff]
      %v3426 = vld [vmem:[%s633 + $0x58f] sm:$0xff]
      %v3427 = vld [vmem:[%s633 + $0x5a7] sm:$0xff]
      %v3428 = vld [vmem:[%s633 + $0x5af] sm:$0xff]
      %v3429 = vld [vmem:[%s633 + $0x5b7] sm:$0xff]
      %v3430 = vld [vmem:[%s633 + $0x5bf] sm:$0xff]
      %v3431 = vld [vmem:[%s633 + $0x5d7] sm:$0xff]
      %v3432 = vld [vmem:[%s633 + $0x5df] sm:$0xff]
      %v3433 = vld [vmem:[%s633 + $0x5e7] sm:$0xff]
      %v3434 = vld [vmem:[%s633 + $0x5ef] sm:$0xff]
      %v3435 = vpack.c.bf16 %v3308, %v3307
      %v3436 = vpack.c.bf16 %v3310, %v3309
      %v3437 = vpack.c.bf16 %v3312, %v3311
      %v3438 = vpack.c.bf16 %v3314, %v3313
      %v3439 = vpack.c.bf16 %v3316, %v3315
      %v3440 = vpack.c.bf16 %v3318, %v3317
      %v3441 = vpack.c.bf16 %v3320, %v3319
      %v3442 = vpack.c.bf16 %v3322, %v3321
      %v3443 = vpack.c.bf16 %v3324, %v3323
      %v3444 = vpack.c.bf16 %v3326, %v3325
      %v3445 = vpack.c.bf16 %v3328, %v3327
      %v3446 = vpack.c.bf16 %v3330, %v3329
      %v3447 = vpack.c.bf16 %v3332, %v3331
      %v3448 = vpack.c.bf16 %v3334, %v3333
      %v3449 = vpack.c.bf16 %v3336, %v3335
      %v3450 = vpack.c.bf16 %v3338, %v3337
      %v3451 = vpack.c.bf16 %v3340, %v3339
      %v3452 = vpack.c.bf16 %v3342, %v3341
      %v3453 = vpack.c.bf16 %v3344, %v3343
      %v3454 = vpack.c.bf16 %v3346, %v3345
      %v3455 = vpack.c.bf16 %v3348, %v3347
      %v3456 = vpack.c.bf16 %v3350, %v3349
      %v3457 = vpack.c.bf16 %v3352, %v3351
      %v3458 = vpack.c.bf16 %v3354, %v3353
      %v3459 = vpack.c.bf16 %v3356, %v3355
      %v3460 = vpack.c.bf16 %v3358, %v3357
      %v3461 = vpack.c.bf16 %v3360, %v3359
      %v3462 = vpack.c.bf16 %v3362, %v3361
      %v3463 = vpack.c.bf16 %v3364, %v3363
      %v3464 = vpack.c.bf16 %v3366, %v3365
      %v3465 = vpack.c.bf16 %v3368, %v3367
      %v3466 = vpack.c.bf16 %v3370, %v3369
      %v3467 = vpack.c.bf16 %v3372, %v3371
      %v3468 = vpack.c.bf16 %v3374, %v3373
      %v3469 = vpack.c.bf16 %v3376, %v3375
      %v3470 = vpack.c.bf16 %v3378, %v3377
      %v3471 = vpack.c.bf16 %v3380, %v3379
      %v3472 = vpack.c.bf16 %v3382, %v3381
      %v3473 = vpack.c.bf16 %v3384, %v3383
      %v3474 = vpack.c.bf16 %v3386, %v3385
      %v3475 = vpack.c.bf16 %v3388, %v3387
      %v3476 = vpack.c.bf16 %v3390, %v3389
      %v3477 = vpack.c.bf16 %v3392, %v3391
      %v3478 = vpack.c.bf16 %v3394, %v3393
      %v3479 = vpack.c.bf16 %v3396, %v3395
      %v3480 = vpack.c.bf16 %v3398, %v3397
      %v3481 = vpack.c.bf16 %v3400, %v3399
      %v3482 = vpack.c.bf16 %v3402, %v3401
      %v3483 = vpack.c.bf16 %v3404, %v3403
      %v3484 = vpack.c.bf16 %v3406, %v3405
      %v3485 = vpack.c.bf16 %v3408, %v3407
      %v3486 = vpack.c.bf16 %v3410, %v3409
      %v3487 = vpack.c.bf16 %v3412, %v3411
      %v3488 = vpack.c.bf16 %v3414, %v3413
      %v3489 = vpack.c.bf16 %v3416, %v3415
      %v3490 = vpack.c.bf16 %v3418, %v3417
      %v3491 = vpack.c.bf16 %v3420, %v3419
      %v3492 = vpack.c.bf16 %v3422, %v3421
      %v3493 = vpack.c.bf16 %v3424, %v3423
      %v3494 = vpack.c.bf16 %v3426, %v3425
      %v3495 = vpack.c.bf16 %v3428, %v3427
      %v3496 = vpack.c.bf16 %v3430, %v3429
      %v3497 = vpack.c.bf16 %v3432, %v3431
      %v3498 = vpack.c.bf16 %v3434, %v3433
      %s3499 = scalar_lea.vmem %s1, 6
      %v3500 = vld [vmem:[%s3499] sm:$0x3]
      %v3502 = vsel %vm172, %v3435, 0
      %v3505 = vsel %vm172, %v3436, 0
      %v3508 = vsel %vm172, %v3437, 0
      %v3511 = vsel %vm172, %v3438, 0
      %v3514 = vsel %vm172, %v3439, 0
      %v3517 = vsel %vm172, %v3440, 0
      %v3520 = vsel %vm172, %v3441, 0
      %v3523 = vsel %vm172, %v3442, 0
      %v3526 = vsel %vm172, %v3443, 0
      %v3529 = vsel %vm172, %v3444, 0
      %v3532 = vsel %vm172, %v3445, 0
      %v3535 = vsel %vm172, %v3446, 0
      %v3538 = vsel %vm172, %v3447, 0
      %v3541 = vsel %vm172, %v3448, 0
      %v3544 = vsel %vm172, %v3449, 0
      %v3547 = vsel %vm172, %v3450, 0
      %v3550 = vsel %vm172, %v3451, 0
      %v3553 = vsel %vm172, %v3452, 0
      %v3556 = vsel %vm172, %v3453, 0
      %v3559 = vsel %vm172, %v3454, 0
      %v3562 = vsel %vm172, %v3455, 0
      %v3565 = vsel %vm172, %v3456, 0
      %v3568 = vsel %vm172, %v3457, 0
      %v3571 = vsel %vm172, %v3458, 0
      %v3574 = vsel %vm172, %v3459, 0
      %v3577 = vsel %vm172, %v3460, 0
      %v3580 = vsel %vm172, %v3461, 0
      %v3583 = vsel %vm172, %v3462, 0
      %v3586 = vsel %vm172, %v3463, 0
      %v3589 = vsel %vm172, %v3464, 0
      %v3592 = vsel %vm172, %v3465, 0
      %v3595 = vsel %vm172, %v3466, 0
      %v3598 = vsel %vm172, %v3467, 0
      %v3601 = vsel %vm172, %v3468, 0
      %v3604 = vsel %vm172, %v3469, 0
      %v3607 = vsel %vm172, %v3470, 0
      %v3610 = vsel %vm172, %v3471, 0
      %v3613 = vsel %vm172, %v3472, 0
      %v3616 = vsel %vm172, %v3473, 0
      %v3619 = vsel %vm172, %v3474, 0
      %v3622 = vsel %vm172, %v3475, 0
      %v3625 = vsel %vm172, %v3476, 0
      %v3628 = vsel %vm172, %v3477, 0
      %v3631 = vsel %vm172, %v3478, 0
      %v3634 = vsel %vm172, %v3479, 0
      %v3637 = vsel %vm172, %v3480, 0
      %v3640 = vsel %vm172, %v3481, 0
      %v3643 = vsel %vm172, %v3482, 0
      %v3646 = vsel %vm172, %v3483, 0
      %v3649 = vsel %vm172, %v3484, 0
      %v3652 = vsel %vm172, %v3485, 0
      %v3655 = vsel %vm172, %v3486, 0
      %v3658 = vsel %vm172, %v3487, 0
      %v3661 = vsel %vm172, %v3488, 0
      %v3664 = vsel %vm172, %v3489, 0
      %v3667 = vsel %vm172, %v3490, 0
      %v3670 = vsel %vm172, %v3491, 0
      %v3673 = vsel %vm172, %v3492, 0
      %v3676 = vsel %vm172, %v3493, 0
      %v3679 = vsel %vm172, %v3494, 0
      %v3682 = vsel %vm172, %v3495, 0
      %v3685 = vsel %vm172, %v3496, 0
      %v3688 = vsel %vm172, %v3497, 0
      %v3691 = vsel %vm172, %v3498, 0
      %v3694 = vand.u32 %v3500, %v1154
      %3696 = vmatpush.bf16.msra.mxu0 0
      %3697 = vmatpush.bf16.msra.mxu0 0
      %3698 = vmatpush.bf16.msra.mxu0 0
      %3699 = vmatpush.bf16.msra.mxu0 0
      %3700 = vmatpush.bf16.msra.mxu0 0
      %3701 = vmatpush.bf16.msra.mxu0 0
      %3702 = vmatpush.bf16.msra.mxu0 0
      %3703 = vmatpush.bf16.msra.mxu0 %v3694
      %3704 = vmatmul.bf16.gmra.mxu0 %v3502
      %v3705 = vpop.f32.mrf.mxu0
      %v3706 = vadd.f32 0.0, %v3705
      %v3707 = vpop.f32.mrf.mxu0
      %v3708 = vadd.f32 0.0, %v3707
      %3709 = vmatmul.bf16.gmra.mxu0 %v3505
      %v3710 = vpop.f32.mrf.mxu0
      %v3711 = vadd.f32 0.0, %v3710
      %v3712 = vpop.f32.mrf.mxu0
      %v3713 = vadd.f32 0.0, %v3712
      %3714 = vmatmul.bf16.gmra.mxu0 %v3508
      %v3715 = vpop.f32.mrf.mxu0
      %v3716 = vadd.f32 0.0, %v3715
      %v3717 = vpop.f32.mrf.mxu0
      %v3718 = vadd.f32 0.0, %v3717
      %3719 = vmatmul.bf16.gmra.mxu0 %v3511
      %v3720 = vpop.f32.mrf.mxu0
      %v3721 = vadd.f32 0.0, %v3720
      %v3722 = vpop.f32.mrf.mxu0
      %v3723 = vadd.f32 0.0, %v3722
      %3724 = vmatmul.bf16.gmra.mxu0 %v3514
      %v3725 = vpop.f32.mrf.mxu0
      %v3726 = vadd.f32 0.0, %v3725
      %v3727 = vpop.f32.mrf.mxu0
      %v3728 = vadd.f32 0.0, %v3727
      %3729 = vmatmul.bf16.gmra.mxu0 %v3517
      %v3730 = vpop.f32.mrf.mxu0
      %v3731 = vadd.f32 0.0, %v3730
      %v3732 = vpop.f32.mrf.mxu0
      %v3733 = vadd.f32 0.0, %v3732
      %3734 = vmatmul.bf16.gmra.mxu0 %v3520
      %v3735 = vpop.f32.mrf.mxu0
      %v3736 = vadd.f32 0.0, %v3735
      %v3737 = vpop.f32.mrf.mxu0
      %v3738 = vadd.f32 0.0, %v3737
      %3739 = vmatmul.bf16.gmra.mxu0 %v3523
      %v3740 = vpop.f32.mrf.mxu0
      %v3741 = vadd.f32 0.0, %v3740
      %v3742 = vpop.f32.mrf.mxu0
      %v3743 = vadd.f32 0.0, %v3742
      %3744 = vmatmul.bf16.gmra.mxu0 %v3526
      %v3745 = vpop.f32.mrf.mxu0
      %v3746 = vadd.f32 0.0, %v3745
      %v3747 = vpop.f32.mrf.mxu0
      %v3748 = vadd.f32 0.0, %v3747
      %3749 = vmatmul.bf16.gmra.mxu0 %v3529
      %v3750 = vpop.f32.mrf.mxu0
      %v3751 = vadd.f32 0.0, %v3750
      %v3752 = vpop.f32.mrf.mxu0
      %v3753 = vadd.f32 0.0, %v3752
      %3754 = vmatmul.bf16.gmra.mxu0 %v3532
      %v3755 = vpop.f32.mrf.mxu0
      %v3756 = vadd.f32 0.0, %v3755
      %v3757 = vpop.f32.mrf.mxu0
      %v3758 = vadd.f32 0.0, %v3757
      %3759 = vmatmul.bf16.gmra.mxu0 %v3535
      %v3760 = vpop.f32.mrf.mxu0
      %v3761 = vadd.f32 0.0, %v3760
      %v3762 = vpop.f32.mrf.mxu0
      %v3763 = vadd.f32 0.0, %v3762
      %3764 = vmatmul.bf16.gmra.mxu0 %v3538
      %v3765 = vpop.f32.mrf.mxu0
      %v3766 = vadd.f32 0.0, %v3765
      %v3767 = vpop.f32.mrf.mxu0
      %v3768 = vadd.f32 0.0, %v3767
      %3769 = vmatmul.bf16.gmra.mxu0 %v3541
      %v3770 = vpop.f32.mrf.mxu0
      %v3771 = vadd.f32 0.0, %v3770
      %v3772 = vpop.f32.mrf.mxu0
      %v3773 = vadd.f32 0.0, %v3772
      %3774 = vmatmul.bf16.gmra.mxu0 %v3544
      %v3775 = vpop.f32.mrf.mxu0
      %v3776 = vadd.f32 0.0, %v3775
      %v3777 = vpop.f32.mrf.mxu0
      %v3778 = vadd.f32 0.0, %v3777
      %3779 = vmatmul.bf16.gmra.mxu0 %v3547
      %v3780 = vpop.f32.mrf.mxu0
      %v3781 = vadd.f32 0.0, %v3780
      %v3782 = vpop.f32.mrf.mxu0
      %v3783 = vadd.f32 0.0, %v3782
      %3784 = vmatmul.bf16.gmra.mxu0 %v3550
      %v3785 = vpop.f32.mrf.mxu0
      %v3786 = vadd.f32 0.0, %v3785
      %v3787 = vpop.f32.mrf.mxu0
      %v3788 = vadd.f32 0.0, %v3787
      %3789 = vmatmul.bf16.gmra.mxu0 %v3553
      %v3790 = vpop.f32.mrf.mxu0
      %v3791 = vadd.f32 0.0, %v3790
      %v3792 = vpop.f32.mrf.mxu0
      %v3793 = vadd.f32 0.0, %v3792
      %3794 = vmatmul.bf16.gmra.mxu0 %v3556
      %v3795 = vpop.f32.mrf.mxu0
      %v3796 = vadd.f32 0.0, %v3795
      %v3797 = vpop.f32.mrf.mxu0
      %v3798 = vadd.f32 0.0, %v3797
      %3799 = vmatmul.bf16.gmra.mxu0 %v3559
      %v3800 = vpop.f32.mrf.mxu0
      %v3801 = vadd.f32 0.0, %v3800
      %v3802 = vpop.f32.mrf.mxu0
      %v3803 = vadd.f32 0.0, %v3802
      %3804 = vmatmul.bf16.gmra.mxu0 %v3562
      %v3805 = vpop.f32.mrf.mxu0
      %v3806 = vadd.f32 0.0, %v3805
      %v3807 = vpop.f32.mrf.mxu0
      %v3808 = vadd.f32 0.0, %v3807
      %3809 = vmatmul.bf16.gmra.mxu0 %v3565
      %v3810 = vpop.f32.mrf.mxu0
      %v3811 = vadd.f32 0.0, %v3810
      %v3812 = vpop.f32.mrf.mxu0
      %v3813 = vadd.f32 0.0, %v3812
      %3814 = vmatmul.bf16.gmra.mxu0 %v3568
      %v3815 = vpop.f32.mrf.mxu0
      %v3816 = vadd.f32 0.0, %v3815
      %v3817 = vpop.f32.mrf.mxu0
      %v3818 = vadd.f32 0.0, %v3817
      %3819 = vmatmul.bf16.gmra.mxu0 %v3571
      %v3820 = vpop.f32.mrf.mxu0
      %v3821 = vadd.f32 0.0, %v3820
      %v3822 = vpop.f32.mrf.mxu0
      %v3823 = vadd.f32 0.0, %v3822
      %3824 = vmatmul.bf16.gmra.mxu0 %v3574
      %v3825 = vpop.f32.mrf.mxu0
      %v3826 = vadd.f32 0.0, %v3825
      %v3827 = vpop.f32.mrf.mxu0
      %v3828 = vadd.f32 0.0, %v3827
      %3829 = vmatmul.bf16.gmra.mxu0 %v3577
      %v3830 = vpop.f32.mrf.mxu0
      %v3831 = vadd.f32 0.0, %v3830
      %v3832 = vpop.f32.mrf.mxu0
      %v3833 = vadd.f32 0.0, %v3832
      %3834 = vmatmul.bf16.gmra.mxu0 %v3580
      %v3835 = vpop.f32.mrf.mxu0
      %v3836 = vadd.f32 0.0, %v3835
      %v3837 = vpop.f32.mrf.mxu0
      %v3838 = vadd.f32 0.0, %v3837
      %3839 = vmatmul.bf16.gmra.mxu0 %v3583
      %v3840 = vpop.f32.mrf.mxu0
      %v3841 = vadd.f32 0.0, %v3840
      %v3842 = vpop.f32.mrf.mxu0
      %v3843 = vadd.f32 0.0, %v3842
      %3844 = vmatmul.bf16.gmra.mxu0 %v3586
      %v3845 = vpop.f32.mrf.mxu0
      %v3846 = vadd.f32 0.0, %v3845
      %v3847 = vpop.f32.mrf.mxu0
      %v3848 = vadd.f32 0.0, %v3847
      %3849 = vmatmul.bf16.gmra.mxu0 %v3589
      %v3850 = vpop.f32.mrf.mxu0
      %v3851 = vadd.f32 0.0, %v3850
      %v3852 = vpop.f32.mrf.mxu0
      %v3853 = vadd.f32 0.0, %v3852
      %3854 = vmatmul.bf16.gmra.mxu0 %v3592
      %v3855 = vpop.f32.mrf.mxu0
      %v3856 = vadd.f32 0.0, %v3855
      %v3857 = vpop.f32.mrf.mxu0
      %v3858 = vadd.f32 0.0, %v3857
      %3859 = vmatmul.bf16.gmra.mxu0 %v3595
      %v3860 = vpop.f32.mrf.mxu0
      %v3861 = vadd.f32 0.0, %v3860
      %v3862 = vpop.f32.mrf.mxu0
      %v3863 = vadd.f32 0.0, %v3862
      %3864 = vmatmul.bf16.gmra.mxu0 %v3598
      %v3865 = vpop.f32.mrf.mxu0
      %v3866 = vadd.f32 0.0, %v3865
      %v3867 = vpop.f32.mrf.mxu0
      %v3868 = vadd.f32 0.0, %v3867
      %3869 = vmatmul.bf16.gmra.mxu0 %v3601
      %v3870 = vpop.f32.mrf.mxu0
      %v3871 = vadd.f32 0.0, %v3870
      %v3872 = vpop.f32.mrf.mxu0
      %v3873 = vadd.f32 0.0, %v3872
      %3874 = vmatmul.bf16.gmra.mxu0 %v3604
      %v3875 = vpop.f32.mrf.mxu0
      %v3876 = vadd.f32 0.0, %v3875
      %v3877 = vpop.f32.mrf.mxu0
      %v3878 = vadd.f32 0.0, %v3877
      %3879 = vmatmul.bf16.gmra.mxu0 %v3607
      %v3880 = vpop.f32.mrf.mxu0
      %v3881 = vadd.f32 0.0, %v3880
      %v3882 = vpop.f32.mrf.mxu0
      %v3883 = vadd.f32 0.0, %v3882
      %3884 = vmatmul.bf16.gmra.mxu0 %v3610
      %v3885 = vpop.f32.mrf.mxu0
      %v3886 = vadd.f32 0.0, %v3885
      %v3887 = vpop.f32.mrf.mxu0
      %v3888 = vadd.f32 0.0, %v3887
      %3889 = vmatmul.bf16.gmra.mxu0 %v3613
      %v3890 = vpop.f32.mrf.mxu0
      %v3891 = vadd.f32 0.0, %v3890
      %v3892 = vpop.f32.mrf.mxu0
      %v3893 = vadd.f32 0.0, %v3892
      %3894 = vmatmul.bf16.gmra.mxu0 %v3616
      %v3895 = vpop.f32.mrf.mxu0
      %v3896 = vadd.f32 0.0, %v3895
      %v3897 = vpop.f32.mrf.mxu0
      %v3898 = vadd.f32 0.0, %v3897
      %3899 = vmatmul.bf16.gmra.mxu0 %v3619
      %v3900 = vpop.f32.mrf.mxu0
      %v3901 = vadd.f32 0.0, %v3900
      %v3902 = vpop.f32.mrf.mxu0
      %v3903 = vadd.f32 0.0, %v3902
      %3904 = vmatmul.bf16.gmra.mxu0 %v3622
      %v3905 = vpop.f32.mrf.mxu0
      %v3906 = vadd.f32 0.0, %v3905
      %v3907 = vpop.f32.mrf.mxu0
      %v3908 = vadd.f32 0.0, %v3907
      %3909 = vmatmul.bf16.gmra.mxu0 %v3625
      %v3910 = vpop.f32.mrf.mxu0
      %v3911 = vadd.f32 0.0, %v3910
      %v3912 = vpop.f32.mrf.mxu0
      %v3913 = vadd.f32 0.0, %v3912
      %3914 = vmatmul.bf16.gmra.mxu0 %v3628
      %v3915 = vpop.f32.mrf.mxu0
      %v3916 = vadd.f32 0.0, %v3915
      %v3917 = vpop.f32.mrf.mxu0
      %v3918 = vadd.f32 0.0, %v3917
      %3919 = vmatmul.bf16.gmra.mxu0 %v3631
      %v3920 = vpop.f32.mrf.mxu0
      %v3921 = vadd.f32 0.0, %v3920
      %v3922 = vpop.f32.mrf.mxu0
      %v3923 = vadd.f32 0.0, %v3922
      %3924 = vmatmul.bf16.gmra.mxu0 %v3634
      %v3925 = vpop.f32.mrf.mxu0
      %v3926 = vadd.f32 0.0, %v3925
      %v3927 = vpop.f32.mrf.mxu0
      %v3928 = vadd.f32 0.0, %v3927
      %3929 = vmatmul.bf16.gmra.mxu0 %v3637
      %v3930 = vpop.f32.mrf.mxu0
      %v3931 = vadd.f32 0.0, %v3930
      %v3932 = vpop.f32.mrf.mxu0
      %v3933 = vadd.f32 0.0, %v3932
      %3934 = vmatmul.bf16.gmra.mxu0 %v3640
      %v3935 = vpop.f32.mrf.mxu0
      %v3936 = vadd.f32 0.0, %v3935
      %v3937 = vpop.f32.mrf.mxu0
      %v3938 = vadd.f32 0.0, %v3937
      %3939 = vmatmul.bf16.gmra.mxu0 %v3643
      %v3940 = vpop.f32.mrf.mxu0
      %v3941 = vadd.f32 0.0, %v3940
      %v3942 = vpop.f32.mrf.mxu0
      %v3943 = vadd.f32 0.0, %v3942
      %3944 = vmatmul.bf16.gmra.mxu0 %v3646
      %v3945 = vpop.f32.mrf.mxu0
      %v3946 = vadd.f32 0.0, %v3945
      %v3947 = vpop.f32.mrf.mxu0
      %v3948 = vadd.f32 0.0, %v3947
      %3949 = vmatmul.bf16.gmra.mxu0 %v3649
      %v3950 = vpop.f32.mrf.mxu0
      %v3951 = vadd.f32 0.0, %v3950
      %v3952 = vpop.f32.mrf.mxu0
      %v3953 = vadd.f32 0.0, %v3952
      %3954 = vmatmul.bf16.gmra.mxu0 %v3652
      %v3955 = vpop.f32.mrf.mxu0
      %v3956 = vadd.f32 0.0, %v3955
      %v3957 = vpop.f32.mrf.mxu0
      %v3958 = vadd.f32 0.0, %v3957
      %3959 = vmatmul.bf16.gmra.mxu0 %v3655
      %v3960 = vpop.f32.mrf.mxu0
      %v3961 = vadd.f32 0.0, %v3960
      %v3962 = vpop.f32.mrf.mxu0
      %v3963 = vadd.f32 0.0, %v3962
      %3964 = vmatmul.bf16.gmra.mxu0 %v3658
      %v3965 = vpop.f32.mrf.mxu0
      %v3966 = vadd.f32 0.0, %v3965
      %v3967 = vpop.f32.mrf.mxu0
      %v3968 = vadd.f32 0.0, %v3967
      %3969 = vmatmul.bf16.gmra.mxu0 %v3661
      %v3970 = vpop.f32.mrf.mxu0
      %v3971 = vadd.f32 0.0, %v3970
      %v3972 = vpop.f32.mrf.mxu0
      %v3973 = vadd.f32 0.0, %v3972
      %3974 = vmatmul.bf16.gmra.mxu0 %v3664
      %v3975 = vpop.f32.mrf.mxu0
      %v3976 = vadd.f32 0.0, %v3975
      %v3977 = vpop.f32.mrf.mxu0
      %v3978 = vadd.f32 0.0, %v3977
      %3979 = vmatmul.bf16.gmra.mxu0 %v3667
      %v3980 = vpop.f32.mrf.mxu0
      %v3981 = vadd.f32 0.0, %v3980
      %v3982 = vpop.f32.mrf.mxu0
      %v3983 = vadd.f32 0.0, %v3982
      %3984 = vmatmul.bf16.gmra.mxu0 %v3670
      %v3985 = vpop.f32.mrf.mxu0
      %v3986 = vadd.f32 0.0, %v3985
      %v3987 = vpop.f32.mrf.mxu0
      %v3988 = vadd.f32 0.0, %v3987
      %3989 = vmatmul.bf16.gmra.mxu0 %v3673
      %v3990 = vpop.f32.mrf.mxu0
      %v3991 = vadd.f32 0.0, %v3990
      %v3992 = vpop.f32.mrf.mxu0
      %v3993 = vadd.f32 0.0, %v3992
      %3994 = vmatmul.bf16.gmra.mxu0 %v3676
      %v3995 = vpop.f32.mrf.mxu0
      %v3996 = vadd.f32 0.0, %v3995
      %v3997 = vpop.f32.mrf.mxu0
      %v3998 = vadd.f32 0.0, %v3997
      %3999 = vmatmul.bf16.gmra.mxu0 %v3679
      %v4000 = vpop.f32.mrf.mxu0
      %v4001 = vadd.f32 0.0, %v4000
      %v4002 = vpop.f32.mrf.mxu0
      %v4003 = vadd.f32 0.0, %v4002
      %4004 = vmatmul.bf16.gmra.mxu0 %v3682
      %v4005 = vpop.f32.mrf.mxu0
      %v4006 = vadd.f32 0.0, %v4005
      %v4007 = vpop.f32.mrf.mxu0
      %v4008 = vadd.f32 0.0, %v4007
      %4009 = vmatmul.bf16.gmra.mxu0 %v3685
      %v4010 = vpop.f32.mrf.mxu0
      %v4011 = vadd.f32 0.0, %v4010
      %v4012 = vpop.f32.mrf.mxu0
      %v4013 = vadd.f32 0.0, %v4012
      %4014 = vmatmul.bf16.gmra.mxu0 %v3688
      %v4015 = vpop.f32.mrf.mxu0
      %v4016 = vadd.f32 0.0, %v4015
      %v4017 = vpop.f32.mrf.mxu0
      %v4018 = vadd.f32 0.0, %v4017
      %4019 = vmatmul.bf16.gmra.mxu0 %v3691
      %v4020 = vpop.f32.mrf.mxu0
      %v4021 = vadd.f32 0.0, %v4020
      %v4022 = vpop.f32.mrf.mxu0
      %v4023 = vadd.f32 0.0, %v4022
      %4024 = vdwg.mxu0
      %v4025 = vadd.f32 %v3179, %v3706
      %v4026 = vadd.f32 %v3180, %v3708
      %v4027 = vadd.f32 %v3181, %v3711
      %v4028 = vadd.f32 %v3182, %v3713
      %v4029 = vadd.f32 %v3183, %v3716
      %v4030 = vadd.f32 %v3184, %v3718
      %v4031 = vadd.f32 %v3185, %v3721
      %v4032 = vadd.f32 %v3186, %v3723
      %v4033 = vadd.f32 %v3187, %v3726
      %v4034 = vadd.f32 %v3188, %v3728
      %v4035 = vadd.f32 %v3189, %v3731
      %v4036 = vadd.f32 %v3190, %v3733
      %v4037 = vadd.f32 %v3191, %v3736
      %v4038 = vadd.f32 %v3192, %v3738
      %v4039 = vadd.f32 %v3193, %v3741
      %v4040 = vadd.f32 %v3194, %v3743
      %v4041 = vadd.f32 %v3195, %v3746
      %v4042 = vadd.f32 %v3196, %v3748
      %v4043 = vadd.f32 %v3197, %v3751
      %v4044 = vadd.f32 %v3198, %v3753
      %v4045 = vadd.f32 %v3199, %v3756
      %v4046 = vadd.f32 %v3200, %v3758
      %v4047 = vadd.f32 %v3201, %v3761
      %v4048 = vadd.f32 %v3202, %v3763
      %v4049 = vadd.f32 %v3203, %v3766
      %v4050 = vadd.f32 %v3204, %v3768
      %v4051 = vadd.f32 %v3205, %v3771
      %v4052 = vadd.f32 %v3206, %v3773
      %v4053 = vadd.f32 %v3207, %v3776
      %v4054 = vadd.f32 %v3208, %v3778
      %v4055 = vadd.f32 %v3209, %v3781
      %v4056 = vadd.f32 %v3210, %v3783
      %v4057 = vadd.f32 %v3211, %v3786
      %v4058 = vadd.f32 %v3212, %v3788
      %v4059 = vadd.f32 %v3213, %v3791
      %v4060 = vadd.f32 %v3214, %v3793
      %v4061 = vadd.f32 %v3215, %v3796
      %v4062 = vadd.f32 %v3216, %v3798
      %v4063 = vadd.f32 %v3217, %v3801
      %v4064 = vadd.f32 %v3218, %v3803
      %v4065 = vadd.f32 %v3219, %v3806
      %v4066 = vadd.f32 %v3220, %v3808
      %v4067 = vadd.f32 %v3221, %v3811
      %v4068 = vadd.f32 %v3222, %v3813
      %v4069 = vadd.f32 %v3223, %v3816
      %v4070 = vadd.f32 %v3224, %v3818
      %v4071 = vadd.f32 %v3225, %v3821
      %v4072 = vadd.f32 %v3226, %v3823
      %v4073 = vadd.f32 %v3227, %v3826
      %v4074 = vadd.f32 %v3228, %v3828
      %v4075 = vadd.f32 %v3229, %v3831
      %v4076 = vadd.f32 %v3230, %v3833
      %v4077 = vadd.f32 %v3231, %v3836
      %v4078 = vadd.f32 %v3232, %v3838
      %v4079 = vadd.f32 %v3233, %v3841
      %v4080 = vadd.f32 %v3234, %v3843
      %v4081 = vadd.f32 %v3235, %v3846
      %v4082 = vadd.f32 %v3236, %v3848
      %v4083 = vadd.f32 %v3237, %v3851
      %v4084 = vadd.f32 %v3238, %v3853
      %v4085 = vadd.f32 %v3239, %v3856
      %v4086 = vadd.f32 %v3240, %v3858
      %v4087 = vadd.f32 %v3241, %v3861
      %v4088 = vadd.f32 %v3242, %v3863
      %v4089 = vadd.f32 %v3243, %v3866
      %v4090 = vadd.f32 %v3244, %v3868
      %v4091 = vadd.f32 %v3245, %v3871
      %v4092 = vadd.f32 %v3246, %v3873
      %v4093 = vadd.f32 %v3247, %v3876
      %v4094 = vadd.f32 %v3248, %v3878
      %v4095 = vadd.f32 %v3249, %v3881
      %v4096 = vadd.f32 %v3250, %v3883
      %v4097 = vadd.f32 %v3251, %v3886
      %v4098 = vadd.f32 %v3252, %v3888
      %v4099 = vadd.f32 %v3253, %v3891
      %v4100 = vadd.f32 %v3254, %v3893
      %v4101 = vadd.f32 %v3255, %v3896
      %v4102 = vadd.f32 %v3256, %v3898
      %v4103 = vadd.f32 %v3257, %v3901
      %v4104 = vadd.f32 %v3258, %v3903
      %v4105 = vadd.f32 %v3259, %v3906
      %v4106 = vadd.f32 %v3260, %v3908
      %v4107 = vadd.f32 %v3261, %v3911
      %v4108 = vadd.f32 %v3262, %v3913
      %v4109 = vadd.f32 %v3263, %v3916
      %v4110 = vadd.f32 %v3264, %v3918
      %v4111 = vadd.f32 %v3265, %v3921
      %v4112 = vadd.f32 %v3266, %v3923
      %v4113 = vadd.f32 %v3267, %v3926
      %v4114 = vadd.f32 %v3268, %v3928
      %v4115 = vadd.f32 %v3269, %v3931
      %v4116 = vadd.f32 %v3270, %v3933
      %v4117 = vadd.f32 %v3271, %v3936
      %v4118 = vadd.f32 %v3272, %v3938
      %v4119 = vadd.f32 %v3273, %v3941
      %v4120 = vadd.f32 %v3274, %v3943
      %v4121 = vadd.f32 %v3275, %v3946
      %v4122 = vadd.f32 %v3276, %v3948
      %v4123 = vadd.f32 %v3277, %v3951
      %v4124 = vadd.f32 %v3278, %v3953
      %v4125 = vadd.f32 %v3279, %v3956
      %v4126 = vadd.f32 %v3280, %v3958
      %v4127 = vadd.f32 %v3281, %v3961
      %v4128 = vadd.f32 %v3282, %v3963
      %v4129 = vadd.f32 %v3283, %v3966
      %v4130 = vadd.f32 %v3284, %v3968
      %v4131 = vadd.f32 %v3285, %v3971
      %v4132 = vadd.f32 %v3286, %v3973
      %v4133 = vadd.f32 %v3287, %v3976
      %v4134 = vadd.f32 %v3288, %v3978
      %v4135 = vadd.f32 %v3289, %v3981
      %v4136 = vadd.f32 %v3290, %v3983
      %v4137 = vadd.f32 %v3291, %v3986
      %v4138 = vadd.f32 %v3292, %v3988
      %v4139 = vadd.f32 %v3293, %v3991
      %v4140 = vadd.f32 %v3294, %v3993
      %v4141 = vadd.f32 %v3295, %v3996
      %v4142 = vadd.f32 %v3296, %v3998
      %v4143 = vadd.f32 %v3297, %v4001
      %v4144 = vadd.f32 %v3298, %v4003
      %v4145 = vadd.f32 %v3299, %v4006
      %v4146 = vadd.f32 %v3300, %v4008
      %v4147 = vadd.f32 %v3301, %v4011
      %v4148 = vadd.f32 %v3302, %v4013
      %v4149 = vadd.f32 %v3303, %v4016
      %v4150 = vadd.f32 %v3304, %v4018
      %v4151 = vadd.f32 %v3305, %v4021
      %v4152 = vadd.f32 %v3306, %v4023
      %v4153 = vld [vmem:[%s633 + $0x8] sm:$0xff]
      %v4154 = vld [vmem:[%s633 + $0x10] sm:$0xff]
      %v4155 = vld [vmem:[%s633 + $0x18] sm:$0xff]
      %v4156 = vld [vmem:[%s633 + $0x20] sm:$0xff]
      %v4157 = vld [vmem:[%s633 + $0x38] sm:$0xff]
      %v4158 = vld [vmem:[%s633 + $0x40] sm:$0xff]
      %v4159 = vld [vmem:[%s633 + $0x48] sm:$0xff]
      %v4160 = vld [vmem:[%s633 + $0x50] sm:$0xff]
      %v4161 = vld [vmem:[%s633 + $0x68] sm:$0xff]
      %v4162 = vld [vmem:[%s633 + $0x70] sm:$0xff]
      %v4163 = vld [vmem:[%s633 + $0x78] sm:$0xff]
      %v4164 = vld [vmem:[%s633 + $0x80] sm:$0xff]
      %v4165 = vld [vmem:[%s633 + $0x98] sm:$0xff]
      %v4166 = vld [vmem:[%s633 + $0xa0] sm:$0xff]
      %v4167 = vld [vmem:[%s633 + $0xa8] sm:$0xff]
      %v4168 = vld [vmem:[%s633 + $0xb0] sm:$0xff]
      %v4169 = vld [vmem:[%s633 + $0xc8] sm:$0xff]
      %v4170 = vld [vmem:[%s633 + $0xd0] sm:$0xff]
      %v4171 = vld [vmem:[%s633 + $0xd8] sm:$0xff]
      %v4172 = vld [vmem:[%s633 + $0xe0] sm:$0xff]
      %v4173 = vld [vmem:[%s633 + $0xf8] sm:$0xff]
      %v4174 = vld [vmem:[%s633 + $0x100] sm:$0xff]
      %v4175 = vld [vmem:[%s633 + $0x108] sm:$0xff]
      %v4176 = vld [vmem:[%s633 + $0x110] sm:$0xff]
      %v4177 = vld [vmem:[%s633 + $0x128] sm:$0xff]
      %v4178 = vld [vmem:[%s633 + $0x130] sm:$0xff]
      %v4179 = vld [vmem:[%s633 + $0x138] sm:$0xff]
      %v4180 = vld [vmem:[%s633 + $0x140] sm:$0xff]
      %v4181 = vld [vmem:[%s633 + $0x158] sm:$0xff]
      %v4182 = vld [vmem:[%s633 + $0x160] sm:$0xff]
      %v4183 = vld [vmem:[%s633 + $0x168] sm:$0xff]
      %v4184 = vld [vmem:[%s633 + $0x170] sm:$0xff]
      %v4185 = vld [vmem:[%s633 + $0x188] sm:$0xff]
      %v4186 = vld [vmem:[%s633 + $0x190] sm:$0xff]
      %v4187 = vld [vmem:[%s633 + $0x198] sm:$0xff]
      %v4188 = vld [vmem:[%s633 + $0x1a0] sm:$0xff]
      %v4189 = vld [vmem:[%s633 + $0x1b8] sm:$0xff]
      %v4190 = vld [vmem:[%s633 + $0x1c0] sm:$0xff]
      %v4191 = vld [vmem:[%s633 + $0x1c8] sm:$0xff]
      %v4192 = vld [vmem:[%s633 + $0x1d0] sm:$0xff]
      %v4193 = vld [vmem:[%s633 + $0x1e8] sm:$0xff]
      %v4194 = vld [vmem:[%s633 + $0x1f0] sm:$0xff]
      %v4195 = vld [vmem:[%s633 + $0x1f8] sm:$0xff]
      %v4196 = vld [vmem:[%s633 + $0x200] sm:$0xff]
      %v4197 = vld [vmem:[%s633 + $0x218] sm:$0xff]
      %v4198 = vld [vmem:[%s633 + $0x220] sm:$0xff]
      %v4199 = vld [vmem:[%s633 + $0x228] sm:$0xff]
      %v4200 = vld [vmem:[%s633 + $0x230] sm:$0xff]
      %v4201 = vld [vmem:[%s633 + $0x248] sm:$0xff]
      %v4202 = vld [vmem:[%s633 + $0x250] sm:$0xff]
      %v4203 = vld [vmem:[%s633 + $0x258] sm:$0xff]
      %v4204 = vld [vmem:[%s633 + $0x260] sm:$0xff]
      %v4205 = vld [vmem:[%s633 + $0x278] sm:$0xff]
      %v4206 = vld [vmem:[%s633 + $0x280] sm:$0xff]
      %v4207 = vld [vmem:[%s633 + $0x288] sm:$0xff]
      %v4208 = vld [vmem:[%s633 + $0x290] sm:$0xff]
      %v4209 = vld [vmem:[%s633 + $0x2a8] sm:$0xff]
      %v4210 = vld [vmem:[%s633 + $0x2b0] sm:$0xff]
      %v4211 = vld [vmem:[%s633 + $0x2b8] sm:$0xff]
      %v4212 = vld [vmem:[%s633 + $0x2c0] sm:$0xff]
      %v4213 = vld [vmem:[%s633 + $0x2d8] sm:$0xff]
      %v4214 = vld [vmem:[%s633 + $0x2e0] sm:$0xff]
      %v4215 = vld [vmem:[%s633 + $0x2e8] sm:$0xff]
      %v4216 = vld [vmem:[%s633 + $0x2f0] sm:$0xff]
      %v4217 = vld [vmem:[%s633 + $0x308] sm:$0xff]
      %v4218 = vld [vmem:[%s633 + $0x310] sm:$0xff]
      %v4219 = vld [vmem:[%s633 + $0x318] sm:$0xff]
      %v4220 = vld [vmem:[%s633 + $0x320] sm:$0xff]
      %v4221 = vld [vmem:[%s633 + $0x338] sm:$0xff]
      %v4222 = vld [vmem:[%s633 + $0x340] sm:$0xff]
      %v4223 = vld [vmem:[%s633 + $0x348] sm:$0xff]
      %v4224 = vld [vmem:[%s633 + $0x350] sm:$0xff]
      %v4225 = vld [vmem:[%s633 + $0x368] sm:$0xff]
      %v4226 = vld [vmem:[%s633 + $0x370] sm:$0xff]
      %v4227 = vld [vmem:[%s633 + $0x378] sm:$0xff]
      %v4228 = vld [vmem:[%s633 + $0x380] sm:$0xff]
      %v4229 = vld [vmem:[%s633 + $0x398] sm:$0xff]
      %v4230 = vld [vmem:[%s633 + $0x3a0] sm:$0xff]
      %v4231 = vld [vmem:[%s633 + $0x3a8] sm:$0xff]
      %v4232 = vld [vmem:[%s633 + $0x3b0] sm:$0xff]
      %v4233 = vld [vmem:[%s633 + $0x3c8] sm:$0xff]
      %v4234 = vld [vmem:[%s633 + $0x3d0] sm:$0xff]
      %v4235 = vld [vmem:[%s633 + $0x3d8] sm:$0xff]
      %v4236 = vld [vmem:[%s633 + $0x3e0] sm:$0xff]
      %v4237 = vld [vmem:[%s633 + $0x3f8] sm:$0xff]
      %v4238 = vld [vmem:[%s633 + $0x400] sm:$0xff]
      %v4239 = vld [vmem:[%s633 + $0x408] sm:$0xff]
      %v4240 = vld [vmem:[%s633 + $0x410] sm:$0xff]
      %v4241 = vld [vmem:[%s633 + $0x428] sm:$0xff]
      %v4242 = vld [vmem:[%s633 + $0x430] sm:$0xff]
      %v4243 = vld [vmem:[%s633 + $0x438] sm:$0xff]
      %v4244 = vld [vmem:[%s633 + $0x440] sm:$0xff]
      %v4245 = vld [vmem:[%s633 + $0x458] sm:$0xff]
      %v4246 = vld [vmem:[%s633 + $0x460] sm:$0xff]
      %v4247 = vld [vmem:[%s633 + $0x468] sm:$0xff]
      %v4248 = vld [vmem:[%s633 + $0x470] sm:$0xff]
      %v4249 = vld [vmem:[%s633 + $0x488] sm:$0xff]
      %v4250 = vld [vmem:[%s633 + $0x490] sm:$0xff]
      %v4251 = vld [vmem:[%s633 + $0x498] sm:$0xff]
      %v4252 = vld [vmem:[%s633 + $0x4a0] sm:$0xff]
      %v4253 = vld [vmem:[%s633 + $0x4b8] sm:$0xff]
      %v4254 = vld [vmem:[%s633 + $0x4c0] sm:$0xff]
      %v4255 = vld [vmem:[%s633 + $0x4c8] sm:$0xff]
      %v4256 = vld [vmem:[%s633 + $0x4d0] sm:$0xff]
      %v4257 = vld [vmem:[%s633 + $0x4e8] sm:$0xff]
      %v4258 = vld [vmem:[%s633 + $0x4f0] sm:$0xff]
      %v4259 = vld [vmem:[%s633 + $0x4f8] sm:$0xff]
      %v4260 = vld [vmem:[%s633 + $0x500] sm:$0xff]
      %v4261 = vld [vmem:[%s633 + $0x518] sm:$0xff]
      %v4262 = vld [vmem:[%s633 + $0x520] sm:$0xff]
      %v4263 = vld [vmem:[%s633 + $0x528] sm:$0xff]
      %v4264 = vld [vmem:[%s633 + $0x530] sm:$0xff]
      %v4265 = vld [vmem:[%s633 + $0x548] sm:$0xff]
      %v4266 = vld [vmem:[%s633 + $0x550] sm:$0xff]
      %v4267 = vld [vmem:[%s633 + $0x558] sm:$0xff]
      %v4268 = vld [vmem:[%s633 + $0x560] sm:$0xff]
      %v4269 = vld [vmem:[%s633 + $0x578] sm:$0xff]
      %v4270 = vld [vmem:[%s633 + $0x580] sm:$0xff]
      %v4271 = vld [vmem:[%s633 + $0x588] sm:$0xff]
      %v4272 = vld [vmem:[%s633 + $0x590] sm:$0xff]
      %v4273 = vld [vmem:[%s633 + $0x5a8] sm:$0xff]
      %v4274 = vld [vmem:[%s633 + $0x5b0] sm:$0xff]
      %v4275 = vld [vmem:[%s633 + $0x5b8] sm:$0xff]
      %v4276 = vld [vmem:[%s633 + $0x5c0] sm:$0xff]
      %v4277 = vld [vmem:[%s633 + $0x5d8] sm:$0xff]
      %v4278 = vld [vmem:[%s633 + $0x5e0] sm:$0xff]
      %v4279 = vld [vmem:[%s633 + $0x5e8] sm:$0xff]
      %v4280 = vld [vmem:[%s633 + $0x5f0] sm:$0xff]
      %v4281 = vpack.c.bf16 %v4154, %v4153
      %v4282 = vpack.c.bf16 %v4156, %v4155
      %v4283 = vpack.c.bf16 %v4158, %v4157
      %v4284 = vpack.c.bf16 %v4160, %v4159
      %v4285 = vpack.c.bf16 %v4162, %v4161
      %v4286 = vpack.c.bf16 %v4164, %v4163
      %v4287 = vpack.c.bf16 %v4166, %v4165
      %v4288 = vpack.c.bf16 %v4168, %v4167
      %v4289 = vpack.c.bf16 %v4170, %v4169
      %v4290 = vpack.c.bf16 %v4172, %v4171
      %v4291 = vpack.c.bf16 %v4174, %v4173
      %v4292 = vpack.c.bf16 %v4176, %v4175
      %v4293 = vpack.c.bf16 %v4178, %v4177
      %v4294 = vpack.c.bf16 %v4180, %v4179
      %v4295 = vpack.c.bf16 %v4182, %v4181
      %v4296 = vpack.c.bf16 %v4184, %v4183
      %v4297 = vpack.c.bf16 %v4186, %v4185
      %v4298 = vpack.c.bf16 %v4188, %v4187
      %v4299 = vpack.c.bf16 %v4190, %v4189
      %v4300 = vpack.c.bf16 %v4192, %v4191
      %v4301 = vpack.c.bf16 %v4194, %v4193
      %v4302 = vpack.c.bf16 %v4196, %v4195
      %v4303 = vpack.c.bf16 %v4198, %v4197
      %v4304 = vpack.c.bf16 %v4200, %v4199
      %v4305 = vpack.c.bf16 %v4202, %v4201
      %v4306 = vpack.c.bf16 %v4204, %v4203
      %v4307 = vpack.c.bf16 %v4206, %v4205
      %v4308 = vpack.c.bf16 %v4208, %v4207
      %v4309 = vpack.c.bf16 %v4210, %v4209
      %v4310 = vpack.c.bf16 %v4212, %v4211
      %v4311 = vpack.c.bf16 %v4214, %v4213
      %v4312 = vpack.c.bf16 %v4216, %v4215
      %v4313 = vpack.c.bf16 %v4218, %v4217
      %v4314 = vpack.c.bf16 %v4220, %v4219
      %v4315 = vpack.c.bf16 %v4222, %v4221
      %v4316 = vpack.c.bf16 %v4224, %v4223
      %v4317 = vpack.c.bf16 %v4226, %v4225
      %v4318 = vpack.c.bf16 %v4228, %v4227
      %v4319 = vpack.c.bf16 %v4230, %v4229
      %v4320 = vpack.c.bf16 %v4232, %v4231
      %v4321 = vpack.c.bf16 %v4234, %v4233
      %v4322 = vpack.c.bf16 %v4236, %v4235
      %v4323 = vpack.c.bf16 %v4238, %v4237
      %v4324 = vpack.c.bf16 %v4240, %v4239
      %v4325 = vpack.c.bf16 %v4242, %v4241
      %v4326 = vpack.c.bf16 %v4244, %v4243
      %v4327 = vpack.c.bf16 %v4246, %v4245
      %v4328 = vpack.c.bf16 %v4248, %v4247
      %v4329 = vpack.c.bf16 %v4250, %v4249
      %v4330 = vpack.c.bf16 %v4252, %v4251
      %v4331 = vpack.c.bf16 %v4254, %v4253
      %v4332 = vpack.c.bf16 %v4256, %v4255
      %v4333 = vpack.c.bf16 %v4258, %v4257
      %v4334 = vpack.c.bf16 %v4260, %v4259
      %v4335 = vpack.c.bf16 %v4262, %v4261
      %v4336 = vpack.c.bf16 %v4264, %v4263
      %v4337 = vpack.c.bf16 %v4266, %v4265
      %v4338 = vpack.c.bf16 %v4268, %v4267
      %v4339 = vpack.c.bf16 %v4270, %v4269
      %v4340 = vpack.c.bf16 %v4272, %v4271
      %v4341 = vpack.c.bf16 %v4274, %v4273
      %v4342 = vpack.c.bf16 %v4276, %v4275
      %v4343 = vpack.c.bf16 %v4278, %v4277
      %v4344 = vpack.c.bf16 %v4280, %v4279
      %s4345 = scalar_lea.vmem %s1, 8
      %v4346 = vld [vmem:[%s4345] sm:$0x3]
      %v4348 = vsel %vm172, %v4281, 0
      %v4351 = vsel %vm172, %v4282, 0
      %v4354 = vsel %vm172, %v4283, 0
      %v4357 = vsel %vm172, %v4284, 0
      %v4360 = vsel %vm172, %v4285, 0
      %v4363 = vsel %vm172, %v4286, 0
      %v4366 = vsel %vm172, %v4287, 0
      %v4369 = vsel %vm172, %v4288, 0
      %v4372 = vsel %vm172, %v4289, 0
      %v4375 = vsel %vm172, %v4290, 0
      %v4378 = vsel %vm172, %v4291, 0
      %v4381 = vsel %vm172, %v4292, 0
      %v4384 = vsel %vm172, %v4293, 0
      %v4387 = vsel %vm172, %v4294, 0
      %v4390 = vsel %vm172, %v4295, 0
      %v4393 = vsel %vm172, %v4296, 0
      %v4396 = vsel %vm172, %v4297, 0
      %v4399 = vsel %vm172, %v4298, 0
      %v4402 = vsel %vm172, %v4299, 0
      %v4405 = vsel %vm172, %v4300, 0
      %v4408 = vsel %vm172, %v4301, 0
      %v4411 = vsel %vm172, %v4302, 0
      %v4414 = vsel %vm172, %v4303, 0
      %v4417 = vsel %vm172, %v4304, 0
      %v4420 = vsel %vm172, %v4305, 0
      %v4423 = vsel %vm172, %v4306, 0
      %v4426 = vsel %vm172, %v4307, 0
      %v4429 = vsel %vm172, %v4308, 0
      %v4432 = vsel %vm172, %v4309, 0
      %v4435 = vsel %vm172, %v4310, 0
      %v4438 = vsel %vm172, %v4311, 0
      %v4441 = vsel %vm172, %v4312, 0
      %v4444 = vsel %vm172, %v4313, 0
      %v4447 = vsel %vm172, %v4314, 0
      %v4450 = vsel %vm172, %v4315, 0
      %v4453 = vsel %vm172, %v4316, 0
      %v4456 = vsel %vm172, %v4317, 0
      %v4459 = vsel %vm172, %v4318, 0
      %v4462 = vsel %vm172, %v4319, 0
      %v4465 = vsel %vm172, %v4320, 0
      %v4468 = vsel %vm172, %v4321, 0
      %v4471 = vsel %vm172, %v4322, 0
      %v4474 = vsel %vm172, %v4323, 0
      %v4477 = vsel %vm172, %v4324, 0
      %v4480 = vsel %vm172, %v4325, 0
      %v4483 = vsel %vm172, %v4326, 0
      %v4486 = vsel %vm172, %v4327, 0
      %v4489 = vsel %vm172, %v4328, 0
      %v4492 = vsel %vm172, %v4329, 0
      %v4495 = vsel %vm172, %v4330, 0
      %v4498 = vsel %vm172, %v4331, 0
      %v4501 = vsel %vm172, %v4332, 0
      %v4504 = vsel %vm172, %v4333, 0
      %v4507 = vsel %vm172, %v4334, 0
      %v4510 = vsel %vm172, %v4335, 0
      %v4513 = vsel %vm172, %v4336, 0
      %v4516 = vsel %vm172, %v4337, 0
      %v4519 = vsel %vm172, %v4338, 0
      %v4522 = vsel %vm172, %v4339, 0
      %v4525 = vsel %vm172, %v4340, 0
      %v4528 = vsel %vm172, %v4341, 0
      %v4531 = vsel %vm172, %v4342, 0
      %v4534 = vsel %vm172, %v4343, 0
      %v4537 = vsel %vm172, %v4344, 0
      %v4540 = vand.u32 %v4346, %v1154
      %4542 = vmatpush.bf16.msra.mxu0 0
      %4543 = vmatpush.bf16.msra.mxu0 0
      %4544 = vmatpush.bf16.msra.mxu0 0
      %4545 = vmatpush.bf16.msra.mxu0 0
      %4546 = vmatpush.bf16.msra.mxu0 0
      %4547 = vmatpush.bf16.msra.mxu0 0
      %4548 = vmatpush.bf16.msra.mxu0 0
      %4549 = vmatpush.bf16.msra.mxu0 %v4540
      %4550 = vmatmul.bf16.gmra.mxu0 %v4348
      %v4551 = vpop.f32.mrf.mxu0
      %v4552 = vadd.f32 0.0, %v4551
      %v4553 = vpop.f32.mrf.mxu0
      %v4554 = vadd.f32 0.0, %v4553
      %4555 = vmatmul.bf16.gmra.mxu0 %v4351
      %v4556 = vpop.f32.mrf.mxu0
      %v4557 = vadd.f32 0.0, %v4556
      %v4558 = vpop.f32.mrf.mxu0
      %v4559 = vadd.f32 0.0, %v4558
      %4560 = vmatmul.bf16.gmra.mxu0 %v4354
      %v4561 = vpop.f32.mrf.mxu0
      %v4562 = vadd.f32 0.0, %v4561
      %v4563 = vpop.f32.mrf.mxu0
      %v4564 = vadd.f32 0.0, %v4563
      %4565 = vmatmul.bf16.gmra.mxu0 %v4357
      %v4566 = vpop.f32.mrf.mxu0
      %v4567 = vadd.f32 0.0, %v4566
      %v4568 = vpop.f32.mrf.mxu0
      %v4569 = vadd.f32 0.0, %v4568
      %4570 = vmatmul.bf16.gmra.mxu0 %v4360
      %v4571 = vpop.f32.mrf.mxu0
      %v4572 = vadd.f32 0.0, %v4571
      %v4573 = vpop.f32.mrf.mxu0
      %v4574 = vadd.f32 0.0, %v4573
      %4575 = vmatmul.bf16.gmra.mxu0 %v4363
      %v4576 = vpop.f32.mrf.mxu0
      %v4577 = vadd.f32 0.0, %v4576
      %v4578 = vpop.f32.mrf.mxu0
      %v4579 = vadd.f32 0.0, %v4578
      %4580 = vmatmul.bf16.gmra.mxu0 %v4366
      %v4581 = vpop.f32.mrf.mxu0
      %v4582 = vadd.f32 0.0, %v4581
      %v4583 = vpop.f32.mrf.mxu0
      %v4584 = vadd.f32 0.0, %v4583
      %4585 = vmatmul.bf16.gmra.mxu0 %v4369
      %v4586 = vpop.f32.mrf.mxu0
      %v4587 = vadd.f32 0.0, %v4586
      %v4588 = vpop.f32.mrf.mxu0
      %v4589 = vadd.f32 0.0, %v4588
      %4590 = vmatmul.bf16.gmra.mxu0 %v4372
      %v4591 = vpop.f32.mrf.mxu0
      %v4592 = vadd.f32 0.0, %v4591
      %v4593 = vpop.f32.mrf.mxu0
      %v4594 = vadd.f32 0.0, %v4593
      %4595 = vmatmul.bf16.gmra.mxu0 %v4375
      %v4596 = vpop.f32.mrf.mxu0
      %v4597 = vadd.f32 0.0, %v4596
      %v4598 = vpop.f32.mrf.mxu0
      %v4599 = vadd.f32 0.0, %v4598
      %4600 = vmatmul.bf16.gmra.mxu0 %v4378
      %v4601 = vpop.f32.mrf.mxu0
      %v4602 = vadd.f32 0.0, %v4601
      %v4603 = vpop.f32.mrf.mxu0
      %v4604 = vadd.f32 0.0, %v4603
      %4605 = vmatmul.bf16.gmra.mxu0 %v4381
      %v4606 = vpop.f32.mrf.mxu0
      %v4607 = vadd.f32 0.0, %v4606
      %v4608 = vpop.f32.mrf.mxu0
      %v4609 = vadd.f32 0.0, %v4608
      %4610 = vmatmul.bf16.gmra.mxu0 %v4384
      %v4611 = vpop.f32.mrf.mxu0
      %v4612 = vadd.f32 0.0, %v4611
      %v4613 = vpop.f32.mrf.mxu0
      %v4614 = vadd.f32 0.0, %v4613
      %4615 = vmatmul.bf16.gmra.mxu0 %v4387
      %v4616 = vpop.f32.mrf.mxu0
      %v4617 = vadd.f32 0.0, %v4616
      %v4618 = vpop.f32.mrf.mxu0
      %v4619 = vadd.f32 0.0, %v4618
      %4620 = vmatmul.bf16.gmra.mxu0 %v4390
      %v4621 = vpop.f32.mrf.mxu0
      %v4622 = vadd.f32 0.0, %v4621
      %v4623 = vpop.f32.mrf.mxu0
      %v4624 = vadd.f32 0.0, %v4623
      %4625 = vmatmul.bf16.gmra.mxu0 %v4393
      %v4626 = vpop.f32.mrf.mxu0
      %v4627 = vadd.f32 0.0, %v4626
      %v4628 = vpop.f32.mrf.mxu0
      %v4629 = vadd.f32 0.0, %v4628
      %4630 = vmatmul.bf16.gmra.mxu0 %v4396
      %v4631 = vpop.f32.mrf.mxu0
      %v4632 = vadd.f32 0.0, %v4631
      %v4633 = vpop.f32.mrf.mxu0
      %v4634 = vadd.f32 0.0, %v4633
      %4635 = vmatmul.bf16.gmra.mxu0 %v4399
      %v4636 = vpop.f32.mrf.mxu0
      %v4637 = vadd.f32 0.0, %v4636
      %v4638 = vpop.f32.mrf.mxu0
      %v4639 = vadd.f32 0.0, %v4638
      %4640 = vmatmul.bf16.gmra.mxu0 %v4402
      %v4641 = vpop.f32.mrf.mxu0
      %v4642 = vadd.f32 0.0, %v4641
      %v4643 = vpop.f32.mrf.mxu0
      %v4644 = vadd.f32 0.0, %v4643
      %4645 = vmatmul.bf16.gmra.mxu0 %v4405
      %v4646 = vpop.f32.mrf.mxu0
      %v4647 = vadd.f32 0.0, %v4646
      %v4648 = vpop.f32.mrf.mxu0
      %v4649 = vadd.f32 0.0, %v4648
      %4650 = vmatmul.bf16.gmra.mxu0 %v4408
      %v4651 = vpop.f32.mrf.mxu0
      %v4652 = vadd.f32 0.0, %v4651
      %v4653 = vpop.f32.mrf.mxu0
      %v4654 = vadd.f32 0.0, %v4653
      %4655 = vmatmul.bf16.gmra.mxu0 %v4411
      %v4656 = vpop.f32.mrf.mxu0
      %v4657 = vadd.f32 0.0, %v4656
      %v4658 = vpop.f32.mrf.mxu0
      %v4659 = vadd.f32 0.0, %v4658
      %4660 = vmatmul.bf16.gmra.mxu0 %v4414
      %v4661 = vpop.f32.mrf.mxu0
      %v4662 = vadd.f32 0.0, %v4661
      %v4663 = vpop.f32.mrf.mxu0
      %v4664 = vadd.f32 0.0, %v4663
      %4665 = vmatmul.bf16.gmra.mxu0 %v4417
      %v4666 = vpop.f32.mrf.mxu0
      %v4667 = vadd.f32 0.0, %v4666
      %v4668 = vpop.f32.mrf.mxu0
      %v4669 = vadd.f32 0.0, %v4668
      %4670 = vmatmul.bf16.gmra.mxu0 %v4420
      %v4671 = vpop.f32.mrf.mxu0
      %v4672 = vadd.f32 0.0, %v4671
      %v4673 = vpop.f32.mrf.mxu0
      %v4674 = vadd.f32 0.0, %v4673
      %4675 = vmatmul.bf16.gmra.mxu0 %v4423
      %v4676 = vpop.f32.mrf.mxu0
      %v4677 = vadd.f32 0.0, %v4676
      %v4678 = vpop.f32.mrf.mxu0
      %v4679 = vadd.f32 0.0, %v4678
      %4680 = vmatmul.bf16.gmra.mxu0 %v4426
      %v4681 = vpop.f32.mrf.mxu0
      %v4682 = vadd.f32 0.0, %v4681
      %v4683 = vpop.f32.mrf.mxu0
      %v4684 = vadd.f32 0.0, %v4683
      %4685 = vmatmul.bf16.gmra.mxu0 %v4429
      %v4686 = vpop.f32.mrf.mxu0
      %v4687 = vadd.f32 0.0, %v4686
      %v4688 = vpop.f32.mrf.mxu0
      %v4689 = vadd.f32 0.0, %v4688
      %4690 = vmatmul.bf16.gmra.mxu0 %v4432
      %v4691 = vpop.f32.mrf.mxu0
      %v4692 = vadd.f32 0.0, %v4691
      %v4693 = vpop.f32.mrf.mxu0
      %v4694 = vadd.f32 0.0, %v4693
      %4695 = vmatmul.bf16.gmra.mxu0 %v4435
      %v4696 = vpop.f32.mrf.mxu0
      %v4697 = vadd.f32 0.0, %v4696
      %v4698 = vpop.f32.mrf.mxu0
      %v4699 = vadd.f32 0.0, %v4698
      %4700 = vmatmul.bf16.gmra.mxu0 %v4438
      %v4701 = vpop.f32.mrf.mxu0
      %v4702 = vadd.f32 0.0, %v4701
      %v4703 = vpop.f32.mrf.mxu0
      %v4704 = vadd.f32 0.0, %v4703
      %4705 = vmatmul.bf16.gmra.mxu0 %v4441
      %v4706 = vpop.f32.mrf.mxu0
      %v4707 = vadd.f32 0.0, %v4706
      %v4708 = vpop.f32.mrf.mxu0
      %v4709 = vadd.f32 0.0, %v4708
      %4710 = vmatmul.bf16.gmra.mxu0 %v4444
      %v4711 = vpop.f32.mrf.mxu0
      %v4712 = vadd.f32 0.0, %v4711
      %v4713 = vpop.f32.mrf.mxu0
      %v4714 = vadd.f32 0.0, %v4713
      %4715 = vmatmul.bf16.gmra.mxu0 %v4447
      %v4716 = vpop.f32.mrf.mxu0
      %v4717 = vadd.f32 0.0, %v4716
      %v4718 = vpop.f32.mrf.mxu0
      %v4719 = vadd.f32 0.0, %v4718
      %4720 = vmatmul.bf16.gmra.mxu0 %v4450
      %v4721 = vpop.f32.mrf.mxu0
      %v4722 = vadd.f32 0.0, %v4721
      %v4723 = vpop.f32.mrf.mxu0
      %v4724 = vadd.f32 0.0, %v4723
      %4725 = vmatmul.bf16.gmra.mxu0 %v4453
      %v4726 = vpop.f32.mrf.mxu0
      %v4727 = vadd.f32 0.0, %v4726
      %v4728 = vpop.f32.mrf.mxu0
      %v4729 = vadd.f32 0.0, %v4728
      %4730 = vmatmul.bf16.gmra.mxu0 %v4456
      %v4731 = vpop.f32.mrf.mxu0
      %v4732 = vadd.f32 0.0, %v4731
      %v4733 = vpop.f32.mrf.mxu0
      %v4734 = vadd.f32 0.0, %v4733
      %4735 = vmatmul.bf16.gmra.mxu0 %v4459
      %v4736 = vpop.f32.mrf.mxu0
      %v4737 = vadd.f32 0.0, %v4736
      %v4738 = vpop.f32.mrf.mxu0
      %v4739 = vadd.f32 0.0, %v4738
      %4740 = vmatmul.bf16.gmra.mxu0 %v4462
      %v4741 = vpop.f32.mrf.mxu0
      %v4742 = vadd.f32 0.0, %v4741
      %v4743 = vpop.f32.mrf.mxu0
      %v4744 = vadd.f32 0.0, %v4743
      %4745 = vmatmul.bf16.gmra.mxu0 %v4465
      %v4746 = vpop.f32.mrf.mxu0
      %v4747 = vadd.f32 0.0, %v4746
      %v4748 = vpop.f32.mrf.mxu0
      %v4749 = vadd.f32 0.0, %v4748
      %4750 = vmatmul.bf16.gmra.mxu0 %v4468
      %v4751 = vpop.f32.mrf.mxu0
      %v4752 = vadd.f32 0.0, %v4751
      %v4753 = vpop.f32.mrf.mxu0
      %v4754 = vadd.f32 0.0, %v4753
      %4755 = vmatmul.bf16.gmra.mxu0 %v4471
      %v4756 = vpop.f32.mrf.mxu0
      %v4757 = vadd.f32 0.0, %v4756
      %v4758 = vpop.f32.mrf.mxu0
      %v4759 = vadd.f32 0.0, %v4758
      %4760 = vmatmul.bf16.gmra.mxu0 %v4474
      %v4761 = vpop.f32.mrf.mxu0
      %v4762 = vadd.f32 0.0, %v4761
      %v4763 = vpop.f32.mrf.mxu0
      %v4764 = vadd.f32 0.0, %v4763
      %4765 = vmatmul.bf16.gmra.mxu0 %v4477
      %v4766 = vpop.f32.mrf.mxu0
      %v4767 = vadd.f32 0.0, %v4766
      %v4768 = vpop.f32.mrf.mxu0
      %v4769 = vadd.f32 0.0, %v4768
      %4770 = vmatmul.bf16.gmra.mxu0 %v4480
      %v4771 = vpop.f32.mrf.mxu0
      %v4772 = vadd.f32 0.0, %v4771
      %v4773 = vpop.f32.mrf.mxu0
      %v4774 = vadd.f32 0.0, %v4773
      %4775 = vmatmul.bf16.gmra.mxu0 %v4483
      %v4776 = vpop.f32.mrf.mxu0
      %v4777 = vadd.f32 0.0, %v4776
      %v4778 = vpop.f32.mrf.mxu0
      %v4779 = vadd.f32 0.0, %v4778
      %4780 = vmatmul.bf16.gmra.mxu0 %v4486
      %v4781 = vpop.f32.mrf.mxu0
      %v4782 = vadd.f32 0.0, %v4781
      %v4783 = vpop.f32.mrf.mxu0
      %v4784 = vadd.f32 0.0, %v4783
      %4785 = vmatmul.bf16.gmra.mxu0 %v4489
      %v4786 = vpop.f32.mrf.mxu0
      %v4787 = vadd.f32 0.0, %v4786
      %v4788 = vpop.f32.mrf.mxu0
      %v4789 = vadd.f32 0.0, %v4788
      %4790 = vmatmul.bf16.gmra.mxu0 %v4492
      %v4791 = vpop.f32.mrf.mxu0
      %v4792 = vadd.f32 0.0, %v4791
      %v4793 = vpop.f32.mrf.mxu0
      %v4794 = vadd.f32 0.0, %v4793
      %4795 = vmatmul.bf16.gmra.mxu0 %v4495
      %v4796 = vpop.f32.mrf.mxu0
      %v4797 = vadd.f32 0.0, %v4796
      %v4798 = vpop.f32.mrf.mxu0
      %v4799 = vadd.f32 0.0, %v4798
      %4800 = vmatmul.bf16.gmra.mxu0 %v4498
      %v4801 = vpop.f32.mrf.mxu0
      %v4802 = vadd.f32 0.0, %v4801
      %v4803 = vpop.f32.mrf.mxu0
      %v4804 = vadd.f32 0.0, %v4803
      %4805 = vmatmul.bf16.gmra.mxu0 %v4501
      %v4806 = vpop.f32.mrf.mxu0
      %v4807 = vadd.f32 0.0, %v4806
      %v4808 = vpop.f32.mrf.mxu0
      %v4809 = vadd.f32 0.0, %v4808
      %4810 = vmatmul.bf16.gmra.mxu0 %v4504
      %v4811 = vpop.f32.mrf.mxu0
      %v4812 = vadd.f32 0.0, %v4811
      %v4813 = vpop.f32.mrf.mxu0
      %v4814 = vadd.f32 0.0, %v4813
      %4815 = vmatmul.bf16.gmra.mxu0 %v4507
      %v4816 = vpop.f32.mrf.mxu0
      %v4817 = vadd.f32 0.0, %v4816
      %v4818 = vpop.f32.mrf.mxu0
      %v4819 = vadd.f32 0.0, %v4818
      %4820 = vmatmul.bf16.gmra.mxu0 %v4510
      %v4821 = vpop.f32.mrf.mxu0
      %v4822 = vadd.f32 0.0, %v4821
      %v4823 = vpop.f32.mrf.mxu0
      %v4824 = vadd.f32 0.0, %v4823
      %4825 = vmatmul.bf16.gmra.mxu0 %v4513
      %v4826 = vpop.f32.mrf.mxu0
      %v4827 = vadd.f32 0.0, %v4826
      %v4828 = vpop.f32.mrf.mxu0
      %v4829 = vadd.f32 0.0, %v4828
      %4830 = vmatmul.bf16.gmra.mxu0 %v4516
      %v4831 = vpop.f32.mrf.mxu0
      %v4832 = vadd.f32 0.0, %v4831
      %v4833 = vpop.f32.mrf.mxu0
      %v4834 = vadd.f32 0.0, %v4833
      %4835 = vmatmul.bf16.gmra.mxu0 %v4519
      %v4836 = vpop.f32.mrf.mxu0
      %v4837 = vadd.f32 0.0, %v4836
      %v4838 = vpop.f32.mrf.mxu0
      %v4839 = vadd.f32 0.0, %v4838
      %4840 = vmatmul.bf16.gmra.mxu0 %v4522
      %v4841 = vpop.f32.mrf.mxu0
      %v4842 = vadd.f32 0.0, %v4841
      %v4843 = vpop.f32.mrf.mxu0
      %v4844 = vadd.f32 0.0, %v4843
      %4845 = vmatmul.bf16.gmra.mxu0 %v4525
      %v4846 = vpop.f32.mrf.mxu0
      %v4847 = vadd.f32 0.0, %v4846
      %v4848 = vpop.f32.mrf.mxu0
      %v4849 = vadd.f32 0.0, %v4848
      %4850 = vmatmul.bf16.gmra.mxu0 %v4528
      %v4851 = vpop.f32.mrf.mxu0
      %v4852 = vadd.f32 0.0, %v4851
      %v4853 = vpop.f32.mrf.mxu0
      %v4854 = vadd.f32 0.0, %v4853
      %4855 = vmatmul.bf16.gmra.mxu0 %v4531
      %v4856 = vpop.f32.mrf.mxu0
      %v4857 = vadd.f32 0.0, %v4856
      %v4858 = vpop.f32.mrf.mxu0
      %v4859 = vadd.f32 0.0, %v4858
      %4860 = vmatmul.bf16.gmra.mxu0 %v4534
      %v4861 = vpop.f32.mrf.mxu0
      %v4862 = vadd.f32 0.0, %v4861
      %v4863 = vpop.f32.mrf.mxu0
      %v4864 = vadd.f32 0.0, %v4863
      %4865 = vmatmul.bf16.gmra.mxu0 %v4537
      %v4866 = vpop.f32.mrf.mxu0
      %v4867 = vadd.f32 0.0, %v4866
      %v4868 = vpop.f32.mrf.mxu0
      %v4869 = vadd.f32 0.0, %v4868
      %4870 = vdwg.mxu0
      %v4871 = vadd.f32 %v4025, %v4552
      %v4872 = vadd.f32 %v4026, %v4554
      %v4873 = vadd.f32 %v4027, %v4557
      %v4874 = vadd.f32 %v4028, %v4559
      %v4875 = vadd.f32 %v4029, %v4562
      %v4876 = vadd.f32 %v4030, %v4564
      %v4877 = vadd.f32 %v4031, %v4567
      %v4878 = vadd.f32 %v4032, %v4569
      %v4879 = vadd.f32 %v4033, %v4572
      %v4880 = vadd.f32 %v4034, %v4574
      %v4881 = vadd.f32 %v4035, %v4577
      %v4882 = vadd.f32 %v4036, %v4579
      %v4883 = vadd.f32 %v4037, %v4582
      %v4884 = vadd.f32 %v4038, %v4584
      %v4885 = vadd.f32 %v4039, %v4587
      %v4886 = vadd.f32 %v4040, %v4589
      %v4887 = vadd.f32 %v4041, %v4592
      %v4888 = vadd.f32 %v4042, %v4594
      %v4889 = vadd.f32 %v4043, %v4597
      %v4890 = vadd.f32 %v4044, %v4599
      %v4891 = vadd.f32 %v4045, %v4602
      %v4892 = vadd.f32 %v4046, %v4604
      %v4893 = vadd.f32 %v4047, %v4607
      %v4894 = vadd.f32 %v4048, %v4609
      %v4895 = vadd.f32 %v4049, %v4612
      %v4896 = vadd.f32 %v4050, %v4614
      %v4897 = vadd.f32 %v4051, %v4617
      %v4898 = vadd.f32 %v4052, %v4619
      %v4899 = vadd.f32 %v4053, %v4622
      %v4900 = vadd.f32 %v4054, %v4624
      %v4901 = vadd.f32 %v4055, %v4627
      %v4902 = vadd.f32 %v4056, %v4629
      %v4903 = vadd.f32 %v4057, %v4632
      %v4904 = vadd.f32 %v4058, %v4634
      %v4905 = vadd.f32 %v4059, %v4637
      %v4906 = vadd.f32 %v4060, %v4639
      %v4907 = vadd.f32 %v4061, %v4642
      %v4908 = vadd.f32 %v4062, %v4644
      %v4909 = vadd.f32 %v4063, %v4647
      %v4910 = vadd.f32 %v4064, %v4649
      %v4911 = vadd.f32 %v4065, %v4652
      %v4912 = vadd.f32 %v4066, %v4654
      %v4913 = vadd.f32 %v4067, %v4657
      %v4914 = vadd.f32 %v4068, %v4659
      %v4915 = vadd.f32 %v4069, %v4662
      %v4916 = vadd.f32 %v4070, %v4664
      %v4917 = vadd.f32 %v4071, %v4667
      %v4918 = vadd.f32 %v4072, %v4669
      %v4919 = vadd.f32 %v4073, %v4672
      %v4920 = vadd.f32 %v4074, %v4674
      %v4921 = vadd.f32 %v4075, %v4677
      %v4922 = vadd.f32 %v4076, %v4679
      %v4923 = vadd.f32 %v4077, %v4682
      %v4924 = vadd.f32 %v4078, %v4684
      %v4925 = vadd.f32 %v4079, %v4687
      %v4926 = vadd.f32 %v4080, %v4689
      %v4927 = vadd.f32 %v4081, %v4692
      %v4928 = vadd.f32 %v4082, %v4694
      %v4929 = vadd.f32 %v4083, %v4697
      %v4930 = vadd.f32 %v4084, %v4699
      %v4931 = vadd.f32 %v4085, %v4702
      %v4932 = vadd.f32 %v4086, %v4704
      %v4933 = vadd.f32 %v4087, %v4707
      %v4934 = vadd.f32 %v4088, %v4709
      %v4935 = vadd.f32 %v4089, %v4712
      %v4936 = vadd.f32 %v4090, %v4714
      %v4937 = vadd.f32 %v4091, %v4717
      %v4938 = vadd.f32 %v4092, %v4719
      %v4939 = vadd.f32 %v4093, %v4722
      %v4940 = vadd.f32 %v4094, %v4724
      %v4941 = vadd.f32 %v4095, %v4727
      %v4942 = vadd.f32 %v4096, %v4729
      %v4943 = vadd.f32 %v4097, %v4732
      %v4944 = vadd.f32 %v4098, %v4734
      %v4945 = vadd.f32 %v4099, %v4737
      %v4946 = vadd.f32 %v4100, %v4739
      %v4947 = vadd.f32 %v4101, %v4742
      %v4948 = vadd.f32 %v4102, %v4744
      %v4949 = vadd.f32 %v4103, %v4747
      %v4950 = vadd.f32 %v4104, %v4749
      %v4951 = vadd.f32 %v4105, %v4752
      %v4952 = vadd.f32 %v4106, %v4754
      %v4953 = vadd.f32 %v4107, %v4757
      %v4954 = vadd.f32 %v4108, %v4759
      %v4955 = vadd.f32 %v4109, %v4762
      %v4956 = vadd.f32 %v4110, %v4764
      %v4957 = vadd.f32 %v4111, %v4767
      %v4958 = vadd.f32 %v4112, %v4769
      %v4959 = vadd.f32 %v4113, %v4772
      %v4960 = vadd.f32 %v4114, %v4774
      %v4961 = vadd.f32 %v4115, %v4777
      %v4962 = vadd.f32 %v4116, %v4779
      %v4963 = vadd.f32 %v4117, %v4782
      %v4964 = vadd.f32 %v4118, %v4784
      %v4965 = vadd.f32 %v4119, %v4787
      %v4966 = vadd.f32 %v4120, %v4789
      %v4967 = vadd.f32 %v4121, %v4792
      %v4968 = vadd.f32 %v4122, %v4794
      %v4969 = vadd.f32 %v4123, %v4797
      %v4970 = vadd.f32 %v4124, %v4799
      %v4971 = vadd.f32 %v4125, %v4802
      %v4972 = vadd.f32 %v4126, %v4804
      %v4973 = vadd.f32 %v4127, %v4807
      %v4974 = vadd.f32 %v4128, %v4809
      %v4975 = vadd.f32 %v4129, %v4812
      %v4976 = vadd.f32 %v4130, %v4814
      %v4977 = vadd.f32 %v4131, %v4817
      %v4978 = vadd.f32 %v4132, %v4819
      %v4979 = vadd.f32 %v4133, %v4822
      %v4980 = vadd.f32 %v4134, %v4824
      %v4981 = vadd.f32 %v4135, %v4827
      %v4982 = vadd.f32 %v4136, %v4829
      %v4983 = vadd.f32 %v4137, %v4832
      %v4984 = vadd.f32 %v4138, %v4834
      %v4985 = vadd.f32 %v4139, %v4837
      %v4986 = vadd.f32 %v4140, %v4839
      %v4987 = vadd.f32 %v4141, %v4842
      %v4988 = vadd.f32 %v4142, %v4844
      %v4989 = vadd.f32 %v4143, %v4847
      %v4990 = vadd.f32 %v4144, %v4849
      %v4991 = vadd.f32 %v4145, %v4852
      %v4992 = vadd.f32 %v4146, %v4854
      %v4993 = vadd.f32 %v4147, %v4857
      %v4994 = vadd.f32 %v4148, %v4859
      %v4995 = vadd.f32 %v4149, %v4862
      %v4996 = vadd.f32 %v4150, %v4864
      %v4997 = vadd.f32 %v4151, %v4867
      %v4998 = vadd.f32 %v4152, %v4869
      %v4999 = vld [vmem:[%s633 + $0x9] sm:$0xff]
      %v5000 = vld [vmem:[%s633 + $0x11] sm:$0xff]
      %v5001 = vld [vmem:[%s633 + $0x19] sm:$0xff]
      %v5002 = vld [vmem:[%s633 + $0x21] sm:$0xff]
      %v5003 = vld [vmem:[%s633 + $0x39] sm:$0xff]
      %v5004 = vld [vmem:[%s633 + $0x41] sm:$0xff]
      %v5005 = vld [vmem:[%s633 + $0x49] sm:$0xff]
      %v5006 = vld [vmem:[%s633 + $0x51] sm:$0xff]
      %v5007 = vld [vmem:[%s633 + $0x69] sm:$0xff]
      %v5008 = vld [vmem:[%s633 + $0x71] sm:$0xff]
      %v5009 = vld [vmem:[%s633 + $0x79] sm:$0xff]
      %v5010 = vld [vmem:[%s633 + $0x81] sm:$0xff]
      %v5011 = vld [vmem:[%s633 + $0x99] sm:$0xff]
      %v5012 = vld [vmem:[%s633 + $0xa1] sm:$0xff]
      %v5013 = vld [vmem:[%s633 + $0xa9] sm:$0xff]
      %v5014 = vld [vmem:[%s633 + $0xb1] sm:$0xff]
      %v5015 = vld [vmem:[%s633 + $0xc9] sm:$0xff]
      %v5016 = vld [vmem:[%s633 + $0xd1] sm:$0xff]
      %v5017 = vld [vmem:[%s633 + $0xd9] sm:$0xff]
      %v5018 = vld [vmem:[%s633 + $0xe1] sm:$0xff]
      %v5019 = vld [vmem:[%s633 + $0xf9] sm:$0xff]
      %v5020 = vld [vmem:[%s633 + $0x101] sm:$0xff]
      %v5021 = vld [vmem:[%s633 + $0x109] sm:$0xff]
      %v5022 = vld [vmem:[%s633 + $0x111] sm:$0xff]
      %v5023 = vld [vmem:[%s633 + $0x129] sm:$0xff]
      %v5024 = vld [vmem:[%s633 + $0x131] sm:$0xff]
      %v5025 = vld [vmem:[%s633 + $0x139] sm:$0xff]
      %v5026 = vld [vmem:[%s633 + $0x141] sm:$0xff]
      %v5027 = vld [vmem:[%s633 + $0x159] sm:$0xff]
      %v5028 = vld [vmem:[%s633 + $0x161] sm:$0xff]
      %v5029 = vld [vmem:[%s633 + $0x169] sm:$0xff]
      %v5030 = vld [vmem:[%s633 + $0x171] sm:$0xff]
      %v5031 = vld [vmem:[%s633 + $0x189] sm:$0xff]
      %v5032 = vld [vmem:[%s633 + $0x191] sm:$0xff]
      %v5033 = vld [vmem:[%s633 + $0x199] sm:$0xff]
      %v5034 = vld [vmem:[%s633 + $0x1a1] sm:$0xff]
      %v5035 = vld [vmem:[%s633 + $0x1b9] sm:$0xff]
      %v5036 = vld [vmem:[%s633 + $0x1c1] sm:$0xff]
      %v5037 = vld [vmem:[%s633 + $0x1c9] sm:$0xff]
      %v5038 = vld [vmem:[%s633 + $0x1d1] sm:$0xff]
      %v5039 = vld [vmem:[%s633 + $0x1e9] sm:$0xff]
      %v5040 = vld [vmem:[%s633 + $0x1f1] sm:$0xff]
      %v5041 = vld [vmem:[%s633 + $0x1f9] sm:$0xff]
      %v5042 = vld [vmem:[%s633 + $0x201] sm:$0xff]
      %v5043 = vld [vmem:[%s633 + $0x219] sm:$0xff]
      %v5044 = vld [vmem:[%s633 + $0x221] sm:$0xff]
      %v5045 = vld [vmem:[%s633 + $0x229] sm:$0xff]
      %v5046 = vld [vmem:[%s633 + $0x231] sm:$0xff]
      %v5047 = vld [vmem:[%s633 + $0x249] sm:$0xff]
      %v5048 = vld [vmem:[%s633 + $0x251] sm:$0xff]
      %v5049 = vld [vmem:[%s633 + $0x259] sm:$0xff]
      %v5050 = vld [vmem:[%s633 + $0x261] sm:$0xff]
      %v5051 = vld [vmem:[%s633 + $0x279] sm:$0xff]
      %v5052 = vld [vmem:[%s633 + $0x281] sm:$0xff]
      %v5053 = vld [vmem:[%s633 + $0x289] sm:$0xff]
      %v5054 = vld [vmem:[%s633 + $0x291] sm:$0xff]
      %v5055 = vld [vmem:[%s633 + $0x2a9] sm:$0xff]
      %v5056 = vld [vmem:[%s633 + $0x2b1] sm:$0xff]
      %v5057 = vld [vmem:[%s633 + $0x2b9] sm:$0xff]
      %v5058 = vld [vmem:[%s633 + $0x2c1] sm:$0xff]
      %v5059 = vld [vmem:[%s633 + $0x2d9] sm:$0xff]
      %v5060 = vld [vmem:[%s633 + $0x2e1] sm:$0xff]
      %v5061 = vld [vmem:[%s633 + $0x2e9] sm:$0xff]
      %v5062 = vld [vmem:[%s633 + $0x2f1] sm:$0xff]
      %v5063 = vld [vmem:[%s633 + $0x309] sm:$0xff]
      %v5064 = vld [vmem:[%s633 + $0x311] sm:$0xff]
      %v5065 = vld [vmem:[%s633 + $0x319] sm:$0xff]
      %v5066 = vld [vmem:[%s633 + $0x321] sm:$0xff]
      %v5067 = vld [vmem:[%s633 + $0x339] sm:$0xff]
      %v5068 = vld [vmem:[%s633 + $0x341] sm:$0xff]
      %v5069 = vld [vmem:[%s633 + $0x349] sm:$0xff]
      %v5070 = vld [vmem:[%s633 + $0x351] sm:$0xff]
      %v5071 = vld [vmem:[%s633 + $0x369] sm:$0xff]
      %v5072 = vld [vmem:[%s633 + $0x371] sm:$0xff]
      %v5073 = vld [vmem:[%s633 + $0x379] sm:$0xff]
      %v5074 = vld [vmem:[%s633 + $0x381] sm:$0xff]
      %v5075 = vld [vmem:[%s633 + $0x399] sm:$0xff]
      %v5076 = vld [vmem:[%s633 + $0x3a1] sm:$0xff]
      %v5077 = vld [vmem:[%s633 + $0x3a9] sm:$0xff]
      %v5078 = vld [vmem:[%s633 + $0x3b1] sm:$0xff]
      %v5079 = vld [vmem:[%s633 + $0x3c9] sm:$0xff]
      %v5080 = vld [vmem:[%s633 + $0x3d1] sm:$0xff]
      %v5081 = vld [vmem:[%s633 + $0x3d9] sm:$0xff]
      %v5082 = vld [vmem:[%s633 + $0x3e1] sm:$0xff]
      %v5083 = vld [vmem:[%s633 + $0x3f9] sm:$0xff]
      %v5084 = vld [vmem:[%s633 + $0x401] sm:$0xff]
      %v5085 = vld [vmem:[%s633 + $0x409] sm:$0xff]
      %v5086 = vld [vmem:[%s633 + $0x411] sm:$0xff]
      %v5087 = vld [vmem:[%s633 + $0x429] sm:$0xff]
      %v5088 = vld [vmem:[%s633 + $0x431] sm:$0xff]
      %v5089 = vld [vmem:[%s633 + $0x439] sm:$0xff]
      %v5090 = vld [vmem:[%s633 + $0x441] sm:$0xff]
      %v5091 = vld [vmem:[%s633 + $0x459] sm:$0xff]
      %v5092 = vld [vmem:[%s633 + $0x461] sm:$0xff]
      %v5093 = vld [vmem:[%s633 + $0x469] sm:$0xff]
      %v5094 = vld [vmem:[%s633 + $0x471] sm:$0xff]
      %v5095 = vld [vmem:[%s633 + $0x489] sm:$0xff]
      %v5096 = vld [vmem:[%s633 + $0x491] sm:$0xff]
      %v5097 = vld [vmem:[%s633 + $0x499] sm:$0xff]
      %v5098 = vld [vmem:[%s633 + $0x4a1] sm:$0xff]
      %v5099 = vld [vmem:[%s633 + $0x4b9] sm:$0xff]
      %v5100 = vld [vmem:[%s633 + $0x4c1] sm:$0xff]
      %v5101 = vld [vmem:[%s633 + $0x4c9] sm:$0xff]
      %v5102 = vld [vmem:[%s633 + $0x4d1] sm:$0xff]
      %v5103 = vld [vmem:[%s633 + $0x4e9] sm:$0xff]
      %v5104 = vld [vmem:[%s633 + $0x4f1] sm:$0xff]
      %v5105 = vld [vmem:[%s633 + $0x4f9] sm:$0xff]
      %v5106 = vld [vmem:[%s633 + $0x501] sm:$0xff]
      %v5107 = vld [vmem:[%s633 + $0x519] sm:$0xff]
      %v5108 = vld [vmem:[%s633 + $0x521] sm:$0xff]
      %v5109 = vld [vmem:[%s633 + $0x529] sm:$0xff]
      %v5110 = vld [vmem:[%s633 + $0x531] sm:$0xff]
      %v5111 = vld [vmem:[%s633 + $0x549] sm:$0xff]
      %v5112 = vld [vmem:[%s633 + $0x551] sm:$0xff]
      %v5113 = vld [vmem:[%s633 + $0x559] sm:$0xff]
      %v5114 = vld [vmem:[%s633 + $0x561] sm:$0xff]
      %v5115 = vld [vmem:[%s633 + $0x579] sm:$0xff]
      %v5116 = vld [vmem:[%s633 + $0x581] sm:$0xff]
      %v5117 = vld [vmem:[%s633 + $0x589] sm:$0xff]
      %v5118 = vld [vmem:[%s633 + $0x591] sm:$0xff]
      %v5119 = vld [vmem:[%s633 + $0x5a9] sm:$0xff]
      %v5120 = vld [vmem:[%s633 + $0x5b1] sm:$0xff]
      %v5121 = vld [vmem:[%s633 + $0x5b9] sm:$0xff]
      %v5122 = vld [vmem:[%s633 + $0x5c1] sm:$0xff]
      %v5123 = vld [vmem:[%s633 + $0x5d9] sm:$0xff]
      %v5124 = vld [vmem:[%s633 + $0x5e1] sm:$0xff]
      %v5125 = vld [vmem:[%s633 + $0x5e9] sm:$0xff]
      %v5126 = vld [vmem:[%s633 + $0x5f1] sm:$0xff]
      %v5127 = vpack.c.bf16 %v5000, %v4999
      %v5128 = vpack.c.bf16 %v5002, %v5001
      %v5129 = vpack.c.bf16 %v5004, %v5003
      %v5130 = vpack.c.bf16 %v5006, %v5005
      %v5131 = vpack.c.bf16 %v5008, %v5007
      %v5132 = vpack.c.bf16 %v5010, %v5009
      %v5133 = vpack.c.bf16 %v5012, %v5011
      %v5134 = vpack.c.bf16 %v5014, %v5013
      %v5135 = vpack.c.bf16 %v5016, %v5015
      %v5136 = vpack.c.bf16 %v5018, %v5017
      %v5137 = vpack.c.bf16 %v5020, %v5019
      %v5138 = vpack.c.bf16 %v5022, %v5021
      %v5139 = vpack.c.bf16 %v5024, %v5023
      %v5140 = vpack.c.bf16 %v5026, %v5025
      %v5141 = vpack.c.bf16 %v5028, %v5027
      %v5142 = vpack.c.bf16 %v5030, %v5029
      %v5143 = vpack.c.bf16 %v5032, %v5031
      %v5144 = vpack.c.bf16 %v5034, %v5033
      %v5145 = vpack.c.bf16 %v5036, %v5035
      %v5146 = vpack.c.bf16 %v5038, %v5037
      %v5147 = vpack.c.bf16 %v5040, %v5039
      %v5148 = vpack.c.bf16 %v5042, %v5041
      %v5149 = vpack.c.bf16 %v5044, %v5043
      %v5150 = vpack.c.bf16 %v5046, %v5045
      %v5151 = vpack.c.bf16 %v5048, %v5047
      %v5152 = vpack.c.bf16 %v5050, %v5049
      %v5153 = vpack.c.bf16 %v5052, %v5051
      %v5154 = vpack.c.bf16 %v5054, %v5053
      %v5155 = vpack.c.bf16 %v5056, %v5055
      %v5156 = vpack.c.bf16 %v5058, %v5057
      %v5157 = vpack.c.bf16 %v5060, %v5059
      %v5158 = vpack.c.bf16 %v5062, %v5061
      %v5159 = vpack.c.bf16 %v5064, %v5063
      %v5160 = vpack.c.bf16 %v5066, %v5065
      %v5161 = vpack.c.bf16 %v5068, %v5067
      %v5162 = vpack.c.bf16 %v5070, %v5069
      %v5163 = vpack.c.bf16 %v5072, %v5071
      %v5164 = vpack.c.bf16 %v5074, %v5073
      %v5165 = vpack.c.bf16 %v5076, %v5075
      %v5166 = vpack.c.bf16 %v5078, %v5077
      %v5167 = vpack.c.bf16 %v5080, %v5079
      %v5168 = vpack.c.bf16 %v5082, %v5081
      %v5169 = vpack.c.bf16 %v5084, %v5083
      %v5170 = vpack.c.bf16 %v5086, %v5085
      %v5171 = vpack.c.bf16 %v5088, %v5087
      %v5172 = vpack.c.bf16 %v5090, %v5089
      %v5173 = vpack.c.bf16 %v5092, %v5091
      %v5174 = vpack.c.bf16 %v5094, %v5093
      %v5175 = vpack.c.bf16 %v5096, %v5095
      %v5176 = vpack.c.bf16 %v5098, %v5097
      %v5177 = vpack.c.bf16 %v5100, %v5099
      %v5178 = vpack.c.bf16 %v5102, %v5101
      %v5179 = vpack.c.bf16 %v5104, %v5103
      %v5180 = vpack.c.bf16 %v5106, %v5105
      %v5181 = vpack.c.bf16 %v5108, %v5107
      %v5182 = vpack.c.bf16 %v5110, %v5109
      %v5183 = vpack.c.bf16 %v5112, %v5111
      %v5184 = vpack.c.bf16 %v5114, %v5113
      %v5185 = vpack.c.bf16 %v5116, %v5115
      %v5186 = vpack.c.bf16 %v5118, %v5117
      %v5187 = vpack.c.bf16 %v5120, %v5119
      %v5188 = vpack.c.bf16 %v5122, %v5121
      %v5189 = vpack.c.bf16 %v5124, %v5123
      %v5190 = vpack.c.bf16 %v5126, %v5125
      %s5191 = scalar_lea.vmem %s1, 10
      %v5192 = vld [vmem:[%s5191] sm:$0x3]
      %v5194 = vsel %vm172, %v5127, 0
      %v5197 = vsel %vm172, %v5128, 0
      %v5200 = vsel %vm172, %v5129, 0
      %v5203 = vsel %vm172, %v5130, 0
      %v5206 = vsel %vm172, %v5131, 0
      %v5209 = vsel %vm172, %v5132, 0
      %v5212 = vsel %vm172, %v5133, 0
      %v5215 = vsel %vm172, %v5134, 0
      %v5218 = vsel %vm172, %v5135, 0
      %v5221 = vsel %vm172, %v5136, 0
      %v5224 = vsel %vm172, %v5137, 0
      %v5227 = vsel %vm172, %v5138, 0
      %v5230 = vsel %vm172, %v5139, 0
      %v5233 = vsel %vm172, %v5140, 0
      %v5236 = vsel %vm172, %v5141, 0
      %v5239 = vsel %vm172, %v5142, 0
      %v5242 = vsel %vm172, %v5143, 0
      %v5245 = vsel %vm172, %v5144, 0
      %v5248 = vsel %vm172, %v5145, 0
      %v5251 = vsel %vm172, %v5146, 0
      %v5254 = vsel %vm172, %v5147, 0
      %v5257 = vsel %vm172, %v5148, 0
      %v5260 = vsel %vm172, %v5149, 0
      %v5263 = vsel %vm172, %v5150, 0
      %v5266 = vsel %vm172, %v5151, 0
      %v5269 = vsel %vm172, %v5152, 0
      %v5272 = vsel %vm172, %v5153, 0
      %v5275 = vsel %vm172, %v5154, 0
      %v5278 = vsel %vm172, %v5155, 0
      %v5281 = vsel %vm172, %v5156, 0
      %v5284 = vsel %vm172, %v5157, 0
      %v5287 = vsel %vm172, %v5158, 0
      %v5290 = vsel %vm172, %v5159, 0
      %v5293 = vsel %vm172, %v5160, 0
      %v5296 = vsel %vm172, %v5161, 0
      %v5299 = vsel %vm172, %v5162, 0
      %v5302 = vsel %vm172, %v5163, 0
      %v5305 = vsel %vm172, %v5164, 0
      %v5308 = vsel %vm172, %v5165, 0
      %v5311 = vsel %vm172, %v5166, 0
      %v5314 = vsel %vm172, %v5167, 0
      %v5317 = vsel %vm172, %v5168, 0
      %v5320 = vsel %vm172, %v5169, 0
      %v5323 = vsel %vm172, %v5170, 0
      %v5326 = vsel %vm172, %v5171, 0
      %v5329 = vsel %vm172, %v5172, 0
      %v5332 = vsel %vm172, %v5173, 0
      %v5335 = vsel %vm172, %v5174, 0
      %v5338 = vsel %vm172, %v5175, 0
      %v5341 = vsel %vm172, %v5176, 0
      %v5344 = vsel %vm172, %v5177, 0
      %v5347 = vsel %vm172, %v5178, 0
      %v5350 = vsel %vm172, %v5179, 0
      %v5353 = vsel %vm172, %v5180, 0
      %v5356 = vsel %vm172, %v5181, 0
      %v5359 = vsel %vm172, %v5182, 0
      %v5362 = vsel %vm172, %v5183, 0
      %v5365 = vsel %vm172, %v5184, 0
      %v5368 = vsel %vm172, %v5185, 0
      %v5371 = vsel %vm172, %v5186, 0
      %v5374 = vsel %vm172, %v5187, 0
      %v5377 = vsel %vm172, %v5188, 0
      %v5380 = vsel %vm172, %v5189, 0
      %v5383 = vsel %vm172, %v5190, 0
      %v5386 = vand.u32 %v5192, %v1154
      %5388 = vmatpush.bf16.msra.mxu0 0
      %5389 = vmatpush.bf16.msra.mxu0 0
      %5390 = vmatpush.bf16.msra.mxu0 0
      %5391 = vmatpush.bf16.msra.mxu0 0
      %5392 = vmatpush.bf16.msra.mxu0 0
      %5393 = vmatpush.bf16.msra.mxu0 0
      %5394 = vmatpush.bf16.msra.mxu0 0
      %5395 = vmatpush.bf16.msra.mxu0 %v5386
      %5396 = vmatmul.bf16.gmra.mxu0 %v5194
      %v5397 = vpop.f32.mrf.mxu0
      %v5398 = vadd.f32 0.0, %v5397
      %v5399 = vpop.f32.mrf.mxu0
      %v5400 = vadd.f32 0.0, %v5399
      %5401 = vmatmul.bf16.gmra.mxu0 %v5197
      %v5402 = vpop.f32.mrf.mxu0
      %v5403 = vadd.f32 0.0, %v5402
      %v5404 = vpop.f32.mrf.mxu0
      %v5405 = vadd.f32 0.0, %v5404
      %5406 = vmatmul.bf16.gmra.mxu0 %v5200
      %v5407 = vpop.f32.mrf.mxu0
      %v5408 = vadd.f32 0.0, %v5407
      %v5409 = vpop.f32.mrf.mxu0
      %v5410 = vadd.f32 0.0, %v5409
      %5411 = vmatmul.bf16.gmra.mxu0 %v5203
      %v5412 = vpop.f32.mrf.mxu0
      %v5413 = vadd.f32 0.0, %v5412
      %v5414 = vpop.f32.mrf.mxu0
      %v5415 = vadd.f32 0.0, %v5414
      %5416 = vmatmul.bf16.gmra.mxu0 %v5206
      %v5417 = vpop.f32.mrf.mxu0
      %v5418 = vadd.f32 0.0, %v5417
      %v5419 = vpop.f32.mrf.mxu0
      %v5420 = vadd.f32 0.0, %v5419
      %5421 = vmatmul.bf16.gmra.mxu0 %v5209
      %v5422 = vpop.f32.mrf.mxu0
      %v5423 = vadd.f32 0.0, %v5422
      %v5424 = vpop.f32.mrf.mxu0
      %v5425 = vadd.f32 0.0, %v5424
      %5426 = vmatmul.bf16.gmra.mxu0 %v5212
      %v5427 = vpop.f32.mrf.mxu0
      %v5428 = vadd.f32 0.0, %v5427
      %v5429 = vpop.f32.mrf.mxu0
      %v5430 = vadd.f32 0.0, %v5429
      %5431 = vmatmul.bf16.gmra.mxu0 %v5215
      %v5432 = vpop.f32.mrf.mxu0
      %v5433 = vadd.f32 0.0, %v5432
      %v5434 = vpop.f32.mrf.mxu0
      %v5435 = vadd.f32 0.0, %v5434
      %5436 = vmatmul.bf16.gmra.mxu0 %v5218
      %v5437 = vpop.f32.mrf.mxu0
      %v5438 = vadd.f32 0.0, %v5437
      %v5439 = vpop.f32.mrf.mxu0
      %v5440 = vadd.f32 0.0, %v5439
      %5441 = vmatmul.bf16.gmra.mxu0 %v5221
      %v5442 = vpop.f32.mrf.mxu0
      %v5443 = vadd.f32 0.0, %v5442
      %v5444 = vpop.f32.mrf.mxu0
      %v5445 = vadd.f32 0.0, %v5444
      %5446 = vmatmul.bf16.gmra.mxu0 %v5224
      %v5447 = vpop.f32.mrf.mxu0
      %v5448 = vadd.f32 0.0, %v5447
      %v5449 = vpop.f32.mrf.mxu0
      %v5450 = vadd.f32 0.0, %v5449
      %5451 = vmatmul.bf16.gmra.mxu0 %v5227
      %v5452 = vpop.f32.mrf.mxu0
      %v5453 = vadd.f32 0.0, %v5452
      %v5454 = vpop.f32.mrf.mxu0
      %v5455 = vadd.f32 0.0, %v5454
      %5456 = vmatmul.bf16.gmra.mxu0 %v5230
      %v5457 = vpop.f32.mrf.mxu0
      %v5458 = vadd.f32 0.0, %v5457
      %v5459 = vpop.f32.mrf.mxu0
      %v5460 = vadd.f32 0.0, %v5459
      %5461 = vmatmul.bf16.gmra.mxu0 %v5233
      %v5462 = vpop.f32.mrf.mxu0
      %v5463 = vadd.f32 0.0, %v5462
      %v5464 = vpop.f32.mrf.mxu0
      %v5465 = vadd.f32 0.0, %v5464
      %5466 = vmatmul.bf16.gmra.mxu0 %v5236
      %v5467 = vpop.f32.mrf.mxu0
      %v5468 = vadd.f32 0.0, %v5467
      %v5469 = vpop.f32.mrf.mxu0
      %v5470 = vadd.f32 0.0, %v5469
      %5471 = vmatmul.bf16.gmra.mxu0 %v5239
      %v5472 = vpop.f32.mrf.mxu0
      %v5473 = vadd.f32 0.0, %v5472
      %v5474 = vpop.f32.mrf.mxu0
      %v5475 = vadd.f32 0.0, %v5474
      %5476 = vmatmul.bf16.gmra.mxu0 %v5242
      %v5477 = vpop.f32.mrf.mxu0
      %v5478 = vadd.f32 0.0, %v5477
      %v5479 = vpop.f32.mrf.mxu0
      %v5480 = vadd.f32 0.0, %v5479
      %5481 = vmatmul.bf16.gmra.mxu0 %v5245
      %v5482 = vpop.f32.mrf.mxu0
      %v5483 = vadd.f32 0.0, %v5482
      %v5484 = vpop.f32.mrf.mxu0
      %v5485 = vadd.f32 0.0, %v5484
      %5486 = vmatmul.bf16.gmra.mxu0 %v5248
      %v5487 = vpop.f32.mrf.mxu0
      %v5488 = vadd.f32 0.0, %v5487
      %v5489 = vpop.f32.mrf.mxu0
      %v5490 = vadd.f32 0.0, %v5489
      %5491 = vmatmul.bf16.gmra.mxu0 %v5251
      %v5492 = vpop.f32.mrf.mxu0
      %v5493 = vadd.f32 0.0, %v5492
      %v5494 = vpop.f32.mrf.mxu0
      %v5495 = vadd.f32 0.0, %v5494
      %5496 = vmatmul.bf16.gmra.mxu0 %v5254
      %v5497 = vpop.f32.mrf.mxu0
      %v5498 = vadd.f32 0.0, %v5497
      %v5499 = vpop.f32.mrf.mxu0
      %v5500 = vadd.f32 0.0, %v5499
      %5501 = vmatmul.bf16.gmra.mxu0 %v5257
      %v5502 = vpop.f32.mrf.mxu0
      %v5503 = vadd.f32 0.0, %v5502
      %v5504 = vpop.f32.mrf.mxu0
      %v5505 = vadd.f32 0.0, %v5504
      %5506 = vmatmul.bf16.gmra.mxu0 %v5260
      %v5507 = vpop.f32.mrf.mxu0
      %v5508 = vadd.f32 0.0, %v5507
      %v5509 = vpop.f32.mrf.mxu0
      %v5510 = vadd.f32 0.0, %v5509
      %5511 = vmatmul.bf16.gmra.mxu0 %v5263
      %v5512 = vpop.f32.mrf.mxu0
      %v5513 = vadd.f32 0.0, %v5512
      %v5514 = vpop.f32.mrf.mxu0
      %v5515 = vadd.f32 0.0, %v5514
      %5516 = vmatmul.bf16.gmra.mxu0 %v5266
      %v5517 = vpop.f32.mrf.mxu0
      %v5518 = vadd.f32 0.0, %v5517
      %v5519 = vpop.f32.mrf.mxu0
      %v5520 = vadd.f32 0.0, %v5519
      %5521 = vmatmul.bf16.gmra.mxu0 %v5269
      %v5522 = vpop.f32.mrf.mxu0
      %v5523 = vadd.f32 0.0, %v5522
      %v5524 = vpop.f32.mrf.mxu0
      %v5525 = vadd.f32 0.0, %v5524
      %5526 = vmatmul.bf16.gmra.mxu0 %v5272
      %v5527 = vpop.f32.mrf.mxu0
      %v5528 = vadd.f32 0.0, %v5527
      %v5529 = vpop.f32.mrf.mxu0
      %v5530 = vadd.f32 0.0, %v5529
      %5531 = vmatmul.bf16.gmra.mxu0 %v5275
      %v5532 = vpop.f32.mrf.mxu0
      %v5533 = vadd.f32 0.0, %v5532
      %v5534 = vpop.f32.mrf.mxu0
      %v5535 = vadd.f32 0.0, %v5534
      %5536 = vmatmul.bf16.gmra.mxu0 %v5278
      %v5537 = vpop.f32.mrf.mxu0
      %v5538 = vadd.f32 0.0, %v5537
      %v5539 = vpop.f32.mrf.mxu0
      %v5540 = vadd.f32 0.0, %v5539
      %5541 = vmatmul.bf16.gmra.mxu0 %v5281
      %v5542 = vpop.f32.mrf.mxu0
      %v5543 = vadd.f32 0.0, %v5542
      %v5544 = vpop.f32.mrf.mxu0
      %v5545 = vadd.f32 0.0, %v5544
      %5546 = vmatmul.bf16.gmra.mxu0 %v5284
      %v5547 = vpop.f32.mrf.mxu0
      %v5548 = vadd.f32 0.0, %v5547
      %v5549 = vpop.f32.mrf.mxu0
      %v5550 = vadd.f32 0.0, %v5549
      %5551 = vmatmul.bf16.gmra.mxu0 %v5287
      %v5552 = vpop.f32.mrf.mxu0
      %v5553 = vadd.f32 0.0, %v5552
      %v5554 = vpop.f32.mrf.mxu0
      %v5555 = vadd.f32 0.0, %v5554
      %5556 = vmatmul.bf16.gmra.mxu0 %v5290
      %v5557 = vpop.f32.mrf.mxu0
      %v5558 = vadd.f32 0.0, %v5557
      %v5559 = vpop.f32.mrf.mxu0
      %v5560 = vadd.f32 0.0, %v5559
      %5561 = vmatmul.bf16.gmra.mxu0 %v5293
      %v5562 = vpop.f32.mrf.mxu0
      %v5563 = vadd.f32 0.0, %v5562
      %v5564 = vpop.f32.mrf.mxu0
      %v5565 = vadd.f32 0.0, %v5564
      %5566 = vmatmul.bf16.gmra.mxu0 %v5296
      %v5567 = vpop.f32.mrf.mxu0
      %v5568 = vadd.f32 0.0, %v5567
      %v5569 = vpop.f32.mrf.mxu0
      %v5570 = vadd.f32 0.0, %v5569
      %5571 = vmatmul.bf16.gmra.mxu0 %v5299
      %v5572 = vpop.f32.mrf.mxu0
      %v5573 = vadd.f32 0.0, %v5572
      %v5574 = vpop.f32.mrf.mxu0
      %v5575 = vadd.f32 0.0, %v5574
      %5576 = vmatmul.bf16.gmra.mxu0 %v5302
      %v5577 = vpop.f32.mrf.mxu0
      %v5578 = vadd.f32 0.0, %v5577
      %v5579 = vpop.f32.mrf.mxu0
      %v5580 = vadd.f32 0.0, %v5579
      %5581 = vmatmul.bf16.gmra.mxu0 %v5305
      %v5582 = vpop.f32.mrf.mxu0
      %v5583 = vadd.f32 0.0, %v5582
      %v5584 = vpop.f32.mrf.mxu0
      %v5585 = vadd.f32 0.0, %v5584
      %5586 = vmatmul.bf16.gmra.mxu0 %v5308
      %v5587 = vpop.f32.mrf.mxu0
      %v5588 = vadd.f32 0.0, %v5587
      %v5589 = vpop.f32.mrf.mxu0
      %v5590 = vadd.f32 0.0, %v5589
      %5591 = vmatmul.bf16.gmra.mxu0 %v5311
      %v5592 = vpop.f32.mrf.mxu0
      %v5593 = vadd.f32 0.0, %v5592
      %v5594 = vpop.f32.mrf.mxu0
      %v5595 = vadd.f32 0.0, %v5594
      %5596 = vmatmul.bf16.gmra.mxu0 %v5314
      %v5597 = vpop.f32.mrf.mxu0
      %v5598 = vadd.f32 0.0, %v5597
      %v5599 = vpop.f32.mrf.mxu0
      %v5600 = vadd.f32 0.0, %v5599
      %5601 = vmatmul.bf16.gmra.mxu0 %v5317
      %v5602 = vpop.f32.mrf.mxu0
      %v5603 = vadd.f32 0.0, %v5602
      %v5604 = vpop.f32.mrf.mxu0
      %v5605 = vadd.f32 0.0, %v5604
      %5606 = vmatmul.bf16.gmra.mxu0 %v5320
      %v5607 = vpop.f32.mrf.mxu0
      %v5608 = vadd.f32 0.0, %v5607
      %v5609 = vpop.f32.mrf.mxu0
      %v5610 = vadd.f32 0.0, %v5609
      %5611 = vmatmul.bf16.gmra.mxu0 %v5323
      %v5612 = vpop.f32.mrf.mxu0
      %v5613 = vadd.f32 0.0, %v5612
      %v5614 = vpop.f32.mrf.mxu0
      %v5615 = vadd.f32 0.0, %v5614
      %5616 = vmatmul.bf16.gmra.mxu0 %v5326
      %v5617 = vpop.f32.mrf.mxu0
      %v5618 = vadd.f32 0.0, %v5617
      %v5619 = vpop.f32.mrf.mxu0
      %v5620 = vadd.f32 0.0, %v5619
      %5621 = vmatmul.bf16.gmra.mxu0 %v5329
      %v5622 = vpop.f32.mrf.mxu0
      %v5623 = vadd.f32 0.0, %v5622
      %v5624 = vpop.f32.mrf.mxu0
      %v5625 = vadd.f32 0.0, %v5624
      %5626 = vmatmul.bf16.gmra.mxu0 %v5332
      %v5627 = vpop.f32.mrf.mxu0
      %v5628 = vadd.f32 0.0, %v5627
      %v5629 = vpop.f32.mrf.mxu0
      %v5630 = vadd.f32 0.0, %v5629
      %5631 = vmatmul.bf16.gmra.mxu0 %v5335
      %v5632 = vpop.f32.mrf.mxu0
      %v5633 = vadd.f32 0.0, %v5632
      %v5634 = vpop.f32.mrf.mxu0
      %v5635 = vadd.f32 0.0, %v5634
      %5636 = vmatmul.bf16.gmra.mxu0 %v5338
      %v5637 = vpop.f32.mrf.mxu0
      %v5638 = vadd.f32 0.0, %v5637
      %v5639 = vpop.f32.mrf.mxu0
      %v5640 = vadd.f32 0.0, %v5639
      %5641 = vmatmul.bf16.gmra.mxu0 %v5341
      %v5642 = vpop.f32.mrf.mxu0
      %v5643 = vadd.f32 0.0, %v5642
      %v5644 = vpop.f32.mrf.mxu0
      %v5645 = vadd.f32 0.0, %v5644
      %5646 = vmatmul.bf16.gmra.mxu0 %v5344
      %v5647 = vpop.f32.mrf.mxu0
      %v5648 = vadd.f32 0.0, %v5647
      %v5649 = vpop.f32.mrf.mxu0
      %v5650 = vadd.f32 0.0, %v5649
      %5651 = vmatmul.bf16.gmra.mxu0 %v5347
      %v5652 = vpop.f32.mrf.mxu0
      %v5653 = vadd.f32 0.0, %v5652
      %v5654 = vpop.f32.mrf.mxu0
      %v5655 = vadd.f32 0.0, %v5654
      %5656 = vmatmul.bf16.gmra.mxu0 %v5350
      %v5657 = vpop.f32.mrf.mxu0
      %v5658 = vadd.f32 0.0, %v5657
      %v5659 = vpop.f32.mrf.mxu0
      %v5660 = vadd.f32 0.0, %v5659
      %5661 = vmatmul.bf16.gmra.mxu0 %v5353
      %v5662 = vpop.f32.mrf.mxu0
      %v5663 = vadd.f32 0.0, %v5662
      %v5664 = vpop.f32.mrf.mxu0
      %v5665 = vadd.f32 0.0, %v5664
      %5666 = vmatmul.bf16.gmra.mxu0 %v5356
      %v5667 = vpop.f32.mrf.mxu0
      %v5668 = vadd.f32 0.0, %v5667
      %v5669 = vpop.f32.mrf.mxu0
      %v5670 = vadd.f32 0.0, %v5669
      %5671 = vmatmul.bf16.gmra.mxu0 %v5359
      %v5672 = vpop.f32.mrf.mxu0
      %v5673 = vadd.f32 0.0, %v5672
      %v5674 = vpop.f32.mrf.mxu0
      %v5675 = vadd.f32 0.0, %v5674
      %5676 = vmatmul.bf16.gmra.mxu0 %v5362
      %v5677 = vpop.f32.mrf.mxu0
      %v5678 = vadd.f32 0.0, %v5677
      %v5679 = vpop.f32.mrf.mxu0
      %v5680 = vadd.f32 0.0, %v5679
      %5681 = vmatmul.bf16.gmra.mxu0 %v5365
      %v5682 = vpop.f32.mrf.mxu0
      %v5683 = vadd.f32 0.0, %v5682
      %v5684 = vpop.f32.mrf.mxu0
      %v5685 = vadd.f32 0.0, %v5684
      %5686 = vmatmul.bf16.gmra.mxu0 %v5368
      %v5687 = vpop.f32.mrf.mxu0
      %v5688 = vadd.f32 0.0, %v5687
      %v5689 = vpop.f32.mrf.mxu0
      %v5690 = vadd.f32 0.0, %v5689
      %5691 = vmatmul.bf16.gmra.mxu0 %v5371
      %v5692 = vpop.f32.mrf.mxu0
      %v5693 = vadd.f32 0.0, %v5692
      %v5694 = vpop.f32.mrf.mxu0
      %v5695 = vadd.f32 0.0, %v5694
      %5696 = vmatmul.bf16.gmra.mxu0 %v5374
      %v5697 = vpop.f32.mrf.mxu0
      %v5698 = vadd.f32 0.0, %v5697
      %v5699 = vpop.f32.mrf.mxu0
      %v5700 = vadd.f32 0.0, %v5699
      %5701 = vmatmul.bf16.gmra.mxu0 %v5377
      %v5702 = vpop.f32.mrf.mxu0
      %v5703 = vadd.f32 0.0, %v5702
      %v5704 = vpop.f32.mrf.mxu0
      %v5705 = vadd.f32 0.0, %v5704
      %5706 = vmatmul.bf16.gmra.mxu0 %v5380
      %v5707 = vpop.f32.mrf.mxu0
      %v5708 = vadd.f32 0.0, %v5707
      %v5709 = vpop.f32.mrf.mxu0
      %v5710 = vadd.f32 0.0, %v5709
      %5711 = vmatmul.bf16.gmra.mxu0 %v5383
      %v5712 = vpop.f32.mrf.mxu0
      %v5713 = vadd.f32 0.0, %v5712
      %v5714 = vpop.f32.mrf.mxu0
      %v5715 = vadd.f32 0.0, %v5714
      %5716 = vdwg.mxu0
      %v5717 = vadd.f32 %v4871, %v5398
      %v5718 = vadd.f32 %v4872, %v5400
      %v5719 = vadd.f32 %v4873, %v5403
      %v5720 = vadd.f32 %v4874, %v5405
      %v5721 = vadd.f32 %v4875, %v5408
      %v5722 = vadd.f32 %v4876, %v5410
      %v5723 = vadd.f32 %v4877, %v5413
      %v5724 = vadd.f32 %v4878, %v5415
      %v5725 = vadd.f32 %v4879, %v5418
      %v5726 = vadd.f32 %v4880, %v5420
      %v5727 = vadd.f32 %v4881, %v5423
      %v5728 = vadd.f32 %v4882, %v5425
      %v5729 = vadd.f32 %v4883, %v5428
      %v5730 = vadd.f32 %v4884, %v5430
      %v5731 = vadd.f32 %v4885, %v5433
      %v5732 = vadd.f32 %v4886, %v5435
      %v5733 = vadd.f32 %v4887, %v5438
      %v5734 = vadd.f32 %v4888, %v5440
      %v5735 = vadd.f32 %v4889, %v5443
      %v5736 = vadd.f32 %v4890, %v5445
      %v5737 = vadd.f32 %v4891, %v5448
      %v5738 = vadd.f32 %v4892, %v5450
      %v5739 = vadd.f32 %v4893, %v5453
      %v5740 = vadd.f32 %v4894, %v5455
      %v5741 = vadd.f32 %v4895, %v5458
      %v5742 = vadd.f32 %v4896, %v5460
      %v5743 = vadd.f32 %v4897, %v5463
      %v5744 = vadd.f32 %v4898, %v5465
      %v5745 = vadd.f32 %v4899, %v5468
      %v5746 = vadd.f32 %v4900, %v5470
      %v5747 = vadd.f32 %v4901, %v5473
      %v5748 = vadd.f32 %v4902, %v5475
      %v5749 = vadd.f32 %v4903, %v5478
      %v5750 = vadd.f32 %v4904, %v5480
      %v5751 = vadd.f32 %v4905, %v5483
      %v5752 = vadd.f32 %v4906, %v5485
      %v5753 = vadd.f32 %v4907, %v5488
      %v5754 = vadd.f32 %v4908, %v5490
      %v5755 = vadd.f32 %v4909, %v5493
      %v5756 = vadd.f32 %v4910, %v5495
      %v5757 = vadd.f32 %v4911, %v5498
      %v5758 = vadd.f32 %v4912, %v5500
      %v5759 = vadd.f32 %v4913, %v5503
      %v5760 = vadd.f32 %v4914, %v5505
      %v5761 = vadd.f32 %v4915, %v5508
      %v5762 = vadd.f32 %v4916, %v5510
      %v5763 = vadd.f32 %v4917, %v5513
      %v5764 = vadd.f32 %v4918, %v5515
      %v5765 = vadd.f32 %v4919, %v5518
      %v5766 = vadd.f32 %v4920, %v5520
      %v5767 = vadd.f32 %v4921, %v5523
      %v5768 = vadd.f32 %v4922, %v5525
      %v5769 = vadd.f32 %v4923, %v5528
      %v5770 = vadd.f32 %v4924, %v5530
      %v5771 = vadd.f32 %v4925, %v5533
      %v5772 = vadd.f32 %v4926, %v5535
      %v5773 = vadd.f32 %v4927, %v5538
      %v5774 = vadd.f32 %v4928, %v5540
      %v5775 = vadd.f32 %v4929, %v5543
      %v5776 = vadd.f32 %v4930, %v5545
      %v5777 = vadd.f32 %v4931, %v5548
      %v5778 = vadd.f32 %v4932, %v5550
      %v5779 = vadd.f32 %v4933, %v5553
      %v5780 = vadd.f32 %v4934, %v5555
      %v5781 = vadd.f32 %v4935, %v5558
      %v5782 = vadd.f32 %v4936, %v5560
      %v5783 = vadd.f32 %v4937, %v5563
      %v5784 = vadd.f32 %v4938, %v5565
      %v5785 = vadd.f32 %v4939, %v5568
      %v5786 = vadd.f32 %v4940, %v5570
      %v5787 = vadd.f32 %v4941, %v5573
      %v5788 = vadd.f32 %v4942, %v5575
      %v5789 = vadd.f32 %v4943, %v5578
      %v5790 = vadd.f32 %v4944, %v5580
      %v5791 = vadd.f32 %v4945, %v5583
      %v5792 = vadd.f32 %v4946, %v5585
      %v5793 = vadd.f32 %v4947, %v5588
      %v5794 = vadd.f32 %v4948, %v5590
      %v5795 = vadd.f32 %v4949, %v5593
      %v5796 = vadd.f32 %v4950, %v5595
      %v5797 = vadd.f32 %v4951, %v5598
      %v5798 = vadd.f32 %v4952, %v5600
      %v5799 = vadd.f32 %v4953, %v5603
      %v5800 = vadd.f32 %v4954, %v5605
      %v5801 = vadd.f32 %v4955, %v5608
      %v5802 = vadd.f32 %v4956, %v5610
      %v5803 = vadd.f32 %v4957, %v5613
      %v5804 = vadd.f32 %v4958, %v5615
      %v5805 = vadd.f32 %v4959, %v5618
      %v5806 = vadd.f32 %v4960, %v5620
      %v5807 = vadd.f32 %v4961, %v5623
      %v5808 = vadd.f32 %v4962, %v5625
      %v5809 = vadd.f32 %v4963, %v5628
      %v5810 = vadd.f32 %v4964, %v5630
      %v5811 = vadd.f32 %v4965, %v5633
      %v5812 = vadd.f32 %v4966, %v5635
      %v5813 = vadd.f32 %v4967, %v5638
      %v5814 = vadd.f32 %v4968, %v5640
      %v5815 = vadd.f32 %v4969, %v5643
      %v5816 = vadd.f32 %v4970, %v5645
      %v5817 = vadd.f32 %v4971, %v5648
      %v5818 = vadd.f32 %v4972, %v5650
      %v5819 = vadd.f32 %v4973, %v5653
      %v5820 = vadd.f32 %v4974, %v5655
      %v5821 = vadd.f32 %v4975, %v5658
      %v5822 = vadd.f32 %v4976, %v5660
      %v5823 = vadd.f32 %v4977, %v5663
      %v5824 = vadd.f32 %v4978, %v5665
      %v5825 = vadd.f32 %v4979, %v5668
      %v5826 = vadd.f32 %v4980, %v5670
      %v5827 = vadd.f32 %v4981, %v5673
      %v5828 = vadd.f32 %v4982, %v5675
      %v5829 = vadd.f32 %v4983, %v5678
      %v5830 = vadd.f32 %v4984, %v5680
      %v5831 = vadd.f32 %v4985, %v5683
      %v5832 = vadd.f32 %v4986, %v5685
      %v5833 = vadd.f32 %v4987, %v5688
      %v5834 = vadd.f32 %v4988, %v5690
      %v5835 = vadd.f32 %v4989, %v5693
      %v5836 = vadd.f32 %v4990, %v5695
      %v5837 = vadd.f32 %v4991, %v5698
      %v5838 = vadd.f32 %v4992, %v5700
      %v5839 = vadd.f32 %v4993, %v5703
      %v5840 = vadd.f32 %v4994, %v5705
      %v5841 = vadd.f32 %v4995, %v5708
      %v5842 = vadd.f32 %v4996, %v5710
      %v5843 = vadd.f32 %v4997, %v5713
      %v5844 = vadd.f32 %v4998, %v5715
      %s5845 = scalar_lea.vmem [#allocation2], 96
      %v5846 = vld [vmem:[%s5845 + $0x7] sm:$0xff]
      %v5847 = vld [vmem:[%s5845 + $0xf] sm:$0xff]
      %v5848 = vld [vmem:[%s5845 + $0x17] sm:$0xff]
      %v5849 = vld [vmem:[%s5845 + $0x1f] sm:$0xff]
      %v5850 = vld [vmem:[%s5845 + $0x37] sm:$0xff]
      %v5851 = vld [vmem:[%s5845 + $0x3f] sm:$0xff]
      %v5852 = vld [vmem:[%s5845 + $0x47] sm:$0xff]
      %v5853 = vld [vmem:[%s5845 + $0x4f] sm:$0xff]
      %v5854 = vld [vmem:[%s5845 + $0x67] sm:$0xff]
      %v5855 = vld [vmem:[%s5845 + $0x6f] sm:$0xff]
      %v5856 = vld [vmem:[%s5845 + $0x77] sm:$0xff]
      %v5857 = vld [vmem:[%s5845 + $0x7f] sm:$0xff]
      %v5858 = vld [vmem:[%s5845 + $0x97] sm:$0xff]
      %v5859 = vld [vmem:[%s5845 + $0x9f] sm:$0xff]
      %v5860 = vld [vmem:[%s5845 + $0xa7] sm:$0xff]
      %v5861 = vld [vmem:[%s5845 + $0xaf] sm:$0xff]
      %v5862 = vld [vmem:[%s5845 + $0xc7] sm:$0xff]
      %v5863 = vld [vmem:[%s5845 + $0xcf] sm:$0xff]
      %v5864 = vld [vmem:[%s5845 + $0xd7] sm:$0xff]
      %v5865 = vld [vmem:[%s5845 + $0xdf] sm:$0xff]
      %v5866 = vld [vmem:[%s5845 + $0xf7] sm:$0xff]
      %v5867 = vld [vmem:[%s5845 + $0xff] sm:$0xff]
      %v5868 = vld [vmem:[%s5845 + $0x107] sm:$0xff]
      %v5869 = vld [vmem:[%s5845 + $0x10f] sm:$0xff]
      %v5870 = vld [vmem:[%s5845 + $0x127] sm:$0xff]
      %v5871 = vld [vmem:[%s5845 + $0x12f] sm:$0xff]
      %v5872 = vld [vmem:[%s5845 + $0x137] sm:$0xff]
      %v5873 = vld [vmem:[%s5845 + $0x13f] sm:$0xff]
      %v5874 = vld [vmem:[%s5845 + $0x157] sm:$0xff]
      %v5875 = vld [vmem:[%s5845 + $0x15f] sm:$0xff]
      %v5876 = vld [vmem:[%s5845 + $0x167] sm:$0xff]
      %v5877 = vld [vmem:[%s5845 + $0x16f] sm:$0xff]
      %v5878 = vld [vmem:[%s5845 + $0x187] sm:$0xff]
      %v5879 = vld [vmem:[%s5845 + $0x18f] sm:$0xff]
      %v5880 = vld [vmem:[%s5845 + $0x197] sm:$0xff]
      %v5881 = vld [vmem:[%s5845 + $0x19f] sm:$0xff]
      %v5882 = vld [vmem:[%s5845 + $0x1b7] sm:$0xff]
      %v5883 = vld [vmem:[%s5845 + $0x1bf] sm:$0xff]
      %v5884 = vld [vmem:[%s5845 + $0x1c7] sm:$0xff]
      %v5885 = vld [vmem:[%s5845 + $0x1cf] sm:$0xff]
      %v5886 = vld [vmem:[%s5845 + $0x1e7] sm:$0xff]
      %v5887 = vld [vmem:[%s5845 + $0x1ef] sm:$0xff]
      %v5888 = vld [vmem:[%s5845 + $0x1f7] sm:$0xff]
      %v5889 = vld [vmem:[%s5845 + $0x1ff] sm:$0xff]
      %v5890 = vld [vmem:[%s5845 + $0x217] sm:$0xff]
      %v5891 = vld [vmem:[%s5845 + $0x21f] sm:$0xff]
      %v5892 = vld [vmem:[%s5845 + $0x227] sm:$0xff]
      %v5893 = vld [vmem:[%s5845 + $0x22f] sm:$0xff]
      %v5894 = vld [vmem:[%s5845 + $0x247] sm:$0xff]
      %v5895 = vld [vmem:[%s5845 + $0x24f] sm:$0xff]
      %v5896 = vld [vmem:[%s5845 + $0x257] sm:$0xff]
      %v5897 = vld [vmem:[%s5845 + $0x25f] sm:$0xff]
      %v5898 = vld [vmem:[%s5845 + $0x277] sm:$0xff]
      %v5899 = vld [vmem:[%s5845 + $0x27f] sm:$0xff]
      %v5900 = vld [vmem:[%s5845 + $0x287] sm:$0xff]
      %v5901 = vld [vmem:[%s5845 + $0x28f] sm:$0xff]
      %v5902 = vld [vmem:[%s5845 + $0x2a7] sm:$0xff]
      %v5903 = vld [vmem:[%s5845 + $0x2af] sm:$0xff]
      %v5904 = vld [vmem:[%s5845 + $0x2b7] sm:$0xff]
      %v5905 = vld [vmem:[%s5845 + $0x2bf] sm:$0xff]
      %v5906 = vld [vmem:[%s5845 + $0x2d7] sm:$0xff]
      %v5907 = vld [vmem:[%s5845 + $0x2df] sm:$0xff]
      %v5908 = vld [vmem:[%s5845 + $0x2e7] sm:$0xff]
      %v5909 = vld [vmem:[%s5845 + $0x2ef] sm:$0xff]
      %v5910 = vld [vmem:[%s5845 + $0x307] sm:$0xff]
      %v5911 = vld [vmem:[%s5845 + $0x30f] sm:$0xff]
      %v5912 = vld [vmem:[%s5845 + $0x317] sm:$0xff]
      %v5913 = vld [vmem:[%s5845 + $0x31f] sm:$0xff]
      %v5914 = vld [vmem:[%s5845 + $0x337] sm:$0xff]
      %v5915 = vld [vmem:[%s5845 + $0x33f] sm:$0xff]
      %v5916 = vld [vmem:[%s5845 + $0x347] sm:$0xff]
      %v5917 = vld [vmem:[%s5845 + $0x34f] sm:$0xff]
      %v5918 = vld [vmem:[%s5845 + $0x367] sm:$0xff]
      %v5919 = vld [vmem:[%s5845 + $0x36f] sm:$0xff]
      %v5920 = vld [vmem:[%s5845 + $0x377] sm:$0xff]
      %v5921 = vld [vmem:[%s5845 + $0x37f] sm:$0xff]
      %v5922 = vld [vmem:[%s5845 + $0x397] sm:$0xff]
      %v5923 = vld [vmem:[%s5845 + $0x39f] sm:$0xff]
      %v5924 = vld [vmem:[%s5845 + $0x3a7] sm:$0xff]
      %v5925 = vld [vmem:[%s5845 + $0x3af] sm:$0xff]
      %v5926 = vld [vmem:[%s5845 + $0x3c7] sm:$0xff]
      %v5927 = vld [vmem:[%s5845 + $0x3cf] sm:$0xff]
      %v5928 = vld [vmem:[%s5845 + $0x3d7] sm:$0xff]
      %v5929 = vld [vmem:[%s5845 + $0x3df] sm:$0xff]
      %v5930 = vld [vmem:[%s5845 + $0x3f7] sm:$0xff]
      %v5931 = vld [vmem:[%s5845 + $0x3ff] sm:$0xff]
      %v5932 = vld [vmem:[%s5845 + $0x407] sm:$0xff]
      %v5933 = vld [vmem:[%s5845 + $0x40f] sm:$0xff]
      %v5934 = vld [vmem:[%s5845 + $0x427] sm:$0xff]
      %v5935 = vld [vmem:[%s5845 + $0x42f] sm:$0xff]
      %v5936 = vld [vmem:[%s5845 + $0x437] sm:$0xff]
      %v5937 = vld [vmem:[%s5845 + $0x43f] sm:$0xff]
      %v5938 = vld [vmem:[%s5845 + $0x457] sm:$0xff]
      %v5939 = vld [vmem:[%s5845 + $0x45f] sm:$0xff]
      %v5940 = vld [vmem:[%s5845 + $0x467] sm:$0xff]
      %v5941 = vld [vmem:[%s5845 + $0x46f] sm:$0xff]
      %v5942 = vld [vmem:[%s5845 + $0x487] sm:$0xff]
      %v5943 = vld [vmem:[%s5845 + $0x48f] sm:$0xff]
      %v5944 = vld [vmem:[%s5845 + $0x497] sm:$0xff]
      %v5945 = vld [vmem:[%s5845 + $0x49f] sm:$0xff]
      %v5946 = vld [vmem:[%s5845 + $0x4b7] sm:$0xff]
      %v5947 = vld [vmem:[%s5845 + $0x4bf] sm:$0xff]
      %v5948 = vld [vmem:[%s5845 + $0x4c7] sm:$0xff]
      %v5949 = vld [vmem:[%s5845 + $0x4cf] sm:$0xff]
      %v5950 = vld [vmem:[%s5845 + $0x4e7] sm:$0xff]
      %v5951 = vld [vmem:[%s5845 + $0x4ef] sm:$0xff]
      %v5952 = vld [vmem:[%s5845 + $0x4f7] sm:$0xff]
      %v5953 = vld [vmem:[%s5845 + $0x4ff] sm:$0xff]
      %v5954 = vld [vmem:[%s5845 + $0x517] sm:$0xff]
      %v5955 = vld [vmem:[%s5845 + $0x51f] sm:$0xff]
      %v5956 = vld [vmem:[%s5845 + $0x527] sm:$0xff]
      %v5957 = vld [vmem:[%s5845 + $0x52f] sm:$0xff]
      %v5958 = vld [vmem:[%s5845 + $0x547] sm:$0xff]
      %v5959 = vld [vmem:[%s5845 + $0x54f] sm:$0xff]
      %v5960 = vld [vmem:[%s5845 + $0x557] sm:$0xff]
      %v5961 = vld [vmem:[%s5845 + $0x55f] sm:$0xff]
      %v5962 = vld [vmem:[%s5845 + $0x577] sm:$0xff]
      %v5963 = vld [vmem:[%s5845 + $0x57f] sm:$0xff]
      %v5964 = vld [vmem:[%s5845 + $0x587] sm:$0xff]
      %v5965 = vld [vmem:[%s5845 + $0x58f] sm:$0xff]
      %v5966 = vld [vmem:[%s5845 + $0x5a7] sm:$0xff]
      %v5967 = vld [vmem:[%s5845 + $0x5af] sm:$0xff]
      %v5968 = vld [vmem:[%s5845 + $0x5b7] sm:$0xff]
      %v5969 = vld [vmem:[%s5845 + $0x5bf] sm:$0xff]
      %v5970 = vld [vmem:[%s5845 + $0x5d7] sm:$0xff]
      %v5971 = vld [vmem:[%s5845 + $0x5df] sm:$0xff]
      %v5972 = vld [vmem:[%s5845 + $0x5e7] sm:$0xff]
      %v5973 = vld [vmem:[%s5845 + $0x5ef] sm:$0xff]
      %v5974 = vpack.c.bf16 %v5847, %v5846
      %v5975 = vpack.c.bf16 %v5849, %v5848
      %v5976 = vpack.c.bf16 %v5851, %v5850
      %v5977 = vpack.c.bf16 %v5853, %v5852
      %v5978 = vpack.c.bf16 %v5855, %v5854
      %v5979 = vpack.c.bf16 %v5857, %v5856
      %v5980 = vpack.c.bf16 %v5859, %v5858
      %v5981 = vpack.c.bf16 %v5861, %v5860
      %v5982 = vpack.c.bf16 %v5863, %v5862
      %v5983 = vpack.c.bf16 %v5865, %v5864
      %v5984 = vpack.c.bf16 %v5867, %v5866
      %v5985 = vpack.c.bf16 %v5869, %v5868
      %v5986 = vpack.c.bf16 %v5871, %v5870
      %v5987 = vpack.c.bf16 %v5873, %v5872
      %v5988 = vpack.c.bf16 %v5875, %v5874
      %v5989 = vpack.c.bf16 %v5877, %v5876
      %v5990 = vpack.c.bf16 %v5879, %v5878
      %v5991 = vpack.c.bf16 %v5881, %v5880
      %v5992 = vpack.c.bf16 %v5883, %v5882
      %v5993 = vpack.c.bf16 %v5885, %v5884
      %v5994 = vpack.c.bf16 %v5887, %v5886
      %v5995 = vpack.c.bf16 %v5889, %v5888
      %v5996 = vpack.c.bf16 %v5891, %v5890
      %v5997 = vpack.c.bf16 %v5893, %v5892
      %v5998 = vpack.c.bf16 %v5895, %v5894
      %v5999 = vpack.c.bf16 %v5897, %v5896
      %v6000 = vpack.c.bf16 %v5899, %v5898
      %v6001 = vpack.c.bf16 %v5901, %v5900
      %v6002 = vpack.c.bf16 %v5903, %v5902
      %v6003 = vpack.c.bf16 %v5905, %v5904
      %v6004 = vpack.c.bf16 %v5907, %v5906
      %v6005 = vpack.c.bf16 %v5909, %v5908
      %v6006 = vpack.c.bf16 %v5911, %v5910
      %v6007 = vpack.c.bf16 %v5913, %v5912
      %v6008 = vpack.c.bf16 %v5915, %v5914
      %v6009 = vpack.c.bf16 %v5917, %v5916
      %v6010 = vpack.c.bf16 %v5919, %v5918
      %v6011 = vpack.c.bf16 %v5921, %v5920
      %v6012 = vpack.c.bf16 %v5923, %v5922
      %v6013 = vpack.c.bf16 %v5925, %v5924
      %v6014 = vpack.c.bf16 %v5927, %v5926
      %v6015 = vpack.c.bf16 %v5929, %v5928
      %v6016 = vpack.c.bf16 %v5931, %v5930
      %v6017 = vpack.c.bf16 %v5933, %v5932
      %v6018 = vpack.c.bf16 %v5935, %v5934
      %v6019 = vpack.c.bf16 %v5937, %v5936
      %v6020 = vpack.c.bf16 %v5939, %v5938
      %v6021 = vpack.c.bf16 %v5941, %v5940
      %v6022 = vpack.c.bf16 %v5943, %v5942
      %v6023 = vpack.c.bf16 %v5945, %v5944
      %v6024 = vpack.c.bf16 %v5947, %v5946
      %v6025 = vpack.c.bf16 %v5949, %v5948
      %v6026 = vpack.c.bf16 %v5951, %v5950
      %v6027 = vpack.c.bf16 %v5953, %v5952
      %v6028 = vpack.c.bf16 %v5955, %v5954
      %v6029 = vpack.c.bf16 %v5957, %v5956
      %v6030 = vpack.c.bf16 %v5959, %v5958
      %v6031 = vpack.c.bf16 %v5961, %v5960
      %v6032 = vpack.c.bf16 %v5963, %v5962
      %v6033 = vpack.c.bf16 %v5965, %v5964
      %v6034 = vpack.c.bf16 %v5967, %v5966
      %v6035 = vpack.c.bf16 %v5969, %v5968
      %v6036 = vpack.c.bf16 %v5971, %v5970
      %v6037 = vpack.c.bf16 %v5973, %v5972
      %s6038 = scalar_lea.vmem %s1, 12
      %v6039 = vld [vmem:[%s6038] sm:$0x3]
      %v6041 = vsel %vm172, %v5974, 0
      %v6044 = vsel %vm172, %v5975, 0
      %v6047 = vsel %vm172, %v5976, 0
      %v6050 = vsel %vm172, %v5977, 0
      %v6053 = vsel %vm172, %v5978, 0
      %v6056 = vsel %vm172, %v5979, 0
      %v6059 = vsel %vm172, %v5980, 0
      %v6062 = vsel %vm172, %v5981, 0
      %v6065 = vsel %vm172, %v5982, 0
      %v6068 = vsel %vm172, %v5983, 0
      %v6071 = vsel %vm172, %v5984, 0
      %v6074 = vsel %vm172, %v5985, 0
      %v6077 = vsel %vm172, %v5986, 0
      %v6080 = vsel %vm172, %v5987, 0
      %v6083 = vsel %vm172, %v5988, 0
      %v6086 = vsel %vm172, %v5989, 0
      %v6089 = vsel %vm172, %v5990, 0
      %v6092 = vsel %vm172, %v5991, 0
      %v6095 = vsel %vm172, %v5992, 0
      %v6098 = vsel %vm172, %v5993, 0
      %v6101 = vsel %vm172, %v5994, 0
      %v6104 = vsel %vm172, %v5995, 0
      %v6107 = vsel %vm172, %v5996, 0
      %v6110 = vsel %vm172, %v5997, 0
      %v6113 = vsel %vm172, %v5998, 0
      %v6116 = vsel %vm172, %v5999, 0
      %v6119 = vsel %vm172, %v6000, 0
      %v6122 = vsel %vm172, %v6001, 0
      %v6125 = vsel %vm172, %v6002, 0
      %v6128 = vsel %vm172, %v6003, 0
      %v6131 = vsel %vm172, %v6004, 0
      %v6134 = vsel %vm172, %v6005, 0
      %v6137 = vsel %vm172, %v6006, 0
      %v6140 = vsel %vm172, %v6007, 0
      %v6143 = vsel %vm172, %v6008, 0
      %v6146 = vsel %vm172, %v6009, 0
      %v6149 = vsel %vm172, %v6010, 0
      %v6152 = vsel %vm172, %v6011, 0
      %v6155 = vsel %vm172, %v6012, 0
      %v6158 = vsel %vm172, %v6013, 0
      %v6161 = vsel %vm172, %v6014, 0
      %v6164 = vsel %vm172, %v6015, 0
      %v6167 = vsel %vm172, %v6016, 0
      %v6170 = vsel %vm172, %v6017, 0
      %v6173 = vsel %vm172, %v6018, 0
      %v6176 = vsel %vm172, %v6019, 0
      %v6179 = vsel %vm172, %v6020, 0
      %v6182 = vsel %vm172, %v6021, 0
      %v6185 = vsel %vm172, %v6022, 0
      %v6188 = vsel %vm172, %v6023, 0
      %v6191 = vsel %vm172, %v6024, 0
      %v6194 = vsel %vm172, %v6025, 0
      %v6197 = vsel %vm172, %v6026, 0
      %v6200 = vsel %vm172, %v6027, 0
      %v6203 = vsel %vm172, %v6028, 0
      %v6206 = vsel %vm172, %v6029, 0
      %v6209 = vsel %vm172, %v6030, 0
      %v6212 = vsel %vm172, %v6031, 0
      %v6215 = vsel %vm172, %v6032, 0
      %v6218 = vsel %vm172, %v6033, 0
      %v6221 = vsel %vm172, %v6034, 0
      %v6224 = vsel %vm172, %v6035, 0
      %v6227 = vsel %vm172, %v6036, 0
      %v6230 = vsel %vm172, %v6037, 0
      %v6233 = vand.u32 %v6039, %v1154
      %6235 = vmatpush.bf16.msra.mxu0 0
      %6236 = vmatpush.bf16.msra.mxu0 0
      %6237 = vmatpush.bf16.msra.mxu0 0
      %6238 = vmatpush.bf16.msra.mxu0 0
      %6239 = vmatpush.bf16.msra.mxu0 0
      %6240 = vmatpush.bf16.msra.mxu0 0
      %6241 = vmatpush.bf16.msra.mxu0 0
      %6242 = vmatpush.bf16.msra.mxu0 %v6233
      %6243 = vmatmul.bf16.gmra.mxu0 %v6041
      %v6244 = vpop.f32.mrf.mxu0
      %v6245 = vadd.f32 0.0, %v6244
      %v6246 = vpop.f32.mrf.mxu0
      %v6247 = vadd.f32 0.0, %v6246
      %6248 = vmatmul.bf16.gmra.mxu0 %v6044
      %v6249 = vpop.f32.mrf.mxu0
      %v6250 = vadd.f32 0.0, %v6249
      %v6251 = vpop.f32.mrf.mxu0
      %v6252 = vadd.f32 0.0, %v6251
      %6253 = vmatmul.bf16.gmra.mxu0 %v6047
      %v6254 = vpop.f32.mrf.mxu0
      %v6255 = vadd.f32 0.0, %v6254
      %v6256 = vpop.f32.mrf.mxu0
      %v6257 = vadd.f32 0.0, %v6256
      %6258 = vmatmul.bf16.gmra.mxu0 %v6050
      %v6259 = vpop.f32.mrf.mxu0
      %v6260 = vadd.f32 0.0, %v6259
      %v6261 = vpop.f32.mrf.mxu0
      %v6262 = vadd.f32 0.0, %v6261
      %6263 = vmatmul.bf16.gmra.mxu0 %v6053
      %v6264 = vpop.f32.mrf.mxu0
      %v6265 = vadd.f32 0.0, %v6264
      %v6266 = vpop.f32.mrf.mxu0
      %v6267 = vadd.f32 0.0, %v6266
      %6268 = vmatmul.bf16.gmra.mxu0 %v6056
      %v6269 = vpop.f32.mrf.mxu0
      %v6270 = vadd.f32 0.0, %v6269
      %v6271 = vpop.f32.mrf.mxu0
      %v6272 = vadd.f32 0.0, %v6271
      %6273 = vmatmul.bf16.gmra.mxu0 %v6059
      %v6274 = vpop.f32.mrf.mxu0
      %v6275 = vadd.f32 0.0, %v6274
      %v6276 = vpop.f32.mrf.mxu0
      %v6277 = vadd.f32 0.0, %v6276
      %6278 = vmatmul.bf16.gmra.mxu0 %v6062
      %v6279 = vpop.f32.mrf.mxu0
      %v6280 = vadd.f32 0.0, %v6279
      %v6281 = vpop.f32.mrf.mxu0
      %v6282 = vadd.f32 0.0, %v6281
      %6283 = vmatmul.bf16.gmra.mxu0 %v6065
      %v6284 = vpop.f32.mrf.mxu0
      %v6285 = vadd.f32 0.0, %v6284
      %v6286 = vpop.f32.mrf.mxu0
      %v6287 = vadd.f32 0.0, %v6286
      %6288 = vmatmul.bf16.gmra.mxu0 %v6068
      %v6289 = vpop.f32.mrf.mxu0
      %v6290 = vadd.f32 0.0, %v6289
      %v6291 = vpop.f32.mrf.mxu0
      %v6292 = vadd.f32 0.0, %v6291
      %6293 = vmatmul.bf16.gmra.mxu0 %v6071
      %v6294 = vpop.f32.mrf.mxu0
      %v6295 = vadd.f32 0.0, %v6294
      %v6296 = vpop.f32.mrf.mxu0
      %v6297 = vadd.f32 0.0, %v6296
      %6298 = vmatmul.bf16.gmra.mxu0 %v6074
      %v6299 = vpop.f32.mrf.mxu0
      %v6300 = vadd.f32 0.0, %v6299
      %v6301 = vpop.f32.mrf.mxu0
      %v6302 = vadd.f32 0.0, %v6301
      %6303 = vmatmul.bf16.gmra.mxu0 %v6077
      %v6304 = vpop.f32.mrf.mxu0
      %v6305 = vadd.f32 0.0, %v6304
      %v6306 = vpop.f32.mrf.mxu0
      %v6307 = vadd.f32 0.0, %v6306
      %6308 = vmatmul.bf16.gmra.mxu0 %v6080
      %v6309 = vpop.f32.mrf.mxu0
      %v6310 = vadd.f32 0.0, %v6309
      %v6311 = vpop.f32.mrf.mxu0
      %v6312 = vadd.f32 0.0, %v6311
      %6313 = vmatmul.bf16.gmra.mxu0 %v6083
      %v6314 = vpop.f32.mrf.mxu0
      %v6315 = vadd.f32 0.0, %v6314
      %v6316 = vpop.f32.mrf.mxu0
      %v6317 = vadd.f32 0.0, %v6316
      %6318 = vmatmul.bf16.gmra.mxu0 %v6086
      %v6319 = vpop.f32.mrf.mxu0
      %v6320 = vadd.f32 0.0, %v6319
      %v6321 = vpop.f32.mrf.mxu0
      %v6322 = vadd.f32 0.0, %v6321
      %6323 = vmatmul.bf16.gmra.mxu0 %v6089
      %v6324 = vpop.f32.mrf.mxu0
      %v6325 = vadd.f32 0.0, %v6324
      %v6326 = vpop.f32.mrf.mxu0
      %v6327 = vadd.f32 0.0, %v6326
      %6328 = vmatmul.bf16.gmra.mxu0 %v6092
      %v6329 = vpop.f32.mrf.mxu0
      %v6330 = vadd.f32 0.0, %v6329
      %v6331 = vpop.f32.mrf.mxu0
      %v6332 = vadd.f32 0.0, %v6331
      %6333 = vmatmul.bf16.gmra.mxu0 %v6095
      %v6334 = vpop.f32.mrf.mxu0
      %v6335 = vadd.f32 0.0, %v6334
      %v6336 = vpop.f32.mrf.mxu0
      %v6337 = vadd.f32 0.0, %v6336
      %6338 = vmatmul.bf16.gmra.mxu0 %v6098
      %v6339 = vpop.f32.mrf.mxu0
      %v6340 = vadd.f32 0.0, %v6339
      %v6341 = vpop.f32.mrf.mxu0
      %v6342 = vadd.f32 0.0, %v6341
      %6343 = vmatmul.bf16.gmra.mxu0 %v6101
      %v6344 = vpop.f32.mrf.mxu0
      %v6345 = vadd.f32 0.0, %v6344
      %v6346 = vpop.f32.mrf.mxu0
      %v6347 = vadd.f32 0.0, %v6346
      %6348 = vmatmul.bf16.gmra.mxu0 %v6104
      %v6349 = vpop.f32.mrf.mxu0
      %v6350 = vadd.f32 0.0, %v6349
      %v6351 = vpop.f32.mrf.mxu0
      %v6352 = vadd.f32 0.0, %v6351
      %6353 = vmatmul.bf16.gmra.mxu0 %v6107
      %v6354 = vpop.f32.mrf.mxu0
      %v6355 = vadd.f32 0.0, %v6354
      %v6356 = vpop.f32.mrf.mxu0
      %v6357 = vadd.f32 0.0, %v6356
      %6358 = vmatmul.bf16.gmra.mxu0 %v6110
      %v6359 = vpop.f32.mrf.mxu0
      %v6360 = vadd.f32 0.0, %v6359
      %v6361 = vpop.f32.mrf.mxu0
      %v6362 = vadd.f32 0.0, %v6361
      %6363 = vmatmul.bf16.gmra.mxu0 %v6113
      %v6364 = vpop.f32.mrf.mxu0
      %v6365 = vadd.f32 0.0, %v6364
      %v6366 = vpop.f32.mrf.mxu0
      %v6367 = vadd.f32 0.0, %v6366
      %6368 = vmatmul.bf16.gmra.mxu0 %v6116
      %v6369 = vpop.f32.mrf.mxu0
      %v6370 = vadd.f32 0.0, %v6369
      %v6371 = vpop.f32.mrf.mxu0
      %v6372 = vadd.f32 0.0, %v6371
      %6373 = vmatmul.bf16.gmra.mxu0 %v6119
      %v6374 = vpop.f32.mrf.mxu0
      %v6375 = vadd.f32 0.0, %v6374
      %v6376 = vpop.f32.mrf.mxu0
      %v6377 = vadd.f32 0.0, %v6376
      %6378 = vmatmul.bf16.gmra.mxu0 %v6122
      %v6379 = vpop.f32.mrf.mxu0
      %v6380 = vadd.f32 0.0, %v6379
      %v6381 = vpop.f32.mrf.mxu0
      %v6382 = vadd.f32 0.0, %v6381
      %6383 = vmatmul.bf16.gmra.mxu0 %v6125
      %v6384 = vpop.f32.mrf.mxu0
      %v6385 = vadd.f32 0.0, %v6384
      %v6386 = vpop.f32.mrf.mxu0
      %v6387 = vadd.f32 0.0, %v6386
      %6388 = vmatmul.bf16.gmra.mxu0 %v6128
      %v6389 = vpop.f32.mrf.mxu0
      %v6390 = vadd.f32 0.0, %v6389
      %v6391 = vpop.f32.mrf.mxu0
      %v6392 = vadd.f32 0.0, %v6391
      %6393 = vmatmul.bf16.gmra.mxu0 %v6131
      %v6394 = vpop.f32.mrf.mxu0
      %v6395 = vadd.f32 0.0, %v6394
      %v6396 = vpop.f32.mrf.mxu0
      %v6397 = vadd.f32 0.0, %v6396
      %6398 = vmatmul.bf16.gmra.mxu0 %v6134
      %v6399 = vpop.f32.mrf.mxu0
      %v6400 = vadd.f32 0.0, %v6399
      %v6401 = vpop.f32.mrf.mxu0
      %v6402 = vadd.f32 0.0, %v6401
      %6403 = vmatmul.bf16.gmra.mxu0 %v6137
      %v6404 = vpop.f32.mrf.mxu0
      %v6405 = vadd.f32 0.0, %v6404
      %v6406 = vpop.f32.mrf.mxu0
      %v6407 = vadd.f32 0.0, %v6406
      %6408 = vmatmul.bf16.gmra.mxu0 %v6140
      %v6409 = vpop.f32.mrf.mxu0
      %v6410 = vadd.f32 0.0, %v6409
      %v6411 = vpop.f32.mrf.mxu0
      %v6412 = vadd.f32 0.0, %v6411
      %6413 = vmatmul.bf16.gmra.mxu0 %v6143
      %v6414 = vpop.f32.mrf.mxu0
      %v6415 = vadd.f32 0.0, %v6414
      %v6416 = vpop.f32.mrf.mxu0
      %v6417 = vadd.f32 0.0, %v6416
      %6418 = vmatmul.bf16.gmra.mxu0 %v6146
      %v6419 = vpop.f32.mrf.mxu0
      %v6420 = vadd.f32 0.0, %v6419
      %v6421 = vpop.f32.mrf.mxu0
      %v6422 = vadd.f32 0.0, %v6421
      %6423 = vmatmul.bf16.gmra.mxu0 %v6149
      %v6424 = vpop.f32.mrf.mxu0
      %v6425 = vadd.f32 0.0, %v6424
      %v6426 = vpop.f32.mrf.mxu0
      %v6427 = vadd.f32 0.0, %v6426
      %6428 = vmatmul.bf16.gmra.mxu0 %v6152
      %v6429 = vpop.f32.mrf.mxu0
      %v6430 = vadd.f32 0.0, %v6429
      %v6431 = vpop.f32.mrf.mxu0
      %v6432 = vadd.f32 0.0, %v6431
      %6433 = vmatmul.bf16.gmra.mxu0 %v6155
      %v6434 = vpop.f32.mrf.mxu0
      %v6435 = vadd.f32 0.0, %v6434
      %v6436 = vpop.f32.mrf.mxu0
      %v6437 = vadd.f32 0.0, %v6436
      %6438 = vmatmul.bf16.gmra.mxu0 %v6158
      %v6439 = vpop.f32.mrf.mxu0
      %v6440 = vadd.f32 0.0, %v6439
      %v6441 = vpop.f32.mrf.mxu0
      %v6442 = vadd.f32 0.0, %v6441
      %6443 = vmatmul.bf16.gmra.mxu0 %v6161
      %v6444 = vpop.f32.mrf.mxu0
      %v6445 = vadd.f32 0.0, %v6444
      %v6446 = vpop.f32.mrf.mxu0
      %v6447 = vadd.f32 0.0, %v6446
      %6448 = vmatmul.bf16.gmra.mxu0 %v6164
      %v6449 = vpop.f32.mrf.mxu0
      %v6450 = vadd.f32 0.0, %v6449
      %v6451 = vpop.f32.mrf.mxu0
      %v6452 = vadd.f32 0.0, %v6451
      %6453 = vmatmul.bf16.gmra.mxu0 %v6167
      %v6454 = vpop.f32.mrf.mxu0
      %v6455 = vadd.f32 0.0, %v6454
      %v6456 = vpop.f32.mrf.mxu0
      %v6457 = vadd.f32 0.0, %v6456
      %6458 = vmatmul.bf16.gmra.mxu0 %v6170
      %v6459 = vpop.f32.mrf.mxu0
      %v6460 = vadd.f32 0.0, %v6459
      %v6461 = vpop.f32.mrf.mxu0
      %v6462 = vadd.f32 0.0, %v6461
      %6463 = vmatmul.bf16.gmra.mxu0 %v6173
      %v6464 = vpop.f32.mrf.mxu0
      %v6465 = vadd.f32 0.0, %v6464
      %v6466 = vpop.f32.mrf.mxu0
      %v6467 = vadd.f32 0.0, %v6466
      %6468 = vmatmul.bf16.gmra.mxu0 %v6176
      %v6469 = vpop.f32.mrf.mxu0
      %v6470 = vadd.f32 0.0, %v6469
      %v6471 = vpop.f32.mrf.mxu0
      %v6472 = vadd.f32 0.0, %v6471
      %6473 = vmatmul.bf16.gmra.mxu0 %v6179
      %v6474 = vpop.f32.mrf.mxu0
      %v6475 = vadd.f32 0.0, %v6474
      %v6476 = vpop.f32.mrf.mxu0
      %v6477 = vadd.f32 0.0, %v6476
      %6478 = vmatmul.bf16.gmra.mxu0 %v6182
      %v6479 = vpop.f32.mrf.mxu0
      %v6480 = vadd.f32 0.0, %v6479
      %v6481 = vpop.f32.mrf.mxu0
      %v6482 = vadd.f32 0.0, %v6481
      %6483 = vmatmul.bf16.gmra.mxu0 %v6185
      %v6484 = vpop.f32.mrf.mxu0
      %v6485 = vadd.f32 0.0, %v6484
      %v6486 = vpop.f32.mrf.mxu0
      %v6487 = vadd.f32 0.0, %v6486
      %6488 = vmatmul.bf16.gmra.mxu0 %v6188
      %v6489 = vpop.f32.mrf.mxu0
      %v6490 = vadd.f32 0.0, %v6489
      %v6491 = vpop.f32.mrf.mxu0
      %v6492 = vadd.f32 0.0, %v6491
      %6493 = vmatmul.bf16.gmra.mxu0 %v6191
      %v6494 = vpop.f32.mrf.mxu0
      %v6495 = vadd.f32 0.0, %v6494
      %v6496 = vpop.f32.mrf.mxu0
      %v6497 = vadd.f32 0.0, %v6496
      %6498 = vmatmul.bf16.gmra.mxu0 %v6194
      %v6499 = vpop.f32.mrf.mxu0
      %v6500 = vadd.f32 0.0, %v6499
      %v6501 = vpop.f32.mrf.mxu0
      %v6502 = vadd.f32 0.0, %v6501
      %6503 = vmatmul.bf16.gmra.mxu0 %v6197
      %v6504 = vpop.f32.mrf.mxu0
      %v6505 = vadd.f32 0.0, %v6504
      %v6506 = vpop.f32.mrf.mxu0
      %v6507 = vadd.f32 0.0, %v6506
      %6508 = vmatmul.bf16.gmra.mxu0 %v6200
      %v6509 = vpop.f32.mrf.mxu0
      %v6510 = vadd.f32 0.0, %v6509
      %v6511 = vpop.f32.mrf.mxu0
      %v6512 = vadd.f32 0.0, %v6511
      %6513 = vmatmul.bf16.gmra.mxu0 %v6203
      %v6514 = vpop.f32.mrf.mxu0
      %v6515 = vadd.f32 0.0, %v6514
      %v6516 = vpop.f32.mrf.mxu0
      %v6517 = vadd.f32 0.0, %v6516
      %6518 = vmatmul.bf16.gmra.mxu0 %v6206
      %v6519 = vpop.f32.mrf.mxu0
      %v6520 = vadd.f32 0.0, %v6519
      %v6521 = vpop.f32.mrf.mxu0
      %v6522 = vadd.f32 0.0, %v6521
      %6523 = vmatmul.bf16.gmra.mxu0 %v6209
      %v6524 = vpop.f32.mrf.mxu0
      %v6525 = vadd.f32 0.0, %v6524
      %v6526 = vpop.f32.mrf.mxu0
      %v6527 = vadd.f32 0.0, %v6526
      %6528 = vmatmul.bf16.gmra.mxu0 %v6212
      %v6529 = vpop.f32.mrf.mxu0
      %v6530 = vadd.f32 0.0, %v6529
      %v6531 = vpop.f32.mrf.mxu0
      %v6532 = vadd.f32 0.0, %v6531
      %6533 = vmatmul.bf16.gmra.mxu0 %v6215
      %v6534 = vpop.f32.mrf.mxu0
      %v6535 = vadd.f32 0.0, %v6534
      %v6536 = vpop.f32.mrf.mxu0
      %v6537 = vadd.f32 0.0, %v6536
      %6538 = vmatmul.bf16.gmra.mxu0 %v6218
      %v6539 = vpop.f32.mrf.mxu0
      %v6540 = vadd.f32 0.0, %v6539
      %v6541 = vpop.f32.mrf.mxu0
      %v6542 = vadd.f32 0.0, %v6541
      %6543 = vmatmul.bf16.gmra.mxu0 %v6221
      %v6544 = vpop.f32.mrf.mxu0
      %v6545 = vadd.f32 0.0, %v6544
      %v6546 = vpop.f32.mrf.mxu0
      %v6547 = vadd.f32 0.0, %v6546
      %6548 = vmatmul.bf16.gmra.mxu0 %v6224
      %v6549 = vpop.f32.mrf.mxu0
      %v6550 = vadd.f32 0.0, %v6549
      %v6551 = vpop.f32.mrf.mxu0
      %v6552 = vadd.f32 0.0, %v6551
      %6553 = vmatmul.bf16.gmra.mxu0 %v6227
      %v6554 = vpop.f32.mrf.mxu0
      %v6555 = vadd.f32 0.0, %v6554
      %v6556 = vpop.f32.mrf.mxu0
      %v6557 = vadd.f32 0.0, %v6556
      %6558 = vmatmul.bf16.gmra.mxu0 %v6230
      %v6559 = vpop.f32.mrf.mxu0
      %v6560 = vadd.f32 0.0, %v6559
      %v6561 = vpop.f32.mrf.mxu0
      %v6562 = vadd.f32 0.0, %v6561
      %6563 = vdwg.mxu0
      %v6564 = vadd.f32 %v5717, %v6245
      %v6565 = vadd.f32 %v5718, %v6247
      %v6566 = vadd.f32 %v5719, %v6250
      %v6567 = vadd.f32 %v5720, %v6252
      %v6568 = vadd.f32 %v5721, %v6255
      %v6569 = vadd.f32 %v5722, %v6257
      %v6570 = vadd.f32 %v5723, %v6260
      %v6571 = vadd.f32 %v5724, %v6262
      %v6572 = vadd.f32 %v5725, %v6265
      %v6573 = vadd.f32 %v5726, %v6267
      %v6574 = vadd.f32 %v5727, %v6270
      %v6575 = vadd.f32 %v5728, %v6272
      %v6576 = vadd.f32 %v5729, %v6275
      %v6577 = vadd.f32 %v5730, %v6277
      %v6578 = vadd.f32 %v5731, %v6280
      %v6579 = vadd.f32 %v5732, %v6282
      %v6580 = vadd.f32 %v5733, %v6285
      %v6581 = vadd.f32 %v5734, %v6287
      %v6582 = vadd.f32 %v5735, %v6290
      %v6583 = vadd.f32 %v5736, %v6292
      %v6584 = vadd.f32 %v5737, %v6295
      %v6585 = vadd.f32 %v5738, %v6297
      %v6586 = vadd.f32 %v5739, %v6300
      %v6587 = vadd.f32 %v5740, %v6302
      %v6588 = vadd.f32 %v5741, %v6305
      %v6589 = vadd.f32 %v5742, %v6307
      %v6590 = vadd.f32 %v5743, %v6310
      %v6591 = vadd.f32 %v5744, %v6312
      %v6592 = vadd.f32 %v5745, %v6315
      %v6593 = vadd.f32 %v5746, %v6317
      %v6594 = vadd.f32 %v5747, %v6320
      %v6595 = vadd.f32 %v5748, %v6322
      %v6596 = vadd.f32 %v5749, %v6325
      %v6597 = vadd.f32 %v5750, %v6327
      %v6598 = vadd.f32 %v5751, %v6330
      %v6599 = vadd.f32 %v5752, %v6332
      %v6600 = vadd.f32 %v5753, %v6335
      %v6601 = vadd.f32 %v5754, %v6337
      %v6602 = vadd.f32 %v5755, %v6340
      %v6603 = vadd.f32 %v5756, %v6342
      %v6604 = vadd.f32 %v5757, %v6345
      %v6605 = vadd.f32 %v5758, %v6347
      %v6606 = vadd.f32 %v5759, %v6350
      %v6607 = vadd.f32 %v5760, %v6352
      %v6608 = vadd.f32 %v5761, %v6355
      %v6609 = vadd.f32 %v5762, %v6357
      %v6610 = vadd.f32 %v5763, %v6360
      %v6611 = vadd.f32 %v5764, %v6362
      %v6612 = vadd.f32 %v5765, %v6365
      %v6613 = vadd.f32 %v5766, %v6367
      %v6614 = vadd.f32 %v5767, %v6370
      %v6615 = vadd.f32 %v5768, %v6372
      %v6616 = vadd.f32 %v5769, %v6375
      %v6617 = vadd.f32 %v5770, %v6377
      %v6618 = vadd.f32 %v5771, %v6380
      %v6619 = vadd.f32 %v5772, %v6382
      %v6620 = vadd.f32 %v5773, %v6385
      %v6621 = vadd.f32 %v5774, %v6387
      %v6622 = vadd.f32 %v5775, %v6390
      %v6623 = vadd.f32 %v5776, %v6392
      %v6624 = vadd.f32 %v5777, %v6395
      %v6625 = vadd.f32 %v5778, %v6397
      %v6626 = vadd.f32 %v5779, %v6400
      %v6627 = vadd.f32 %v5780, %v6402
      %v6628 = vadd.f32 %v5781, %v6405
      %v6629 = vadd.f32 %v5782, %v6407
      %v6630 = vadd.f32 %v5783, %v6410
      %v6631 = vadd.f32 %v5784, %v6412
      %v6632 = vadd.f32 %v5785, %v6415
      %v6633 = vadd.f32 %v5786, %v6417
      %v6634 = vadd.f32 %v5787, %v6420
      %v6635 = vadd.f32 %v5788, %v6422
      %v6636 = vadd.f32 %v5789, %v6425
      %v6637 = vadd.f32 %v5790, %v6427
      %v6638 = vadd.f32 %v5791, %v6430
      %v6639 = vadd.f32 %v5792, %v6432
      %v6640 = vadd.f32 %v5793, %v6435
      %v6641 = vadd.f32 %v5794, %v6437
      %v6642 = vadd.f32 %v5795, %v6440
      %v6643 = vadd.f32 %v5796, %v6442
      %v6644 = vadd.f32 %v5797, %v6445
      %v6645 = vadd.f32 %v5798, %v6447
      %v6646 = vadd.f32 %v5799, %v6450
      %v6647 = vadd.f32 %v5800, %v6452
      %v6648 = vadd.f32 %v5801, %v6455
      %v6649 = vadd.f32 %v5802, %v6457
      %v6650 = vadd.f32 %v5803, %v6460
      %v6651 = vadd.f32 %v5804, %v6462
      %v6652 = vadd.f32 %v5805, %v6465
      %v6653 = vadd.f32 %v5806, %v6467
      %v6654 = vadd.f32 %v5807, %v6470
      %v6655 = vadd.f32 %v5808, %v6472
      %v6656 = vadd.f32 %v5809, %v6475
      %v6657 = vadd.f32 %v5810, %v6477
      %v6658 = vadd.f32 %v5811, %v6480
      %v6659 = vadd.f32 %v5812, %v6482
      %v6660 = vadd.f32 %v5813, %v6485
      %v6661 = vadd.f32 %v5814, %v6487
      %v6662 = vadd.f32 %v5815, %v6490
      %v6663 = vadd.f32 %v5816, %v6492
      %v6664 = vadd.f32 %v5817, %v6495
      %v6665 = vadd.f32 %v5818, %v6497
      %v6666 = vadd.f32 %v5819, %v6500
      %v6667 = vadd.f32 %v5820, %v6502
      %v6668 = vadd.f32 %v5821, %v6505
      %v6669 = vadd.f32 %v5822, %v6507
      %v6670 = vadd.f32 %v5823, %v6510
      %v6671 = vadd.f32 %v5824, %v6512
      %v6672 = vadd.f32 %v5825, %v6515
      %v6673 = vadd.f32 %v5826, %v6517
      %v6674 = vadd.f32 %v5827, %v6520
      %v6675 = vadd.f32 %v5828, %v6522
      %v6676 = vadd.f32 %v5829, %v6525
      %v6677 = vadd.f32 %v5830, %v6527
      %v6678 = vadd.f32 %v5831, %v6530
      %v6679 = vadd.f32 %v5832, %v6532
      %v6680 = vadd.f32 %v5833, %v6535
      %v6681 = vadd.f32 %v5834, %v6537
      %v6682 = vadd.f32 %v5835, %v6540
      %v6683 = vadd.f32 %v5836, %v6542
      %v6684 = vadd.f32 %v5837, %v6545
      %v6685 = vadd.f32 %v5838, %v6547
      %v6686 = vadd.f32 %v5839, %v6550
      %v6687 = vadd.f32 %v5840, %v6552
      %v6688 = vadd.f32 %v5841, %v6555
      %v6689 = vadd.f32 %v5842, %v6557
      %v6690 = vadd.f32 %v5843, %v6560
      %v6691 = vadd.f32 %v5844, %v6562
      %v6692 = vld [vmem:[%s5845 + $0x8] sm:$0xff]
      %v6693 = vld [vmem:[%s5845 + $0x10] sm:$0xff]
      %v6694 = vld [vmem:[%s5845 + $0x18] sm:$0xff]
      %v6695 = vld [vmem:[%s5845 + $0x20] sm:$0xff]
      %v6696 = vld [vmem:[%s5845 + $0x38] sm:$0xff]
      %v6697 = vld [vmem:[%s5845 + $0x40] sm:$0xff]
      %v6698 = vld [vmem:[%s5845 + $0x48] sm:$0xff]
      %v6699 = vld [vmem:[%s5845 + $0x50] sm:$0xff]
      %v6700 = vld [vmem:[%s5845 + $0x68] sm:$0xff]
      %v6701 = vld [vmem:[%s5845 + $0x70] sm:$0xff]
      %v6702 = vld [vmem:[%s5845 + $0x78] sm:$0xff]
      %v6703 = vld [vmem:[%s5845 + $0x80] sm:$0xff]
      %v6704 = vld [vmem:[%s5845 + $0x98] sm:$0xff]
      %v6705 = vld [vmem:[%s5845 + $0xa0] sm:$0xff]
      %v6706 = vld [vmem:[%s5845 + $0xa8] sm:$0xff]
      %v6707 = vld [vmem:[%s5845 + $0xb0] sm:$0xff]
      %v6708 = vld [vmem:[%s5845 + $0xc8] sm:$0xff]
      %v6709 = vld [vmem:[%s5845 + $0xd0] sm:$0xff]
      %v6710 = vld [vmem:[%s5845 + $0xd8] sm:$0xff]
      %v6711 = vld [vmem:[%s5845 + $0xe0] sm:$0xff]
      %v6712 = vld [vmem:[%s5845 + $0xf8] sm:$0xff]
      %v6713 = vld [vmem:[%s5845 + $0x100] sm:$0xff]
      %v6714 = vld [vmem:[%s5845 + $0x108] sm:$0xff]
      %v6715 = vld [vmem:[%s5845 + $0x110] sm:$0xff]
      %v6716 = vld [vmem:[%s5845 + $0x128] sm:$0xff]
      %v6717 = vld [vmem:[%s5845 + $0x130] sm:$0xff]
      %v6718 = vld [vmem:[%s5845 + $0x138] sm:$0xff]
      %v6719 = vld [vmem:[%s5845 + $0x140] sm:$0xff]
      %v6720 = vld [vmem:[%s5845 + $0x158] sm:$0xff]
      %v6721 = vld [vmem:[%s5845 + $0x160] sm:$0xff]
      %v6722 = vld [vmem:[%s5845 + $0x168] sm:$0xff]
      %v6723 = vld [vmem:[%s5845 + $0x170] sm:$0xff]
      %v6724 = vld [vmem:[%s5845 + $0x188] sm:$0xff]
      %v6725 = vld [vmem:[%s5845 + $0x190] sm:$0xff]
      %v6726 = vld [vmem:[%s5845 + $0x198] sm:$0xff]
      %v6727 = vld [vmem:[%s5845 + $0x1a0] sm:$0xff]
      %v6728 = vld [vmem:[%s5845 + $0x1b8] sm:$0xff]
      %v6729 = vld [vmem:[%s5845 + $0x1c0] sm:$0xff]
      %v6730 = vld [vmem:[%s5845 + $0x1c8] sm:$0xff]
      %v6731 = vld [vmem:[%s5845 + $0x1d0] sm:$0xff]
      %v6732 = vld [vmem:[%s5845 + $0x1e8] sm:$0xff]
      %v6733 = vld [vmem:[%s5845 + $0x1f0] sm:$0xff]
      %v6734 = vld [vmem:[%s5845 + $0x1f8] sm:$0xff]
      %v6735 = vld [vmem:[%s5845 + $0x200] sm:$0xff]
      %v6736 = vld [vmem:[%s5845 + $0x218] sm:$0xff]
      %v6737 = vld [vmem:[%s5845 + $0x220] sm:$0xff]
      %v6738 = vld [vmem:[%s5845 + $0x228] sm:$0xff]
      %v6739 = vld [vmem:[%s5845 + $0x230] sm:$0xff]
      %v6740 = vld [vmem:[%s5845 + $0x248] sm:$0xff]
      %v6741 = vld [vmem:[%s5845 + $0x250] sm:$0xff]
      %v6742 = vld [vmem:[%s5845 + $0x258] sm:$0xff]
      %v6743 = vld [vmem:[%s5845 + $0x260] sm:$0xff]
      %v6744 = vld [vmem:[%s5845 + $0x278] sm:$0xff]
      %v6745 = vld [vmem:[%s5845 + $0x280] sm:$0xff]
      %v6746 = vld [vmem:[%s5845 + $0x288] sm:$0xff]
      %v6747 = vld [vmem:[%s5845 + $0x290] sm:$0xff]
      %v6748 = vld [vmem:[%s5845 + $0x2a8] sm:$0xff]
      %v6749 = vld [vmem:[%s5845 + $0x2b0] sm:$0xff]
      %v6750 = vld [vmem:[%s5845 + $0x2b8] sm:$0xff]
      %v6751 = vld [vmem:[%s5845 + $0x2c0] sm:$0xff]
      %v6752 = vld [vmem:[%s5845 + $0x2d8] sm:$0xff]
      %v6753 = vld [vmem:[%s5845 + $0x2e0] sm:$0xff]
      %v6754 = vld [vmem:[%s5845 + $0x2e8] sm:$0xff]
      %v6755 = vld [vmem:[%s5845 + $0x2f0] sm:$0xff]
      %v6756 = vld [vmem:[%s5845 + $0x308] sm:$0xff]
      %v6757 = vld [vmem:[%s5845 + $0x310] sm:$0xff]
      %v6758 = vld [vmem:[%s5845 + $0x318] sm:$0xff]
      %v6759 = vld [vmem:[%s5845 + $0x320] sm:$0xff]
      %v6760 = vld [vmem:[%s5845 + $0x338] sm:$0xff]
      %v6761 = vld [vmem:[%s5845 + $0x340] sm:$0xff]
      %v6762 = vld [vmem:[%s5845 + $0x348] sm:$0xff]
      %v6763 = vld [vmem:[%s5845 + $0x350] sm:$0xff]
      %v6764 = vld [vmem:[%s5845 + $0x368] sm:$0xff]
      %v6765 = vld [vmem:[%s5845 + $0x370] sm:$0xff]
      %v6766 = vld [vmem:[%s5845 + $0x378] sm:$0xff]
      %v6767 = vld [vmem:[%s5845 + $0x380] sm:$0xff]
      %v6768 = vld [vmem:[%s5845 + $0x398] sm:$0xff]
      %v6769 = vld [vmem:[%s5845 + $0x3a0] sm:$0xff]
      %v6770 = vld [vmem:[%s5845 + $0x3a8] sm:$0xff]
      %v6771 = vld [vmem:[%s5845 + $0x3b0] sm:$0xff]
      %v6772 = vld [vmem:[%s5845 + $0x3c8] sm:$0xff]
      %v6773 = vld [vmem:[%s5845 + $0x3d0] sm:$0xff]
      %v6774 = vld [vmem:[%s5845 + $0x3d8] sm:$0xff]
      %v6775 = vld [vmem:[%s5845 + $0x3e0] sm:$0xff]
      %v6776 = vld [vmem:[%s5845 + $0x3f8] sm:$0xff]
      %v6777 = vld [vmem:[%s5845 + $0x400] sm:$0xff]
      %v6778 = vld [vmem:[%s5845 + $0x408] sm:$0xff]
      %v6779 = vld [vmem:[%s5845 + $0x410] sm:$0xff]
      %v6780 = vld [vmem:[%s5845 + $0x428] sm:$0xff]
      %v6781 = vld [vmem:[%s5845 + $0x430] sm:$0xff]
      %v6782 = vld [vmem:[%s5845 + $0x438] sm:$0xff]
      %v6783 = vld [vmem:[%s5845 + $0x440] sm:$0xff]
      %v6784 = vld [vmem:[%s5845 + $0x458] sm:$0xff]
      %v6785 = vld [vmem:[%s5845 + $0x460] sm:$0xff]
      %v6786 = vld [vmem:[%s5845 + $0x468] sm:$0xff]
      %v6787 = vld [vmem:[%s5845 + $0x470] sm:$0xff]
      %v6788 = vld [vmem:[%s5845 + $0x488] sm:$0xff]
      %v6789 = vld [vmem:[%s5845 + $0x490] sm:$0xff]
      %v6790 = vld [vmem:[%s5845 + $0x498] sm:$0xff]
      %v6791 = vld [vmem:[%s5845 + $0x4a0] sm:$0xff]
      %v6792 = vld [vmem:[%s5845 + $0x4b8] sm:$0xff]
      %v6793 = vld [vmem:[%s5845 + $0x4c0] sm:$0xff]
      %v6794 = vld [vmem:[%s5845 + $0x4c8] sm:$0xff]
      %v6795 = vld [vmem:[%s5845 + $0x4d0] sm:$0xff]
      %v6796 = vld [vmem:[%s5845 + $0x4e8] sm:$0xff]
      %v6797 = vld [vmem:[%s5845 + $0x4f0] sm:$0xff]
      %v6798 = vld [vmem:[%s5845 + $0x4f8] sm:$0xff]
      %v6799 = vld [vmem:[%s5845 + $0x500] sm:$0xff]
      %v6800 = vld [vmem:[%s5845 + $0x518] sm:$0xff]
      %v6801 = vld [vmem:[%s5845 + $0x520] sm:$0xff]
      %v6802 = vld [vmem:[%s5845 + $0x528] sm:$0xff]
      %v6803 = vld [vmem:[%s5845 + $0x530] sm:$0xff]
      %v6804 = vld [vmem:[%s5845 + $0x548] sm:$0xff]
      %v6805 = vld [vmem:[%s5845 + $0x550] sm:$0xff]
      %v6806 = vld [vmem:[%s5845 + $0x558] sm:$0xff]
      %v6807 = vld [vmem:[%s5845 + $0x560] sm:$0xff]
      %v6808 = vld [vmem:[%s5845 + $0x578] sm:$0xff]
      %v6809 = vld [vmem:[%s5845 + $0x580] sm:$0xff]
      %v6810 = vld [vmem:[%s5845 + $0x588] sm:$0xff]
      %v6811 = vld [vmem:[%s5845 + $0x590] sm:$0xff]
      %v6812 = vld [vmem:[%s5845 + $0x5a8] sm:$0xff]
      %v6813 = vld [vmem:[%s5845 + $0x5b0] sm:$0xff]
      %v6814 = vld [vmem:[%s5845 + $0x5b8] sm:$0xff]
      %v6815 = vld [vmem:[%s5845 + $0x5c0] sm:$0xff]
      %v6816 = vld [vmem:[%s5845 + $0x5d8] sm:$0xff]
      %v6817 = vld [vmem:[%s5845 + $0x5e0] sm:$0xff]
      %v6818 = vld [vmem:[%s5845 + $0x5e8] sm:$0xff]
      %v6819 = vld [vmem:[%s5845 + $0x5f0] sm:$0xff]
      %v6820 = vpack.c.bf16 %v6693, %v6692
      %v6821 = vpack.c.bf16 %v6695, %v6694
      %v6822 = vpack.c.bf16 %v6697, %v6696
      %v6823 = vpack.c.bf16 %v6699, %v6698
      %v6824 = vpack.c.bf16 %v6701, %v6700
      %v6825 = vpack.c.bf16 %v6703, %v6702
      %v6826 = vpack.c.bf16 %v6705, %v6704
      %v6827 = vpack.c.bf16 %v6707, %v6706
      %v6828 = vpack.c.bf16 %v6709, %v6708
      %v6829 = vpack.c.bf16 %v6711, %v6710
      %v6830 = vpack.c.bf16 %v6713, %v6712
      %v6831 = vpack.c.bf16 %v6715, %v6714
      %v6832 = vpack.c.bf16 %v6717, %v6716
      %v6833 = vpack.c.bf16 %v6719, %v6718
      %v6834 = vpack.c.bf16 %v6721, %v6720
      %v6835 = vpack.c.bf16 %v6723, %v6722
      %v6836 = vpack.c.bf16 %v6725, %v6724
      %v6837 = vpack.c.bf16 %v6727, %v6726
      %v6838 = vpack.c.bf16 %v6729, %v6728
      %v6839 = vpack.c.bf16 %v6731, %v6730
      %v6840 = vpack.c.bf16 %v6733, %v6732
      %v6841 = vpack.c.bf16 %v6735, %v6734
      %v6842 = vpack.c.bf16 %v6737, %v6736
      %v6843 = vpack.c.bf16 %v6739, %v6738
      %v6844 = vpack.c.bf16 %v6741, %v6740
      %v6845 = vpack.c.bf16 %v6743, %v6742
      %v6846 = vpack.c.bf16 %v6745, %v6744
      %v6847 = vpack.c.bf16 %v6747, %v6746
      %v6848 = vpack.c.bf16 %v6749, %v6748
      %v6849 = vpack.c.bf16 %v6751, %v6750
      %v6850 = vpack.c.bf16 %v6753, %v6752
      %v6851 = vpack.c.bf16 %v6755, %v6754
      %v6852 = vpack.c.bf16 %v6757, %v6756
      %v6853 = vpack.c.bf16 %v6759, %v6758
      %v6854 = vpack.c.bf16 %v6761, %v6760
      %v6855 = vpack.c.bf16 %v6763, %v6762
      %v6856 = vpack.c.bf16 %v6765, %v6764
      %v6857 = vpack.c.bf16 %v6767, %v6766
      %v6858 = vpack.c.bf16 %v6769, %v6768
      %v6859 = vpack.c.bf16 %v6771, %v6770
      %v6860 = vpack.c.bf16 %v6773, %v6772
      %v6861 = vpack.c.bf16 %v6775, %v6774
      %v6862 = vpack.c.bf16 %v6777, %v6776
      %v6863 = vpack.c.bf16 %v6779, %v6778
      %v6864 = vpack.c.bf16 %v6781, %v6780
      %v6865 = vpack.c.bf16 %v6783, %v6782
      %v6866 = vpack.c.bf16 %v6785, %v6784
      %v6867 = vpack.c.bf16 %v6787, %v6786
      %v6868 = vpack.c.bf16 %v6789, %v6788
      %v6869 = vpack.c.bf16 %v6791, %v6790
      %v6870 = vpack.c.bf16 %v6793, %v6792
      %v6871 = vpack.c.bf16 %v6795, %v6794
      %v6872 = vpack.c.bf16 %v6797, %v6796
      %v6873 = vpack.c.bf16 %v6799, %v6798
      %v6874 = vpack.c.bf16 %v6801, %v6800
      %v6875 = vpack.c.bf16 %v6803, %v6802
      %v6876 = vpack.c.bf16 %v6805, %v6804
      %v6877 = vpack.c.bf16 %v6807, %v6806
      %v6878 = vpack.c.bf16 %v6809, %v6808
      %v6879 = vpack.c.bf16 %v6811, %v6810
      %v6880 = vpack.c.bf16 %v6813, %v6812
      %v6881 = vpack.c.bf16 %v6815, %v6814
      %v6882 = vpack.c.bf16 %v6817, %v6816
      %v6883 = vpack.c.bf16 %v6819, %v6818
      %s6884 = scalar_lea.vmem %s1, 14
      %v6885 = vld [vmem:[%s6884] sm:$0x3]
      %v6887 = vsel %vm172, %v6820, 0
      %v6890 = vsel %vm172, %v6821, 0
      %v6893 = vsel %vm172, %v6822, 0
      %v6896 = vsel %vm172, %v6823, 0
      %v6899 = vsel %vm172, %v6824, 0
      %v6902 = vsel %vm172, %v6825, 0
      %v6905 = vsel %vm172, %v6826, 0
      %v6908 = vsel %vm172, %v6827, 0
      %v6911 = vsel %vm172, %v6828, 0
      %v6914 = vsel %vm172, %v6829, 0
      %v6917 = vsel %vm172, %v6830, 0
      %v6920 = vsel %vm172, %v6831, 0
      %v6923 = vsel %vm172, %v6832, 0
      %v6926 = vsel %vm172, %v6833, 0
      %v6929 = vsel %vm172, %v6834, 0
      %v6932 = vsel %vm172, %v6835, 0
      %v6935 = vsel %vm172, %v6836, 0
      %v6938 = vsel %vm172, %v6837, 0
      %v6941 = vsel %vm172, %v6838, 0
      %v6944 = vsel %vm172, %v6839, 0
      %v6947 = vsel %vm172, %v6840, 0
      %v6950 = vsel %vm172, %v6841, 0
      %v6953 = vsel %vm172, %v6842, 0
      %v6956 = vsel %vm172, %v6843, 0
      %v6959 = vsel %vm172, %v6844, 0
      %v6962 = vsel %vm172, %v6845, 0
      %v6965 = vsel %vm172, %v6846, 0
      %v6968 = vsel %vm172, %v6847, 0
      %v6971 = vsel %vm172, %v6848, 0
      %v6974 = vsel %vm172, %v6849, 0
      %v6977 = vsel %vm172, %v6850, 0
      %v6980 = vsel %vm172, %v6851, 0
      %v6983 = vsel %vm172, %v6852, 0
      %v6986 = vsel %vm172, %v6853, 0
      %v6989 = vsel %vm172, %v6854, 0
      %v6992 = vsel %vm172, %v6855, 0
      %v6995 = vsel %vm172, %v6856, 0
      %v6998 = vsel %vm172, %v6857, 0
      %v7001 = vsel %vm172, %v6858, 0
      %v7004 = vsel %vm172, %v6859, 0
      %v7007 = vsel %vm172, %v6860, 0
      %v7010 = vsel %vm172, %v6861, 0
      %v7013 = vsel %vm172, %v6862, 0
      %v7016 = vsel %vm172, %v6863, 0
      %v7019 = vsel %vm172, %v6864, 0
      %v7022 = vsel %vm172, %v6865, 0
      %v7025 = vsel %vm172, %v6866, 0
      %v7028 = vsel %vm172, %v6867, 0
      %v7031 = vsel %vm172, %v6868, 0
      %v7034 = vsel %vm172, %v6869, 0
      %v7037 = vsel %vm172, %v6870, 0
      %v7040 = vsel %vm172, %v6871, 0
      %v7043 = vsel %vm172, %v6872, 0
      %v7046 = vsel %vm172, %v6873, 0
      %v7049 = vsel %vm172, %v6874, 0
      %v7052 = vsel %vm172, %v6875, 0
      %v7055 = vsel %vm172, %v6876, 0
      %v7058 = vsel %vm172, %v6877, 0
      %v7061 = vsel %vm172, %v6878, 0
      %v7064 = vsel %vm172, %v6879, 0
      %v7067 = vsel %vm172, %v6880, 0
      %v7070 = vsel %vm172, %v6881, 0
      %v7073 = vsel %vm172, %v6882, 0
      %v7076 = vsel %vm172, %v6883, 0
      %v7079 = vand.u32 %v6885, %v1154
      %7081 = vmatpush.bf16.msra.mxu0 0
      %7082 = vmatpush.bf16.msra.mxu0 0
      %7083 = vmatpush.bf16.msra.mxu0 0
      %7084 = vmatpush.bf16.msra.mxu0 0
      %7085 = vmatpush.bf16.msra.mxu0 0
      %7086 = vmatpush.bf16.msra.mxu0 0
      %7087 = vmatpush.bf16.msra.mxu0 0
      %7088 = vmatpush.bf16.msra.mxu0 %v7079
      %7089 = vmatmul.bf16.gmra.mxu0 %v6887
      %v7090 = vpop.f32.mrf.mxu0
      %v7091 = vadd.f32 0.0, %v7090
      %v7092 = vpop.f32.mrf.mxu0
      %v7093 = vadd.f32 0.0, %v7092
      %7094 = vmatmul.bf16.gmra.mxu0 %v6890
      %v7095 = vpop.f32.mrf.mxu0
      %v7096 = vadd.f32 0.0, %v7095
      %v7097 = vpop.f32.mrf.mxu0
      %v7098 = vadd.f32 0.0, %v7097
      %7099 = vmatmul.bf16.gmra.mxu0 %v6893
      %v7100 = vpop.f32.mrf.mxu0
      %v7101 = vadd.f32 0.0, %v7100
      %v7102 = vpop.f32.mrf.mxu0
      %v7103 = vadd.f32 0.0, %v7102
      %7104 = vmatmul.bf16.gmra.mxu0 %v6896
      %v7105 = vpop.f32.mrf.mxu0
      %v7106 = vadd.f32 0.0, %v7105
      %v7107 = vpop.f32.mrf.mxu0
      %v7108 = vadd.f32 0.0, %v7107
      %7109 = vmatmul.bf16.gmra.mxu0 %v6899
      %v7110 = vpop.f32.mrf.mxu0
      %v7111 = vadd.f32 0.0, %v7110
      %v7112 = vpop.f32.mrf.mxu0
      %v7113 = vadd.f32 0.0, %v7112
      %7114 = vmatmul.bf16.gmra.mxu0 %v6902
      %v7115 = vpop.f32.mrf.mxu0
      %v7116 = vadd.f32 0.0, %v7115
      %v7117 = vpop.f32.mrf.mxu0
      %v7118 = vadd.f32 0.0, %v7117
      %7119 = vmatmul.bf16.gmra.mxu0 %v6905
      %v7120 = vpop.f32.mrf.mxu0
      %v7121 = vadd.f32 0.0, %v7120
      %v7122 = vpop.f32.mrf.mxu0
      %v7123 = vadd.f32 0.0, %v7122
      %7124 = vmatmul.bf16.gmra.mxu0 %v6908
      %v7125 = vpop.f32.mrf.mxu0
      %v7126 = vadd.f32 0.0, %v7125
      %v7127 = vpop.f32.mrf.mxu0
      %v7128 = vadd.f32 0.0, %v7127
      %7129 = vmatmul.bf16.gmra.mxu0 %v6911
      %v7130 = vpop.f32.mrf.mxu0
      %v7131 = vadd.f32 0.0, %v7130
      %v7132 = vpop.f32.mrf.mxu0
      %v7133 = vadd.f32 0.0, %v7132
      %7134 = vmatmul.bf16.gmra.mxu0 %v6914
      %v7135 = vpop.f32.mrf.mxu0
      %v7136 = vadd.f32 0.0, %v7135
      %v7137 = vpop.f32.mrf.mxu0
      %v7138 = vadd.f32 0.0, %v7137
      %7139 = vmatmul.bf16.gmra.mxu0 %v6917
      %v7140 = vpop.f32.mrf.mxu0
      %v7141 = vadd.f32 0.0, %v7140
      %v7142 = vpop.f32.mrf.mxu0
      %v7143 = vadd.f32 0.0, %v7142
      %7144 = vmatmul.bf16.gmra.mxu0 %v6920
      %v7145 = vpop.f32.mrf.mxu0
      %v7146 = vadd.f32 0.0, %v7145
      %v7147 = vpop.f32.mrf.mxu0
      %v7148 = vadd.f32 0.0, %v7147
      %7149 = vmatmul.bf16.gmra.mxu0 %v6923
      %v7150 = vpop.f32.mrf.mxu0
      %v7151 = vadd.f32 0.0, %v7150
      %v7152 = vpop.f32.mrf.mxu0
      %v7153 = vadd.f32 0.0, %v7152
      %7154 = vmatmul.bf16.gmra.mxu0 %v6926
      %v7155 = vpop.f32.mrf.mxu0
      %v7156 = vadd.f32 0.0, %v7155
      %v7157 = vpop.f32.mrf.mxu0
      %v7158 = vadd.f32 0.0, %v7157
      %7159 = vmatmul.bf16.gmra.mxu0 %v6929
      %v7160 = vpop.f32.mrf.mxu0
      %v7161 = vadd.f32 0.0, %v7160
      %v7162 = vpop.f32.mrf.mxu0
      %v7163 = vadd.f32 0.0, %v7162
      %7164 = vmatmul.bf16.gmra.mxu0 %v6932
      %v7165 = vpop.f32.mrf.mxu0
      %v7166 = vadd.f32 0.0, %v7165
      %v7167 = vpop.f32.mrf.mxu0
      %v7168 = vadd.f32 0.0, %v7167
      %7169 = vmatmul.bf16.gmra.mxu0 %v6935
      %v7170 = vpop.f32.mrf.mxu0
      %v7171 = vadd.f32 0.0, %v7170
      %v7172 = vpop.f32.mrf.mxu0
      %v7173 = vadd.f32 0.0, %v7172
      %7174 = vmatmul.bf16.gmra.mxu0 %v6938
      %v7175 = vpop.f32.mrf.mxu0
      %v7176 = vadd.f32 0.0, %v7175
      %v7177 = vpop.f32.mrf.mxu0
      %v7178 = vadd.f32 0.0, %v7177
      %7179 = vmatmul.bf16.gmra.mxu0 %v6941
      %v7180 = vpop.f32.mrf.mxu0
      %v7181 = vadd.f32 0.0, %v7180
      %v7182 = vpop.f32.mrf.mxu0
      %v7183 = vadd.f32 0.0, %v7182
      %7184 = vmatmul.bf16.gmra.mxu0 %v6944
      %v7185 = vpop.f32.mrf.mxu0
      %v7186 = vadd.f32 0.0, %v7185
      %v7187 = vpop.f32.mrf.mxu0
      %v7188 = vadd.f32 0.0, %v7187
      %7189 = vmatmul.bf16.gmra.mxu0 %v6947
      %v7190 = vpop.f32.mrf.mxu0
      %v7191 = vadd.f32 0.0, %v7190
      %v7192 = vpop.f32.mrf.mxu0
      %v7193 = vadd.f32 0.0, %v7192
      %7194 = vmatmul.bf16.gmra.mxu0 %v6950
      %v7195 = vpop.f32.mrf.mxu0
      %v7196 = vadd.f32 0.0, %v7195
      %v7197 = vpop.f32.mrf.mxu0
      %v7198 = vadd.f32 0.0, %v7197
      %7199 = vmatmul.bf16.gmra.mxu0 %v6953
      %v7200 = vpop.f32.mrf.mxu0
      %v7201 = vadd.f32 0.0, %v7200
      %v7202 = vpop.f32.mrf.mxu0
      %v7203 = vadd.f32 0.0, %v7202
      %7204 = vmatmul.bf16.gmra.mxu0 %v6956
      %v7205 = vpop.f32.mrf.mxu0
      %v7206 = vadd.f32 0.0, %v7205
      %v7207 = vpop.f32.mrf.mxu0
      %v7208 = vadd.f32 0.0, %v7207
      %7209 = vmatmul.bf16.gmra.mxu0 %v6959
      %v7210 = vpop.f32.mrf.mxu0
      %v7211 = vadd.f32 0.0, %v7210
      %v7212 = vpop.f32.mrf.mxu0
      %v7213 = vadd.f32 0.0, %v7212
      %7214 = vmatmul.bf16.gmra.mxu0 %v6962
      %v7215 = vpop.f32.mrf.mxu0
      %v7216 = vadd.f32 0.0, %v7215
      %v7217 = vpop.f32.mrf.mxu0
      %v7218 = vadd.f32 0.0, %v7217
      %7219 = vmatmul.bf16.gmra.mxu0 %v6965
      %v7220 = vpop.f32.mrf.mxu0
      %v7221 = vadd.f32 0.0, %v7220
      %v7222 = vpop.f32.mrf.mxu0
      %v7223 = vadd.f32 0.0, %v7222
      %7224 = vmatmul.bf16.gmra.mxu0 %v6968
      %v7225 = vpop.f32.mrf.mxu0
      %v7226 = vadd.f32 0.0, %v7225
      %v7227 = vpop.f32.mrf.mxu0
      %v7228 = vadd.f32 0.0, %v7227
      %7229 = vmatmul.bf16.gmra.mxu0 %v6971
      %v7230 = vpop.f32.mrf.mxu0
      %v7231 = vadd.f32 0.0, %v7230
      %v7232 = vpop.f32.mrf.mxu0
      %v7233 = vadd.f32 0.0, %v7232
      %7234 = vmatmul.bf16.gmra.mxu0 %v6974
      %v7235 = vpop.f32.mrf.mxu0
      %v7236 = vadd.f32 0.0, %v7235
      %v7237 = vpop.f32.mrf.mxu0
      %v7238 = vadd.f32 0.0, %v7237
      %7239 = vmatmul.bf16.gmra.mxu0 %v6977
      %v7240 = vpop.f32.mrf.mxu0
      %v7241 = vadd.f32 0.0, %v7240
      %v7242 = vpop.f32.mrf.mxu0
      %v7243 = vadd.f32 0.0, %v7242
      %7244 = vmatmul.bf16.gmra.mxu0 %v6980
      %v7245 = vpop.f32.mrf.mxu0
      %v7246 = vadd.f32 0.0, %v7245
      %v7247 = vpop.f32.mrf.mxu0
      %v7248 = vadd.f32 0.0, %v7247
      %7249 = vmatmul.bf16.gmra.mxu0 %v6983
      %v7250 = vpop.f32.mrf.mxu0
      %v7251 = vadd.f32 0.0, %v7250
      %v7252 = vpop.f32.mrf.mxu0
      %v7253 = vadd.f32 0.0, %v7252
      %7254 = vmatmul.bf16.gmra.mxu0 %v6986
      %v7255 = vpop.f32.mrf.mxu0
      %v7256 = vadd.f32 0.0, %v7255
      %v7257 = vpop.f32.mrf.mxu0
      %v7258 = vadd.f32 0.0, %v7257
      %7259 = vmatmul.bf16.gmra.mxu0 %v6989
      %v7260 = vpop.f32.mrf.mxu0
      %v7261 = vadd.f32 0.0, %v7260
      %v7262 = vpop.f32.mrf.mxu0
      %v7263 = vadd.f32 0.0, %v7262
      %7264 = vmatmul.bf16.gmra.mxu0 %v6992
      %v7265 = vpop.f32.mrf.mxu0
      %v7266 = vadd.f32 0.0, %v7265
      %v7267 = vpop.f32.mrf.mxu0
      %v7268 = vadd.f32 0.0, %v7267
      %7269 = vmatmul.bf16.gmra.mxu0 %v6995
      %v7270 = vpop.f32.mrf.mxu0
      %v7271 = vadd.f32 0.0, %v7270
      %v7272 = vpop.f32.mrf.mxu0
      %v7273 = vadd.f32 0.0, %v7272
      %7274 = vmatmul.bf16.gmra.mxu0 %v6998
      %v7275 = vpop.f32.mrf.mxu0
      %v7276 = vadd.f32 0.0, %v7275
      %v7277 = vpop.f32.mrf.mxu0
      %v7278 = vadd.f32 0.0, %v7277
      %7279 = vmatmul.bf16.gmra.mxu0 %v7001
      %v7280 = vpop.f32.mrf.mxu0
      %v7281 = vadd.f32 0.0, %v7280
      %v7282 = vpop.f32.mrf.mxu0
      %v7283 = vadd.f32 0.0, %v7282
      %7284 = vmatmul.bf16.gmra.mxu0 %v7004
      %v7285 = vpop.f32.mrf.mxu0
      %v7286 = vadd.f32 0.0, %v7285
      %v7287 = vpop.f32.mrf.mxu0
      %v7288 = vadd.f32 0.0, %v7287
      %7289 = vmatmul.bf16.gmra.mxu0 %v7007
      %v7290 = vpop.f32.mrf.mxu0
      %v7291 = vadd.f32 0.0, %v7290
      %v7292 = vpop.f32.mrf.mxu0
      %v7293 = vadd.f32 0.0, %v7292
      %7294 = vmatmul.bf16.gmra.mxu0 %v7010
      %v7295 = vpop.f32.mrf.mxu0
      %v7296 = vadd.f32 0.0, %v7295
      %v7297 = vpop.f32.mrf.mxu0
      %v7298 = vadd.f32 0.0, %v7297
      %7299 = vmatmul.bf16.gmra.mxu0 %v7013
      %v7300 = vpop.f32.mrf.mxu0
      %v7301 = vadd.f32 0.0, %v7300
      %v7302 = vpop.f32.mrf.mxu0
      %v7303 = vadd.f32 0.0, %v7302
      %7304 = vmatmul.bf16.gmra.mxu0 %v7016
      %v7305 = vpop.f32.mrf.mxu0
      %v7306 = vadd.f32 0.0, %v7305
      %v7307 = vpop.f32.mrf.mxu0
      %v7308 = vadd.f32 0.0, %v7307
      %7309 = vmatmul.bf16.gmra.mxu0 %v7019
      %v7310 = vpop.f32.mrf.mxu0
      %v7311 = vadd.f32 0.0, %v7310
      %v7312 = vpop.f32.mrf.mxu0
      %v7313 = vadd.f32 0.0, %v7312
      %7314 = vmatmul.bf16.gmra.mxu0 %v7022
      %v7315 = vpop.f32.mrf.mxu0
      %v7316 = vadd.f32 0.0, %v7315
      %v7317 = vpop.f32.mrf.mxu0
      %v7318 = vadd.f32 0.0, %v7317
      %7319 = vmatmul.bf16.gmra.mxu0 %v7025
      %v7320 = vpop.f32.mrf.mxu0
      %v7321 = vadd.f32 0.0, %v7320
      %v7322 = vpop.f32.mrf.mxu0
      %v7323 = vadd.f32 0.0, %v7322
      %7324 = vmatmul.bf16.gmra.mxu0 %v7028
      %v7325 = vpop.f32.mrf.mxu0
      %v7326 = vadd.f32 0.0, %v7325
      %v7327 = vpop.f32.mrf.mxu0
      %v7328 = vadd.f32 0.0, %v7327
      %7329 = vmatmul.bf16.gmra.mxu0 %v7031
      %v7330 = vpop.f32.mrf.mxu0
      %v7331 = vadd.f32 0.0, %v7330
      %v7332 = vpop.f32.mrf.mxu0
      %v7333 = vadd.f32 0.0, %v7332
      %7334 = vmatmul.bf16.gmra.mxu0 %v7034
      %v7335 = vpop.f32.mrf.mxu0
      %v7336 = vadd.f32 0.0, %v7335
      %v7337 = vpop.f32.mrf.mxu0
      %v7338 = vadd.f32 0.0, %v7337
      %7339 = vmatmul.bf16.gmra.mxu0 %v7037
      %v7340 = vpop.f32.mrf.mxu0
      %v7341 = vadd.f32 0.0, %v7340
      %v7342 = vpop.f32.mrf.mxu0
      %v7343 = vadd.f32 0.0, %v7342
      %7344 = vmatmul.bf16.gmra.mxu0 %v7040
      %v7345 = vpop.f32.mrf.mxu0
      %v7346 = vadd.f32 0.0, %v7345
      %v7347 = vpop.f32.mrf.mxu0
      %v7348 = vadd.f32 0.0, %v7347
      %7349 = vmatmul.bf16.gmra.mxu0 %v7043
      %v7350 = vpop.f32.mrf.mxu0
      %v7351 = vadd.f32 0.0, %v7350
      %v7352 = vpop.f32.mrf.mxu0
      %v7353 = vadd.f32 0.0, %v7352
      %7354 = vmatmul.bf16.gmra.mxu0 %v7046
      %v7355 = vpop.f32.mrf.mxu0
      %v7356 = vadd.f32 0.0, %v7355
      %v7357 = vpop.f32.mrf.mxu0
      %v7358 = vadd.f32 0.0, %v7357
      %7359 = vmatmul.bf16.gmra.mxu0 %v7049
      %v7360 = vpop.f32.mrf.mxu0
      %v7361 = vadd.f32 0.0, %v7360
      %v7362 = vpop.f32.mrf.mxu0
      %v7363 = vadd.f32 0.0, %v7362
      %7364 = vmatmul.bf16.gmra.mxu0 %v7052
      %v7365 = vpop.f32.mrf.mxu0
      %v7366 = vadd.f32 0.0, %v7365
      %v7367 = vpop.f32.mrf.mxu0
      %v7368 = vadd.f32 0.0, %v7367
      %7369 = vmatmul.bf16.gmra.mxu0 %v7055
      %v7370 = vpop.f32.mrf.mxu0
      %v7371 = vadd.f32 0.0, %v7370
      %v7372 = vpop.f32.mrf.mxu0
      %v7373 = vadd.f32 0.0, %v7372
      %7374 = vmatmul.bf16.gmra.mxu0 %v7058
      %v7375 = vpop.f32.mrf.mxu0
      %v7376 = vadd.f32 0.0, %v7375
      %v7377 = vpop.f32.mrf.mxu0
      %v7378 = vadd.f32 0.0, %v7377
      %7379 = vmatmul.bf16.gmra.mxu0 %v7061
      %v7380 = vpop.f32.mrf.mxu0
      %v7381 = vadd.f32 0.0, %v7380
      %v7382 = vpop.f32.mrf.mxu0
      %v7383 = vadd.f32 0.0, %v7382
      %7384 = vmatmul.bf16.gmra.mxu0 %v7064
      %v7385 = vpop.f32.mrf.mxu0
      %v7386 = vadd.f32 0.0, %v7385
      %v7387 = vpop.f32.mrf.mxu0
      %v7388 = vadd.f32 0.0, %v7387
      %7389 = vmatmul.bf16.gmra.mxu0 %v7067
      %v7390 = vpop.f32.mrf.mxu0
      %v7391 = vadd.f32 0.0, %v7390
      %v7392 = vpop.f32.mrf.mxu0
      %v7393 = vadd.f32 0.0, %v7392
      %7394 = vmatmul.bf16.gmra.mxu0 %v7070
      %v7395 = vpop.f32.mrf.mxu0
      %v7396 = vadd.f32 0.0, %v7395
      %v7397 = vpop.f32.mrf.mxu0
      %v7398 = vadd.f32 0.0, %v7397
      %7399 = vmatmul.bf16.gmra.mxu0 %v7073
      %v7400 = vpop.f32.mrf.mxu0
      %v7401 = vadd.f32 0.0, %v7400
      %v7402 = vpop.f32.mrf.mxu0
      %v7403 = vadd.f32 0.0, %v7402
      %7404 = vmatmul.bf16.gmra.mxu0 %v7076
      %v7405 = vpop.f32.mrf.mxu0
      %v7406 = vadd.f32 0.0, %v7405
      %v7407 = vpop.f32.mrf.mxu0
      %v7408 = vadd.f32 0.0, %v7407
      %7409 = vdwg.mxu0
      %v7410 = vadd.f32 %v6564, %v7091
      %v7411 = vadd.f32 %v6565, %v7093
      %v7412 = vadd.f32 %v6566, %v7096
      %v7413 = vadd.f32 %v6567, %v7098
      %v7414 = vadd.f32 %v6568, %v7101
      %v7415 = vadd.f32 %v6569, %v7103
      %v7416 = vadd.f32 %v6570, %v7106
      %v7417 = vadd.f32 %v6571, %v7108
      %v7418 = vadd.f32 %v6572, %v7111
      %v7419 = vadd.f32 %v6573, %v7113
      %v7420 = vadd.f32 %v6574, %v7116
      %v7421 = vadd.f32 %v6575, %v7118
      %v7422 = vadd.f32 %v6576, %v7121
      %v7423 = vadd.f32 %v6577, %v7123
      %v7424 = vadd.f32 %v6578, %v7126
      %v7425 = vadd.f32 %v6579, %v7128
      %v7426 = vadd.f32 %v6580, %v7131
      %v7427 = vadd.f32 %v6581, %v7133
      %v7428 = vadd.f32 %v6582, %v7136
      %v7429 = vadd.f32 %v6583, %v7138
      %v7430 = vadd.f32 %v6584, %v7141
      %v7431 = vadd.f32 %v6585, %v7143
      %v7432 = vadd.f32 %v6586, %v7146
      %v7433 = vadd.f32 %v6587, %v7148
      %v7434 = vadd.f32 %v6588, %v7151
      %v7435 = vadd.f32 %v6589, %v7153
      %v7436 = vadd.f32 %v6590, %v7156
      %v7437 = vadd.f32 %v6591, %v7158
      %v7438 = vadd.f32 %v6592, %v7161
      %v7439 = vadd.f32 %v6593, %v7163
      %v7440 = vadd.f32 %v6594, %v7166
      %v7441 = vadd.f32 %v6595, %v7168
      %v7442 = vadd.f32 %v6596, %v7171
      %v7443 = vadd.f32 %v6597, %v7173
      %v7444 = vadd.f32 %v6598, %v7176
      %v7445 = vadd.f32 %v6599, %v7178
      %v7446 = vadd.f32 %v6600, %v7181
      %v7447 = vadd.f32 %v6601, %v7183
      %v7448 = vadd.f32 %v6602, %v7186
      %v7449 = vadd.f32 %v6603, %v7188
      %v7450 = vadd.f32 %v6604, %v7191
      %v7451 = vadd.f32 %v6605, %v7193
      %v7452 = vadd.f32 %v6606, %v7196
      %v7453 = vadd.f32 %v6607, %v7198
      %v7454 = vadd.f32 %v6608, %v7201
      %v7455 = vadd.f32 %v6609, %v7203
      %v7456 = vadd.f32 %v6610, %v7206
      %v7457 = vadd.f32 %v6611, %v7208
      %v7458 = vadd.f32 %v6612, %v7211
      %v7459 = vadd.f32 %v6613, %v7213
      %v7460 = vadd.f32 %v6614, %v7216
      %v7461 = vadd.f32 %v6615, %v7218
      %v7462 = vadd.f32 %v6616, %v7221
      %v7463 = vadd.f32 %v6617, %v7223
      %v7464 = vadd.f32 %v6618, %v7226
      %v7465 = vadd.f32 %v6619, %v7228
      %v7466 = vadd.f32 %v6620, %v7231
      %v7467 = vadd.f32 %v6621, %v7233
      %v7468 = vadd.f32 %v6622, %v7236
      %v7469 = vadd.f32 %v6623, %v7238
      %v7470 = vadd.f32 %v6624, %v7241
      %v7471 = vadd.f32 %v6625, %v7243
      %v7472 = vadd.f32 %v6626, %v7246
      %v7473 = vadd.f32 %v6627, %v7248
      %v7474 = vadd.f32 %v6628, %v7251
      %v7475 = vadd.f32 %v6629, %v7253
      %v7476 = vadd.f32 %v6630, %v7256
      %v7477 = vadd.f32 %v6631, %v7258
      %v7478 = vadd.f32 %v6632, %v7261
      %v7479 = vadd.f32 %v6633, %v7263
      %v7480 = vadd.f32 %v6634, %v7266
      %v7481 = vadd.f32 %v6635, %v7268
      %v7482 = vadd.f32 %v6636, %v7271
      %v7483 = vadd.f32 %v6637, %v7273
      %v7484 = vadd.f32 %v6638, %v7276
      %v7485 = vadd.f32 %v6639, %v7278
      %v7486 = vadd.f32 %v6640, %v7281
      %v7487 = vadd.f32 %v6641, %v7283
      %v7488 = vadd.f32 %v6642, %v7286
      %v7489 = vadd.f32 %v6643, %v7288
      %v7490 = vadd.f32 %v6644, %v7291
      %v7491 = vadd.f32 %v6645, %v7293
      %v7492 = vadd.f32 %v6646, %v7296
      %v7493 = vadd.f32 %v6647, %v7298
      %v7494 = vadd.f32 %v6648, %v7301
      %v7495 = vadd.f32 %v6649, %v7303
      %v7496 = vadd.f32 %v6650, %v7306
      %v7497 = vadd.f32 %v6651, %v7308
      %v7498 = vadd.f32 %v6652, %v7311
      %v7499 = vadd.f32 %v6653, %v7313
      %v7500 = vadd.f32 %v6654, %v7316
      %v7501 = vadd.f32 %v6655, %v7318
      %v7502 = vadd.f32 %v6656, %v7321
      %v7503 = vadd.f32 %v6657, %v7323
      %v7504 = vadd.f32 %v6658, %v7326
      %v7505 = vadd.f32 %v6659, %v7328
      %v7506 = vadd.f32 %v6660, %v7331
      %v7507 = vadd.f32 %v6661, %v7333
      %v7508 = vadd.f32 %v6662, %v7336
      %v7509 = vadd.f32 %v6663, %v7338
      %v7510 = vadd.f32 %v6664, %v7341
      %v7511 = vadd.f32 %v6665, %v7343
      %v7512 = vadd.f32 %v6666, %v7346
      %v7513 = vadd.f32 %v6667, %v7348
      %v7514 = vadd.f32 %v6668, %v7351
      %v7515 = vadd.f32 %v6669, %v7353
      %v7516 = vadd.f32 %v6670, %v7356
      %v7517 = vadd.f32 %v6671, %v7358
      %v7518 = vadd.f32 %v6672, %v7361
      %v7519 = vadd.f32 %v6673, %v7363
      %v7520 = vadd.f32 %v6674, %v7366
      %v7521 = vadd.f32 %v6675, %v7368
      %v7522 = vadd.f32 %v6676, %v7371
      %v7523 = vadd.f32 %v6677, %v7373
      %v7524 = vadd.f32 %v6678, %v7376
      %v7525 = vadd.f32 %v6679, %v7378
      %v7526 = vadd.f32 %v6680, %v7381
      %v7527 = vadd.f32 %v6681, %v7383
      %v7528 = vadd.f32 %v6682, %v7386
      %v7529 = vadd.f32 %v6683, %v7388
      %v7530 = vadd.f32 %v6684, %v7391
      %v7531 = vadd.f32 %v6685, %v7393
      %v7532 = vadd.f32 %v6686, %v7396
      %v7533 = vadd.f32 %v6687, %v7398
      %v7534 = vadd.f32 %v6688, %v7401
      %v7535 = vadd.f32 %v6689, %v7403
      %v7536 = vadd.f32 %v6690, %v7406
      %v7537 = vadd.f32 %v6691, %v7408
      %v7538 = vld [vmem:[%s5845 + $0x9] sm:$0xff]
      %v7539 = vld [vmem:[%s5845 + $0x11] sm:$0xff]
      %v7540 = vld [vmem:[%s5845 + $0x19] sm:$0xff]
      %v7541 = vld [vmem:[%s5845 + $0x21] sm:$0xff]
      %v7542 = vld [vmem:[%s5845 + $0x39] sm:$0xff]
      %v7543 = vld [vmem:[%s5845 + $0x41] sm:$0xff]
      %v7544 = vld [vmem:[%s5845 + $0x49] sm:$0xff]
      %v7545 = vld [vmem:[%s5845 + $0x51] sm:$0xff]
      %v7546 = vld [vmem:[%s5845 + $0x69] sm:$0xff]
      %v7547 = vld [vmem:[%s5845 + $0x71] sm:$0xff]
      %v7548 = vld [vmem:[%s5845 + $0x79] sm:$0xff]
      %v7549 = vld [vmem:[%s5845 + $0x81] sm:$0xff]
      %v7550 = vld [vmem:[%s5845 + $0x99] sm:$0xff]
      %v7551 = vld [vmem:[%s5845 + $0xa1] sm:$0xff]
      %v7552 = vld [vmem:[%s5845 + $0xa9] sm:$0xff]
      %v7553 = vld [vmem:[%s5845 + $0xb1] sm:$0xff]
      %v7554 = vld [vmem:[%s5845 + $0xc9] sm:$0xff]
      %v7555 = vld [vmem:[%s5845 + $0xd1] sm:$0xff]
      %v7556 = vld [vmem:[%s5845 + $0xd9] sm:$0xff]
      %v7557 = vld [vmem:[%s5845 + $0xe1] sm:$0xff]
      %v7558 = vld [vmem:[%s5845 + $0xf9] sm:$0xff]
      %v7559 = vld [vmem:[%s5845 + $0x101] sm:$0xff]
      %v7560 = vld [vmem:[%s5845 + $0x109] sm:$0xff]
      %v7561 = vld [vmem:[%s5845 + $0x111] sm:$0xff]
      %v7562 = vld [vmem:[%s5845 + $0x129] sm:$0xff]
      %v7563 = vld [vmem:[%s5845 + $0x131] sm:$0xff]
      %v7564 = vld [vmem:[%s5845 + $0x139] sm:$0xff]
      %v7565 = vld [vmem:[%s5845 + $0x141] sm:$0xff]
      %v7566 = vld [vmem:[%s5845 + $0x159] sm:$0xff]
      %v7567 = vld [vmem:[%s5845 + $0x161] sm:$0xff]
      %v7568 = vld [vmem:[%s5845 + $0x169] sm:$0xff]
      %v7569 = vld [vmem:[%s5845 + $0x171] sm:$0xff]
      %v7570 = vld [vmem:[%s5845 + $0x189] sm:$0xff]
      %v7571 = vld [vmem:[%s5845 + $0x191] sm:$0xff]
      %v7572 = vld [vmem:[%s5845 + $0x199] sm:$0xff]
      %v7573 = vld [vmem:[%s5845 + $0x1a1] sm:$0xff]
      %v7574 = vld [vmem:[%s5845 + $0x1b9] sm:$0xff]
      %v7575 = vld [vmem:[%s5845 + $0x1c1] sm:$0xff]
      %v7576 = vld [vmem:[%s5845 + $0x1c9] sm:$0xff]
      %v7577 = vld [vmem:[%s5845 + $0x1d1] sm:$0xff]
      %v7578 = vld [vmem:[%s5845 + $0x1e9] sm:$0xff]
      %v7579 = vld [vmem:[%s5845 + $0x1f1] sm:$0xff]
      %v7580 = vld [vmem:[%s5845 + $0x1f9] sm:$0xff]
      %v7581 = vld [vmem:[%s5845 + $0x201] sm:$0xff]
      %v7582 = vld [vmem:[%s5845 + $0x219] sm:$0xff]
      %v7583 = vld [vmem:[%s5845 + $0x221] sm:$0xff]
      %v7584 = vld [vmem:[%s5845 + $0x229] sm:$0xff]
      %v7585 = vld [vmem:[%s5845 + $0x231] sm:$0xff]
      %v7586 = vld [vmem:[%s5845 + $0x249] sm:$0xff]
      %v7587 = vld [vmem:[%s5845 + $0x251] sm:$0xff]
      %v7588 = vld [vmem:[%s5845 + $0x259] sm:$0xff]
      %v7589 = vld [vmem:[%s5845 + $0x261] sm:$0xff]
      %v7590 = vld [vmem:[%s5845 + $0x279] sm:$0xff]
      %v7591 = vld [vmem:[%s5845 + $0x281] sm:$0xff]
      %v7592 = vld [vmem:[%s5845 + $0x289] sm:$0xff]
      %v7593 = vld [vmem:[%s5845 + $0x291] sm:$0xff]
      %v7594 = vld [vmem:[%s5845 + $0x2a9] sm:$0xff]
      %v7595 = vld [vmem:[%s5845 + $0x2b1] sm:$0xff]
      %v7596 = vld [vmem:[%s5845 + $0x2b9] sm:$0xff]
      %v7597 = vld [vmem:[%s5845 + $0x2c1] sm:$0xff]
      %v7598 = vld [vmem:[%s5845 + $0x2d9] sm:$0xff]
      %v7599 = vld [vmem:[%s5845 + $0x2e1] sm:$0xff]
      %v7600 = vld [vmem:[%s5845 + $0x2e9] sm:$0xff]
      %v7601 = vld [vmem:[%s5845 + $0x2f1] sm:$0xff]
      %v7602 = vld [vmem:[%s5845 + $0x309] sm:$0xff]
      %v7603 = vld [vmem:[%s5845 + $0x311] sm:$0xff]
      %v7604 = vld [vmem:[%s5845 + $0x319] sm:$0xff]
      %v7605 = vld [vmem:[%s5845 + $0x321] sm:$0xff]
      %v7606 = vld [vmem:[%s5845 + $0x339] sm:$0xff]
      %v7607 = vld [vmem:[%s5845 + $0x341] sm:$0xff]
      %v7608 = vld [vmem:[%s5845 + $0x349] sm:$0xff]
      %v7609 = vld [vmem:[%s5845 + $0x351] sm:$0xff]
      %v7610 = vld [vmem:[%s5845 + $0x369] sm:$0xff]
      %v7611 = vld [vmem:[%s5845 + $0x371] sm:$0xff]
      %v7612 = vld [vmem:[%s5845 + $0x379] sm:$0xff]
      %v7613 = vld [vmem:[%s5845 + $0x381] sm:$0xff]
      %v7614 = vld [vmem:[%s5845 + $0x399] sm:$0xff]
      %v7615 = vld [vmem:[%s5845 + $0x3a1] sm:$0xff]
      %v7616 = vld [vmem:[%s5845 + $0x3a9] sm:$0xff]
      %v7617 = vld [vmem:[%s5845 + $0x3b1] sm:$0xff]
      %v7618 = vld [vmem:[%s5845 + $0x3c9] sm:$0xff]
      %v7619 = vld [vmem:[%s5845 + $0x3d1] sm:$0xff]
      %v7620 = vld [vmem:[%s5845 + $0x3d9] sm:$0xff]
      %v7621 = vld [vmem:[%s5845 + $0x3e1] sm:$0xff]
      %v7622 = vld [vmem:[%s5845 + $0x3f9] sm:$0xff]
      %v7623 = vld [vmem:[%s5845 + $0x401] sm:$0xff]
      %v7624 = vld [vmem:[%s5845 + $0x409] sm:$0xff]
      %v7625 = vld [vmem:[%s5845 + $0x411] sm:$0xff]
      %v7626 = vld [vmem:[%s5845 + $0x429] sm:$0xff]
      %v7627 = vld [vmem:[%s5845 + $0x431] sm:$0xff]
      %v7628 = vld [vmem:[%s5845 + $0x439] sm:$0xff]
      %v7629 = vld [vmem:[%s5845 + $0x441] sm:$0xff]
      %v7630 = vld [vmem:[%s5845 + $0x459] sm:$0xff]
      %v7631 = vld [vmem:[%s5845 + $0x461] sm:$0xff]
      %v7632 = vld [vmem:[%s5845 + $0x469] sm:$0xff]
      %v7633 = vld [vmem:[%s5845 + $0x471] sm:$0xff]
      %v7634 = vld [vmem:[%s5845 + $0x489] sm:$0xff]
      %v7635 = vld [vmem:[%s5845 + $0x491] sm:$0xff]
      %v7636 = vld [vmem:[%s5845 + $0x499] sm:$0xff]
      %v7637 = vld [vmem:[%s5845 + $0x4a1] sm:$0xff]
      %v7638 = vld [vmem:[%s5845 + $0x4b9] sm:$0xff]
      %v7639 = vld [vmem:[%s5845 + $0x4c1] sm:$0xff]
      %v7640 = vld [vmem:[%s5845 + $0x4c9] sm:$0xff]
      %v7641 = vld [vmem:[%s5845 + $0x4d1] sm:$0xff]
      %v7642 = vld [vmem:[%s5845 + $0x4e9] sm:$0xff]
      %v7643 = vld [vmem:[%s5845 + $0x4f1] sm:$0xff]
      %v7644 = vld [vmem:[%s5845 + $0x4f9] sm:$0xff]
      %v7645 = vld [vmem:[%s5845 + $0x501] sm:$0xff]
      %v7646 = vld [vmem:[%s5845 + $0x519] sm:$0xff]
      %v7647 = vld [vmem:[%s5845 + $0x521] sm:$0xff]
      %v7648 = vld [vmem:[%s5845 + $0x529] sm:$0xff]
      %v7649 = vld [vmem:[%s5845 + $0x531] sm:$0xff]
      %v7650 = vld [vmem:[%s5845 + $0x549] sm:$0xff]
      %v7651 = vld [vmem:[%s5845 + $0x551] sm:$0xff]
      %v7652 = vld [vmem:[%s5845 + $0x559] sm:$0xff]
      %v7653 = vld [vmem:[%s5845 + $0x561] sm:$0xff]
      %v7654 = vld [vmem:[%s5845 + $0x579] sm:$0xff]
      %v7655 = vld [vmem:[%s5845 + $0x581] sm:$0xff]
      %v7656 = vld [vmem:[%s5845 + $0x589] sm:$0xff]
      %v7657 = vld [vmem:[%s5845 + $0x591] sm:$0xff]
      %v7658 = vld [vmem:[%s5845 + $0x5a9] sm:$0xff]
      %v7659 = vld [vmem:[%s5845 + $0x5b1] sm:$0xff]
      %v7660 = vld [vmem:[%s5845 + $0x5b9] sm:$0xff]
      %v7661 = vld [vmem:[%s5845 + $0x5c1] sm:$0xff]
      %v7662 = vld [vmem:[%s5845 + $0x5d9] sm:$0xff]
      %v7663 = vld [vmem:[%s5845 + $0x5e1] sm:$0xff]
      %v7664 = vld [vmem:[%s5845 + $0x5e9] sm:$0xff]
      %v7665 = vld [vmem:[%s5845 + $0x5f1] sm:$0xff]
      %v7666 = vpack.c.bf16 %v7539, %v7538
      %v7667 = vpack.c.bf16 %v7541, %v7540
      %v7668 = vpack.c.bf16 %v7543, %v7542
      %v7669 = vpack.c.bf16 %v7545, %v7544
      %v7670 = vpack.c.bf16 %v7547, %v7546
      %v7671 = vpack.c.bf16 %v7549, %v7548
      %v7672 = vpack.c.bf16 %v7551, %v7550
      %v7673 = vpack.c.bf16 %v7553, %v7552
      %v7674 = vpack.c.bf16 %v7555, %v7554
      %v7675 = vpack.c.bf16 %v7557, %v7556
      %v7676 = vpack.c.bf16 %v7559, %v7558
      %v7677 = vpack.c.bf16 %v7561, %v7560
      %v7678 = vpack.c.bf16 %v7563, %v7562
      %v7679 = vpack.c.bf16 %v7565, %v7564
      %v7680 = vpack.c.bf16 %v7567, %v7566
      %v7681 = vpack.c.bf16 %v7569, %v7568
      %v7682 = vpack.c.bf16 %v7571, %v7570
      %v7683 = vpack.c.bf16 %v7573, %v7572
      %v7684 = vpack.c.bf16 %v7575, %v7574
      %v7685 = vpack.c.bf16 %v7577, %v7576
      %v7686 = vpack.c.bf16 %v7579, %v7578
      %v7687 = vpack.c.bf16 %v7581, %v7580
      %v7688 = vpack.c.bf16 %v7583, %v7582
      %v7689 = vpack.c.bf16 %v7585, %v7584
      %v7690 = vpack.c.bf16 %v7587, %v7586
      %v7691 = vpack.c.bf16 %v7589, %v7588
      %v7692 = vpack.c.bf16 %v7591, %v7590
      %v7693 = vpack.c.bf16 %v7593, %v7592
      %v7694 = vpack.c.bf16 %v7595, %v7594
      %v7695 = vpack.c.bf16 %v7597, %v7596
      %v7696 = vpack.c.bf16 %v7599, %v7598
      %v7697 = vpack.c.bf16 %v7601, %v7600
      %v7698 = vpack.c.bf16 %v7603, %v7602
      %v7699 = vpack.c.bf16 %v7605, %v7604
      %v7700 = vpack.c.bf16 %v7607, %v7606
      %v7701 = vpack.c.bf16 %v7609, %v7608
      %v7702 = vpack.c.bf16 %v7611, %v7610
      %v7703 = vpack.c.bf16 %v7613, %v7612
      %v7704 = vpack.c.bf16 %v7615, %v7614
      %v7705 = vpack.c.bf16 %v7617, %v7616
      %v7706 = vpack.c.bf16 %v7619, %v7618
      %v7707 = vpack.c.bf16 %v7621, %v7620
      %v7708 = vpack.c.bf16 %v7623, %v7622
      %v7709 = vpack.c.bf16 %v7625, %v7624
      %v7710 = vpack.c.bf16 %v7627, %v7626
      %v7711 = vpack.c.bf16 %v7629, %v7628
      %v7712 = vpack.c.bf16 %v7631, %v7630
      %v7713 = vpack.c.bf16 %v7633, %v7632
      %v7714 = vpack.c.bf16 %v7635, %v7634
      %v7715 = vpack.c.bf16 %v7637, %v7636
      %v7716 = vpack.c.bf16 %v7639, %v7638
      %v7717 = vpack.c.bf16 %v7641, %v7640
      %v7718 = vpack.c.bf16 %v7643, %v7642
      %v7719 = vpack.c.bf16 %v7645, %v7644
      %v7720 = vpack.c.bf16 %v7647, %v7646
      %v7721 = vpack.c.bf16 %v7649, %v7648
      %v7722 = vpack.c.bf16 %v7651, %v7650
      %v7723 = vpack.c.bf16 %v7653, %v7652
      %v7724 = vpack.c.bf16 %v7655, %v7654
      %v7725 = vpack.c.bf16 %v7657, %v7656
      %v7726 = vpack.c.bf16 %v7659, %v7658
      %v7727 = vpack.c.bf16 %v7661, %v7660
      %v7728 = vpack.c.bf16 %v7663, %v7662
      %v7729 = vpack.c.bf16 %v7665, %v7664
      %s7730 = scalar_lea.vmem %s1, 16
      %v7731 = vld [vmem:[%s7730] sm:$0x3]
      %v7733 = vsel %vm172, %v7666, 0
      %v7736 = vsel %vm172, %v7667, 0
      %v7739 = vsel %vm172, %v7668, 0
      %v7742 = vsel %vm172, %v7669, 0
      %v7745 = vsel %vm172, %v7670, 0
      %v7748 = vsel %vm172, %v7671, 0
      %v7751 = vsel %vm172, %v7672, 0
      %v7754 = vsel %vm172, %v7673, 0
      %v7757 = vsel %vm172, %v7674, 0
      %v7760 = vsel %vm172, %v7675, 0
      %v7763 = vsel %vm172, %v7676, 0
      %v7766 = vsel %vm172, %v7677, 0
      %v7769 = vsel %vm172, %v7678, 0
      %v7772 = vsel %vm172, %v7679, 0
      %v7775 = vsel %vm172, %v7680, 0
      %v7778 = vsel %vm172, %v7681, 0
      %v7781 = vsel %vm172, %v7682, 0
      %v7784 = vsel %vm172, %v7683, 0
      %v7787 = vsel %vm172, %v7684, 0
      %v7790 = vsel %vm172, %v7685, 0
      %v7793 = vsel %vm172, %v7686, 0
      %v7796 = vsel %vm172, %v7687, 0
      %v7799 = vsel %vm172, %v7688, 0
      %v7802 = vsel %vm172, %v7689, 0
      %v7805 = vsel %vm172, %v7690, 0
      %v7808 = vsel %vm172, %v7691, 0
      %v7811 = vsel %vm172, %v7692, 0
      %v7814 = vsel %vm172, %v7693, 0
      %v7817 = vsel %vm172, %v7694, 0
      %v7820 = vsel %vm172, %v7695, 0
      %v7823 = vsel %vm172, %v7696, 0
      %v7826 = vsel %vm172, %v7697, 0
      %v7829 = vsel %vm172, %v7698, 0
      %v7832 = vsel %vm172, %v7699, 0
      %v7835 = vsel %vm172, %v7700, 0
      %v7838 = vsel %vm172, %v7701, 0
      %v7841 = vsel %vm172, %v7702, 0
      %v7844 = vsel %vm172, %v7703, 0
      %v7847 = vsel %vm172, %v7704, 0
      %v7850 = vsel %vm172, %v7705, 0
      %v7853 = vsel %vm172, %v7706, 0
      %v7856 = vsel %vm172, %v7707, 0
      %v7859 = vsel %vm172, %v7708, 0
      %v7862 = vsel %vm172, %v7709, 0
      %v7865 = vsel %vm172, %v7710, 0
      %v7868 = vsel %vm172, %v7711, 0
      %v7871 = vsel %vm172, %v7712, 0
      %v7874 = vsel %vm172, %v7713, 0
      %v7877 = vsel %vm172, %v7714, 0
      %v7880 = vsel %vm172, %v7715, 0
      %v7883 = vsel %vm172, %v7716, 0
      %v7886 = vsel %vm172, %v7717, 0
      %v7889 = vsel %vm172, %v7718, 0
      %v7892 = vsel %vm172, %v7719, 0
      %v7895 = vsel %vm172, %v7720, 0
      %v7898 = vsel %vm172, %v7721, 0
      %v7901 = vsel %vm172, %v7722, 0
      %v7904 = vsel %vm172, %v7723, 0
      %v7907 = vsel %vm172, %v7724, 0
      %v7910 = vsel %vm172, %v7725, 0
      %v7913 = vsel %vm172, %v7726, 0
      %v7916 = vsel %vm172, %v7727, 0
      %v7919 = vsel %vm172, %v7728, 0
      %v7922 = vsel %vm172, %v7729, 0
      %v7925 = vand.u32 %v7731, %v1154
      %7927 = vmatpush.bf16.msra.mxu0 0
      %7928 = vmatpush.bf16.msra.mxu0 0
      %7929 = vmatpush.bf16.msra.mxu0 0
      %7930 = vmatpush.bf16.msra.mxu0 0
      %7931 = vmatpush.bf16.msra.mxu0 0
      %7932 = vmatpush.bf16.msra.mxu0 0
      %7933 = vmatpush.bf16.msra.mxu0 0
      %7934 = vmatpush.bf16.msra.mxu0 %v7925
      %7935 = vmatmul.bf16.gmra.mxu0 %v7733
      %v7936 = vpop.f32.mrf.mxu0
      %v7937 = vadd.f32 0.0, %v7936
      %v7938 = vpop.f32.mrf.mxu0
      %v7939 = vadd.f32 0.0, %v7938
      %7940 = vmatmul.bf16.gmra.mxu0 %v7736
      %v7941 = vpop.f32.mrf.mxu0
      %v7942 = vadd.f32 0.0, %v7941
      %v7943 = vpop.f32.mrf.mxu0
      %v7944 = vadd.f32 0.0, %v7943
      %7945 = vmatmul.bf16.gmra.mxu0 %v7739
      %v7946 = vpop.f32.mrf.mxu0
      %v7947 = vadd.f32 0.0, %v7946
      %v7948 = vpop.f32.mrf.mxu0
      %v7949 = vadd.f32 0.0, %v7948
      %7950 = vmatmul.bf16.gmra.mxu0 %v7742
      %v7951 = vpop.f32.mrf.mxu0
      %v7952 = vadd.f32 0.0, %v7951
      %v7953 = vpop.f32.mrf.mxu0
      %v7954 = vadd.f32 0.0, %v7953
      %7955 = vmatmul.bf16.gmra.mxu0 %v7745
      %v7956 = vpop.f32.mrf.mxu0
      %v7957 = vadd.f32 0.0, %v7956
      %v7958 = vpop.f32.mrf.mxu0
      %v7959 = vadd.f32 0.0, %v7958
      %7960 = vmatmul.bf16.gmra.mxu0 %v7748
      %v7961 = vpop.f32.mrf.mxu0
      %v7962 = vadd.f32 0.0, %v7961
      %v7963 = vpop.f32.mrf.mxu0
      %v7964 = vadd.f32 0.0, %v7963
      %7965 = vmatmul.bf16.gmra.mxu0 %v7751
      %v7966 = vpop.f32.mrf.mxu0
      %v7967 = vadd.f32 0.0, %v7966
      %v7968 = vpop.f32.mrf.mxu0
      %v7969 = vadd.f32 0.0, %v7968
      %7970 = vmatmul.bf16.gmra.mxu0 %v7754
      %v7971 = vpop.f32.mrf.mxu0
      %v7972 = vadd.f32 0.0, %v7971
      %v7973 = vpop.f32.mrf.mxu0
      %v7974 = vadd.f32 0.0, %v7973
      %7975 = vmatmul.bf16.gmra.mxu0 %v7757
      %v7976 = vpop.f32.mrf.mxu0
      %v7977 = vadd.f32 0.0, %v7976
      %v7978 = vpop.f32.mrf.mxu0
      %v7979 = vadd.f32 0.0, %v7978
      %7980 = vmatmul.bf16.gmra.mxu0 %v7760
      %v7981 = vpop.f32.mrf.mxu0
      %v7982 = vadd.f32 0.0, %v7981
      %v7983 = vpop.f32.mrf.mxu0
      %v7984 = vadd.f32 0.0, %v7983
      %7985 = vmatmul.bf16.gmra.mxu0 %v7763
      %v7986 = vpop.f32.mrf.mxu0
      %v7987 = vadd.f32 0.0, %v7986
      %v7988 = vpop.f32.mrf.mxu0
      %v7989 = vadd.f32 0.0, %v7988
      %7990 = vmatmul.bf16.gmra.mxu0 %v7766
      %v7991 = vpop.f32.mrf.mxu0
      %v7992 = vadd.f32 0.0, %v7991
      %v7993 = vpop.f32.mrf.mxu0
      %v7994 = vadd.f32 0.0, %v7993
      %7995 = vmatmul.bf16.gmra.mxu0 %v7769
      %v7996 = vpop.f32.mrf.mxu0
      %v7997 = vadd.f32 0.0, %v7996
      %v7998 = vpop.f32.mrf.mxu0
      %v7999 = vadd.f32 0.0, %v7998
      %8000 = vmatmul.bf16.gmra.mxu0 %v7772
      %v8001 = vpop.f32.mrf.mxu0
      %v8002 = vadd.f32 0.0, %v8001
      %v8003 = vpop.f32.mrf.mxu0
      %v8004 = vadd.f32 0.0, %v8003
      %8005 = vmatmul.bf16.gmra.mxu0 %v7775
      %v8006 = vpop.f32.mrf.mxu0
      %v8007 = vadd.f32 0.0, %v8006
      %v8008 = vpop.f32.mrf.mxu0
      %v8009 = vadd.f32 0.0, %v8008
      %8010 = vmatmul.bf16.gmra.mxu0 %v7778
      %v8011 = vpop.f32.mrf.mxu0
      %v8012 = vadd.f32 0.0, %v8011
      %v8013 = vpop.f32.mrf.mxu0
      %v8014 = vadd.f32 0.0, %v8013
      %8015 = vmatmul.bf16.gmra.mxu0 %v7781
      %v8016 = vpop.f32.mrf.mxu0
      %v8017 = vadd.f32 0.0, %v8016
      %v8018 = vpop.f32.mrf.mxu0
      %v8019 = vadd.f32 0.0, %v8018
      %8020 = vmatmul.bf16.gmra.mxu0 %v7784
      %v8021 = vpop.f32.mrf.mxu0
      %v8022 = vadd.f32 0.0, %v8021
      %v8023 = vpop.f32.mrf.mxu0
      %v8024 = vadd.f32 0.0, %v8023
      %8025 = vmatmul.bf16.gmra.mxu0 %v7787
      %v8026 = vpop.f32.mrf.mxu0
      %v8027 = vadd.f32 0.0, %v8026
      %v8028 = vpop.f32.mrf.mxu0
      %v8029 = vadd.f32 0.0, %v8028
      %8030 = vmatmul.bf16.gmra.mxu0 %v7790
      %v8031 = vpop.f32.mrf.mxu0
      %v8032 = vadd.f32 0.0, %v8031
      %v8033 = vpop.f32.mrf.mxu0
      %v8034 = vadd.f32 0.0, %v8033
      %8035 = vmatmul.bf16.gmra.mxu0 %v7793
      %v8036 = vpop.f32.mrf.mxu0
      %v8037 = vadd.f32 0.0, %v8036
      %v8038 = vpop.f32.mrf.mxu0
      %v8039 = vadd.f32 0.0, %v8038
      %8040 = vmatmul.bf16.gmra.mxu0 %v7796
      %v8041 = vpop.f32.mrf.mxu0
      %v8042 = vadd.f32 0.0, %v8041
      %v8043 = vpop.f32.mrf.mxu0
      %v8044 = vadd.f32 0.0, %v8043
      %8045 = vmatmul.bf16.gmra.mxu0 %v7799
      %v8046 = vpop.f32.mrf.mxu0
      %v8047 = vadd.f32 0.0, %v8046
      %v8048 = vpop.f32.mrf.mxu0
      %v8049 = vadd.f32 0.0, %v8048
      %8050 = vmatmul.bf16.gmra.mxu0 %v7802
      %v8051 = vpop.f32.mrf.mxu0
      %v8052 = vadd.f32 0.0, %v8051
      %v8053 = vpop.f32.mrf.mxu0
      %v8054 = vadd.f32 0.0, %v8053
      %8055 = vmatmul.bf16.gmra.mxu0 %v7805
      %v8056 = vpop.f32.mrf.mxu0
      %v8057 = vadd.f32 0.0, %v8056
      %v8058 = vpop.f32.mrf.mxu0
      %v8059 = vadd.f32 0.0, %v8058
      %8060 = vmatmul.bf16.gmra.mxu0 %v7808
      %v8061 = vpop.f32.mrf.mxu0
      %v8062 = vadd.f32 0.0, %v8061
      %v8063 = vpop.f32.mrf.mxu0
      %v8064 = vadd.f32 0.0, %v8063
      %8065 = vmatmul.bf16.gmra.mxu0 %v7811
      %v8066 = vpop.f32.mrf.mxu0
      %v8067 = vadd.f32 0.0, %v8066
      %v8068 = vpop.f32.mrf.mxu0
      %v8069 = vadd.f32 0.0, %v8068
      %8070 = vmatmul.bf16.gmra.mxu0 %v7814
      %v8071 = vpop.f32.mrf.mxu0
      %v8072 = vadd.f32 0.0, %v8071
      %v8073 = vpop.f32.mrf.mxu0
      %v8074 = vadd.f32 0.0, %v8073
      %8075 = vmatmul.bf16.gmra.mxu0 %v7817
      %v8076 = vpop.f32.mrf.mxu0
      %v8077 = vadd.f32 0.0, %v8076
      %v8078 = vpop.f32.mrf.mxu0
      %v8079 = vadd.f32 0.0, %v8078
      %8080 = vmatmul.bf16.gmra.mxu0 %v7820
      %v8081 = vpop.f32.mrf.mxu0
      %v8082 = vadd.f32 0.0, %v8081
      %v8083 = vpop.f32.mrf.mxu0
      %v8084 = vadd.f32 0.0, %v8083
      %8085 = vmatmul.bf16.gmra.mxu0 %v7823
      %v8086 = vpop.f32.mrf.mxu0
      %v8087 = vadd.f32 0.0, %v8086
      %v8088 = vpop.f32.mrf.mxu0
      %v8089 = vadd.f32 0.0, %v8088
      %8090 = vmatmul.bf16.gmra.mxu0 %v7826
      %v8091 = vpop.f32.mrf.mxu0
      %v8092 = vadd.f32 0.0, %v8091
      %v8093 = vpop.f32.mrf.mxu0
      %v8094 = vadd.f32 0.0, %v8093
      %8095 = vmatmul.bf16.gmra.mxu0 %v7829
      %v8096 = vpop.f32.mrf.mxu0
      %v8097 = vadd.f32 0.0, %v8096
      %v8098 = vpop.f32.mrf.mxu0
      %v8099 = vadd.f32 0.0, %v8098
      %8100 = vmatmul.bf16.gmra.mxu0 %v7832
      %v8101 = vpop.f32.mrf.mxu0
      %v8102 = vadd.f32 0.0, %v8101
      %v8103 = vpop.f32.mrf.mxu0
      %v8104 = vadd.f32 0.0, %v8103
      %8105 = vmatmul.bf16.gmra.mxu0 %v7835
      %v8106 = vpop.f32.mrf.mxu0
      %v8107 = vadd.f32 0.0, %v8106
      %v8108 = vpop.f32.mrf.mxu0
      %v8109 = vadd.f32 0.0, %v8108
      %8110 = vmatmul.bf16.gmra.mxu0 %v7838
      %v8111 = vpop.f32.mrf.mxu0
      %v8112 = vadd.f32 0.0, %v8111
      %v8113 = vpop.f32.mrf.mxu0
      %v8114 = vadd.f32 0.0, %v8113
      %8115 = vmatmul.bf16.gmra.mxu0 %v7841
      %v8116 = vpop.f32.mrf.mxu0
      %v8117 = vadd.f32 0.0, %v8116
      %v8118 = vpop.f32.mrf.mxu0
      %v8119 = vadd.f32 0.0, %v8118
      %8120 = vmatmul.bf16.gmra.mxu0 %v7844
      %v8121 = vpop.f32.mrf.mxu0
      %v8122 = vadd.f32 0.0, %v8121
      %v8123 = vpop.f32.mrf.mxu0
      %v8124 = vadd.f32 0.0, %v8123
      %8125 = vmatmul.bf16.gmra.mxu0 %v7847
      %v8126 = vpop.f32.mrf.mxu0
      %v8127 = vadd.f32 0.0, %v8126
      %v8128 = vpop.f32.mrf.mxu0
      %v8129 = vadd.f32 0.0, %v8128
      %8130 = vmatmul.bf16.gmra.mxu0 %v7850
      %v8131 = vpop.f32.mrf.mxu0
      %v8132 = vadd.f32 0.0, %v8131
      %v8133 = vpop.f32.mrf.mxu0
      %v8134 = vadd.f32 0.0, %v8133
      %8135 = vmatmul.bf16.gmra.mxu0 %v7853
      %v8136 = vpop.f32.mrf.mxu0
      %v8137 = vadd.f32 0.0, %v8136
      %v8138 = vpop.f32.mrf.mxu0
      %v8139 = vadd.f32 0.0, %v8138
      %8140 = vmatmul.bf16.gmra.mxu0 %v7856
      %v8141 = vpop.f32.mrf.mxu0
      %v8142 = vadd.f32 0.0, %v8141
      %v8143 = vpop.f32.mrf.mxu0
      %v8144 = vadd.f32 0.0, %v8143
      %8145 = vmatmul.bf16.gmra.mxu0 %v7859
      %v8146 = vpop.f32.mrf.mxu0
      %v8147 = vadd.f32 0.0, %v8146
      %v8148 = vpop.f32.mrf.mxu0
      %v8149 = vadd.f32 0.0, %v8148
      %8150 = vmatmul.bf16.gmra.mxu0 %v7862
      %v8151 = vpop.f32.mrf.mxu0
      %v8152 = vadd.f32 0.0, %v8151
      %v8153 = vpop.f32.mrf.mxu0
      %v8154 = vadd.f32 0.0, %v8153
      %8155 = vmatmul.bf16.gmra.mxu0 %v7865
      %v8156 = vpop.f32.mrf.mxu0
      %v8157 = vadd.f32 0.0, %v8156
      %v8158 = vpop.f32.mrf.mxu0
      %v8159 = vadd.f32 0.0, %v8158
      %8160 = vmatmul.bf16.gmra.mxu0 %v7868
      %v8161 = vpop.f32.mrf.mxu0
      %v8162 = vadd.f32 0.0, %v8161
      %v8163 = vpop.f32.mrf.mxu0
      %v8164 = vadd.f32 0.0, %v8163
      %8165 = vmatmul.bf16.gmra.mxu0 %v7871
      %v8166 = vpop.f32.mrf.mxu0
      %v8167 = vadd.f32 0.0, %v8166
      %v8168 = vpop.f32.mrf.mxu0
      %v8169 = vadd.f32 0.0, %v8168
      %8170 = vmatmul.bf16.gmra.mxu0 %v7874
      %v8171 = vpop.f32.mrf.mxu0
      %v8172 = vadd.f32 0.0, %v8171
      %v8173 = vpop.f32.mrf.mxu0
      %v8174 = vadd.f32 0.0, %v8173
      %8175 = vmatmul.bf16.gmra.mxu0 %v7877
      %v8176 = vpop.f32.mrf.mxu0
      %v8177 = vadd.f32 0.0, %v8176
      %v8178 = vpop.f32.mrf.mxu0
      %v8179 = vadd.f32 0.0, %v8178
      %8180 = vmatmul.bf16.gmra.mxu0 %v7880
      %v8181 = vpop.f32.mrf.mxu0
      %v8182 = vadd.f32 0.0, %v8181
      %v8183 = vpop.f32.mrf.mxu0
      %v8184 = vadd.f32 0.0, %v8183
      %8185 = vmatmul.bf16.gmra.mxu0 %v7883
      %v8186 = vpop.f32.mrf.mxu0
      %v8187 = vadd.f32 0.0, %v8186
      %v8188 = vpop.f32.mrf.mxu0
      %v8189 = vadd.f32 0.0, %v8188
      %8190 = vmatmul.bf16.gmra.mxu0 %v7886
      %v8191 = vpop.f32.mrf.mxu0
      %v8192 = vadd.f32 0.0, %v8191
      %v8193 = vpop.f32.mrf.mxu0
      %v8194 = vadd.f32 0.0, %v8193
      %8195 = vmatmul.bf16.gmra.mxu0 %v7889
      %v8196 = vpop.f32.mrf.mxu0
      %v8197 = vadd.f32 0.0, %v8196
      %v8198 = vpop.f32.mrf.mxu0
      %v8199 = vadd.f32 0.0, %v8198
      %8200 = vmatmul.bf16.gmra.mxu0 %v7892
      %v8201 = vpop.f32.mrf.mxu0
      %v8202 = vadd.f32 0.0, %v8201
      %v8203 = vpop.f32.mrf.mxu0
      %v8204 = vadd.f32 0.0, %v8203
      %8205 = vmatmul.bf16.gmra.mxu0 %v7895
      %v8206 = vpop.f32.mrf.mxu0
      %v8207 = vadd.f32 0.0, %v8206
      %v8208 = vpop.f32.mrf.mxu0
      %v8209 = vadd.f32 0.0, %v8208
      %8210 = vmatmul.bf16.gmra.mxu0 %v7898
      %v8211 = vpop.f32.mrf.mxu0
      %v8212 = vadd.f32 0.0, %v8211
      %v8213 = vpop.f32.mrf.mxu0
      %v8214 = vadd.f32 0.0, %v8213
      %8215 = vmatmul.bf16.gmra.mxu0 %v7901
      %v8216 = vpop.f32.mrf.mxu0
      %v8217 = vadd.f32 0.0, %v8216
      %v8218 = vpop.f32.mrf.mxu0
      %v8219 = vadd.f32 0.0, %v8218
      %8220 = vmatmul.bf16.gmra.mxu0 %v7904
      %v8221 = vpop.f32.mrf.mxu0
      %v8222 = vadd.f32 0.0, %v8221
      %v8223 = vpop.f32.mrf.mxu0
      %v8224 = vadd.f32 0.0, %v8223
      %8225 = vmatmul.bf16.gmra.mxu0 %v7907
      %v8226 = vpop.f32.mrf.mxu0
      %v8227 = vadd.f32 0.0, %v8226
      %v8228 = vpop.f32.mrf.mxu0
      %v8229 = vadd.f32 0.0, %v8228
      %8230 = vmatmul.bf16.gmra.mxu0 %v7910
      %v8231 = vpop.f32.mrf.mxu0
      %v8232 = vadd.f32 0.0, %v8231
      %v8233 = vpop.f32.mrf.mxu0
      %v8234 = vadd.f32 0.0, %v8233
      %8235 = vmatmul.bf16.gmra.mxu0 %v7913
      %v8236 = vpop.f32.mrf.mxu0
      %v8237 = vadd.f32 0.0, %v8236
      %v8238 = vpop.f32.mrf.mxu0
      %v8239 = vadd.f32 0.0, %v8238
      %8240 = vmatmul.bf16.gmra.mxu0 %v7916
      %v8241 = vpop.f32.mrf.mxu0
      %v8242 = vadd.f32 0.0, %v8241
      %v8243 = vpop.f32.mrf.mxu0
      %v8244 = vadd.f32 0.0, %v8243
      %8245 = vmatmul.bf16.gmra.mxu0 %v7919
      %v8246 = vpop.f32.mrf.mxu0
      %v8247 = vadd.f32 0.0, %v8246
      %v8248 = vpop.f32.mrf.mxu0
      %v8249 = vadd.f32 0.0, %v8248
      %8250 = vmatmul.bf16.gmra.mxu0 %v7922
      %v8251 = vpop.f32.mrf.mxu0
      %v8252 = vadd.f32 0.0, %v8251
      %v8253 = vpop.f32.mrf.mxu0
      %v8254 = vadd.f32 0.0, %v8253
      %8255 = vdwg.mxu0
      %v8256 = vadd.f32 %v7410, %v7937
      %v8257 = vadd.f32 %v7411, %v7939
      %v8258 = vadd.f32 %v7412, %v7942
      %v8259 = vadd.f32 %v7413, %v7944
      %v8260 = vadd.f32 %v7414, %v7947
      %v8261 = vadd.f32 %v7415, %v7949
      %v8262 = vadd.f32 %v7416, %v7952
      %v8263 = vadd.f32 %v7417, %v7954
      %v8264 = vadd.f32 %v7418, %v7957
      %v8265 = vadd.f32 %v7419, %v7959
      %v8266 = vadd.f32 %v7420, %v7962
      %v8267 = vadd.f32 %v7421, %v7964
      %v8268 = vadd.f32 %v7422, %v7967
      %v8269 = vadd.f32 %v7423, %v7969
      %v8270 = vadd.f32 %v7424, %v7972
      %v8271 = vadd.f32 %v7425, %v7974
      %v8272 = vadd.f32 %v7426, %v7977
      %v8273 = vadd.f32 %v7427, %v7979
      %v8274 = vadd.f32 %v7428, %v7982
      %v8275 = vadd.f32 %v7429, %v7984
      %v8276 = vadd.f32 %v7430, %v7987
      %v8277 = vadd.f32 %v7431, %v7989
      %v8278 = vadd.f32 %v7432, %v7992
      %v8279 = vadd.f32 %v7433, %v7994
      %v8280 = vadd.f32 %v7434, %v7997
      %v8281 = vadd.f32 %v7435, %v7999
      %v8282 = vadd.f32 %v7436, %v8002
      %v8283 = vadd.f32 %v7437, %v8004
      %v8284 = vadd.f32 %v7438, %v8007
      %v8285 = vadd.f32 %v7439, %v8009
      %v8286 = vadd.f32 %v7440, %v8012
      %v8287 = vadd.f32 %v7441, %v8014
      %v8288 = vadd.f32 %v7442, %v8017
      %v8289 = vadd.f32 %v7443, %v8019
      %v8290 = vadd.f32 %v7444, %v8022
      %v8291 = vadd.f32 %v7445, %v8024
      %v8292 = vadd.f32 %v7446, %v8027
      %v8293 = vadd.f32 %v7447, %v8029
      %v8294 = vadd.f32 %v7448, %v8032
      %v8295 = vadd.f32 %v7449, %v8034
      %v8296 = vadd.f32 %v7450, %v8037
      %v8297 = vadd.f32 %v7451, %v8039
      %v8298 = vadd.f32 %v7452, %v8042
      %v8299 = vadd.f32 %v7453, %v8044
      %v8300 = vadd.f32 %v7454, %v8047
      %v8301 = vadd.f32 %v7455, %v8049
      %v8302 = vadd.f32 %v7456, %v8052
      %v8303 = vadd.f32 %v7457, %v8054
      %v8304 = vadd.f32 %v7458, %v8057
      %v8305 = vadd.f32 %v7459, %v8059
      %v8306 = vadd.f32 %v7460, %v8062
      %v8307 = vadd.f32 %v7461, %v8064
      %v8308 = vadd.f32 %v7462, %v8067
      %v8309 = vadd.f32 %v7463, %v8069
      %v8310 = vadd.f32 %v7464, %v8072
      %v8311 = vadd.f32 %v7465, %v8074
      %v8312 = vadd.f32 %v7466, %v8077
      %v8313 = vadd.f32 %v7467, %v8079
      %v8314 = vadd.f32 %v7468, %v8082
      %v8315 = vadd.f32 %v7469, %v8084
      %v8316 = vadd.f32 %v7470, %v8087
      %v8317 = vadd.f32 %v7471, %v8089
      %v8318 = vadd.f32 %v7472, %v8092
      %v8319 = vadd.f32 %v7473, %v8094
      %v8320 = vadd.f32 %v7474, %v8097
      %v8321 = vadd.f32 %v7475, %v8099
      %v8322 = vadd.f32 %v7476, %v8102
      %v8323 = vadd.f32 %v7477, %v8104
      %v8324 = vadd.f32 %v7478, %v8107
      %v8325 = vadd.f32 %v7479, %v8109
      %v8326 = vadd.f32 %v7480, %v8112
      %v8327 = vadd.f32 %v7481, %v8114
      %v8328 = vadd.f32 %v7482, %v8117
      %v8329 = vadd.f32 %v7483, %v8119
      %v8330 = vadd.f32 %v7484, %v8122
      %v8331 = vadd.f32 %v7485, %v8124
      %v8332 = vadd.f32 %v7486, %v8127
      %v8333 = vadd.f32 %v7487, %v8129
      %v8334 = vadd.f32 %v7488, %v8132
      %v8335 = vadd.f32 %v7489, %v8134
      %v8336 = vadd.f32 %v7490, %v8137
      %v8337 = vadd.f32 %v7491, %v8139
      %v8338 = vadd.f32 %v7492, %v8142
      %v8339 = vadd.f32 %v7493, %v8144
      %v8340 = vadd.f32 %v7494, %v8147
      %v8341 = vadd.f32 %v7495, %v8149
      %v8342 = vadd.f32 %v7496, %v8152
      %v8343 = vadd.f32 %v7497, %v8154
      %v8344 = vadd.f32 %v7498, %v8157
      %v8345 = vadd.f32 %v7499, %v8159
      %v8346 = vadd.f32 %v7500, %v8162
      %v8347 = vadd.f32 %v7501, %v8164
      %v8348 = vadd.f32 %v7502, %v8167
      %v8349 = vadd.f32 %v7503, %v8169
      %v8350 = vadd.f32 %v7504, %v8172
      %v8351 = vadd.f32 %v7505, %v8174
      %v8352 = vadd.f32 %v7506, %v8177
      %v8353 = vadd.f32 %v7507, %v8179
      %v8354 = vadd.f32 %v7508, %v8182
      %v8355 = vadd.f32 %v7509, %v8184
      %v8356 = vadd.f32 %v7510, %v8187
      %v8357 = vadd.f32 %v7511, %v8189
      %v8358 = vadd.f32 %v7512, %v8192
      %v8359 = vadd.f32 %v7513, %v8194
      %v8360 = vadd.f32 %v7514, %v8197
      %v8361 = vadd.f32 %v7515, %v8199
      %v8362 = vadd.f32 %v7516, %v8202
      %v8363 = vadd.f32 %v7517, %v8204
      %v8364 = vadd.f32 %v7518, %v8207
      %v8365 = vadd.f32 %v7519, %v8209
      %v8366 = vadd.f32 %v7520, %v8212
      %v8367 = vadd.f32 %v7521, %v8214
      %v8368 = vadd.f32 %v7522, %v8217
      %v8369 = vadd.f32 %v7523, %v8219
      %v8370 = vadd.f32 %v7524, %v8222
      %v8371 = vadd.f32 %v7525, %v8224
      %v8372 = vadd.f32 %v7526, %v8227
      %v8373 = vadd.f32 %v7527, %v8229
      %v8374 = vadd.f32 %v7528, %v8232
      %v8375 = vadd.f32 %v7529, %v8234
      %v8376 = vadd.f32 %v7530, %v8237
      %v8377 = vadd.f32 %v7531, %v8239
      %v8378 = vadd.f32 %v7532, %v8242
      %v8379 = vadd.f32 %v7533, %v8244
      %v8380 = vadd.f32 %v7534, %v8247
      %v8381 = vadd.f32 %v7535, %v8249
      %v8382 = vadd.f32 %v7536, %v8252
      %v8383 = vadd.f32 %v7537, %v8254
      %v8384 = vpack.c.bf16 %v8256, %v8256
      %v8385 = vpack.c.bf16 %v8257, %v8257
      %v8386 = vpack.c.bf16 %v8258, %v8258
      %v8387 = vpack.c.bf16 %v8259, %v8259
      %v8388 = vpack.c.bf16 %v8260, %v8260
      %v8389 = vpack.c.bf16 %v8261, %v8261
      %v8390 = vpack.c.bf16 %v8262, %v8262
      %v8391 = vpack.c.bf16 %v8263, %v8263
      %v8392 = vpack.c.bf16 %v8264, %v8264
      %v8393 = vpack.c.bf16 %v8265, %v8265
      %v8394 = vpack.c.bf16 %v8266, %v8266
      %v8395 = vpack.c.bf16 %v8267, %v8267
      %v8396 = vpack.c.bf16 %v8268, %v8268
      %v8397 = vpack.c.bf16 %v8269, %v8269
      %v8398 = vpack.c.bf16 %v8270, %v8270
      %v8399 = vpack.c.bf16 %v8271, %v8271
      %v8400 = vpack.c.bf16 %v8272, %v8272
      %v8401 = vpack.c.bf16 %v8273, %v8273
      %v8402 = vpack.c.bf16 %v8274, %v8274
      %v8403 = vpack.c.bf16 %v8275, %v8275
      %v8404 = vpack.c.bf16 %v8276, %v8276
      %v8405 = vpack.c.bf16 %v8277, %v8277
      %v8406 = vpack.c.bf16 %v8278, %v8278
      %v8407 = vpack.c.bf16 %v8279, %v8279
      %v8408 = vpack.c.bf16 %v8280, %v8280
      %v8409 = vpack.c.bf16 %v8281, %v8281
      %v8410 = vpack.c.bf16 %v8282, %v8282
      %v8411 = vpack.c.bf16 %v8283, %v8283
      %v8412 = vpack.c.bf16 %v8284, %v8284
      %v8413 = vpack.c.bf16 %v8285, %v8285
      %v8414 = vpack.c.bf16 %v8286, %v8286
      %v8415 = vpack.c.bf16 %v8287, %v8287
      %v8416 = vpack.c.bf16 %v8288, %v8288
      %v8417 = vpack.c.bf16 %v8289, %v8289
      %v8418 = vpack.c.bf16 %v8290, %v8290
      %v8419 = vpack.c.bf16 %v8291, %v8291
      %v8420 = vpack.c.bf16 %v8292, %v8292
      %v8421 = vpack.c.bf16 %v8293, %v8293
      %v8422 = vpack.c.bf16 %v8294, %v8294
      %v8423 = vpack.c.bf16 %v8295, %v8295
      %v8424 = vpack.c.bf16 %v8296, %v8296
      %v8425 = vpack.c.bf16 %v8297, %v8297
      %v8426 = vpack.c.bf16 %v8298, %v8298
      %v8427 = vpack.c.bf16 %v8299, %v8299
      %v8428 = vpack.c.bf16 %v8300, %v8300
      %v8429 = vpack.c.bf16 %v8301, %v8301
      %v8430 = vpack.c.bf16 %v8302, %v8302
      %v8431 = vpack.c.bf16 %v8303, %v8303
      %v8432 = vpack.c.bf16 %v8304, %v8304
      %v8433 = vpack.c.bf16 %v8305, %v8305
      %v8434 = vpack.c.bf16 %v8306, %v8306
      %v8435 = vpack.c.bf16 %v8307, %v8307
      %v8436 = vpack.c.bf16 %v8308, %v8308
      %v8437 = vpack.c.bf16 %v8309, %v8309
      %v8438 = vpack.c.bf16 %v8310, %v8310
      %v8439 = vpack.c.bf16 %v8311, %v8311
      %v8440 = vpack.c.bf16 %v8312, %v8312
      %v8441 = vpack.c.bf16 %v8313, %v8313
      %v8442 = vpack.c.bf16 %v8314, %v8314
      %v8443 = vpack.c.bf16 %v8315, %v8315
      %v8444 = vpack.c.bf16 %v8316, %v8316
      %v8445 = vpack.c.bf16 %v8317, %v8317
      %v8446 = vpack.c.bf16 %v8318, %v8318
      %v8447 = vpack.c.bf16 %v8319, %v8319
      %v8448 = vpack.c.bf16 %v8320, %v8320
      %v8449 = vpack.c.bf16 %v8321, %v8321
      %v8450 = vpack.c.bf16 %v8322, %v8322
      %v8451 = vpack.c.bf16 %v8323, %v8323
      %v8452 = vpack.c.bf16 %v8324, %v8324
      %v8453 = vpack.c.bf16 %v8325, %v8325
      %v8454 = vpack.c.bf16 %v8326, %v8326
      %v8455 = vpack.c.bf16 %v8327, %v8327
      %v8456 = vpack.c.bf16 %v8328, %v8328
      %v8457 = vpack.c.bf16 %v8329, %v8329
      %v8458 = vpack.c.bf16 %v8330, %v8330
      %v8459 = vpack.c.bf16 %v8331, %v8331
      %v8460 = vpack.c.bf16 %v8332, %v8332
      %v8461 = vpack.c.bf16 %v8333, %v8333
      %v8462 = vpack.c.bf16 %v8334, %v8334
      %v8463 = vpack.c.bf16 %v8335, %v8335
      %v8464 = vpack.c.bf16 %v8336, %v8336
      %v8465 = vpack.c.bf16 %v8337, %v8337
      %v8466 = vpack.c.bf16 %v8338, %v8338
      %v8467 = vpack.c.bf16 %v8339, %v8339
      %v8468 = vpack.c.bf16 %v8340, %v8340
      %v8469 = vpack.c.bf16 %v8341, %v8341
      %v8470 = vpack.c.bf16 %v8342, %v8342
      %v8471 = vpack.c.bf16 %v8343, %v8343
      %v8472 = vpack.c.bf16 %v8344, %v8344
      %v8473 = vpack.c.bf16 %v8345, %v8345
      %v8474 = vpack.c.bf16 %v8346, %v8346
      %v8475 = vpack.c.bf16 %v8347, %v8347
      %v8476 = vpack.c.bf16 %v8348, %v8348
      %v8477 = vpack.c.bf16 %v8349, %v8349
      %v8478 = vpack.c.bf16 %v8350, %v8350
      %v8479 = vpack.c.bf16 %v8351, %v8351
      %v8480 = vpack.c.bf16 %v8352, %v8352
      %v8481 = vpack.c.bf16 %v8353, %v8353
      %v8482 = vpack.c.bf16 %v8354, %v8354
      %v8483 = vpack.c.bf16 %v8355, %v8355
      %v8484 = vpack.c.bf16 %v8356, %v8356
      %v8485 = vpack.c.bf16 %v8357, %v8357
      %v8486 = vpack.c.bf16 %v8358, %v8358
      %v8487 = vpack.c.bf16 %v8359, %v8359
      %v8488 = vpack.c.bf16 %v8360, %v8360
      %v8489 = vpack.c.bf16 %v8361, %v8361
      %v8490 = vpack.c.bf16 %v8362, %v8362
      %v8491 = vpack.c.bf16 %v8363, %v8363
      %v8492 = vpack.c.bf16 %v8364, %v8364
      %v8493 = vpack.c.bf16 %v8365, %v8365
      %v8494 = vpack.c.bf16 %v8366, %v8366
      %v8495 = vpack.c.bf16 %v8367, %v8367
      %v8496 = vpack.c.bf16 %v8368, %v8368
      %v8497 = vpack.c.bf16 %v8369, %v8369
      %v8498 = vpack.c.bf16 %v8370, %v8370
      %v8499 = vpack.c.bf16 %v8371, %v8371
      %v8500 = vpack.c.bf16 %v8372, %v8372
      %v8501 = vpack.c.bf16 %v8373, %v8373
      %v8502 = vpack.c.bf16 %v8374, %v8374
      %v8503 = vpack.c.bf16 %v8375, %v8375
      %v8504 = vpack.c.bf16 %v8376, %v8376
      %v8505 = vpack.c.bf16 %v8377, %v8377
      %v8506 = vpack.c.bf16 %v8378, %v8378
      %v8507 = vpack.c.bf16 %v8379, %v8379
      %v8508 = vpack.c.bf16 %v8380, %v8380
      %v8509 = vpack.c.bf16 %v8381, %v8381
      %v8510 = vpack.c.bf16 %v8382, %v8382
      %v8511 = vpack.c.bf16 %v8383, %v8383
      %vm8512 = vcmask 125952
      %8513 = vst.msk [vmem:[%s170] sm:$0xf] %vm8512, %v8384
      %8514 = vst.msk [vmem:[%s170 + $0x4] sm:$0xf] %vm8512, %v8385
      %8515 = vst.msk [vmem:[%s170 + $0x8] sm:$0xf] %vm8512, %v8386
      %8516 = vst.msk [vmem:[%s170 + $0xc] sm:$0xf] %vm8512, %v8387
      %8517 = vst.msk [vmem:[%s170 + $0x10] sm:$0xf] %vm8512, %v8388
      %8518 = vst.msk [vmem:[%s170 + $0x14] sm:$0xf] %vm8512, %v8389
      %8519 = vst.msk [vmem:[%s170 + $0x18] sm:$0xf] %vm8512, %v8390
      %8520 = vst.msk [vmem:[%s170 + $0x1c] sm:$0xf] %vm8512, %v8391
      %8521 = vst.msk [vmem:[%s170 + $0x20] sm:$0xf] %vm8512, %v8392
      %8522 = vst.msk [vmem:[%s170 + $0x24] sm:$0xf] %vm8512, %v8393
      %8523 = vst.msk [vmem:[%s170 + $0x28] sm:$0xf] %vm8512, %v8394
      %8524 = vst.msk [vmem:[%s170 + $0x2c] sm:$0xf] %vm8512, %v8395
      %8525 = vst.msk [vmem:[%s170 + $0x30] sm:$0xf] %vm8512, %v8396
      %8526 = vst.msk [vmem:[%s170 + $0x34] sm:$0xf] %vm8512, %v8397
      %8527 = vst.msk [vmem:[%s170 + $0x38] sm:$0xf] %vm8512, %v8398
      %8528 = vst.msk [vmem:[%s170 + $0x3c] sm:$0xf] %vm8512, %v8399
      %8529 = vst.msk [vmem:[%s170 + $0x40] sm:$0xf] %vm8512, %v8400
      %8530 = vst.msk [vmem:[%s170 + $0x44] sm:$0xf] %vm8512, %v8401
      %8531 = vst.msk [vmem:[%s170 + $0x48] sm:$0xf] %vm8512, %v8402
      %8532 = vst.msk [vmem:[%s170 + $0x4c] sm:$0xf] %vm8512, %v8403
      %8533 = vst.msk [vmem:[%s170 + $0x50] sm:$0xf] %vm8512, %v8404
      %8534 = vst.msk [vmem:[%s170 + $0x54] sm:$0xf] %vm8512, %v8405
      %8535 = vst.msk [vmem:[%s170 + $0x58] sm:$0xf] %vm8512, %v8406
      %8536 = vst.msk [vmem:[%s170 + $0x5c] sm:$0xf] %vm8512, %v8407
      %8537 = vst.msk [vmem:[%s170 + $0x60] sm:$0xf] %vm8512, %v8408
      %8538 = vst.msk [vmem:[%s170 + $0x64] sm:$0xf] %vm8512, %v8409
      %8539 = vst.msk [vmem:[%s170 + $0x68] sm:$0xf] %vm8512, %v8410
      %8540 = vst.msk [vmem:[%s170 + $0x6c] sm:$0xf] %vm8512, %v8411
      %8541 = vst.msk [vmem:[%s170 + $0x70] sm:$0xf] %vm8512, %v8412
      %8542 = vst.msk [vmem:[%s170 + $0x74] sm:$0xf] %vm8512, %v8413
      %8543 = vst.msk [vmem:[%s170 + $0x78] sm:$0xf] %vm8512, %v8414
      %8544 = vst.msk [vmem:[%s170 + $0x7c] sm:$0xf] %vm8512, %v8415
      %8545 = vst.msk [vmem:[%s170 + $0x80] sm:$0xf] %vm8512, %v8416
      %8546 = vst.msk [vmem:[%s170 + $0x84] sm:$0xf] %vm8512, %v8417
      %8547 = vst.msk [vmem:[%s170 + $0x88] sm:$0xf] %vm8512, %v8418
      %8548 = vst.msk [vmem:[%s170 + $0x8c] sm:$0xf] %vm8512, %v8419
      %8549 = vst.msk [vmem:[%s170 + $0x90] sm:$0xf] %vm8512, %v8420
      %8550 = vst.msk [vmem:[%s170 + $0x94] sm:$0xf] %vm8512, %v8421
      %8551 = vst.msk [vmem:[%s170 + $0x98] sm:$0xf] %vm8512, %v8422
      %8552 = vst.msk [vmem:[%s170 + $0x9c] sm:$0xf] %vm8512, %v8423
      %8553 = vst.msk [vmem:[%s170 + $0xa0] sm:$0xf] %vm8512, %v8424
      %8554 = vst.msk [vmem:[%s170 + $0xa4] sm:$0xf] %vm8512, %v8425
      %8555 = vst.msk [vmem:[%s170 + $0xa8] sm:$0xf] %vm8512, %v8426
      %8556 = vst.msk [vmem:[%s170 + $0xac] sm:$0xf] %vm8512, %v8427
      %8557 = vst.msk [vmem:[%s170 + $0xb0] sm:$0xf] %vm8512, %v8428
      %8558 = vst.msk [vmem:[%s170 + $0xb4] sm:$0xf] %vm8512, %v8429
      %8559 = vst.msk [vmem:[%s170 + $0xb8] sm:$0xf] %vm8512, %v8430
      %8560 = vst.msk [vmem:[%s170 + $0xbc] sm:$0xf] %vm8512, %v8431
      %8561 = vst.msk [vmem:[%s170 + $0xc0] sm:$0xf] %vm8512, %v8432
      %8562 = vst.msk [vmem:[%s170 + $0xc4] sm:$0xf] %vm8512, %v8433
      %8563 = vst.msk [vmem:[%s170 + $0xc8] sm:$0xf] %vm8512, %v8434
      %8564 = vst.msk [vmem:[%s170 + $0xcc] sm:$0xf] %vm8512, %v8435
      %8565 = vst.msk [vmem:[%s170 + $0xd0] sm:$0xf] %vm8512, %v8436
      %8566 = vst.msk [vmem:[%s170 + $0xd4] sm:$0xf] %vm8512, %v8437
      %8567 = vst.msk [vmem:[%s170 + $0xd8] sm:$0xf] %vm8512, %v8438
      %8568 = vst.msk [vmem:[%s170 + $0xdc] sm:$0xf] %vm8512, %v8439
      %8569 = vst.msk [vmem:[%s170 + $0xe0] sm:$0xf] %vm8512, %v8440
      %8570 = vst.msk [vmem:[%s170 + $0xe4] sm:$0xf] %vm8512, %v8441
      %8571 = vst.msk [vmem:[%s170 + $0xe8] sm:$0xf] %vm8512, %v8442
      %8572 = vst.msk [vmem:[%s170 + $0xec] sm:$0xf] %vm8512, %v8443
      %8573 = vst.msk [vmem:[%s170 + $0xf0] sm:$0xf] %vm8512, %v8444
      %8574 = vst.msk [vmem:[%s170 + $0xf4] sm:$0xf] %vm8512, %v8445
      %8575 = vst.msk [vmem:[%s170 + $0xf8] sm:$0xf] %vm8512, %v8446
      %8576 = vst.msk [vmem:[%s170 + $0xfc] sm:$0xf] %vm8512, %v8447
      %8577 = vst.msk [vmem:[%s170 + $0x100] sm:$0xf] %vm8512, %v8448
      %8578 = vst.msk [vmem:[%s170 + $0x104] sm:$0xf] %vm8512, %v8449
      %8579 = vst.msk [vmem:[%s170 + $0x108] sm:$0xf] %vm8512, %v8450
      %8580 = vst.msk [vmem:[%s170 + $0x10c] sm:$0xf] %vm8512, %v8451
      %8581 = vst.msk [vmem:[%s170 + $0x110] sm:$0xf] %vm8512, %v8452
      %8582 = vst.msk [vmem:[%s170 + $0x114] sm:$0xf] %vm8512, %v8453
      %8583 = vst.msk [vmem:[%s170 + $0x118] sm:$0xf] %vm8512, %v8454
      %8584 = vst.msk [vmem:[%s170 + $0x11c] sm:$0xf] %vm8512, %v8455
      %8585 = vst.msk [vmem:[%s170 + $0x120] sm:$0xf] %vm8512, %v8456
      %8586 = vst.msk [vmem:[%s170 + $0x124] sm:$0xf] %vm8512, %v8457
      %8587 = vst.msk [vmem:[%s170 + $0x128] sm:$0xf] %vm8512, %v8458
      %8588 = vst.msk [vmem:[%s170 + $0x12c] sm:$0xf] %vm8512, %v8459
      %8589 = vst.msk [vmem:[%s170 + $0x130] sm:$0xf] %vm8512, %v8460
      %8590 = vst.msk [vmem:[%s170 + $0x134] sm:$0xf] %vm8512, %v8461
      %8591 = vst.msk [vmem:[%s170 + $0x138] sm:$0xf] %vm8512, %v8462
      %8592 = vst.msk [vmem:[%s170 + $0x13c] sm:$0xf] %vm8512, %v8463
      %8593 = vst.msk [vmem:[%s170 + $0x140] sm:$0xf] %vm8512, %v8464
      %8594 = vst.msk [vmem:[%s170 + $0x144] sm:$0xf] %vm8512, %v8465
      %8595 = vst.msk [vmem:[%s170 + $0x148] sm:$0xf] %vm8512, %v8466
      %8596 = vst.msk [vmem:[%s170 + $0x14c] sm:$0xf] %vm8512, %v8467
      %8597 = vst.msk [vmem:[%s170 + $0x150] sm:$0xf] %vm8512, %v8468
      %8598 = vst.msk [vmem:[%s170 + $0x154] sm:$0xf] %vm8512, %v8469
      %8599 = vst.msk [vmem:[%s170 + $0x158] sm:$0xf] %vm8512, %v8470
      %8600 = vst.msk [vmem:[%s170 + $0x15c] sm:$0xf] %vm8512, %v8471
      %8601 = vst.msk [vmem:[%s170 + $0x160] sm:$0xf] %vm8512, %v8472
      %8602 = vst.msk [vmem:[%s170 + $0x164] sm:$0xf] %vm8512, %v8473
      %8603 = vst.msk [vmem:[%s170 + $0x168] sm:$0xf] %vm8512, %v8474
      %8604 = vst.msk [vmem:[%s170 + $0x16c] sm:$0xf] %vm8512, %v8475
      %8605 = vst.msk [vmem:[%s170 + $0x170] sm:$0xf] %vm8512, %v8476
      %8606 = vst.msk [vmem:[%s170 + $0x174] sm:$0xf] %vm8512, %v8477
      %8607 = vst.msk [vmem:[%s170 + $0x178] sm:$0xf] %vm8512, %v8478
      %8608 = vst.msk [vmem:[%s170 + $0x17c] sm:$0xf] %vm8512, %v8479
      %8609 = vst.msk [vmem:[%s170 + $0x180] sm:$0xf] %vm8512, %v8480
      %8610 = vst.msk [vmem:[%s170 + $0x184] sm:$0xf] %vm8512, %v8481
      %8611 = vst.msk [vmem:[%s170 + $0x188] sm:$0xf] %vm8512, %v8482
      %8612 = vst.msk [vmem:[%s170 + $0x18c] sm:$0xf] %vm8512, %v8483
      %8613 = vst.msk [vmem:[%s170 + $0x190] sm:$0xf] %vm8512, %v8484
      %8614 = vst.msk [vmem:[%s170 + $0x194] sm:$0xf] %vm8512, %v8485
      %8615 = vst.msk [vmem:[%s170 + $0x198] sm:$0xf] %vm8512, %v8486
      %8616 = vst.msk [vmem:[%s170 + $0x19c] sm:$0xf] %vm8512, %v8487
      %8617 = vst.msk [vmem:[%s170 + $0x1a0] sm:$0xf] %vm8512, %v8488
      %8618 = vst.msk [vmem:[%s170 + $0x1a4] sm:$0xf] %vm8512, %v8489
      %8619 = vst.msk [vmem:[%s170 + $0x1a8] sm:$0xf] %vm8512, %v8490
      %8620 = vst.msk [vmem:[%s170 + $0x1ac] sm:$0xf] %vm8512, %v8491
      %8621 = vst.msk [vmem:[%s170 + $0x1b0] sm:$0xf] %vm8512, %v8492
      %8622 = vst.msk [vmem:[%s170 + $0x1b4] sm:$0xf] %vm8512, %v8493
      %8623 = vst.msk [vmem:[%s170 + $0x1b8] sm:$0xf] %vm8512, %v8494
      %8624 = vst.msk [vmem:[%s170 + $0x1bc] sm:$0xf] %vm8512, %v8495
      %8625 = vst.msk [vmem:[%s170 + $0x1c0] sm:$0xf] %vm8512, %v8496
      %8626 = vst.msk [vmem:[%s170 + $0x1c4] sm:$0xf] %vm8512, %v8497
      %8627 = vst.msk [vmem:[%s170 + $0x1c8] sm:$0xf] %vm8512, %v8498
      %8628 = vst.msk [vmem:[%s170 + $0x1cc] sm:$0xf] %vm8512, %v8499
      %8629 = vst.msk [vmem:[%s170 + $0x1d0] sm:$0xf] %vm8512, %v8500
      %8630 = vst.msk [vmem:[%s170 + $0x1d4] sm:$0xf] %vm8512, %v8501
      %8631 = vst.msk [vmem:[%s170 + $0x1d8] sm:$0xf] %vm8512, %v8502
      %8632 = vst.msk [vmem:[%s170 + $0x1dc] sm:$0xf] %vm8512, %v8503
      %8633 = vst.msk [vmem:[%s170 + $0x1e0] sm:$0xf] %vm8512, %v8504
      %8634 = vst.msk [vmem:[%s170 + $0x1e4] sm:$0xf] %vm8512, %v8505
      %8635 = vst.msk [vmem:[%s170 + $0x1e8] sm:$0xf] %vm8512, %v8506
      %8636 = vst.msk [vmem:[%s170 + $0x1ec] sm:$0xf] %vm8512, %v8507
      %8637 = vst.msk [vmem:[%s170 + $0x1f0] sm:$0xf] %vm8512, %v8508
      %8638 = vst.msk [vmem:[%s170 + $0x1f4] sm:$0xf] %vm8512, %v8509
      %8639 = vst.msk [vmem:[%s170 + $0x1f8] sm:$0xf] %vm8512, %v8510
      %8640 = vst.msk [vmem:[%s170 + $0x1fc] sm:$0xf] %vm8512, %v8511
      %p8641 = scmp.lt.s32.totalorder %s14, 1
      %s8642 = scalar_select %p8641, %s14, 1
      %s8643 = smul.addr %s8642, 128
      %s8644 = smul.addr %s8643, 4
      %s8645 = scalar_lea.vmem %s3, %s8644
      // Predicated region
      $region33: #{tpu_custom_call.1} parent=31 // pred_check
        %p8646 = pneg %p100
      $region34: #{tpu_custom_call.1} parent=31 // pred_check_branch
        %8648 = sbr.rel (%p8646) target = $region36
      $region35: #{tpu_custom_call.1} parent=31 // pred_region
        _
      $region36: #{tpu_custom_call.1} parent=31 // pred_fallthru
        _
    $region32: #{tpu_custom_call.1} parent=5 // pred_fallthru
      _
    %p8649 = scmp.le.s32.totalorder 2, %s9
    // Predicated region
    $region37: #{tpu_custom_call.1} parent=5 // pred_check
      %p8650 = pneg %p8649
    $region38: #{tpu_custom_call.1} parent=5 // pred_check_branch
      %8652 = sbr.rel (%p8650) target = $region40
    $region39: #{tpu_custom_call.1} parent=5 // pred_region
      %s8653 = ssub.s32 %s9, 2
      // Predicated region
      $region41: #{tpu_custom_call.1} parent=39 // pred_check
        %p8654 = pneg %p106
      $region42: #{tpu_custom_call.1} parent=39 // pred_check_branch
        %8656 = sbr.rel (%p8654) target = $region44
      $region43: #{tpu_custom_call.1} parent=39 // pred_region
        %p8657 = scmp.lt.s32.totalorder %s15, 1
        %s8658 = scalar_select %p8657, %s15, 1
        %s8659 = smul.addr %s8658, 128
        %s8660 = smul.addr %s8659, 4
        %s8661 = scalar_lea.vmem %s3, %s8660
      $region44: #{tpu_custom_call.1} parent=39 // pred_fallthru
        _
    $region40: #{tpu_custom_call.1} parent=5 // pred_fallthru
      _
  $region6: #{tpu_custom_call.1} parent=0 // loop_footer
    %s13 = sadd.s32 1, %s9
  $region7: #{tpu_custom_call.1} parent=0 // loop_footer_branch
    %8 = sbr.rel target = $region3
  $region8: #{tpu_custom_call.1} parent=0 // loop_exit
    _

</llo_original>
